<compile_context>
chip_gen: v5e
topology: v5e:2x2
jax: 0.10.0
libtpu: 0.0.40
codegen_flags: <defaults>
</compile_context>

<pallas_src>
import jax
import jax.numpy as jnp
import numpy as np
from jax.experimental import pallas as pl
from jax.experimental.pallas import tpu as pltpu

CHANNELS = 3
IMAGE_SIZE = 32
IN_DIM = IMAGE_SIZE * IMAGE_SIZE * CHANNELS  # 3072
STARTING = 256                               # starting_size
LN_EPS = 1e-5                                # nn.LayerNorm default eps

_INV_SQRT2 = 0.7071067811865476


def _round_up(x, m):
    return ((x + m - 1) // m) * m


def _gelu(x):
    # exact GELU (PyTorch nn.GELU() default): 0.5 * x * (1 + erf(x / sqrt(2)))
    return 0.5 * x * (1.0 + jax.lax.erf(x * _INV_SQRT2))


def _encoder_kernel(x_ref,
                    w0_ref, b0_ref,          # input_transform
                    g1_ref, be1_ref,         # layernorm1 (gamma, beta)
                    w1_ref, b1_ref,          # d1 (lane-padded)
                    w2_ref, b2_ref,          # d2 (lane-padded)
                    w3_ref, b3_ref,          # d3 (lane-padded)
                    w4_ref, b4_ref,          # d4 (lane-padded in)
                    w5_ref, b5_ref,          # d5
                    o_ref):
    # bf16 operands into the MXU (no-op cast if input is already bf16),
    # f32 accumulation, f32 elementwise math.
    x = x_ref[...].astype(jnp.bfloat16)                                   # (bm, 3072)

    # out = input_transform(x)
    h = jnp.dot(x, w0_ref[...], preferred_element_type=jnp.float32) + b0_ref[...]
    # out = layernorm1(gelu(out))
    h = _gelu(h)
    mu = jnp.mean(h, axis=-1, keepdims=True)
    var = jnp.mean((h - mu) * (h - mu), axis=-1, keepdims=True)
    h = (h - mu) * jax.lax.rsqrt(var + LN_EPS)
    h = h * g1_ref[...] + be1_ref[...]
    # out = gelu(d1(out)); gelu(d2(out)); gelu(d3(out)); gelu(d4(out))
    h = _gelu(jnp.dot(h.astype(jnp.bfloat16), w1_ref[...],
                      preferred_element_type=jnp.float32) + b1_ref[...])
    h = _gelu(jnp.dot(h.astype(jnp.bfloat16), w2_ref[...],
                      preferred_element_type=jnp.float32) + b2_ref[...])
    h = _gelu(jnp.dot(h.astype(jnp.bfloat16), w3_ref[...],
                      preferred_element_type=jnp.float32) + b3_ref[...])
    h = _gelu(jnp.dot(h.astype(jnp.bfloat16), w4_ref[...],
                      preferred_element_type=jnp.float32) + b4_ref[...])
    # out = d5(out)
    o_ref[...] = (jnp.dot(h.astype(jnp.bfloat16), w5_ref[...],
                          preferred_element_type=jnp.float32)
                  + b5_ref[...]).astype(o_ref.dtype)


def init_params(key, starting=STARTING, channels=CHANNELS):
    """Deterministic parameter init (PyTorch-style uniform). Linear weights are
    stored as (in, out) so the kernel computes x @ W + b."""
    in_dim = IMAGE_SIZE * IMAGE_SIZE * channels
    dims = [
        (in_dim, starting),               # input_transform
        (starting, starting // 8),        # d1
        (starting // 8, starting // 16),  # d2
        (starting // 16, starting // 8),  # d3
        (starting // 8, starting),        # d4
        (starting, in_dim),               # d5
    ]
    keys = jax.random.split(key, 2 * len(dims) + 1)
    params = []
    fan_in, fan_out = dims[0]
    bound = 1.0 / np.sqrt(fan_in)
    w0 = jax.random.uniform(keys[0], (fan_in, fan_out), jnp.float32, -bound, bound)
    b0 = jax.random.uniform(keys[1], (1, fan_out), jnp.float32, -bound, bound)
    params += [w0, b0]
    # layernorm1 (gamma=1, beta=0, PyTorch default init)
    params += [jnp.ones((1, starting), jnp.float32), jnp.zeros((1, starting), jnp.float32)]
    for i, (fi, fo) in enumerate(dims[1:], start=1):
        bound = 1.0 / np.sqrt(fi)
        w = jax.random.uniform(keys[2 * i], (fi, fo), jnp.float32, -bound, bound)
        b = jax.random.uniform(keys[2 * i + 1], (1, fo), jnp.float32, -bound, bound)
        params += [w, b]
    return params


def _pad_to(a, shape):
    return jnp.pad(a, [(0, s - d) for d, s in zip(a.shape, shape)])


def prepare_params(params):
    """One-time weight prep: cast to bf16 and zero-pad the narrow middle layers
    to 128 lanes so intermediates are lane-dense. Padding is exact (padded bias
    lanes are 0, GELU(0)=0, padded weight rows are 0). Call ONCE and cache the
    result; do not call inside the forward path."""
    (w0, b0, g1, be1, w1, b1, w2, b2, w3, b3, w4, b4, w5, b5) = params
    s = w0.shape[1]
    p1 = _round_up(w1.shape[1], 128)   # starting//8  -> 128
    p2 = _round_up(w2.shape[1], 128)   # starting//16 -> 128
    bf = jnp.bfloat16
    prepped = (
        w0.astype(bf), b0.astype(jnp.float32),
        g1.astype(jnp.float32), be1.astype(jnp.float32),
        _pad_to(w1, (s, p1)).astype(bf),  _pad_to(b1, (1, p1)).astype(jnp.float32),
        _pad_to(w2, (p1, p2)).astype(bf), _pad_to(b2, (1, p2)).astype(jnp.float32),
        _pad_to(w3, (p2, p1)).astype(bf), _pad_to(b3, (1, p1)).astype(jnp.float32),
        _pad_to(w4, (p1, s)).astype(bf),  b4.astype(jnp.float32),
        w5.astype(bf), b5.astype(jnp.float32),
    )
    # Materialize now so each forward call reuses the same device buffers.
    return jax.tree_util.tree_map(jax.block_until_ready, prepped)


def _pick_bm(B, bm_max=256):
    """Batch tile: full (rounded) batch when small; otherwise aim for >= 4 grid
    steps so both v7x TensorCores get >= 2 pipelined steps each."""
    b8 = _round_up(max(B, 1), 8)
    if b8 <= bm_max:
        return b8
    return min(bm_max, max(8, _round_up(pl.cdiv(b8, 4), 8)))


def smaller_fc_encoder(x_nchw, prepped_params, *, bm=None, out_dtype=jnp.float32):
    """Forward pass of SmallerFCEncoder.

    x_nchw: (B, C, 32, 32), f32 or bf16 (bf16 halves the input DMA).
    prepped_params: result of prepare_params() (computed once, cached).
    bm: batch tile; None -> auto (>=4 grid steps for B > 256). For very large
        batches on v5e/v6e you may pass bm=512; keep bm<=256 on v7x (64 MiB VMEM/TC).
    out_dtype: jnp.float32 (default, matches PyTorch) or jnp.bfloat16 to cut
        output HBM traffic in half on this bandwidth-bound kernel.
    """
    B = x_nchw.shape[0]
    x = x_nchw.reshape(B, -1)                      # torch.flatten(input, start_dim=1)

    if bm is None:
        bm_eff = _pick_bm(B)
    else:
        bm_eff = min(_round_up(bm, 8), _round_up(B, 8))
    grid = (pl.cdiv(B, bm_eff),)                   # ragged last block handled by Pallas

    in_specs = [pl.BlockSpec((bm_eff, IN_DIM), lambda i: (i, 0))]
    # Constant index_map -> weights/biases fetched once and kept resident.
    in_specs += [pl.BlockSpec(p.shape, lambda i: (0, 0)) for p in prepped_params]
    out_spec = pl.BlockSpec((bm_eff, IN_DIM), lambda i: (i, 0))

    out_flat = pl.pallas_call(
        _encoder_kernel,
        out_shape=jax.ShapeDtypeStruct((B, IN_DIM), out_dtype),
        grid=grid,
        in_specs=in_specs,
        out_specs=out_spec,
        compiler_params=pltpu.CompilerParams(
            dimension_semantics=("parallel",),     # megacore-shardable on v7x
            vmem_limit_bytes=48 << 20,             # safe within v7x's 64 MiB/TC
        ),
    )(x, *prepped_params)

    return out_flat.reshape(B, CHANNELS, IMAGE_SIZE, IMAGE_SIZE)


def _reference(x_nchw, params):
    """Pure-JAX reference mirroring the kernel numerics (bf16 matmul operands,
    f32 accumulation)."""
    (w0, b0, g1, be1, w1, b1, w2, b2, w3, b3, w4, b4, w5, b5) = params

    def bdot(a, w):
        return jnp.dot(a.astype(jnp.bfloat16), w.astype(jnp.bfloat16),
                       preferred_element_type=jnp.float32)

    x = x_nchw.reshape(x_nchw.shape[0], -1).astype(jnp.float32)
    h = bdot(x, w0) + b0
    h = _gelu(h)
    mu = jnp.mean(h, axis=-1, keepdims=True)
    var = jnp.mean((h - mu) ** 2, axis=-1, keepdims=True)
    h = (h - mu) * jax.lax.rsqrt(var + LN_EPS) * g1 + be1
    h = _gelu(bdot(h, w1) + b1)
    h = _gelu(bdot(h, w2) + b2)
    h = _gelu(bdot(h, w3) + b3)
    h = _gelu(bdot(h, w4) + b4)
    h = bdot(h, w5) + b5
    return h.reshape(x_nchw.shape[0], CHANNELS, IMAGE_SIZE, IMAGE_SIZE)


if __name__ == "__main__":
    key = jax.random.PRNGKey(0)
    k_x, k_p = jax.random.split(key)

    # Small demo batch; deliberately not a multiple of the tile to exercise the
    # ragged last block + multi-step grid. Production: B=512+ with bm=None.
    B = 20
    x = jax.random.normal(k_x, (B, CHANNELS, IMAGE_SIZE, IMAGE_SIZE), jnp.float32)

    params = init_params(k_p, starting=STARTING, channels=CHANNELS)
    prepped = prepare_params(params)      # hoisted one-time prep (cache this)

    out = smaller_fc_encoder(x, prepped, bm=8)     # grid=(3,), ragged last block
    out = jax.block_until_ready(out)

    ref = jax.block_until_ready(_reference(x, params))
    np.testing.assert_allclose(np.asarray(out), np.asarray(ref), rtol=1e-2, atol=1e-2)
    assert out.shape == (B, CHANNELS, IMAGE_SIZE, IMAGE_SIZE)
    assert out.dtype == jnp.float32

    # Auto tile pick + bf16 output path (half the writeback traffic).
    out_bf16 = jax.block_until_ready(
        smaller_fc_encoder(x, prepped, out_dtype=jnp.bfloat16))
    np.testing.assert_allclose(np.asarray(out_bf16, dtype=np.float32),
                               np.asarray(ref), rtol=5e-2, atol=5e-2)

    print("KERNEL_OK")
</pallas_src>

<mosaic_0001>
module attributes {stable_mosaic.version = 11 : i64} {
  func.func @_encoder_kernel(%arg0: i32, %arg1: memref<8x3072xf32, #tpu.memory_space<vmem>>, %arg2: memref<3072x256xbf16, #tpu.memory_space<vmem>>, %arg3: memref<1x256xf32, #tpu.memory_space<vmem>>, %arg4: memref<1x256xf32, #tpu.memory_space<vmem>>, %arg5: memref<1x256xf32, #tpu.memory_space<vmem>>, %arg6: memref<256x128xbf16, #tpu.memory_space<vmem>>, %arg7: memref<1x128xf32, #tpu.memory_space<vmem>>, %arg8: memref<128x128xbf16, #tpu.memory_space<vmem>>, %arg9: memref<1x128xf32, #tpu.memory_space<vmem>>, %arg10: memref<128x128xbf16, #tpu.memory_space<vmem>>, %arg11: memref<1x128xf32, #tpu.memory_space<vmem>>, %arg12: memref<128x256xbf16, #tpu.memory_space<vmem>>, %arg13: memref<1x256xf32, #tpu.memory_space<vmem>>, %arg14: memref<256x3072xbf16, #tpu.memory_space<vmem>>, %arg15: memref<1x3072xf32, #tpu.memory_space<vmem>>, %arg16: memref<8x3072xf32, #tpu.memory_space<vmem>>) attributes {dimension_semantics = [#tpu.dimension_semantics<parallel>], iteration_bounds = array<i64: 3>, scalar_prefetch = 0 : i64, scratch_operands = 0 : i64, tpu.core_type = #tpu.core_type<tc>, window_params = [{transform_indices = @transform_0, window_bounds = array<i64: 8, 3072>}, {pipeline_mode = #tpu.pipeline_mode<synchronous>, transform_indices = @transform_1, window_bounds = array<i64: 3072, 256>}, {pipeline_mode = #tpu.pipeline_mode<synchronous>, transform_indices = @transform_2, window_bounds = array<i64: 1, 256>}, {pipeline_mode = #tpu.pipeline_mode<synchronous>, transform_indices = @transform_3, window_bounds = array<i64: 1, 256>}, {pipeline_mode = #tpu.pipeline_mode<synchronous>, transform_indices = @transform_4, window_bounds = array<i64: 1, 256>}, {pipeline_mode = #tpu.pipeline_mode<synchronous>, transform_indices = @transform_5, window_bounds = array<i64: 256, 128>}, {pipeline_mode = #tpu.pipeline_mode<synchronous>, transform_indices = @transform_6, window_bounds = array<i64: 1, 128>}, {pipeline_mode = #tpu.pipeline_mode<synchronous>, transform_indices = @transform_7, window_bounds = array<i64: 128, 128>}, {pipeline_mode = #tpu.pipeline_mode<synchronous>, transform_indices = @transform_8, window_bounds = array<i64: 1, 128>}, {pipeline_mode = #tpu.pipeline_mode<synchronous>, transform_indices = @transform_9, window_bounds = array<i64: 128, 128>}, {pipeline_mode = #tpu.pipeline_mode<synchronous>, transform_indices = @transform_10, window_bounds = array<i64: 1, 128>}, {pipeline_mode = #tpu.pipeline_mode<synchronous>, transform_indices = @transform_11, window_bounds = array<i64: 128, 256>}, {pipeline_mode = #tpu.pipeline_mode<synchronous>, transform_indices = @transform_12, window_bounds = array<i64: 1, 256>}, {pipeline_mode = #tpu.pipeline_mode<synchronous>, transform_indices = @transform_13, window_bounds = array<i64: 256, 3072>}, {pipeline_mode = #tpu.pipeline_mode<synchronous>, transform_indices = @transform_14, window_bounds = array<i64: 1, 3072>}, {transform_indices = @transform_15, window_bounds = array<i64: 8, 3072>}]} {
    %c0 = arith.constant 0 : index
    %c0_0 = arith.constant 0 : index
    %0 = vector.load %arg1[%c0, %c0_0] : memref<8x3072xf32, #tpu.memory_space<vmem>>, vector<8x3072xf32>
    %1 = arith.truncf %0 : vector<8x3072xf32> to vector<8x3072xbf16>
    %c0_1 = arith.constant 0 : index
    %c0_2 = arith.constant 0 : index
    %2 = vector.load %arg2[%c0_1, %c0_2] : memref<3072x256xbf16, #tpu.memory_space<vmem>>, vector<3072x256xbf16>
    %cst = arith.constant dense<0.000000e+00> : vector<8x256xf32>
    %3 = tpu.matmul %1, %2, %cst {dimension_numbers = #tpu.dot_dimension_numbers<[1], [0], [0], [1], [0, 0, 1, 1], [], []>} : vector<8x3072xbf16>, vector<3072x256xbf16>, vector<8x256xf32> -> vector<8x256xf32>
    %c0_3 = arith.constant 0 : index
    %c0_4 = arith.constant 0 : index
    %4 = vector.load %arg3[%c0_3, %c0_4] : memref<1x256xf32, #tpu.memory_space<vmem>>, vector<1x256xf32>
    %5 = vector.broadcast %4 : vector<1x256xf32> to vector<8x256xf32>
    %6 = arith.addf %3, %5 : vector<8x256xf32>
    %cst_5 = arith.constant 5.000000e-01 : f32
    %7 = vector.broadcast %cst_5 : f32 to vector<8x256xf32>
    %8 = arith.mulf %7, %6 : vector<8x256xf32>
    %cst_6 = arith.constant 0.707106769 : f32
    %9 = vector.broadcast %cst_6 : f32 to vector<8x256xf32>
    %10 = arith.mulf %6, %9 : vector<8x256xf32>
    %11 = math.erf %10 : vector<8x256xf32>
    %cst_7 = arith.constant 1.000000e+00 : f32
    %12 = vector.broadcast %cst_7 : f32 to vector<8x256xf32>
    %13 = arith.addf %12, %11 : vector<8x256xf32>
    %14 = arith.mulf %8, %13 : vector<8x256xf32>
    %cst_8 = arith.constant dense<0.000000e+00> : vector<8xf32>
    %15 = vector.multi_reduction <add>, %14, %cst_8 [1] : vector<8x256xf32> to vector<8xf32>
    %16 = vector.shape_cast %15 : vector<8xf32> to vector<8x1xf32>
    %cst_9 = arith.constant 2.560000e+02 : f32
    %17 = vector.broadcast %cst_9 : f32 to vector<8x1xf32>
    %18 = arith.divf %16, %17 : vector<8x1xf32>
    %19 = vector.broadcast %18 : vector<8x1xf32> to vector<8x256xf32>
    %20 = arith.subf %14, %19 : vector<8x256xf32>
    %21 = vector.broadcast %18 : vector<8x1xf32> to vector<8x256xf32>
    %22 = arith.subf %14, %21 : vector<8x256xf32>
    %23 = arith.mulf %20, %22 : vector<8x256xf32>
    %cst_10 = arith.constant dense<0.000000e+00> : vector<8xf32>
    %24 = vector.multi_reduction <add>, %23, %cst_10 [1] : vector<8x256xf32> to vector<8xf32>
    %25 = vector.shape_cast %24 : vector<8xf32> to vector<8x1xf32>
    %cst_11 = arith.constant 2.560000e+02 : f32
    %26 = vector.broadcast %cst_11 : f32 to vector<8x1xf32>
    %27 = arith.divf %25, %26 : vector<8x1xf32>
    %28 = vector.broadcast %18 : vector<8x1xf32> to vector<8x256xf32>
    %29 = arith.subf %14, %28 : vector<8x256xf32>
    %cst_12 = arith.constant 9.99999974E-6 : f32
    %30 = vector.broadcast %cst_12 : f32 to vector<8x1xf32>
    %31 = arith.addf %27, %30 : vector<8x1xf32>
    %32 = math.rsqrt %31 : vector<8x1xf32>
    %33 = vector.broadcast %32 : vector<8x1xf32> to vector<8x256xf32>
    %34 = arith.mulf %29, %33 : vector<8x256xf32>
    %c0_13 = arith.constant 0 : index
    %c0_14 = arith.constant 0 : index
    %35 = vector.load %arg4[%c0_13, %c0_14] : memref<1x256xf32, #tpu.memory_space<vmem>>, vector<1x256xf32>
    %36 = vector.broadcast %35 : vector<1x256xf32> to vector<8x256xf32>
    %37 = arith.mulf %34, %36 : vector<8x256xf32>
    %c0_15 = arith.constant 0 : index
    %c0_16 = arith.constant 0 : index
    %38 = vector.load %arg5[%c0_15, %c0_16] : memref<1x256xf32, #tpu.memory_space<vmem>>, vector<1x256xf32>
    %39 = vector.broadcast %38 : vector<1x256xf32> to vector<8x256xf32>
    %40 = arith.addf %37, %39 : vector<8x256xf32>
    %41 = arith.truncf %40 : vector<8x256xf32> to vector<8x256xbf16>
    %c0_17 = arith.constant 0 : index
    %c0_18 = arith.constant 0 : index
    %42 = vector.load %arg6[%c0_17, %c0_18] : memref<256x128xbf16, #tpu.memory_space<vmem>>, vector<256x128xbf16>
    %cst_19 = arith.constant dense<0.000000e+00> : vector<8x128xf32>
    %43 = tpu.matmul %41, %42, %cst_19 {dimension_numbers = #tpu.dot_dimension_numbers<[1], [0], [0], [1], [0, 0, 1, 1], [], []>} : vector<8x256xbf16>, vector<256x128xbf16>, vector<8x128xf32> -> vector<8x128xf32>
    %c0_20 = arith.constant 0 : index
    %c0_21 = arith.constant 0 : index
    %44 = vector.load %arg7[%c0_20, %c0_21] : memref<1x128xf32, #tpu.memory_space<vmem>>, vector<1x128xf32>
    %45 = vector.broadcast %44 : vector<1x128xf32> to vector<8x128xf32>
    %46 = arith.addf %43, %45 : vector<8x128xf32>
    %cst_22 = arith.constant 5.000000e-01 : f32
    %47 = vector.broadcast %cst_22 : f32 to vector<8x128xf32>
    %48 = arith.mulf %47, %46 : vector<8x128xf32>
    %cst_23 = arith.constant 0.707106769 : f32
    %49 = vector.broadcast %cst_23 : f32 to vector<8x128xf32>
    %50 = arith.mulf %46, %49 : vector<8x128xf32>
    %51 = math.erf %50 : vector<8x128xf32>
    %cst_24 = arith.constant 1.000000e+00 : f32
    %52 = vector.broadcast %cst_24 : f32 to vector<8x128xf32>
    %53 = arith.addf %52, %51 : vector<8x128xf32>
    %54 = arith.mulf %48, %53 : vector<8x128xf32>
    %55 = arith.truncf %54 : vector<8x128xf32> to vector<8x128xbf16>
    %c0_25 = arith.constant 0 : index
    %c0_26 = arith.constant 0 : index
    %56 = vector.load %arg8[%c0_25, %c0_26] : memref<128x128xbf16, #tpu.memory_space<vmem>>, vector<128x128xbf16>
    %cst_27 = arith.constant dense<0.000000e+00> : vector<8x128xf32>
    %57 = tpu.matmul %55, %56, %cst_27 {dimension_numbers = #tpu.dot_dimension_numbers<[1], [0], [0], [1], [0, 0, 1, 1], [], []>} : vector<8x128xbf16>, vector<128x128xbf16>, vector<8x128xf32> -> vector<8x128xf32>
    %c0_28 = arith.constant 0 : index
    %c0_29 = arith.constant 0 : index
    %58 = vector.load %arg9[%c0_28, %c0_29] : memref<1x128xf32, #tpu.memory_space<vmem>>, vector<1x128xf32>
    %59 = vector.broadcast %58 : vector<1x128xf32> to vector<8x128xf32>
    %60 = arith.addf %57, %59 : vector<8x128xf32>
    %cst_30 = arith.constant 5.000000e-01 : f32
    %61 = vector.broadcast %cst_30 : f32 to vector<8x128xf32>
    %62 = arith.mulf %61, %60 : vector<8x128xf32>
    %cst_31 = arith.constant 0.707106769 : f32
    %63 = vector.broadcast %cst_31 : f32 to vector<8x128xf32>
    %64 = arith.mulf %60, %63 : vector<8x128xf32>
    %65 = math.erf %64 : vector<8x128xf32>
    %cst_32 = arith.constant 1.000000e+00 : f32
    %66 = vector.broadcast %cst_32 : f32 to vector<8x128xf32>
    %67 = arith.addf %66, %65 : vector<8x128xf32>
    %68 = arith.mulf %62, %67 : vector<8x128xf32>
    %69 = arith.truncf %68 : vector<8x128xf32> to vector<8x128xbf16>
    %c0_33 = arith.constant 0 : index
    %c0_34 = arith.constant 0 : index
    %70 = vector.load %arg10[%c0_33, %c0_34] : memref<128x128xbf16, #tpu.memory_space<vmem>>, vector<128x128xbf16>
    %cst_35 = arith.constant dense<0.000000e+00> : vector<8x128xf32>
    %71 = tpu.matmul %69, %70, %cst_35 {dimension_numbers = #tpu.dot_dimension_numbers<[1], [0], [0], [1], [0, 0, 1, 1], [], []>} : vector<8x128xbf16>, vector<128x128xbf16>, vector<8x128xf32> -> vector<8x128xf32>
    %c0_36 = arith.constant 0 : index
    %c0_37 = arith.constant 0 : index
    %72 = vector.load %arg11[%c0_36, %c0_37] : memref<1x128xf32, #tpu.memory_space<vmem>>, vector<1x128xf32>
    %73 = vector.broadcast %72 : vector<1x128xf32> to vector<8x128xf32>
    %74 = arith.addf %71, %73 : vector<8x128xf32>
    %cst_38 = arith.constant 5.000000e-01 : f32
    %75 = vector.broadcast %cst_38 : f32 to vector<8x128xf32>
    %76 = arith.mulf %75, %74 : vector<8x128xf32>
    %cst_39 = arith.constant 0.707106769 : f32
    %77 = vector.broadcast %cst_39 : f32 to vector<8x128xf32>
    %78 = arith.mulf %74, %77 : vector<8x128xf32>
    %79 = math.erf %78 : vector<8x128xf32>
    %cst_40 = arith.constant 1.000000e+00 : f32
    %80 = vector.broadcast %cst_40 : f32 to vector<8x128xf32>
    %81 = arith.addf %80, %79 : vector<8x128xf32>
    %82 = arith.mulf %76, %81 : vector<8x128xf32>
    %83 = arith.truncf %82 : vector<8x128xf32> to vector<8x128xbf16>
    %c0_41 = arith.constant 0 : index
    %c0_42 = arith.constant 0 : index
    %84 = vector.load %arg12[%c0_41, %c0_42] : memref<128x256xbf16, #tpu.memory_space<vmem>>, vector<128x256xbf16>
    %cst_43 = arith.constant dense<0.000000e+00> : vector<8x256xf32>
    %85 = tpu.matmul %83, %84, %cst_43 {dimension_numbers = #tpu.dot_dimension_numbers<[1], [0], [0], [1], [0, 0, 1, 1], [], []>} : vector<8x128xbf16>, vector<128x256xbf16>, vector<8x256xf32> -> vector<8x256xf32>
    %c0_44 = arith.constant 0 : index
    %c0_45 = arith.constant 0 : index
    %86 = vector.load %arg13[%c0_44, %c0_45] : memref<1x256xf32, #tpu.memory_space<vmem>>, vector<1x256xf32>
    %87 = vector.broadcast %86 : vector<1x256xf32> to vector<8x256xf32>
    %88 = arith.addf %85, %87 : vector<8x256xf32>
    %cst_46 = arith.constant 5.000000e-01 : f32
    %89 = vector.broadcast %cst_46 : f32 to vector<8x256xf32>
    %90 = arith.mulf %89, %88 : vector<8x256xf32>
    %cst_47 = arith.constant 0.707106769 : f32
    %91 = vector.broadcast %cst_47 : f32 to vector<8x256xf32>
    %92 = arith.mulf %88, %91 : vector<8x256xf32>
    %93 = math.erf %92 : vector<8x256xf32>
    %cst_48 = arith.constant 1.000000e+00 : f32
    %94 = vector.broadcast %cst_48 : f32 to vector<8x256xf32>
    %95 = arith.addf %94, %93 : vector<8x256xf32>
    %96 = arith.mulf %90, %95 : vector<8x256xf32>
    %97 = arith.truncf %96 : vector<8x256xf32> to vector<8x256xbf16>
    %c0_49 = arith.constant 0 : index
    %c0_50 = arith.constant 0 : index
    %98 = vector.load %arg14[%c0_49, %c0_50] : memref<256x3072xbf16, #tpu.memory_space<vmem>>, vector<256x3072xbf16>
    %cst_51 = arith.constant dense<0.000000e+00> : vector<8x3072xf32>
    %99 = tpu.matmul %97, %98, %cst_51 {dimension_numbers = #tpu.dot_dimension_numbers<[1], [0], [0], [1], [0, 0, 1, 1], [], []>} : vector<8x256xbf16>, vector<256x3072xbf16>, vector<8x3072xf32> -> vector<8x3072xf32>
    %c0_52 = arith.constant 0 : index
    %c0_53 = arith.constant 0 : index
    %100 = vector.load %arg15[%c0_52, %c0_53] : memref<1x3072xf32, #tpu.memory_space<vmem>>, vector<1x3072xf32>
    %101 = vector.broadcast %100 : vector<1x3072xf32> to vector<8x3072xf32>
    %102 = arith.addf %99, %101 : vector<8x3072xf32>
    %c0_54 = arith.constant 0 : index
    %c0_55 = arith.constant 0 : index
    %103 = vector.load %arg16[%c0_54, %c0_55] : memref<8x3072xf32, #tpu.memory_space<vmem>>, vector<8x3072xf32>
    tpu.vector_store %arg16[%c0_54, %c0_55], %102 {strides = array<i32>} : memref<8x3072xf32, #tpu.memory_space<vmem>>, vector<8x3072xf32>,
    return
  }
  func.func @transform_0(%arg0: i32) -> (i32, i32) {
    %c0_i32 = arith.constant 0 : i32
    %c0_i32_0 = arith.constant 0 : i32
    return %arg0, %c0_i32 : i32, i32
  }
  func.func @transform_1(%arg0: i32) -> (i32, i32) {
    %c0_i32 = arith.constant 0 : i32
    %c0_i32_0 = arith.constant 0 : i32
    %c0_i32_1 = arith.constant 0 : i32
    return %c0_i32, %c0_i32_0 : i32, i32
  }
  func.func @transform_2(%arg0: i32) -> (i32, i32) {
    %c0_i32 = arith.constant 0 : i32
    %c0_i32_0 = arith.constant 0 : i32
    %c0_i32_1 = arith.constant 0 : i32
    return %c0_i32, %c0_i32_0 : i32, i32
  }
  func.func @transform_3(%arg0: i32) -> (i32, i32) {
    %c0_i32 = arith.constant 0 : i32
    %c0_i32_0 = arith.constant 0 : i32
    %c0_i32_1 = arith.constant 0 : i32
    return %c0_i32, %c0_i32_0 : i32, i32
  }
  func.func @transform_4(%arg0: i32) -> (i32, i32) {
    %c0_i32 = arith.constant 0 : i32
    %c0_i32_0 = arith.constant 0 : i32
    %c0_i32_1 = arith.constant 0 : i32
    return %c0_i32, %c0_i32_0 : i32, i32
  }
  func.func @transform_5(%arg0: i32) -> (i32, i32) {
    %c0_i32 = arith.constant 0 : i32
    %c0_i32_0 = arith.constant 0 : i32
    %c0_i32_1 = arith.constant 0 : i32
    return %c0_i32, %c0_i32_0 : i32, i32
  }
  func.func @transform_6(%arg0: i32) -> (i32, i32) {
    %c0_i32 = arith.constant 0 : i32
    %c0_i32_0 = arith.constant 0 : i32
    %c0_i32_1 = arith.constant 0 : i32
    return %c0_i32, %c0_i32_0 : i32, i32
  }
  func.func @transform_7(%arg0: i32) -> (i32, i32) {
    %c0_i32 = arith.constant 0 : i32
    %c0_i32_0 = arith.constant 0 : i32
    %c0_i32_1 = arith.constant 0 : i32
    return %c0_i32, %c0_i32_0 : i32, i32
  }
  func.func @transform_8(%arg0: i32) -> (i32, i32) {
    %c0_i32 = arith.constant 0 : i32
    %c0_i32_0 = arith.constant 0 : i32
    %c0_i32_1 = arith.constant 0 : i32
    return %c0_i32, %c0_i32_0 : i32, i32
  }
  func.func @transform_9(%arg0: i32) -> (i32, i32) {
    %c0_i32 = arith.constant 0 : i32
    %c0_i32_0 = arith.constant 0 : i32
    %c0_i32_1 = arith.constant 0 : i32
    return %c0_i32, %c0_i32_0 : i32, i32
  }
  func.func @transform_10(%arg0: i32) -> (i32, i32) {
    %c0_i32 = arith.constant 0 : i32
    %c0_i32_0 = arith.constant 0 : i32
    %c0_i32_1 = arith.constant 0 : i32
    return %c0_i32, %c0_i32_0 : i32, i32
  }
  func.func @transform_11(%arg0: i32) -> (i32, i32) {
    %c0_i32 = arith.constant 0 : i32
    %c0_i32_0 = arith.constant 0 : i32
    %c0_i32_1 = arith.constant 0 : i32
    return %c0_i32, %c0_i32_0 : i32, i32
  }
  func.func @transform_12(%arg0: i32) -> (i32, i32) {
    %c0_i32 = arith.constant 0 : i32
    %c0_i32_0 = arith.constant 0 : i32
    %c0_i32_1 = arith.constant 0 : i32
    return %c0_i32, %c0_i32_0 : i32, i32
  }
  func.func @transform_13(%arg0: i32) -> (i32, i32) {
    %c0_i32 = arith.constant 0 : i32
    %c0_i32_0 = arith.constant 0 : i32
    %c0_i32_1 = arith.constant 0 : i32
    return %c0_i32, %c0_i32_0 : i32, i32
  }
  func.func @transform_14(%arg0: i32) -> (i32, i32) {
    %c0_i32 = arith.constant 0 : i32
    %c0_i32_0 = arith.constant 0 : i32
    %c0_i32_1 = arith.constant 0 : i32
    return %c0_i32, %c0_i32_0 : i32, i32
  }
  func.func @transform_15(%arg0: i32) -> (i32, i32) {
    %c0_i32 = arith.constant 0 : i32
    %c0_i32_0 = arith.constant 0 : i32
    return %arg0, %c0_i32 : i32, i32
  }
}

</mosaic_0001>

<llo_original>
// kernel: tpu_custom_call.1
$region0: #{tpu_custom_call.1}
  #allocation0 [shape = 'u32[]', space=smem, size = 0x4, offset = 0x4, fixed_abs, tag = 'smem constant byte address 0x4 - core index']
  #allocation1 [shape = 'u32[72,128]{1,0:T(1,128)}', space=vmem, size = 0x9000, scoped, tag = 'internal scratch']
  %s0 = inlined_call_operand.hbm [shape: f32[20,3072], index: 0, kind: input, shape index: {}]
  %s1 = inlined_call_operand.hbm [shape: bf16[3072,256], index: 1, kind: input, shape index: {}]
  %s2 = inlined_call_operand.hbm [shape: f32[1,256], index: 2, kind: input, shape index: {}]
  %s3 = inlined_call_operand.hbm [shape: f32[1,256], index: 3, kind: input, shape index: {}]
  %s4 = inlined_call_operand.hbm [shape: f32[1,256], index: 4, kind: input, shape index: {}]
  %s5 = inlined_call_operand.hbm [shape: bf16[256,128], index: 5, kind: input, shape index: {}]
  %s6 = inlined_call_operand.hbm [shape: f32[1,128], index: 6, kind: input, shape index: {}]
  %s7 = inlined_call_operand.hbm [shape: bf16[128,128], index: 7, kind: input, shape index: {}]
  %s8 = inlined_call_operand.hbm [shape: f32[1,128], index: 8, kind: input, shape index: {}]
  %s9 = inlined_call_operand.hbm [shape: bf16[128,128], index: 9, kind: input, shape index: {}]
  %s10 = inlined_call_operand.hbm [shape: f32[1,128], index: 10, kind: input, shape index: {}]
  %s11 = inlined_call_operand.hbm [shape: bf16[128,256], index: 11, kind: input, shape index: {}]
  %s12 = inlined_call_operand.hbm [shape: f32[1,256], index: 12, kind: input, shape index: {}]
  %s13 = inlined_call_operand.hbm [shape: bf16[256,3072], index: 13, kind: input, shape index: {}]
  %s14 = inlined_call_operand.hbm [shape: f32[1,3072], index: 14, kind: input, shape index: {}]
  %s15 = inlined_call_operand.hbm [shape: f32[20,3072], index: 15, kind: output, shape index: {}]
  %s16 = sld [smem:[#allocation0]]
  $region153: #{tpu_custom_call.1} parent=0
    _
  %s18 = ssub.s32 1, %s16
  %s19 = scalar_select 0, %s18, %s16
  $region1: #{tpu_custom_call.1} parent=0
    #allocation2 [shape = 'u8[196608]{0}', space=vmem, size = 0x30000, scoped, tag = 'input window, operand 0']
    #allocation3 [shape = 's32[2]{0}', space=sflag, size = 0x8, scoped, tag = 'scoped memory for tpu_custom_call.1']
    #allocation4 [shape = 's32[2]{0}', space=sflag, size = 0x8, scoped, tag = 'scoped memory for tpu_custom_call.1']
    #allocation5 [shape = 'u8[1572864]{0}', space=vmem, size = 0x180000, scoped, tag = 'input window, operand 1, single buffered']
    #allocation6 [shape = 's32[1]{0}', space=sflag, size = 0x4, scoped, tag = 'scoped memory for tpu_custom_call.1']
    #allocation7 [shape = 'u8[1024]{0}', space=vmem, size = 0x400, scoped, tag = 'input window, operand 2, single buffered']
    #allocation8 [shape = 'u8[1024]{0}', space=vmem, size = 0x400, scoped, tag = 'input window, operand 3, single buffered']
    #allocation9 [shape = 's32[1]{0}', space=sflag, size = 0x4, scoped, tag = 'scoped memory for tpu_custom_call.1']
    #allocation10 [shape = 'u8[1024]{0}', space=vmem, size = 0x400, scoped, tag = 'input window, operand 4, single buffered']
    #allocation11 [shape = 'u8[65536]{0}', space=vmem, size = 0x10000, scoped, tag = 'input window, operand 5, single buffered']
    #allocation12 [shape = 's32[1]{0}', space=sflag, size = 0x4, scoped, tag = 'scoped memory for tpu_custom_call.1']
    #allocation13 [shape = 'u8[512]{0}', space=vmem, size = 0x400, scoped, tag = 'input window, operand 6, single buffered']
    #allocation14 [shape = 'u8[32768]{0}', space=vmem, size = 0x8000, scoped, tag = 'input window, operand 7, single buffered']
    #allocation15 [shape = 's32[1]{0}', space=sflag, size = 0x4, scoped, tag = 'scoped memory for tpu_custom_call.1']
    #allocation16 [shape = 'u8[512]{0}', space=vmem, size = 0x400, scoped, tag = 'input window, operand 8, single buffered']
    #allocation17 [shape = 'u8[32768]{0}', space=vmem, size = 0x8000, scoped, tag = 'input window, operand 9, single buffered']
    #allocation18 [shape = 's32[1]{0}', space=sflag, size = 0x4, scoped, tag = 'scoped memory for tpu_custom_call.1']
    #allocation19 [shape = 'u8[512]{0}', space=vmem, size = 0x400, scoped, tag = 'input window, operand 10, single buffered']
    #allocation20 [shape = 'u8[65536]{0}', space=vmem, size = 0x10000, scoped, tag = 'input window, operand 11, single buffered']
    #allocation21 [shape = 's32[1]{0}', space=sflag, size = 0x4, scoped, tag = 'scoped memory for tpu_custom_call.1']
    #allocation22 [shape = 'u8[1024]{0}', space=vmem, size = 0x400, scoped, tag = 'input window, operand 12, single buffered']
    #allocation23 [shape = 'u8[1572864]{0}', space=vmem, size = 0x180000, scoped, tag = 'input window, operand 13, single buffered']
    #allocation24 [shape = 's32[1]{0}', space=sflag, size = 0x4, scoped, tag = 'scoped memory for tpu_custom_call.1']
    #allocation25 [shape = 'u8[12288]{0}', space=vmem, size = 0x3000, scoped, tag = 'input window, operand 14, single buffered']
    #allocation26 [shape = 'u8[196608]{0}', space=vmem, size = 0x30000, scoped, tag = 'output window, operand 0']
    %20 = vsyncpa [#allocation3], 0
    %s21 = scalar_lea.sflag [#allocation3], 1
    %22 = vsyncpa %s21, 0
    %23 = vsyncpa [#allocation6], 0
    %24 = vsyncpa [#allocation9], 0
    %25 = vsyncpa [#allocation12], 0
    %26 = vsyncpa [#allocation15], 0
    %27 = vsyncpa [#allocation18], 0
    %28 = vsyncpa [#allocation21], 0
    %29 = vsyncpa [#allocation24], 0
    %30 = vsyncpa [#allocation4], 0
    %s31 = scalar_lea.sflag [#allocation4], 1
    %32 = vsyncpa %s31, 0
    loop: start=0, step=1, limit=5
    $region2: #{tpu_custom_call.1} parent=1 // loop_pre_header
      _
    $region3: #{tpu_custom_call.1} parent=1 // loop_header
      %s34 = sphi 0, %s38
      %p35 = scmp.ge.s32.totalorder %s34, 5
      %s44 = sphi 0, %s46
      %s47 = sphi 0, %s44
      %s48 = sphi 0, %s47
      %s64 = sphi 0, %s48
      %s68 = sphi 0, %s68
      %s70 = sphi 0, %s68
      %s71 = sphi 0, %s70
      %s85 = sphi 0, %s71
      %s89 = sphi 0, %s89
      %s91 = sphi 0, %s89
      %s92 = sphi 0, %s91
      %s106 = sphi 0, %s92
      %s110 = sphi 0, %s110
      %s112 = sphi 0, %s110
      %s113 = sphi 0, %s112
      %s127 = sphi 0, %s113
      %s131 = sphi 0, %s131
      %s133 = sphi 0, %s131
      %s134 = sphi 0, %s133
      %s148 = sphi 0, %s134
      %s152 = sphi 0, %s152
      %s154 = sphi 0, %s152
      %s155 = sphi 0, %s154
      %s169 = sphi 0, %s155
      %s173 = sphi 0, %s173
      %s175 = sphi 0, %s173
      %s176 = sphi 0, %s175
      %s190 = sphi 0, %s176
      %s194 = sphi 0, %s194
      %s196 = sphi 0, %s194
      %s197 = sphi 0, %s196
      %s211 = sphi 0, %s197
      %s215 = sphi 0, %s215
      %s217 = sphi 0, %s215
      %s218 = sphi 0, %s217
      %s232 = sphi 0, %s218
      %s236 = sphi 0, %s236
      %s238 = sphi 0, %s236
      %s239 = sphi 0, %s238
      %s253 = sphi 0, %s239
      %s257 = sphi 0, %s257
      %s259 = sphi 0, %s257
      %s260 = sphi 0, %s259
      %s274 = sphi 0, %s260
      %s278 = sphi 0, %s278
      %s280 = sphi 0, %s278
      %s281 = sphi 0, %s280
      %s295 = sphi 0, %s281
      %s299 = sphi 0, %s299
      %s301 = sphi 0, %s299
      %s302 = sphi 0, %s301
      %s316 = sphi 0, %s302
      %s320 = sphi 0, %s320
      %s322 = sphi 0, %s320
      %s323 = sphi 0, %s322
      %s337 = sphi 0, %s323
      %s341 = sphi 0, %s341
      %s343 = sphi 0, %s341
      %s344 = sphi 0, %s343
      %s358 = sphi 0, %s344
      %s364 = sphi 0, %s366
      %s367 = sphi 0, %s364
      %s368 = sphi 0, %s367
      %s384 = sphi 0, %s368
    $region4: #{tpu_custom_call.1} parent=1 // loop_header_branch
      %37 = sbr.rel (%p35) target = $region8
    $region5: #{tpu_custom_call.1} parent=1 // loop_body
      %s39 = ssub.s32 %s34, 1
      %s40 = ssub.s32 %s34, 2
      %s41 = sadd.s32 %s34, 1
      %s42 = ssub.s32 %s34, %s41
      %p43 = scmp.eq.s32.totalorder %s42, 0
      %s45 = sadd.s32 %s44, 1
      %s46 = scalar_select %p43, %s44, %s45
      %p49 = pneg %p43
      %p50 = scmp.eq.s32.totalorder %s34, 2
      %p51 = por %p49, %p50
      %p52 = scmp.ne.s32.totalorder %s44, %s47
      %p53 = scmp.eq.s32.totalorder %s34, 0
      %p54 = por %p52, %p53
      %p55 = scmp.ne.s32.totalorder %s44, %s47
      %p56 = scmp.eq.s32.totalorder %s39, 2
      %p57 = por %p55, %p56
      %p58 = scmp.ne.s32.totalorder %s47, %s48
      %p59 = scmp.eq.s32.totalorder %s39, 0
      %p60 = por %p58, %p59
      %p61 = scmp.ne.s32.totalorder %s47, %s48
      %p62 = scmp.eq.s32.totalorder %s40, 2
      %p63 = por %p61, %p62
      %p65 = scmp.ne.s32.totalorder %s48, %s64
      %p66 = scmp.eq.s32.totalorder %s40, 0
      %p67 = por %p65, %p66
      %s69 = sadd.s32 %s68, 1
      %p72 = scmp.eq.s32.totalorder %s34, 2
      %p73 = scmp.ne.s32.totalorder %s68, %s70
      %p74 = scmp.eq.s32.totalorder %s34, 0
      %p75 = por %p73, %p74
      %p76 = scmp.ne.s32.totalorder %s68, %s70
      %p77 = scmp.eq.s32.totalorder %s39, 2
      %p78 = por %p76, %p77
      %p79 = scmp.ne.s32.totalorder %s70, %s71
      %p80 = scmp.eq.s32.totalorder %s39, 0
      %p81 = por %p79, %p80
      %p82 = scmp.ne.s32.totalorder %s70, %s71
      %p83 = scmp.eq.s32.totalorder %s40, 2
      %p84 = por %p82, %p83
      %p86 = scmp.ne.s32.totalorder %s71, %s85
      %p87 = scmp.eq.s32.totalorder %s40, 0
      %p88 = por %p86, %p87
      %s90 = sadd.s32 %s89, 1
      %p93 = scmp.eq.s32.totalorder %s34, 2
      %p94 = scmp.ne.s32.totalorder %s89, %s91
      %p95 = scmp.eq.s32.totalorder %s34, 0
      %p96 = por %p94, %p95
      %p97 = scmp.ne.s32.totalorder %s89, %s91
      %p98 = scmp.eq.s32.totalorder %s39, 2
      %p99 = por %p97, %p98
      %p100 = scmp.ne.s32.totalorder %s91, %s92
      %p101 = scmp.eq.s32.totalorder %s39, 0
      %p102 = por %p100, %p101
      %p103 = scmp.ne.s32.totalorder %s91, %s92
      %p104 = scmp.eq.s32.totalorder %s40, 2
      %p105 = por %p103, %p104
      %p107 = scmp.ne.s32.totalorder %s92, %s106
      %p108 = scmp.eq.s32.totalorder %s40, 0
      %p109 = por %p107, %p108
      %s111 = sadd.s32 %s110, 1
      %p114 = scmp.eq.s32.totalorder %s34, 2
      %p115 = scmp.ne.s32.totalorder %s110, %s112
      %p116 = scmp.eq.s32.totalorder %s34, 0
      %p117 = por %p115, %p116
      %p118 = scmp.ne.s32.totalorder %s110, %s112
      %p119 = scmp.eq.s32.totalorder %s39, 2
      %p120 = por %p118, %p119
      %p121 = scmp.ne.s32.totalorder %s112, %s113
      %p122 = scmp.eq.s32.totalorder %s39, 0
      %p123 = por %p121, %p122
      %p124 = scmp.ne.s32.totalorder %s112, %s113
      %p125 = scmp.eq.s32.totalorder %s40, 2
      %p126 = por %p124, %p125
      %p128 = scmp.ne.s32.totalorder %s113, %s127
      %p129 = scmp.eq.s32.totalorder %s40, 0
      %p130 = por %p128, %p129
      %s132 = sadd.s32 %s131, 1
      %p135 = scmp.eq.s32.totalorder %s34, 2
      %p136 = scmp.ne.s32.totalorder %s131, %s133
      %p137 = scmp.eq.s32.totalorder %s34, 0
      %p138 = por %p136, %p137
      %p139 = scmp.ne.s32.totalorder %s131, %s133
      %p140 = scmp.eq.s32.totalorder %s39, 2
      %p141 = por %p139, %p140
      %p142 = scmp.ne.s32.totalorder %s133, %s134
      %p143 = scmp.eq.s32.totalorder %s39, 0
      %p144 = por %p142, %p143
      %p145 = scmp.ne.s32.totalorder %s133, %s134
      %p146 = scmp.eq.s32.totalorder %s40, 2
      %p147 = por %p145, %p146
      %p149 = scmp.ne.s32.totalorder %s134, %s148
      %p150 = scmp.eq.s32.totalorder %s40, 0
      %p151 = por %p149, %p150
      %s153 = sadd.s32 %s152, 1
      %p156 = scmp.eq.s32.totalorder %s34, 2
      %p157 = scmp.ne.s32.totalorder %s152, %s154
      %p158 = scmp.eq.s32.totalorder %s34, 0
      %p159 = por %p157, %p158
      %p160 = scmp.ne.s32.totalorder %s152, %s154
      %p161 = scmp.eq.s32.totalorder %s39, 2
      %p162 = por %p160, %p161
      %p163 = scmp.ne.s32.totalorder %s154, %s155
      %p164 = scmp.eq.s32.totalorder %s39, 0
      %p165 = por %p163, %p164
      %p166 = scmp.ne.s32.totalorder %s154, %s155
      %p167 = scmp.eq.s32.totalorder %s40, 2
      %p168 = por %p166, %p167
      %p170 = scmp.ne.s32.totalorder %s155, %s169
      %p171 = scmp.eq.s32.totalorder %s40, 0
      %p172 = por %p170, %p171
      %s174 = sadd.s32 %s173, 1
      %p177 = scmp.eq.s32.totalorder %s34, 2
      %p178 = scmp.ne.s32.totalorder %s173, %s175
      %p179 = scmp.eq.s32.totalorder %s34, 0
      %p180 = por %p178, %p179
      %p181 = scmp.ne.s32.totalorder %s173, %s175
      %p182 = scmp.eq.s32.totalorder %s39, 2
      %p183 = por %p181, %p182
      %p184 = scmp.ne.s32.totalorder %s175, %s176
      %p185 = scmp.eq.s32.totalorder %s39, 0
      %p186 = por %p184, %p185
      %p187 = scmp.ne.s32.totalorder %s175, %s176
      %p188 = scmp.eq.s32.totalorder %s40, 2
      %p189 = por %p187, %p188
      %p191 = scmp.ne.s32.totalorder %s176, %s190
      %p192 = scmp.eq.s32.totalorder %s40, 0
      %p193 = por %p191, %p192
      %s195 = sadd.s32 %s194, 1
      %p198 = scmp.eq.s32.totalorder %s34, 2
      %p199 = scmp.ne.s32.totalorder %s194, %s196
      %p200 = scmp.eq.s32.totalorder %s34, 0
      %p201 = por %p199, %p200
      %p202 = scmp.ne.s32.totalorder %s194, %s196
      %p203 = scmp.eq.s32.totalorder %s39, 2
      %p204 = por %p202, %p203
      %p205 = scmp.ne.s32.totalorder %s196, %s197
      %p206 = scmp.eq.s32.totalorder %s39, 0
      %p207 = por %p205, %p206
      %p208 = scmp.ne.s32.totalorder %s196, %s197
      %p209 = scmp.eq.s32.totalorder %s40, 2
      %p210 = por %p208, %p209
      %p212 = scmp.ne.s32.totalorder %s197, %s211
      %p213 = scmp.eq.s32.totalorder %s40, 0
      %p214 = por %p212, %p213
      %s216 = sadd.s32 %s215, 1
      %p219 = scmp.eq.s32.totalorder %s34, 2
      %p220 = scmp.ne.s32.totalorder %s215, %s217
      %p221 = scmp.eq.s32.totalorder %s34, 0
      %p222 = por %p220, %p221
      %p223 = scmp.ne.s32.totalorder %s215, %s217
      %p224 = scmp.eq.s32.totalorder %s39, 2
      %p225 = por %p223, %p224
      %p226 = scmp.ne.s32.totalorder %s217, %s218
      %p227 = scmp.eq.s32.totalorder %s39, 0
      %p228 = por %p226, %p227
      %p229 = scmp.ne.s32.totalorder %s217, %s218
      %p230 = scmp.eq.s32.totalorder %s40, 2
      %p231 = por %p229, %p230
      %p233 = scmp.ne.s32.totalorder %s218, %s232
      %p234 = scmp.eq.s32.totalorder %s40, 0
      %p235 = por %p233, %p234
      %s237 = sadd.s32 %s236, 1
      %p240 = scmp.eq.s32.totalorder %s34, 2
      %p241 = scmp.ne.s32.totalorder %s236, %s238
      %p242 = scmp.eq.s32.totalorder %s34, 0
      %p243 = por %p241, %p242
      %p244 = scmp.ne.s32.totalorder %s236, %s238
      %p245 = scmp.eq.s32.totalorder %s39, 2
      %p246 = por %p244, %p245
      %p247 = scmp.ne.s32.totalorder %s238, %s239
      %p248 = scmp.eq.s32.totalorder %s39, 0
      %p249 = por %p247, %p248
      %p250 = scmp.ne.s32.totalorder %s238, %s239
      %p251 = scmp.eq.s32.totalorder %s40, 2
      %p252 = por %p250, %p251
      %p254 = scmp.ne.s32.totalorder %s239, %s253
      %p255 = scmp.eq.s32.totalorder %s40, 0
      %p256 = por %p254, %p255
      %s258 = sadd.s32 %s257, 1
      %p261 = scmp.eq.s32.totalorder %s34, 2
      %p262 = scmp.ne.s32.totalorder %s257, %s259
      %p263 = scmp.eq.s32.totalorder %s34, 0
      %p264 = por %p262, %p263
      %p265 = scmp.ne.s32.totalorder %s257, %s259
      %p266 = scmp.eq.s32.totalorder %s39, 2
      %p267 = por %p265, %p266
      %p268 = scmp.ne.s32.totalorder %s259, %s260
      %p269 = scmp.eq.s32.totalorder %s39, 0
      %p270 = por %p268, %p269
      %p271 = scmp.ne.s32.totalorder %s259, %s260
      %p272 = scmp.eq.s32.totalorder %s40, 2
      %p273 = por %p271, %p272
      %p275 = scmp.ne.s32.totalorder %s260, %s274
      %p276 = scmp.eq.s32.totalorder %s40, 0
      %p277 = por %p275, %p276
      %s279 = sadd.s32 %s278, 1
      %p282 = scmp.eq.s32.totalorder %s34, 2
      %p283 = scmp.ne.s32.totalorder %s278, %s280
      %p284 = scmp.eq.s32.totalorder %s34, 0
      %p285 = por %p283, %p284
      %p286 = scmp.ne.s32.totalorder %s278, %s280
      %p287 = scmp.eq.s32.totalorder %s39, 2
      %p288 = por %p286, %p287
      %p289 = scmp.ne.s32.totalorder %s280, %s281
      %p290 = scmp.eq.s32.totalorder %s39, 0
      %p291 = por %p289, %p290
      %p292 = scmp.ne.s32.totalorder %s280, %s281
      %p293 = scmp.eq.s32.totalorder %s40, 2
      %p294 = por %p292, %p293
      %p296 = scmp.ne.s32.totalorder %s281, %s295
      %p297 = scmp.eq.s32.totalorder %s40, 0
      %p298 = por %p296, %p297
      %s300 = sadd.s32 %s299, 1
      %p303 = scmp.eq.s32.totalorder %s34, 2
      %p304 = scmp.ne.s32.totalorder %s299, %s301
      %p305 = scmp.eq.s32.totalorder %s34, 0
      %p306 = por %p304, %p305
      %p307 = scmp.ne.s32.totalorder %s299, %s301
      %p308 = scmp.eq.s32.totalorder %s39, 2
      %p309 = por %p307, %p308
      %p310 = scmp.ne.s32.totalorder %s301, %s302
      %p311 = scmp.eq.s32.totalorder %s39, 0
      %p312 = por %p310, %p311
      %p313 = scmp.ne.s32.totalorder %s301, %s302
      %p314 = scmp.eq.s32.totalorder %s40, 2
      %p315 = por %p313, %p314
      %p317 = scmp.ne.s32.totalorder %s302, %s316
      %p318 = scmp.eq.s32.totalorder %s40, 0
      %p319 = por %p317, %p318
      %s321 = sadd.s32 %s320, 1
      %p324 = scmp.eq.s32.totalorder %s34, 2
      %p325 = scmp.ne.s32.totalorder %s320, %s322
      %p326 = scmp.eq.s32.totalorder %s34, 0
      %p327 = por %p325, %p326
      %p328 = scmp.ne.s32.totalorder %s320, %s322
      %p329 = scmp.eq.s32.totalorder %s39, 2
      %p330 = por %p328, %p329
      %p331 = scmp.ne.s32.totalorder %s322, %s323
      %p332 = scmp.eq.s32.totalorder %s39, 0
      %p333 = por %p331, %p332
      %p334 = scmp.ne.s32.totalorder %s322, %s323
      %p335 = scmp.eq.s32.totalorder %s40, 2
      %p336 = por %p334, %p335
      %p338 = scmp.ne.s32.totalorder %s323, %s337
      %p339 = scmp.eq.s32.totalorder %s40, 0
      %p340 = por %p338, %p339
      %s342 = sadd.s32 %s341, 1
      %p345 = scmp.eq.s32.totalorder %s34, 2
      %p346 = scmp.ne.s32.totalorder %s341, %s343
      %p347 = scmp.eq.s32.totalorder %s34, 0
      %p348 = por %p346, %p347
      %p349 = scmp.ne.s32.totalorder %s341, %s343
      %p350 = scmp.eq.s32.totalorder %s39, 2
      %p351 = por %p349, %p350
      %p352 = scmp.ne.s32.totalorder %s343, %s344
      %p353 = scmp.eq.s32.totalorder %s39, 0
      %p354 = por %p352, %p353
      %p355 = scmp.ne.s32.totalorder %s343, %s344
      %p356 = scmp.eq.s32.totalorder %s40, 2
      %p357 = por %p355, %p356
      %p359 = scmp.ne.s32.totalorder %s344, %s358
      %p360 = scmp.eq.s32.totalorder %s40, 0
      %p361 = por %p359, %p360
      %s362 = ssub.s32 %s34, %s41
      %p363 = scmp.eq.s32.totalorder %s362, 0
      %s365 = sadd.s32 %s364, 1
      %s366 = scalar_select %p363, %s364, %s365
      %p369 = pneg %p363
      %p370 = scmp.eq.s32.totalorder %s34, 2
      %p371 = por %p369, %p370
      %p372 = scmp.ne.s32.totalorder %s364, %s367
      %p373 = scmp.eq.s32.totalorder %s34, 0
      %p374 = por %p372, %p373
      %p375 = scmp.ne.s32.totalorder %s364, %s367
      %p376 = scmp.eq.s32.totalorder %s39, 2
      %p377 = por %p375, %p376
      %p378 = scmp.ne.s32.totalorder %s367, %s368
      %p379 = scmp.eq.s32.totalorder %s39, 0
      %p380 = por %p378, %p379
      %p381 = scmp.ne.s32.totalorder %s367, %s368
      %p382 = scmp.eq.s32.totalorder %s40, 2
      %p383 = por %p381, %p382
      %p385 = scmp.ne.s32.totalorder %s368, %s384
      %p386 = scmp.eq.s32.totalorder %s40, 0
      %p387 = por %p385, %p386
      %p388 = scmp.le.s32.totalorder 1, %s34
      %p389 = scmp.lt.s32.totalorder %s34, 4
      %p390 = pnand %p388, %p389
      %p391 = pneg %p390
      // Predicated region
      $region9: #{tpu_custom_call.1} parent=5 // pred_check
        _
      $region10: #{tpu_custom_call.1} parent=5 // pred_check_branch
        %393 = sbr.rel (%p390) target = $region12
      $region11: #{tpu_custom_call.1} parent=5 // pred_region
        %s394 = ssub.s32 %s34, 1
        // Predicated region
        $region13: #{tpu_custom_call.1} parent=11 // pred_check
          %p395 = pneg %p81
        $region14: #{tpu_custom_call.1} parent=11 // pred_check_branch
          %397 = sbr.rel (%p395) target = $region16
        $region15: #{tpu_custom_call.1} parent=11 // pred_region
          %399 = vsyncadd [#allocation6], 0
          %s400 = sshll.u32 %s1, 4
          %s401 = int_to_ptr.hbm [resolvable:$true] %s400
          %s402 = sshll.u32 [#allocation5], 4
          %s403 = int_to_ptr.vmem [resolvable:$true] %s402
          %408 = dma.hbm_to_vmem [thread:$0]  %s401, 49152, %s403, [#allocation6], 128, 128, 8
        $region16: #{tpu_custom_call.1} parent=11 // pred_fallthru
          _
        // Predicated region
        $region17: #{tpu_custom_call.1} parent=11 // pred_check
          %p409 = pneg %p102
        $region18: #{tpu_custom_call.1} parent=11 // pred_check_branch
          %411 = sbr.rel (%p409) target = $region20
        $region19: #{tpu_custom_call.1} parent=11 // pred_region
          %413 = vsyncadd [#allocation6], 0
          %s415 = sshll.u32 %s2, 4
          %s416 = int_to_ptr.hbm [resolvable:$true] %s415
          %s417 = sshll.u32 [#allocation7], 4
          %s418 = int_to_ptr.vmem [resolvable:$true] %s417
          %420 = dma.hbm_to_vmem [thread:$0]  %s416, 32, %s418, [#allocation6]
        $region20: #{tpu_custom_call.1} parent=11 // pred_fallthru
          _
        // Predicated region
        $region21: #{tpu_custom_call.1} parent=11 // pred_check
          %p421 = pneg %p123
        $region22: #{tpu_custom_call.1} parent=11 // pred_check_branch
          %423 = sbr.rel (%p421) target = $region24
        $region23: #{tpu_custom_call.1} parent=11 // pred_region
          %425 = vsyncadd [#allocation9], 0
          %s427 = sshll.u32 %s3, 4
          %s428 = int_to_ptr.hbm [resolvable:$true] %s427
          %s429 = sshll.u32 [#allocation8], 4
          %s430 = int_to_ptr.vmem [resolvable:$true] %s429
          %432 = dma.hbm_to_vmem [thread:$0]  %s428, 32, %s430, [#allocation9]
        $region24: #{tpu_custom_call.1} parent=11 // pred_fallthru
          _
        // Predicated region
        $region25: #{tpu_custom_call.1} parent=11 // pred_check
          %p433 = pneg %p144
        $region26: #{tpu_custom_call.1} parent=11 // pred_check_branch
          %435 = sbr.rel (%p433) target = $region28
        $region27: #{tpu_custom_call.1} parent=11 // pred_region
          %437 = vsyncadd [#allocation9], 0
          %s439 = sshll.u32 %s4, 4
          %s440 = int_to_ptr.hbm [resolvable:$true] %s439
          %s441 = sshll.u32 [#allocation10], 4
          %s442 = int_to_ptr.vmem [resolvable:$true] %s441
          %444 = dma.hbm_to_vmem [thread:$0]  %s440, 32, %s442, [#allocation9]
        $region28: #{tpu_custom_call.1} parent=11 // pred_fallthru
          _
        // Predicated region
        $region29: #{tpu_custom_call.1} parent=11 // pred_check
          %p445 = pneg %p165
        $region30: #{tpu_custom_call.1} parent=11 // pred_check_branch
          %447 = sbr.rel (%p445) target = $region32
        $region31: #{tpu_custom_call.1} parent=11 // pred_region
          %449 = vsyncadd [#allocation12], 0
          %s450 = sshll.u32 %s5, 4
          %s451 = int_to_ptr.hbm [resolvable:$true] %s450
          %s452 = sshll.u32 [#allocation11], 4
          %s453 = int_to_ptr.vmem [resolvable:$true] %s452
          %458 = dma.hbm_to_vmem [thread:$0]  %s451, 2048, %s453, [#allocation12], 64, 64, 4
        $region32: #{tpu_custom_call.1} parent=11 // pred_fallthru
          _
        // Predicated region
        $region33: #{tpu_custom_call.1} parent=11 // pred_check
          %p459 = pneg %p186
        $region34: #{tpu_custom_call.1} parent=11 // pred_check_branch
          %461 = sbr.rel (%p459) target = $region36
        $region35: #{tpu_custom_call.1} parent=11 // pred_region
          %463 = vsyncadd [#allocation12], 0
          %s465 = sshll.u32 %s6, 4
          %s466 = int_to_ptr.hbm [resolvable:$true] %s465
          %s467 = sshll.u32 [#allocation13], 4
          %s468 = int_to_ptr.vmem [resolvable:$true] %s467
          %470 = dma.hbm_to_vmem [thread:$0]  %s466, 16, %s468, [#allocation12]
        $region36: #{tpu_custom_call.1} parent=11 // pred_fallthru
          _
        // Predicated region
        $region37: #{tpu_custom_call.1} parent=11 // pred_check
          %p471 = pneg %p207
        $region38: #{tpu_custom_call.1} parent=11 // pred_check_branch
          %473 = sbr.rel (%p471) target = $region40
        $region39: #{tpu_custom_call.1} parent=11 // pred_region
          %475 = vsyncadd [#allocation15], 0
          %s476 = sshll.u32 %s7, 4
          %s477 = int_to_ptr.hbm [resolvable:$true] %s476
          %s478 = sshll.u32 [#allocation14], 4
          %s479 = int_to_ptr.vmem [resolvable:$true] %s478
          %484 = dma.hbm_to_vmem [thread:$0]  %s477, 1024, %s479, [#allocation15], 64, 64, 4
        $region40: #{tpu_custom_call.1} parent=11 // pred_fallthru
          _
        // Predicated region
        $region41: #{tpu_custom_call.1} parent=11 // pred_check
          %p485 = pneg %p228
        $region42: #{tpu_custom_call.1} parent=11 // pred_check_branch
          %487 = sbr.rel (%p485) target = $region44
        $region43: #{tpu_custom_call.1} parent=11 // pred_region
          %489 = vsyncadd [#allocation15], 0
          %s491 = sshll.u32 %s8, 4
          %s492 = int_to_ptr.hbm [resolvable:$true] %s491
          %s493 = sshll.u32 [#allocation16], 4
          %s494 = int_to_ptr.vmem [resolvable:$true] %s493
          %496 = dma.hbm_to_vmem [thread:$0]  %s492, 16, %s494, [#allocation15]
        $region44: #{tpu_custom_call.1} parent=11 // pred_fallthru
          _
        // Predicated region
        $region45: #{tpu_custom_call.1} parent=11 // pred_check
          %p497 = pneg %p249
        $region46: #{tpu_custom_call.1} parent=11 // pred_check_branch
          %499 = sbr.rel (%p497) target = $region48
        $region47: #{tpu_custom_call.1} parent=11 // pred_region
          %501 = vsyncadd [#allocation18], 0
          %s502 = sshll.u32 %s9, 4
          %s503 = int_to_ptr.hbm [resolvable:$true] %s502
          %s504 = sshll.u32 [#allocation17], 4
          %s505 = int_to_ptr.vmem [resolvable:$true] %s504
          %510 = dma.hbm_to_vmem [thread:$0]  %s503, 1024, %s505, [#allocation18], 64, 64, 4
        $region48: #{tpu_custom_call.1} parent=11 // pred_fallthru
          _
        // Predicated region
        $region49: #{tpu_custom_call.1} parent=11 // pred_check
          %p511 = pneg %p270
        $region50: #{tpu_custom_call.1} parent=11 // pred_check_branch
          %513 = sbr.rel (%p511) target = $region52
        $region51: #{tpu_custom_call.1} parent=11 // pred_region
          %515 = vsyncadd [#allocation18], 0
          %s517 = sshll.u32 %s10, 4
          %s518 = int_to_ptr.hbm [resolvable:$true] %s517
          %s519 = sshll.u32 [#allocation19], 4
          %s520 = int_to_ptr.vmem [resolvable:$true] %s519
          %522 = dma.hbm_to_vmem [thread:$0]  %s518, 16, %s520, [#allocation18]
        $region52: #{tpu_custom_call.1} parent=11 // pred_fallthru
          _
        // Predicated region
        $region53: #{tpu_custom_call.1} parent=11 // pred_check
          %p523 = pneg %p291
        $region54: #{tpu_custom_call.1} parent=11 // pred_check_branch
          %525 = sbr.rel (%p523) target = $region56
        $region55: #{tpu_custom_call.1} parent=11 // pred_region
          %527 = vsyncadd [#allocation21], 0
          %s528 = sshll.u32 %s11, 4
          %s529 = int_to_ptr.hbm [resolvable:$true] %s528
          %s530 = sshll.u32 [#allocation20], 4
          %s531 = int_to_ptr.vmem [resolvable:$true] %s530
          %536 = dma.hbm_to_vmem [thread:$0]  %s529, 2048, %s531, [#allocation21], 128, 128, 8
        $region56: #{tpu_custom_call.1} parent=11 // pred_fallthru
          _
        // Predicated region
        $region57: #{tpu_custom_call.1} parent=11 // pred_check
          %p537 = pneg %p312
        $region58: #{tpu_custom_call.1} parent=11 // pred_check_branch
          %539 = sbr.rel (%p537) target = $region60
        $region59: #{tpu_custom_call.1} parent=11 // pred_region
          %541 = vsyncadd [#allocation21], 0
          %s543 = sshll.u32 %s12, 4
          %s544 = int_to_ptr.hbm [resolvable:$true] %s543
          %s545 = sshll.u32 [#allocation22], 4
          %s546 = int_to_ptr.vmem [resolvable:$true] %s545
          %548 = dma.hbm_to_vmem [thread:$0]  %s544, 32, %s546, [#allocation21]
        $region60: #{tpu_custom_call.1} parent=11 // pred_fallthru
          _
        // Predicated region
        $region61: #{tpu_custom_call.1} parent=11 // pred_check
          %p549 = pneg %p333
        $region62: #{tpu_custom_call.1} parent=11 // pred_check_branch
          %551 = sbr.rel (%p549) target = $region64
        $region63: #{tpu_custom_call.1} parent=11 // pred_region
          %553 = vsyncadd [#allocation24], 0
          %s554 = sshll.u32 %s13, 4
          %s555 = int_to_ptr.hbm [resolvable:$true] %s554
          %s556 = sshll.u32 [#allocation23], 4
          %s557 = int_to_ptr.vmem [resolvable:$true] %s556
          %562 = dma.hbm_to_vmem [thread:$0]  %s555, 49152, %s557, [#allocation24], 1536, 1536, 96
        $region64: #{tpu_custom_call.1} parent=11 // pred_fallthru
          _
        // Predicated region
        $region65: #{tpu_custom_call.1} parent=11 // pred_check
          %p563 = pneg %p354
        $region66: #{tpu_custom_call.1} parent=11 // pred_check_branch
          %565 = sbr.rel (%p563) target = $region68
        $region67: #{tpu_custom_call.1} parent=11 // pred_region
          %567 = vsyncadd [#allocation24], 0
          %s569 = sshll.u32 %s14, 4
          %s570 = int_to_ptr.hbm [resolvable:$true] %s569
          %s571 = sshll.u32 [#allocation25], 4
          %s572 = int_to_ptr.vmem [resolvable:$true] %s571
          %574 = dma.hbm_to_vmem [thread:$0]  %s570, 384, %s572, [#allocation24]
        $region68: #{tpu_custom_call.1} parent=11 // pred_fallthru
          _
      $region12: #{tpu_custom_call.1} parent=5 // pred_fallthru
        _
      %p575 = scmp.lt.s32.totalorder %s34, 3
      // Predicated region
      $region69: #{tpu_custom_call.1} parent=5 // pred_check
        %p576 = pneg %p575
      $region70: #{tpu_custom_call.1} parent=5 // pred_check_branch
        %578 = sbr.rel (%p576) target = $region72
      $region71: #{tpu_custom_call.1} parent=5 // pred_region
        // Predicated region
        $region73: #{tpu_custom_call.1} parent=71 // pred_check
          %p579 = pneg %p54
        $region74: #{tpu_custom_call.1} parent=71 // pred_check_branch
          %581 = sbr.rel (%p579) target = $region76
        $region75: #{tpu_custom_call.1} parent=71 // pred_region
          %s582 = sand.u32 %s44, 1
          %s583 = scalar_lea.sflag [#allocation3], %s582
          %s584 = sand.u32 %s44, 1
          %s585 = smul.addr %s584, 192
          %s586 = scalar_lea.vmem [#allocation2], %s585
          %588 = vsyncadd %s583, 0
          %s589 = smul.addr %s34, 24
          %s590 = smul.addr %s589, 8
          %s591 = scalar_lea.hbm %s0, %s590
          %s593 = sshll.u32 %s591, 4
          %s594 = int_to_ptr.hbm [resolvable:$true] %s593
          %s595 = sshll.u32 %s586, 4
          %s596 = int_to_ptr.vmem [resolvable:$true] %s595
          %598 = dma.hbm_to_vmem [thread:$0]  %s594, 3072, %s596, %s583
        $region76: #{tpu_custom_call.1} parent=71 // pred_fallthru
          _
      $region72: #{tpu_custom_call.1} parent=5 // pred_fallthru
        _
      %p599 = scmp.le.s32.totalorder 1, %s34
      %p600 = scmp.lt.s32.totalorder %s34, 4
      %p601 = pnand %p599, %p600
      %p602 = pneg %p601
      // Predicated region
      $region77: #{tpu_custom_call.1} parent=5 // pred_check
        _
      $region78: #{tpu_custom_call.1} parent=5 // pred_check_branch
        %604 = sbr.rel (%p601) target = $region80
      $region79: #{tpu_custom_call.1} parent=5 // pred_region
        %s605 = ssub.s32 %s34, 1
        %s606 = sand.u32 %s47, 1
        %s607 = scalar_lea.sflag [#allocation3], %s606
        %s608 = sand.u32 %s47, 1
        %s609 = smul.addr %s608, 192
        %s610 = scalar_lea.vmem [#allocation2], %s609
        // Predicated region
        $region81: #{tpu_custom_call.1} parent=79 // pred_check
          %p611 = pneg %p60
        $region82: #{tpu_custom_call.1} parent=79 // pred_check_branch
          %613 = sbr.rel (%p611) target = $region84
        $region83: #{tpu_custom_call.1} parent=79 // pred_region
          %615 = dma.done %s607, 3072
        $region84: #{tpu_custom_call.1} parent=79 // pred_fallthru
          _
        // Predicated region
        $region85: #{tpu_custom_call.1} parent=79 // pred_check
          %p616 = pneg %p81
        $region86: #{tpu_custom_call.1} parent=79 // pred_check_branch
          %618 = sbr.rel (%p616) target = $region88
        $region87: #{tpu_custom_call.1} parent=79 // pred_region
          %620 = dma.done [#allocation6], 49152
        $region88: #{tpu_custom_call.1} parent=79 // pred_fallthru
          _
        // Predicated region
        $region89: #{tpu_custom_call.1} parent=79 // pred_check
          %p621 = pneg %p102
        $region90: #{tpu_custom_call.1} parent=79 // pred_check_branch
          %623 = sbr.rel (%p621) target = $region92
        $region91: #{tpu_custom_call.1} parent=79 // pred_region
          %625 = dma.done [#allocation6], 32
        $region92: #{tpu_custom_call.1} parent=79 // pred_fallthru
          _
        // Predicated region
        $region93: #{tpu_custom_call.1} parent=79 // pred_check
          %p626 = pneg %p123
        $region94: #{tpu_custom_call.1} parent=79 // pred_check_branch
          %628 = sbr.rel (%p626) target = $region96
        $region95: #{tpu_custom_call.1} parent=79 // pred_region
          %630 = dma.done [#allocation9], 32
        $region96: #{tpu_custom_call.1} parent=79 // pred_fallthru
          _
        // Predicated region
        $region97: #{tpu_custom_call.1} parent=79 // pred_check
          %p631 = pneg %p144
        $region98: #{tpu_custom_call.1} parent=79 // pred_check_branch
          %633 = sbr.rel (%p631) target = $region100
        $region99: #{tpu_custom_call.1} parent=79 // pred_region
          %635 = dma.done [#allocation9], 32
        $region100: #{tpu_custom_call.1} parent=79 // pred_fallthru
          _
        // Predicated region
        $region101: #{tpu_custom_call.1} parent=79 // pred_check
          %p636 = pneg %p165
        $region102: #{tpu_custom_call.1} parent=79 // pred_check_branch
          %638 = sbr.rel (%p636) target = $region104
        $region103: #{tpu_custom_call.1} parent=79 // pred_region
          %640 = dma.done [#allocation12], 2048
        $region104: #{tpu_custom_call.1} parent=79 // pred_fallthru
          _
        // Predicated region
        $region105: #{tpu_custom_call.1} parent=79 // pred_check
          %p641 = pneg %p186
        $region106: #{tpu_custom_call.1} parent=79 // pred_check_branch
          %643 = sbr.rel (%p641) target = $region108
        $region107: #{tpu_custom_call.1} parent=79 // pred_region
          %645 = dma.done [#allocation12], 16
        $region108: #{tpu_custom_call.1} parent=79 // pred_fallthru
          _
        // Predicated region
        $region109: #{tpu_custom_call.1} parent=79 // pred_check
          %p646 = pneg %p207
        $region110: #{tpu_custom_call.1} parent=79 // pred_check_branch
          %648 = sbr.rel (%p646) target = $region112
        $region111: #{tpu_custom_call.1} parent=79 // pred_region
          %650 = dma.done [#allocation15], 1024
        $region112: #{tpu_custom_call.1} parent=79 // pred_fallthru
          _
        // Predicated region
        $region113: #{tpu_custom_call.1} parent=79 // pred_check
          %p651 = pneg %p228
        $region114: #{tpu_custom_call.1} parent=79 // pred_check_branch
          %653 = sbr.rel (%p651) target = $region116
        $region115: #{tpu_custom_call.1} parent=79 // pred_region
          %655 = dma.done [#allocation15], 16
        $region116: #{tpu_custom_call.1} parent=79 // pred_fallthru
          _
        // Predicated region
        $region117: #{tpu_custom_call.1} parent=79 // pred_check
          %p656 = pneg %p249
        $region118: #{tpu_custom_call.1} parent=79 // pred_check_branch
          %658 = sbr.rel (%p656) target = $region120
        $region119: #{tpu_custom_call.1} parent=79 // pred_region
          %660 = dma.done [#allocation18], 1024
        $region120: #{tpu_custom_call.1} parent=79 // pred_fallthru
          _
        // Predicated region
        $region121: #{tpu_custom_call.1} parent=79 // pred_check
          %p661 = pneg %p270
        $region122: #{tpu_custom_call.1} parent=79 // pred_check_branch
          %663 = sbr.rel (%p661) target = $region124
        $region123: #{tpu_custom_call.1} parent=79 // pred_region
          %665 = dma.done [#allocation18], 16
        $region124: #{tpu_custom_call.1} parent=79 // pred_fallthru
          _
        // Predicated region
        $region125: #{tpu_custom_call.1} parent=79 // pred_check
          %p666 = pneg %p291
        $region126: #{tpu_custom_call.1} parent=79 // pred_check_branch
          %668 = sbr.rel (%p666) target = $region128
        $region127: #{tpu_custom_call.1} parent=79 // pred_region
          %670 = dma.done [#allocation21], 2048
        $region128: #{tpu_custom_call.1} parent=79 // pred_fallthru
          _
        // Predicated region
        $region129: #{tpu_custom_call.1} parent=79 // pred_check
          %p671 = pneg %p312
        $region130: #{tpu_custom_call.1} parent=79 // pred_check_branch
          %673 = sbr.rel (%p671) target = $region132
        $region131: #{tpu_custom_call.1} parent=79 // pred_region
          %675 = dma.done [#allocation21], 32
        $region132: #{tpu_custom_call.1} parent=79 // pred_fallthru
          _
        // Predicated region
        $region133: #{tpu_custom_call.1} parent=79 // pred_check
          %p676 = pneg %p333
        $region134: #{tpu_custom_call.1} parent=79 // pred_check_branch
          %678 = sbr.rel (%p676) target = $region136
        $region135: #{tpu_custom_call.1} parent=79 // pred_region
          %680 = dma.done [#allocation24], 49152
        $region136: #{tpu_custom_call.1} parent=79 // pred_fallthru
          _
        // Predicated region
        $region137: #{tpu_custom_call.1} parent=79 // pred_check
          %p681 = pneg %p354
        $region138: #{tpu_custom_call.1} parent=79 // pred_check_branch
          %683 = sbr.rel (%p681) target = $region140
        $region139: #{tpu_custom_call.1} parent=79 // pred_region
          %685 = dma.done [#allocation24], 384
        $region140: #{tpu_custom_call.1} parent=79 // pred_fallthru
          _
        %s686 = sand.u32 %s47, 1
        %s687 = scalar_lea.sflag [#allocation3], %s686
        %s688 = sand.u32 %s47, 1
        %s689 = smul.addr %s688, 192
        %s690 = scalar_lea.vmem [#allocation2], %s689
        %p691 = pneg %p60
        %p692 = pneg %p57
        %p693 = pneg %p81
        %p694 = pneg %p78
        %p695 = pneg %p102
        %p696 = pneg %p99
        %p697 = pneg %p123
        %p698 = pneg %p120
        %p699 = pneg %p144
        %p700 = pneg %p141
        %p701 = pneg %p165
        %p702 = pneg %p162
        %p703 = pneg %p186
        %p704 = pneg %p183
        %p705 = pneg %p207
        %p706 = pneg %p204
        %p707 = pneg %p228
        %p708 = pneg %p225
        %p709 = pneg %p249
        %p710 = pneg %p246
        %p711 = pneg %p270
        %p712 = pneg %p267
        %p713 = pneg %p291
        %p714 = pneg %p288
        %p715 = pneg %p312
        %p716 = pneg %p309
        %p717 = pneg %p333
        %p718 = pneg %p330
        %p719 = pneg %p354
        %p720 = pneg %p351
        %p721 = pneg %p380
        %p722 = pneg %p377
        %s723 = sand.u32 %s367, 1
        %s724 = scalar_lea.sflag [#allocation4], %s723
        %s725 = sand.u32 %s367, 1
        %s726 = smul.addr %s725, 192
        %s727 = scalar_lea.vmem [#allocation26], %s726
        %v728 = vld [vmem:[%s610] sm:$0xff]
        %v729 = vld [vmem:[%s610 + $0x8] sm:$0xff]
        %v730 = vld [vmem:[%s610 + $0x10] sm:$0xff]
        %v731 = vld [vmem:[%s610 + $0x18] sm:$0xff]
        %v732 = vld [vmem:[%s610 + $0x20] sm:$0xff]
        %v733 = vld [vmem:[%s610 + $0x28] sm:$0xff]
        %v734 = vld [vmem:[%s610 + $0x30] sm:$0xff]
        %v735 = vld [vmem:[%s610 + $0x38] sm:$0xff]
        %v736 = vld [vmem:[%s610 + $0x40] sm:$0xff]
        %v737 = vld [vmem:[%s610 + $0x48] sm:$0xff]
        %v738 = vld [vmem:[%s610 + $0x50] sm:$0xff]
        %v739 = vld [vmem:[%s610 + $0x58] sm:$0xff]
        %v740 = vld [vmem:[%s610 + $0x60] sm:$0xff]
        %v741 = vld [vmem:[%s610 + $0x68] sm:$0xff]
        %v742 = vld [vmem:[%s610 + $0x70] sm:$0xff]
        %v743 = vld [vmem:[%s610 + $0x78] sm:$0xff]
        %v744 = vld [vmem:[%s610 + $0x80] sm:$0xff]
        %v745 = vld [vmem:[%s610 + $0x88] sm:$0xff]
        %v746 = vld [vmem:[%s610 + $0x90] sm:$0xff]
        %v747 = vld [vmem:[%s610 + $0x98] sm:$0xff]
        %v748 = vld [vmem:[%s610 + $0xa0] sm:$0xff]
        %v749 = vld [vmem:[%s610 + $0xa8] sm:$0xff]
        %v750 = vld [vmem:[%s610 + $0xb0] sm:$0xff]
        %v751 = vld [vmem:[%s610 + $0xb8] sm:$0xff]
        %v752 = vpack.c.bf16 %v728, %v728
        %v753 = vpack.c.bf16 %v729, %v729
        %v754 = vpack.c.bf16 %v730, %v730
        %v755 = vpack.c.bf16 %v731, %v731
        %v756 = vpack.c.bf16 %v732, %v732
        %v757 = vpack.c.bf16 %v733, %v733
        %v758 = vpack.c.bf16 %v734, %v734
        %v759 = vpack.c.bf16 %v735, %v735
        %v760 = vpack.c.bf16 %v736, %v736
        %v761 = vpack.c.bf16 %v737, %v737
        %v762 = vpack.c.bf16 %v738, %v738
        %v763 = vpack.c.bf16 %v739, %v739
        %v764 = vpack.c.bf16 %v740, %v740
        %v765 = vpack.c.bf16 %v741, %v741
        %v766 = vpack.c.bf16 %v742, %v742
        %v767 = vpack.c.bf16 %v743, %v743
        %v768 = vpack.c.bf16 %v744, %v744
        %v769 = vpack.c.bf16 %v745, %v745
        %v770 = vpack.c.bf16 %v746, %v746
        %v771 = vpack.c.bf16 %v747, %v747
        %v772 = vpack.c.bf16 %v748, %v748
        %v773 = vpack.c.bf16 %v749, %v749
        %v774 = vpack.c.bf16 %v750, %v750
        %v775 = vpack.c.bf16 %v751, %v751
        %v776 = vld [vmem:[#allocation5] sm:$0xff]
        %v777 = vld [vmem:[#allocation5 + $0x8] sm:$0xff]
        %v778 = vld [vmem:[#allocation5 + $0x10] sm:$0xff]
        %v779 = vld [vmem:[#allocation5 + $0x18] sm:$0xff]
        %v780 = vld [vmem:[#allocation5 + $0x20] sm:$0xff]
        %v781 = vld [vmem:[#allocation5 + $0x28] sm:$0xff]
        %v782 = vld [vmem:[#allocation5 + $0x30] sm:$0xff]
        %v783 = vld [vmem:[#allocation5 + $0x38] sm:$0xff]
        %v784 = vld [vmem:[#allocation5 + $0x40] sm:$0xff]
        %v785 = vld [vmem:[#allocation5 + $0x48] sm:$0xff]
        %v786 = vld [vmem:[#allocation5 + $0x50] sm:$0xff]
        %v787 = vld [vmem:[#allocation5 + $0x58] sm:$0xff]
        %v788 = vld [vmem:[#allocation5 + $0x60] sm:$0xff]
        %v789 = vld [vmem:[#allocation5 + $0x68] sm:$0xff]
        %v790 = vld [vmem:[#allocation5 + $0x70] sm:$0xff]
        %v791 = vld [vmem:[#allocation5 + $0x78] sm:$0xff]
        %v792 = vld [vmem:[#allocation5 + $0x80] sm:$0xff]
        %v793 = vld [vmem:[#allocation5 + $0x88] sm:$0xff]
        %v794 = vld [vmem:[#allocation5 + $0x90] sm:$0xff]
        %v795 = vld [vmem:[#allocation5 + $0x98] sm:$0xff]
        %v796 = vld [vmem:[#allocation5 + $0xa0] sm:$0xff]
        %v797 = vld [vmem:[#allocation5 + $0xa8] sm:$0xff]
        %v798 = vld [vmem:[#allocation5 + $0xb0] sm:$0xff]
        %v799 = vld [vmem:[#allocation5 + $0xb8] sm:$0xff]
        %v800 = vld [vmem:[#allocation5 + $0xc0] sm:$0xff]
        %v801 = vld [vmem:[#allocation5 + $0xc8] sm:$0xff]
        %v802 = vld [vmem:[#allocation5 + $0xd0] sm:$0xff]
        %v803 = vld [vmem:[#allocation5 + $0xd8] sm:$0xff]
        %v804 = vld [vmem:[#allocation5 + $0xe0] sm:$0xff]
        %v805 = vld [vmem:[#allocation5 + $0xe8] sm:$0xff]
        %v806 = vld [vmem:[#allocation5 + $0xf0] sm:$0xff]
        %v807 = vld [vmem:[#allocation5 + $0xf8] sm:$0xff]
        %v808 = vld [vmem:[#allocation5 + $0x100] sm:$0xff]
        %v809 = vld [vmem:[#allocation5 + $0x108] sm:$0xff]
        %v810 = vld [vmem:[#allocation5 + $0x110] sm:$0xff]
        %v811 = vld [vmem:[#allocation5 + $0x118] sm:$0xff]
        %v812 = vld [vmem:[#allocation5 + $0x120] sm:$0xff]
        %v813 = vld [vmem:[#allocation5 + $0x128] sm:$0xff]
        %v814 = vld [vmem:[#allocation5 + $0x130] sm:$0xff]
        %v815 = vld [vmem:[#allocation5 + $0x138] sm:$0xff]
        %v816 = vld [vmem:[#allocation5 + $0x140] sm:$0xff]
        %v817 = vld [vmem:[#allocation5 + $0x148] sm:$0xff]
        %v818 = vld [vmem:[#allocation5 + $0x150] sm:$0xff]
        %v819 = vld [vmem:[#allocation5 + $0x158] sm:$0xff]
        %v820 = vld [vmem:[#allocation5 + $0x160] sm:$0xff]
        %v821 = vld [vmem:[#allocation5 + $0x168] sm:$0xff]
        %v822 = vld [vmem:[#allocation5 + $0x170] sm:$0xff]
        %v823 = vld [vmem:[#allocation5 + $0x178] sm:$0xff]
        %v824 = vld [vmem:[#allocation5 + $0x180] sm:$0xff]
        %v825 = vld [vmem:[#allocation5 + $0x188] sm:$0xff]
        %v826 = vld [vmem:[#allocation5 + $0x190] sm:$0xff]
        %v827 = vld [vmem:[#allocation5 + $0x198] sm:$0xff]
        %v828 = vld [vmem:[#allocation5 + $0x1a0] sm:$0xff]
        %v829 = vld [vmem:[#allocation5 + $0x1a8] sm:$0xff]
        %v830 = vld [vmem:[#allocation5 + $0x1b0] sm:$0xff]
        %v831 = vld [vmem:[#allocation5 + $0x1b8] sm:$0xff]
        %v832 = vld [vmem:[#allocation5 + $0x1c0] sm:$0xff]
        %v833 = vld [vmem:[#allocation5 + $0x1c8] sm:$0xff]
        %v834 = vld [vmem:[#allocation5 + $0x1d0] sm:$0xff]
        %v835 = vld [vmem:[#allocation5 + $0x1d8] sm:$0xff]
        %v836 = vld [vmem:[#allocation5 + $0x1e0] sm:$0xff]
        %v837 = vld [vmem:[#allocation5 + $0x1e8] sm:$0xff]
        %v838 = vld [vmem:[#allocation5 + $0x1f0] sm:$0xff]
        %v839 = vld [vmem:[#allocation5 + $0x1f8] sm:$0xff]
        %v840 = vld [vmem:[#allocation5 + $0x200] sm:$0xff]
        %v841 = vld [vmem:[#allocation5 + $0x208] sm:$0xff]
        %v842 = vld [vmem:[#allocation5 + $0x210] sm:$0xff]
        %v843 = vld [vmem:[#allocation5 + $0x218] sm:$0xff]
        %v844 = vld [vmem:[#allocation5 + $0x220] sm:$0xff]
        %v845 = vld [vmem:[#allocation5 + $0x228] sm:$0xff]
        %v846 = vld [vmem:[#allocation5 + $0x230] sm:$0xff]
        %v847 = vld [vmem:[#allocation5 + $0x238] sm:$0xff]
        %v848 = vld [vmem:[#allocation5 + $0x240] sm:$0xff]
        %v849 = vld [vmem:[#allocation5 + $0x248] sm:$0xff]
        %v850 = vld [vmem:[#allocation5 + $0x250] sm:$0xff]
        %v851 = vld [vmem:[#allocation5 + $0x258] sm:$0xff]
        %v852 = vld [vmem:[#allocation5 + $0x260] sm:$0xff]
        %v853 = vld [vmem:[#allocation5 + $0x268] sm:$0xff]
        %v854 = vld [vmem:[#allocation5 + $0x270] sm:$0xff]
        %v855 = vld [vmem:[#allocation5 + $0x278] sm:$0xff]
        %v856 = vld [vmem:[#allocation5 + $0x280] sm:$0xff]
        %v857 = vld [vmem:[#allocation5 + $0x288] sm:$0xff]
        %v858 = vld [vmem:[#allocation5 + $0x290] sm:$0xff]
        %v859 = vld [vmem:[#allocation5 + $0x298] sm:$0xff]
        %v860 = vld [vmem:[#allocation5 + $0x2a0] sm:$0xff]
        %v861 = vld [vmem:[#allocation5 + $0x2a8] sm:$0xff]
        %v862 = vld [vmem:[#allocation5 + $0x2b0] sm:$0xff]
        %v863 = vld [vmem:[#allocation5 + $0x2b8] sm:$0xff]
        %v864 = vld [vmem:[#allocation5 + $0x2c0] sm:$0xff]
        %v865 = vld [vmem:[#allocation5 + $0x2c8] sm:$0xff]
        %v866 = vld [vmem:[#allocation5 + $0x2d0] sm:$0xff]
        %v867 = vld [vmem:[#allocation5 + $0x2d8] sm:$0xff]
        %v868 = vld [vmem:[#allocation5 + $0x2e0] sm:$0xff]
        %v869 = vld [vmem:[#allocation5 + $0x2e8] sm:$0xff]
        %v870 = vld [vmem:[#allocation5 + $0x2f0] sm:$0xff]
        %v871 = vld [vmem:[#allocation5 + $0x2f8] sm:$0xff]
        %v872 = vld [vmem:[#allocation5 + $0x300] sm:$0xff]
        %v873 = vld [vmem:[#allocation5 + $0x308] sm:$0xff]
        %v874 = vld [vmem:[#allocation5 + $0x310] sm:$0xff]
        %v875 = vld [vmem:[#allocation5 + $0x318] sm:$0xff]
        %v876 = vld [vmem:[#allocation5 + $0x320] sm:$0xff]
        %v877 = vld [vmem:[#allocation5 + $0x328] sm:$0xff]
        %v878 = vld [vmem:[#allocation5 + $0x330] sm:$0xff]
        %v879 = vld [vmem:[#allocation5 + $0x338] sm:$0xff]
        %v880 = vld [vmem:[#allocation5 + $0x340] sm:$0xff]
        %v881 = vld [vmem:[#allocation5 + $0x348] sm:$0xff]
        %v882 = vld [vmem:[#allocation5 + $0x350] sm:$0xff]
        %v883 = vld [vmem:[#allocation5 + $0x358] sm:$0xff]
        %v884 = vld [vmem:[#allocation5 + $0x360] sm:$0xff]
        %v885 = vld [vmem:[#allocation5 + $0x368] sm:$0xff]
        %v886 = vld [vmem:[#allocation5 + $0x370] sm:$0xff]
        %v887 = vld [vmem:[#allocation5 + $0x378] sm:$0xff]
        %v888 = vld [vmem:[#allocation5 + $0x380] sm:$0xff]
        %v889 = vld [vmem:[#allocation5 + $0x388] sm:$0xff]
        %v890 = vld [vmem:[#allocation5 + $0x390] sm:$0xff]
        %v891 = vld [vmem:[#allocation5 + $0x398] sm:$0xff]
        %v892 = vld [vmem:[#allocation5 + $0x3a0] sm:$0xff]
        %v893 = vld [vmem:[#allocation5 + $0x3a8] sm:$0xff]
        %v894 = vld [vmem:[#allocation5 + $0x3b0] sm:$0xff]
        %v895 = vld [vmem:[#allocation5 + $0x3b8] sm:$0xff]
        %v896 = vld [vmem:[#allocation5 + $0x3c0] sm:$0xff]
        %v897 = vld [vmem:[#allocation5 + $0x3c8] sm:$0xff]
        %v898 = vld [vmem:[#allocation5 + $0x3d0] sm:$0xff]
        %v899 = vld [vmem:[#allocation5 + $0x3d8] sm:$0xff]
        %v900 = vld [vmem:[#allocation5 + $0x3e0] sm:$0xff]
        %v901 = vld [vmem:[#allocation5 + $0x3e8] sm:$0xff]
        %v902 = vld [vmem:[#allocation5 + $0x3f0] sm:$0xff]
        %v903 = vld [vmem:[#allocation5 + $0x3f8] sm:$0xff]
        %v904 = vld [vmem:[#allocation5 + $0x400] sm:$0xff]
        %v905 = vld [vmem:[#allocation5 + $0x408] sm:$0xff]
        %v906 = vld [vmem:[#allocation5 + $0x410] sm:$0xff]
        %v907 = vld [vmem:[#allocation5 + $0x418] sm:$0xff]
        %v908 = vld [vmem:[#allocation5 + $0x420] sm:$0xff]
        %v909 = vld [vmem:[#allocation5 + $0x428] sm:$0xff]
        %v910 = vld [vmem:[#allocation5 + $0x430] sm:$0xff]
        %v911 = vld [vmem:[#allocation5 + $0x438] sm:$0xff]
        %v912 = vld [vmem:[#allocation5 + $0x440] sm:$0xff]
        %v913 = vld [vmem:[#allocation5 + $0x448] sm:$0xff]
        %v914 = vld [vmem:[#allocation5 + $0x450] sm:$0xff]
        %v915 = vld [vmem:[#allocation5 + $0x458] sm:$0xff]
        %v916 = vld [vmem:[#allocation5 + $0x460] sm:$0xff]
        %v917 = vld [vmem:[#allocation5 + $0x468] sm:$0xff]
        %v918 = vld [vmem:[#allocation5 + $0x470] sm:$0xff]
        %v919 = vld [vmem:[#allocation5 + $0x478] sm:$0xff]
        %v920 = vld [vmem:[#allocation5 + $0x480] sm:$0xff]
        %v921 = vld [vmem:[#allocation5 + $0x488] sm:$0xff]
        %v922 = vld [vmem:[#allocation5 + $0x490] sm:$0xff]
        %v923 = vld [vmem:[#allocation5 + $0x498] sm:$0xff]
        %v924 = vld [vmem:[#allocation5 + $0x4a0] sm:$0xff]
        %v925 = vld [vmem:[#allocation5 + $0x4a8] sm:$0xff]
        %v926 = vld [vmem:[#allocation5 + $0x4b0] sm:$0xff]
        %v927 = vld [vmem:[#allocation5 + $0x4b8] sm:$0xff]
        %v928 = vld [vmem:[#allocation5 + $0x4c0] sm:$0xff]
        %v929 = vld [vmem:[#allocation5 + $0x4c8] sm:$0xff]
        %v930 = vld [vmem:[#allocation5 + $0x4d0] sm:$0xff]
        %v931 = vld [vmem:[#allocation5 + $0x4d8] sm:$0xff]
        %v932 = vld [vmem:[#allocation5 + $0x4e0] sm:$0xff]
        %v933 = vld [vmem:[#allocation5 + $0x4e8] sm:$0xff]
        %v934 = vld [vmem:[#allocation5 + $0x4f0] sm:$0xff]
        %v935 = vld [vmem:[#allocation5 + $0x4f8] sm:$0xff]
        %v936 = vld [vmem:[#allocation5 + $0x500] sm:$0xff]
        %v937 = vld [vmem:[#allocation5 + $0x508] sm:$0xff]
        %v938 = vld [vmem:[#allocation5 + $0x510] sm:$0xff]
        %v939 = vld [vmem:[#allocation5 + $0x518] sm:$0xff]
        %v940 = vld [vmem:[#allocation5 + $0x520] sm:$0xff]
        %v941 = vld [vmem:[#allocation5 + $0x528] sm:$0xff]
        %v942 = vld [vmem:[#allocation5 + $0x530] sm:$0xff]
        %v943 = vld [vmem:[#allocation5 + $0x538] sm:$0xff]
        %v944 = vld [vmem:[#allocation5 + $0x540] sm:$0xff]
        %v945 = vld [vmem:[#allocation5 + $0x548] sm:$0xff]
        %v946 = vld [vmem:[#allocation5 + $0x550] sm:$0xff]
        %v947 = vld [vmem:[#allocation5 + $0x558] sm:$0xff]
        %v948 = vld [vmem:[#allocation5 + $0x560] sm:$0xff]
        %v949 = vld [vmem:[#allocation5 + $0x568] sm:$0xff]
        %v950 = vld [vmem:[#allocation5 + $0x570] sm:$0xff]
        %v951 = vld [vmem:[#allocation5 + $0x578] sm:$0xff]
        %v952 = vld [vmem:[#allocation5 + $0x580] sm:$0xff]
        %v953 = vld [vmem:[#allocation5 + $0x588] sm:$0xff]
        %v954 = vld [vmem:[#allocation5 + $0x590] sm:$0xff]
        %v955 = vld [vmem:[#allocation5 + $0x598] sm:$0xff]
        %v956 = vld [vmem:[#allocation5 + $0x5a0] sm:$0xff]
        %v957 = vld [vmem:[#allocation5 + $0x5a8] sm:$0xff]
        %v958 = vld [vmem:[#allocation5 + $0x5b0] sm:$0xff]
        %v959 = vld [vmem:[#allocation5 + $0x5b8] sm:$0xff]
        %v960 = vld [vmem:[#allocation5 + $0x5c0] sm:$0xff]
        %v961 = vld [vmem:[#allocation5 + $0x5c8] sm:$0xff]
        %v962 = vld [vmem:[#allocation5 + $0x5d0] sm:$0xff]
        %v963 = vld [vmem:[#allocation5 + $0x5d8] sm:$0xff]
        %v964 = vld [vmem:[#allocation5 + $0x5e0] sm:$0xff]
        %v965 = vld [vmem:[#allocation5 + $0x5e8] sm:$0xff]
        %v966 = vld [vmem:[#allocation5 + $0x5f0] sm:$0xff]
        %v967 = vld [vmem:[#allocation5 + $0x5f8] sm:$0xff]
        %v968 = vld [vmem:[#allocation5 + $0x600] sm:$0xff]
        %v969 = vld [vmem:[#allocation5 + $0x608] sm:$0xff]
        %v970 = vld [vmem:[#allocation5 + $0x610] sm:$0xff]
        %v971 = vld [vmem:[#allocation5 + $0x618] sm:$0xff]
        %v972 = vld [vmem:[#allocation5 + $0x620] sm:$0xff]
        %v973 = vld [vmem:[#allocation5 + $0x628] sm:$0xff]
        %v974 = vld [vmem:[#allocation5 + $0x630] sm:$0xff]
        %v975 = vld [vmem:[#allocation5 + $0x638] sm:$0xff]
        %v976 = vld [vmem:[#allocation5 + $0x640] sm:$0xff]
        %v977 = vld [vmem:[#allocation5 + $0x648] sm:$0xff]
        %v978 = vld [vmem:[#allocation5 + $0x650] sm:$0xff]
        %v979 = vld [vmem:[#allocation5 + $0x658] sm:$0xff]
        %v980 = vld [vmem:[#allocation5 + $0x660] sm:$0xff]
        %v981 = vld [vmem:[#allocation5 + $0x668] sm:$0xff]
        %v982 = vld [vmem:[#allocation5 + $0x670] sm:$0xff]
        %v983 = vld [vmem:[#allocation5 + $0x678] sm:$0xff]
        %v984 = vld [vmem:[#allocation5 + $0x680] sm:$0xff]
        %v985 = vld [vmem:[#allocation5 + $0x688] sm:$0xff]
        %v986 = vld [vmem:[#allocation5 + $0x690] sm:$0xff]
        %v987 = vld [vmem:[#allocation5 + $0x698] sm:$0xff]
        %v988 = vld [vmem:[#allocation5 + $0x6a0] sm:$0xff]
        %v989 = vld [vmem:[#allocation5 + $0x6a8] sm:$0xff]
        %v990 = vld [vmem:[#allocation5 + $0x6b0] sm:$0xff]
        %v991 = vld [vmem:[#allocation5 + $0x6b8] sm:$0xff]
        %v992 = vld [vmem:[#allocation5 + $0x6c0] sm:$0xff]
        %v993 = vld [vmem:[#allocation5 + $0x6c8] sm:$0xff]
        %v994 = vld [vmem:[#allocation5 + $0x6d0] sm:$0xff]
        %v995 = vld [vmem:[#allocation5 + $0x6d8] sm:$0xff]
        %v996 = vld [vmem:[#allocation5 + $0x6e0] sm:$0xff]
        %v997 = vld [vmem:[#allocation5 + $0x6e8] sm:$0xff]
        %v998 = vld [vmem:[#allocation5 + $0x6f0] sm:$0xff]
        %v999 = vld [vmem:[#allocation5 + $0x6f8] sm:$0xff]
        %v1000 = vld [vmem:[#allocation5 + $0x700] sm:$0xff]
        %v1001 = vld [vmem:[#allocation5 + $0x708] sm:$0xff]
        %v1002 = vld [vmem:[#allocation5 + $0x710] sm:$0xff]
        %v1003 = vld [vmem:[#allocation5 + $0x718] sm:$0xff]
        %v1004 = vld [vmem:[#allocation5 + $0x720] sm:$0xff]
        %v1005 = vld [vmem:[#allocation5 + $0x728] sm:$0xff]
        %v1006 = vld [vmem:[#allocation5 + $0x730] sm:$0xff]
        %v1007 = vld [vmem:[#allocation5 + $0x738] sm:$0xff]
        %v1008 = vld [vmem:[#allocation5 + $0x740] sm:$0xff]
        %v1009 = vld [vmem:[#allocation5 + $0x748] sm:$0xff]
        %v1010 = vld [vmem:[#allocation5 + $0x750] sm:$0xff]
        %v1011 = vld [vmem:[#allocation5 + $0x758] sm:$0xff]
        %v1012 = vld [vmem:[#allocation5 + $0x760] sm:$0xff]
        %v1013 = vld [vmem:[#allocation5 + $0x768] sm:$0xff]
        %v1014 = vld [vmem:[#allocation5 + $0x770] sm:$0xff]
        %v1015 = vld [vmem:[#allocation5 + $0x778] sm:$0xff]
        %v1016 = vld [vmem:[#allocation5 + $0x780] sm:$0xff]
        %v1017 = vld [vmem:[#allocation5 + $0x788] sm:$0xff]
        %v1018 = vld [vmem:[#allocation5 + $0x790] sm:$0xff]
        %v1019 = vld [vmem:[#allocation5 + $0x798] sm:$0xff]
        %v1020 = vld [vmem:[#allocation5 + $0x7a0] sm:$0xff]
        %v1021 = vld [vmem:[#allocation5 + $0x7a8] sm:$0xff]
        %v1022 = vld [vmem:[#allocation5 + $0x7b0] sm:$0xff]
        %v1023 = vld [vmem:[#allocation5 + $0x7b8] sm:$0xff]
        %v1024 = vld [vmem:[#allocation5 + $0x7c0] sm:$0xff]
        %v1025 = vld [vmem:[#allocation5 + $0x7c8] sm:$0xff]
        %v1026 = vld [vmem:[#allocation5 + $0x7d0] sm:$0xff]
        %v1027 = vld [vmem:[#allocation5 + $0x7d8] sm:$0xff]
        %v1028 = vld [vmem:[#allocation5 + $0x7e0] sm:$0xff]
        %v1029 = vld [vmem:[#allocation5 + $0x7e8] sm:$0xff]
        %v1030 = vld [vmem:[#allocation5 + $0x7f0] sm:$0xff]
        %v1031 = vld [vmem:[#allocation5 + $0x7f8] sm:$0xff]
        %v1032 = vld [vmem:[#allocation5 + $0x800] sm:$0xff]
        %v1033 = vld [vmem:[#allocation5 + $0x808] sm:$0xff]
        %v1034 = vld [vmem:[#allocation5 + $0x810] sm:$0xff]
        %v1035 = vld [vmem:[#allocation5 + $0x818] sm:$0xff]
        %v1036 = vld [vmem:[#allocation5 + $0x820] sm:$0xff]
        %v1037 = vld [vmem:[#allocation5 + $0x828] sm:$0xff]
        %v1038 = vld [vmem:[#allocation5 + $0x830] sm:$0xff]
        %v1039 = vld [vmem:[#allocation5 + $0x838] sm:$0xff]
        %v1040 = vld [vmem:[#allocation5 + $0x840] sm:$0xff]
        %v1041 = vld [vmem:[#allocation5 + $0x848] sm:$0xff]
        %v1042 = vld [vmem:[#allocation5 + $0x850] sm:$0xff]
        %v1043 = vld [vmem:[#allocation5 + $0x858] sm:$0xff]
        %v1044 = vld [vmem:[#allocation5 + $0x860] sm:$0xff]
        %v1045 = vld [vmem:[#allocation5 + $0x868] sm:$0xff]
        %v1046 = vld [vmem:[#allocation5 + $0x870] sm:$0xff]
        %v1047 = vld [vmem:[#allocation5 + $0x878] sm:$0xff]
        %v1048 = vld [vmem:[#allocation5 + $0x880] sm:$0xff]
        %v1049 = vld [vmem:[#allocation5 + $0x888] sm:$0xff]
        %v1050 = vld [vmem:[#allocation5 + $0x890] sm:$0xff]
        %v1051 = vld [vmem:[#allocation5 + $0x898] sm:$0xff]
        %v1052 = vld [vmem:[#allocation5 + $0x8a0] sm:$0xff]
        %v1053 = vld [vmem:[#allocation5 + $0x8a8] sm:$0xff]
        %v1054 = vld [vmem:[#allocation5 + $0x8b0] sm:$0xff]
        %v1055 = vld [vmem:[#allocation5 + $0x8b8] sm:$0xff]
        %v1056 = vld [vmem:[#allocation5 + $0x8c0] sm:$0xff]
        %v1057 = vld [vmem:[#allocation5 + $0x8c8] sm:$0xff]
        %v1058 = vld [vmem:[#allocation5 + $0x8d0] sm:$0xff]
        %v1059 = vld [vmem:[#allocation5 + $0x8d8] sm:$0xff]
        %v1060 = vld [vmem:[#allocation5 + $0x8e0] sm:$0xff]
        %v1061 = vld [vmem:[#allocation5 + $0x8e8] sm:$0xff]
        %v1062 = vld [vmem:[#allocation5 + $0x8f0] sm:$0xff]
        %v1063 = vld [vmem:[#allocation5 + $0x8f8] sm:$0xff]
        %v1064 = vld [vmem:[#allocation5 + $0x900] sm:$0xff]
        %v1065 = vld [vmem:[#allocation5 + $0x908] sm:$0xff]
        %v1066 = vld [vmem:[#allocation5 + $0x910] sm:$0xff]
        %v1067 = vld [vmem:[#allocation5 + $0x918] sm:$0xff]
        %v1068 = vld [vmem:[#allocation5 + $0x920] sm:$0xff]
        %v1069 = vld [vmem:[#allocation5 + $0x928] sm:$0xff]
        %v1070 = vld [vmem:[#allocation5 + $0x930] sm:$0xff]
        %v1071 = vld [vmem:[#allocation5 + $0x938] sm:$0xff]
        %v1072 = vld [vmem:[#allocation5 + $0x940] sm:$0xff]
        %v1073 = vld [vmem:[#allocation5 + $0x948] sm:$0xff]
        %v1074 = vld [vmem:[#allocation5 + $0x950] sm:$0xff]
        %v1075 = vld [vmem:[#allocation5 + $0x958] sm:$0xff]
        %v1076 = vld [vmem:[#allocation5 + $0x960] sm:$0xff]
        %v1077 = vld [vmem:[#allocation5 + $0x968] sm:$0xff]
        %v1078 = vld [vmem:[#allocation5 + $0x970] sm:$0xff]
        %v1079 = vld [vmem:[#allocation5 + $0x978] sm:$0xff]
        %v1080 = vld [vmem:[#allocation5 + $0x980] sm:$0xff]
        %v1081 = vld [vmem:[#allocation5 + $0x988] sm:$0xff]
        %v1082 = vld [vmem:[#allocation5 + $0x990] sm:$0xff]
        %v1083 = vld [vmem:[#allocation5 + $0x998] sm:$0xff]
        %v1084 = vld [vmem:[#allocation5 + $0x9a0] sm:$0xff]
        %v1085 = vld [vmem:[#allocation5 + $0x9a8] sm:$0xff]
        %v1086 = vld [vmem:[#allocation5 + $0x9b0] sm:$0xff]
        %v1087 = vld [vmem:[#allocation5 + $0x9b8] sm:$0xff]
        %v1088 = vld [vmem:[#allocation5 + $0x9c0] sm:$0xff]
        %v1089 = vld [vmem:[#allocation5 + $0x9c8] sm:$0xff]
        %v1090 = vld [vmem:[#allocation5 + $0x9d0] sm:$0xff]
        %v1091 = vld [vmem:[#allocation5 + $0x9d8] sm:$0xff]
        %v1092 = vld [vmem:[#allocation5 + $0x9e0] sm:$0xff]
        %v1093 = vld [vmem:[#allocation5 + $0x9e8] sm:$0xff]
        %v1094 = vld [vmem:[#allocation5 + $0x9f0] sm:$0xff]
        %v1095 = vld [vmem:[#allocation5 + $0x9f8] sm:$0xff]
        %v1096 = vld [vmem:[#allocation5 + $0xa00] sm:$0xff]
        %v1097 = vld [vmem:[#allocation5 + $0xa08] sm:$0xff]
        %v1098 = vld [vmem:[#allocation5 + $0xa10] sm:$0xff]
        %v1099 = vld [vmem:[#allocation5 + $0xa18] sm:$0xff]
        %v1100 = vld [vmem:[#allocation5 + $0xa20] sm:$0xff]
        %v1101 = vld [vmem:[#allocation5 + $0xa28] sm:$0xff]
        %v1102 = vld [vmem:[#allocation5 + $0xa30] sm:$0xff]
        %v1103 = vld [vmem:[#allocation5 + $0xa38] sm:$0xff]
        %v1104 = vld [vmem:[#allocation5 + $0xa40] sm:$0xff]
        %v1105 = vld [vmem:[#allocation5 + $0xa48] sm:$0xff]
        %v1106 = vld [vmem:[#allocation5 + $0xa50] sm:$0xff]
        %v1107 = vld [vmem:[#allocation5 + $0xa58] sm:$0xff]
        %v1108 = vld [vmem:[#allocation5 + $0xa60] sm:$0xff]
        %v1109 = vld [vmem:[#allocation5 + $0xa68] sm:$0xff]
        %v1110 = vld [vmem:[#allocation5 + $0xa70] sm:$0xff]
        %v1111 = vld [vmem:[#allocation5 + $0xa78] sm:$0xff]
        %v1112 = vld [vmem:[#allocation5 + $0xa80] sm:$0xff]
        %v1113 = vld [vmem:[#allocation5 + $0xa88] sm:$0xff]
        %v1114 = vld [vmem:[#allocation5 + $0xa90] sm:$0xff]
        %v1115 = vld [vmem:[#allocation5 + $0xa98] sm:$0xff]
        %v1116 = vld [vmem:[#allocation5 + $0xaa0] sm:$0xff]
        %v1117 = vld [vmem:[#allocation5 + $0xaa8] sm:$0xff]
        %v1118 = vld [vmem:[#allocation5 + $0xab0] sm:$0xff]
        %v1119 = vld [vmem:[#allocation5 + $0xab8] sm:$0xff]
        %v1120 = vld [vmem:[#allocation5 + $0xac0] sm:$0xff]
        %v1121 = vld [vmem:[#allocation5 + $0xac8] sm:$0xff]
        %v1122 = vld [vmem:[#allocation5 + $0xad0] sm:$0xff]
        %v1123 = vld [vmem:[#allocation5 + $0xad8] sm:$0xff]
        %v1124 = vld [vmem:[#allocation5 + $0xae0] sm:$0xff]
        %v1125 = vld [vmem:[#allocation5 + $0xae8] sm:$0xff]
        %v1126 = vld [vmem:[#allocation5 + $0xaf0] sm:$0xff]
        %v1127 = vld [vmem:[#allocation5 + $0xaf8] sm:$0xff]
        %v1128 = vld [vmem:[#allocation5 + $0xb00] sm:$0xff]
        %v1129 = vld [vmem:[#allocation5 + $0xb08] sm:$0xff]
        %v1130 = vld [vmem:[#allocation5 + $0xb10] sm:$0xff]
        %v1131 = vld [vmem:[#allocation5 + $0xb18] sm:$0xff]
        %v1132 = vld [vmem:[#allocation5 + $0xb20] sm:$0xff]
        %v1133 = vld [vmem:[#allocation5 + $0xb28] sm:$0xff]
        %v1134 = vld [vmem:[#allocation5 + $0xb30] sm:$0xff]
        %v1135 = vld [vmem:[#allocation5 + $0xb38] sm:$0xff]
        %v1136 = vld [vmem:[#allocation5 + $0xb40] sm:$0xff]
        %v1137 = vld [vmem:[#allocation5 + $0xb48] sm:$0xff]
        %v1138 = vld [vmem:[#allocation5 + $0xb50] sm:$0xff]
        %v1139 = vld [vmem:[#allocation5 + $0xb58] sm:$0xff]
        %v1140 = vld [vmem:[#allocation5 + $0xb60] sm:$0xff]
        %v1141 = vld [vmem:[#allocation5 + $0xb68] sm:$0xff]
        %v1142 = vld [vmem:[#allocation5 + $0xb70] sm:$0xff]
        %v1143 = vld [vmem:[#allocation5 + $0xb78] sm:$0xff]
        %v1144 = vld [vmem:[#allocation5 + $0xb80] sm:$0xff]
        %v1145 = vld [vmem:[#allocation5 + $0xb88] sm:$0xff]
        %v1146 = vld [vmem:[#allocation5 + $0xb90] sm:$0xff]
        %v1147 = vld [vmem:[#allocation5 + $0xb98] sm:$0xff]
        %v1148 = vld [vmem:[#allocation5 + $0xba0] sm:$0xff]
        %v1149 = vld [vmem:[#allocation5 + $0xba8] sm:$0xff]
        %v1150 = vld [vmem:[#allocation5 + $0xbb0] sm:$0xff]
        %v1151 = vld [vmem:[#allocation5 + $0xbb8] sm:$0xff]
        %v1152 = vld [vmem:[#allocation5 + $0xbc0] sm:$0xff]
        %v1153 = vld [vmem:[#allocation5 + $0xbc8] sm:$0xff]
        %v1154 = vld [vmem:[#allocation5 + $0xbd0] sm:$0xff]
        %v1155 = vld [vmem:[#allocation5 + $0xbd8] sm:$0xff]
        %v1156 = vld [vmem:[#allocation5 + $0xbe0] sm:$0xff]
        %v1157 = vld [vmem:[#allocation5 + $0xbe8] sm:$0xff]
        %v1158 = vld [vmem:[#allocation5 + $0xbf0] sm:$0xff]
        %v1159 = vld [vmem:[#allocation5 + $0xbf8] sm:$0xff]
        %v1160 = vld [vmem:[#allocation7] sm:$0x3]
        %v1162 = vperm.slane %v1160, 0
        %v1163 = vperm.slane %v1160, 1
        %v1550 = vunpack.c.l.b16 %v776
        %v1551 = vunpack.c.h.b16 %v776
        %v1552 = vunpack.c.l.b16 %v777
        %v1553 = vunpack.c.h.b16 %v777
        %v1554 = vunpack.c.l.b16 %v778
        %v1555 = vunpack.c.h.b16 %v778
        %v1556 = vunpack.c.l.b16 %v779
        %v1557 = vunpack.c.h.b16 %v779
        %v1558 = vunpack.c.l.b16 %v780
        %v1559 = vunpack.c.h.b16 %v780
        %v1560 = vunpack.c.l.b16 %v781
        %v1561 = vunpack.c.h.b16 %v781
        %v1562 = vunpack.c.l.b16 %v782
        %v1563 = vunpack.c.h.b16 %v782
        %v1564 = vunpack.c.l.b16 %v783
        %v1565 = vunpack.c.h.b16 %v783
        %v1566 = vunpack.c.l.b16 %v784
        %v1567 = vunpack.c.h.b16 %v784
        %v1568 = vunpack.c.l.b16 %v785
        %v1569 = vunpack.c.h.b16 %v785
        %v1570 = vunpack.c.l.b16 %v786
        %v1571 = vunpack.c.h.b16 %v786
        %v1572 = vunpack.c.l.b16 %v787
        %v1573 = vunpack.c.h.b16 %v787
        %v1574 = vunpack.c.l.b16 %v788
        %v1575 = vunpack.c.h.b16 %v788
        %v1576 = vunpack.c.l.b16 %v789
        %v1577 = vunpack.c.h.b16 %v789
        %v1578 = vunpack.c.l.b16 %v790
        %v1579 = vunpack.c.h.b16 %v790
        %v1580 = vunpack.c.l.b16 %v791
        %v1581 = vunpack.c.h.b16 %v791
        %v1582 = vunpack.c.l.b16 %v792
        %v1583 = vunpack.c.h.b16 %v792
        %v1584 = vunpack.c.l.b16 %v793
        %v1585 = vunpack.c.h.b16 %v793
        %v1586 = vunpack.c.l.b16 %v794
        %v1587 = vunpack.c.h.b16 %v794
        %v1588 = vunpack.c.l.b16 %v795
        %v1589 = vunpack.c.h.b16 %v795
        %v1590 = vunpack.c.l.b16 %v796
        %v1591 = vunpack.c.h.b16 %v796
        %v1592 = vunpack.c.l.b16 %v797
        %v1593 = vunpack.c.h.b16 %v797
        %v1594 = vunpack.c.l.b16 %v798
        %v1595 = vunpack.c.h.b16 %v798
        %v1596 = vunpack.c.l.b16 %v799
        %v1597 = vunpack.c.h.b16 %v799
        %v1598 = vunpack.c.l.b16 %v800
        %v1599 = vunpack.c.h.b16 %v800
        %v1600 = vunpack.c.l.b16 %v801
        %v1601 = vunpack.c.h.b16 %v801
        %v1602 = vunpack.c.l.b16 %v802
        %v1603 = vunpack.c.h.b16 %v802
        %v1604 = vunpack.c.l.b16 %v803
        %v1605 = vunpack.c.h.b16 %v803
        %v1606 = vunpack.c.l.b16 %v804
        %v1607 = vunpack.c.h.b16 %v804
        %v1608 = vunpack.c.l.b16 %v805
        %v1609 = vunpack.c.h.b16 %v805
        %v1610 = vunpack.c.l.b16 %v806
        %v1611 = vunpack.c.h.b16 %v806
        %v1612 = vunpack.c.l.b16 %v807
        %v1613 = vunpack.c.h.b16 %v807
        %v1614 = vunpack.c.l.b16 %v808
        %v1615 = vunpack.c.h.b16 %v808
        %v1616 = vunpack.c.l.b16 %v809
        %v1617 = vunpack.c.h.b16 %v809
        %v1618 = vunpack.c.l.b16 %v810
        %v1619 = vunpack.c.h.b16 %v810
        %v1620 = vunpack.c.l.b16 %v811
        %v1621 = vunpack.c.h.b16 %v811
        %v1622 = vunpack.c.l.b16 %v812
        %v1623 = vunpack.c.h.b16 %v812
        %v1624 = vunpack.c.l.b16 %v813
        %v1625 = vunpack.c.h.b16 %v813
        %v1626 = vunpack.c.l.b16 %v814
        %v1627 = vunpack.c.h.b16 %v814
        %v1628 = vunpack.c.l.b16 %v815
        %v1629 = vunpack.c.h.b16 %v815
        %v1630 = vunpack.c.l.b16 %v816
        %v1631 = vunpack.c.h.b16 %v816
        %v1632 = vunpack.c.l.b16 %v817
        %v1633 = vunpack.c.h.b16 %v817
        %v1634 = vunpack.c.l.b16 %v818
        %v1635 = vunpack.c.h.b16 %v818
        %v1636 = vunpack.c.l.b16 %v819
        %v1637 = vunpack.c.h.b16 %v819
        %v1638 = vunpack.c.l.b16 %v820
        %v1639 = vunpack.c.h.b16 %v820
        %v1640 = vunpack.c.l.b16 %v821
        %v1641 = vunpack.c.h.b16 %v821
        %v1642 = vunpack.c.l.b16 %v822
        %v1643 = vunpack.c.h.b16 %v822
        %v1644 = vunpack.c.l.b16 %v823
        %v1645 = vunpack.c.h.b16 %v823
        %v1646 = vunpack.c.l.b16 %v824
        %v1647 = vunpack.c.h.b16 %v824
        %v1648 = vunpack.c.l.b16 %v825
        %v1649 = vunpack.c.h.b16 %v825
        %v1650 = vunpack.c.l.b16 %v826
        %v1651 = vunpack.c.h.b16 %v826
        %v1652 = vunpack.c.l.b16 %v827
        %v1653 = vunpack.c.h.b16 %v827
        %v1654 = vunpack.c.l.b16 %v828
        %v1655 = vunpack.c.h.b16 %v828
        %v1656 = vunpack.c.l.b16 %v829
        %v1657 = vunpack.c.h.b16 %v829
        %v1658 = vunpack.c.l.b16 %v830
        %v1659 = vunpack.c.h.b16 %v830
        %v1660 = vunpack.c.l.b16 %v831
        %v1661 = vunpack.c.h.b16 %v831
        %v1662 = vunpack.c.l.b16 %v832
        %v1663 = vunpack.c.h.b16 %v832
        %v1664 = vunpack.c.l.b16 %v833
        %v1665 = vunpack.c.h.b16 %v833
        %v1666 = vunpack.c.l.b16 %v834
        %v1667 = vunpack.c.h.b16 %v834
        %v1668 = vunpack.c.l.b16 %v835
        %v1669 = vunpack.c.h.b16 %v835
        %v1670 = vunpack.c.l.b16 %v836
        %v1671 = vunpack.c.h.b16 %v836
        %v1672 = vunpack.c.l.b16 %v837
        %v1673 = vunpack.c.h.b16 %v837
        %v1674 = vunpack.c.l.b16 %v838
        %v1675 = vunpack.c.h.b16 %v838
        %v1676 = vunpack.c.l.b16 %v839
        %v1677 = vunpack.c.h.b16 %v839
        %v1678 = vunpack.c.l.b16 %v840
        %v1679 = vunpack.c.h.b16 %v840
        %v1680 = vunpack.c.l.b16 %v841
        %v1681 = vunpack.c.h.b16 %v841
        %v1682 = vunpack.c.l.b16 %v842
        %v1683 = vunpack.c.h.b16 %v842
        %v1684 = vunpack.c.l.b16 %v843
        %v1685 = vunpack.c.h.b16 %v843
        %v1686 = vunpack.c.l.b16 %v844
        %v1687 = vunpack.c.h.b16 %v844
        %v1688 = vunpack.c.l.b16 %v845
        %v1689 = vunpack.c.h.b16 %v845
        %v1690 = vunpack.c.l.b16 %v846
        %v1691 = vunpack.c.h.b16 %v846
        %v1692 = vunpack.c.l.b16 %v847
        %v1693 = vunpack.c.h.b16 %v847
        %v1694 = vunpack.c.l.b16 %v848
        %v1695 = vunpack.c.h.b16 %v848
        %v1696 = vunpack.c.l.b16 %v849
        %v1697 = vunpack.c.h.b16 %v849
        %v1698 = vunpack.c.l.b16 %v850
        %v1699 = vunpack.c.h.b16 %v850
        %v1700 = vunpack.c.l.b16 %v851
        %v1701 = vunpack.c.h.b16 %v851
        %v1702 = vunpack.c.l.b16 %v852
        %v1703 = vunpack.c.h.b16 %v852
        %v1704 = vunpack.c.l.b16 %v853
        %v1705 = vunpack.c.h.b16 %v853
        %v1706 = vunpack.c.l.b16 %v854
        %v1707 = vunpack.c.h.b16 %v854
        %v1708 = vunpack.c.l.b16 %v855
        %v1709 = vunpack.c.h.b16 %v855
        %v1710 = vunpack.c.l.b16 %v856
        %v1711 = vunpack.c.h.b16 %v856
        %v1712 = vunpack.c.l.b16 %v857
        %v1713 = vunpack.c.h.b16 %v857
        %v1714 = vunpack.c.l.b16 %v858
        %v1715 = vunpack.c.h.b16 %v858
        %v1716 = vunpack.c.l.b16 %v859
        %v1717 = vunpack.c.h.b16 %v859
        %v1718 = vunpack.c.l.b16 %v860
        %v1719 = vunpack.c.h.b16 %v860
        %v1720 = vunpack.c.l.b16 %v861
        %v1721 = vunpack.c.h.b16 %v861
        %v1722 = vunpack.c.l.b16 %v862
        %v1723 = vunpack.c.h.b16 %v862
        %v1724 = vunpack.c.l.b16 %v863
        %v1725 = vunpack.c.h.b16 %v863
        %v1726 = vunpack.c.l.b16 %v864
        %v1727 = vunpack.c.h.b16 %v864
        %v1728 = vunpack.c.l.b16 %v865
        %v1729 = vunpack.c.h.b16 %v865
        %v1730 = vunpack.c.l.b16 %v866
        %v1731 = vunpack.c.h.b16 %v866
        %v1732 = vunpack.c.l.b16 %v867
        %v1733 = vunpack.c.h.b16 %v867
        %v1734 = vunpack.c.l.b16 %v868
        %v1735 = vunpack.c.h.b16 %v868
        %v1736 = vunpack.c.l.b16 %v869
        %v1737 = vunpack.c.h.b16 %v869
        %v1738 = vunpack.c.l.b16 %v870
        %v1739 = vunpack.c.h.b16 %v870
        %v1740 = vunpack.c.l.b16 %v871
        %v1741 = vunpack.c.h.b16 %v871
        %v1742 = vunpack.c.l.b16 %v872
        %v1743 = vunpack.c.h.b16 %v872
        %v1744 = vunpack.c.l.b16 %v873
        %v1745 = vunpack.c.h.b16 %v873
        %v1746 = vunpack.c.l.b16 %v874
        %v1747 = vunpack.c.h.b16 %v874
        %v1748 = vunpack.c.l.b16 %v875
        %v1749 = vunpack.c.h.b16 %v875
        %v1750 = vunpack.c.l.b16 %v876
        %v1751 = vunpack.c.h.b16 %v876
        %v1752 = vunpack.c.l.b16 %v877
        %v1753 = vunpack.c.h.b16 %v877
        %v1754 = vunpack.c.l.b16 %v878
        %v1755 = vunpack.c.h.b16 %v878
        %v1756 = vunpack.c.l.b16 %v879
        %v1757 = vunpack.c.h.b16 %v879
        %v1758 = vunpack.c.l.b16 %v880
        %v1759 = vunpack.c.h.b16 %v880
        %v1760 = vunpack.c.l.b16 %v881
        %v1761 = vunpack.c.h.b16 %v881
        %v1762 = vunpack.c.l.b16 %v882
        %v1763 = vunpack.c.h.b16 %v882
        %v1764 = vunpack.c.l.b16 %v883
        %v1765 = vunpack.c.h.b16 %v883
        %v1766 = vunpack.c.l.b16 %v884
        %v1767 = vunpack.c.h.b16 %v884
        %v1768 = vunpack.c.l.b16 %v885
        %v1769 = vunpack.c.h.b16 %v885
        %v1770 = vunpack.c.l.b16 %v886
        %v1771 = vunpack.c.h.b16 %v886
        %v1772 = vunpack.c.l.b16 %v887
        %v1773 = vunpack.c.h.b16 %v887
        %v1774 = vunpack.c.l.b16 %v888
        %v1775 = vunpack.c.h.b16 %v888
        %v1776 = vunpack.c.l.b16 %v889
        %v1777 = vunpack.c.h.b16 %v889
        %v1778 = vunpack.c.l.b16 %v890
        %v1779 = vunpack.c.h.b16 %v890
        %v1780 = vunpack.c.l.b16 %v891
        %v1781 = vunpack.c.h.b16 %v891
        %v1782 = vunpack.c.l.b16 %v892
        %v1783 = vunpack.c.h.b16 %v892
        %v1784 = vunpack.c.l.b16 %v893
        %v1785 = vunpack.c.h.b16 %v893
        %v1786 = vunpack.c.l.b16 %v894
        %v1787 = vunpack.c.h.b16 %v894
        %v1788 = vunpack.c.l.b16 %v895
        %v1789 = vunpack.c.h.b16 %v895
        %v1790 = vunpack.c.l.b16 %v896
        %v1791 = vunpack.c.h.b16 %v896
        %v1792 = vunpack.c.l.b16 %v897
        %v1793 = vunpack.c.h.b16 %v897
        %v1794 = vunpack.c.l.b16 %v898
        %v1795 = vunpack.c.h.b16 %v898
        %v1796 = vunpack.c.l.b16 %v899
        %v1797 = vunpack.c.h.b16 %v899
        %v1798 = vunpack.c.l.b16 %v900
        %v1799 = vunpack.c.h.b16 %v900
        %v1800 = vunpack.c.l.b16 %v901
        %v1801 = vunpack.c.h.b16 %v901
        %v1802 = vunpack.c.l.b16 %v902
        %v1803 = vunpack.c.h.b16 %v902
        %v1804 = vunpack.c.l.b16 %v903
        %v1805 = vunpack.c.h.b16 %v903
        %v1806 = vunpack.c.l.b16 %v904
        %v1807 = vunpack.c.h.b16 %v904
        %v1808 = vunpack.c.l.b16 %v905
        %v1809 = vunpack.c.h.b16 %v905
        %v1810 = vunpack.c.l.b16 %v906
        %v1811 = vunpack.c.h.b16 %v906
        %v1812 = vunpack.c.l.b16 %v907
        %v1813 = vunpack.c.h.b16 %v907
        %v1814 = vunpack.c.l.b16 %v908
        %v1815 = vunpack.c.h.b16 %v908
        %v1816 = vunpack.c.l.b16 %v909
        %v1817 = vunpack.c.h.b16 %v909
        %v1818 = vunpack.c.l.b16 %v910
        %v1819 = vunpack.c.h.b16 %v910
        %v1820 = vunpack.c.l.b16 %v911
        %v1821 = vunpack.c.h.b16 %v911
        %v1822 = vunpack.c.l.b16 %v912
        %v1823 = vunpack.c.h.b16 %v912
        %v1824 = vunpack.c.l.b16 %v913
        %v1825 = vunpack.c.h.b16 %v913
        %v1826 = vunpack.c.l.b16 %v914
        %v1827 = vunpack.c.h.b16 %v914
        %v1828 = vunpack.c.l.b16 %v915
        %v1829 = vunpack.c.h.b16 %v915
        %v1830 = vunpack.c.l.b16 %v916
        %v1831 = vunpack.c.h.b16 %v916
        %v1832 = vunpack.c.l.b16 %v917
        %v1833 = vunpack.c.h.b16 %v917
        %v1834 = vunpack.c.l.b16 %v918
        %v1835 = vunpack.c.h.b16 %v918
        %v1836 = vunpack.c.l.b16 %v919
        %v1837 = vunpack.c.h.b16 %v919
        %v1838 = vunpack.c.l.b16 %v920
        %v1839 = vunpack.c.h.b16 %v920
        %v1840 = vunpack.c.l.b16 %v921
        %v1841 = vunpack.c.h.b16 %v921
        %v1842 = vunpack.c.l.b16 %v922
        %v1843 = vunpack.c.h.b16 %v922
        %v1844 = vunpack.c.l.b16 %v923
        %v1845 = vunpack.c.h.b16 %v923
        %v1846 = vunpack.c.l.b16 %v924
        %v1847 = vunpack.c.h.b16 %v924
        %v1848 = vunpack.c.l.b16 %v925
        %v1849 = vunpack.c.h.b16 %v925
        %v1850 = vunpack.c.l.b16 %v926
        %v1851 = vunpack.c.h.b16 %v926
        %v1852 = vunpack.c.l.b16 %v927
        %v1853 = vunpack.c.h.b16 %v927
        %v1854 = vunpack.c.l.b16 %v928
        %v1855 = vunpack.c.h.b16 %v928
        %v1856 = vunpack.c.l.b16 %v929
        %v1857 = vunpack.c.h.b16 %v929
        %v1858 = vunpack.c.l.b16 %v930
        %v1859 = vunpack.c.h.b16 %v930
        %v1860 = vunpack.c.l.b16 %v931
        %v1861 = vunpack.c.h.b16 %v931
        %v1862 = vunpack.c.l.b16 %v932
        %v1863 = vunpack.c.h.b16 %v932
        %v1864 = vunpack.c.l.b16 %v933
        %v1865 = vunpack.c.h.b16 %v933
        %v1866 = vunpack.c.l.b16 %v934
        %v1867 = vunpack.c.h.b16 %v934
        %v1868 = vunpack.c.l.b16 %v935
        %v1869 = vunpack.c.h.b16 %v935
        %v1870 = vunpack.c.l.b16 %v936
        %v1871 = vunpack.c.h.b16 %v936
        %v1872 = vunpack.c.l.b16 %v937
        %v1873 = vunpack.c.h.b16 %v937
        %v1874 = vunpack.c.l.b16 %v938
        %v1875 = vunpack.c.h.b16 %v938
        %v1876 = vunpack.c.l.b16 %v939
        %v1877 = vunpack.c.h.b16 %v939
        %v1878 = vunpack.c.l.b16 %v940
        %v1879 = vunpack.c.h.b16 %v940
        %v1880 = vunpack.c.l.b16 %v941
        %v1881 = vunpack.c.h.b16 %v941
        %v1882 = vunpack.c.l.b16 %v942
        %v1883 = vunpack.c.h.b16 %v942
        %v1884 = vunpack.c.l.b16 %v943
        %v1885 = vunpack.c.h.b16 %v943
        %v1886 = vunpack.c.l.b16 %v944
        %v1887 = vunpack.c.h.b16 %v944
        %v1888 = vunpack.c.l.b16 %v945
        %v1889 = vunpack.c.h.b16 %v945
        %v1890 = vunpack.c.l.b16 %v946
        %v1891 = vunpack.c.h.b16 %v946
        %v1892 = vunpack.c.l.b16 %v947
        %v1893 = vunpack.c.h.b16 %v947
        %v1894 = vunpack.c.l.b16 %v948
        %v1895 = vunpack.c.h.b16 %v948
        %v1896 = vunpack.c.l.b16 %v949
        %v1897 = vunpack.c.h.b16 %v949
        %v1898 = vunpack.c.l.b16 %v950
        %v1899 = vunpack.c.h.b16 %v950
        %v1900 = vunpack.c.l.b16 %v951
        %v1901 = vunpack.c.h.b16 %v951
        %v1902 = vunpack.c.l.b16 %v952
        %v1903 = vunpack.c.h.b16 %v952
        %v1904 = vunpack.c.l.b16 %v953
        %v1905 = vunpack.c.h.b16 %v953
        %v1906 = vunpack.c.l.b16 %v954
        %v1907 = vunpack.c.h.b16 %v954
        %v1908 = vunpack.c.l.b16 %v955
        %v1909 = vunpack.c.h.b16 %v955
        %v1910 = vunpack.c.l.b16 %v956
        %v1911 = vunpack.c.h.b16 %v956
        %v1912 = vunpack.c.l.b16 %v957
        %v1913 = vunpack.c.h.b16 %v957
        %v1914 = vunpack.c.l.b16 %v958
        %v1915 = vunpack.c.h.b16 %v958
        %v1916 = vunpack.c.l.b16 %v959
        %v1917 = vunpack.c.h.b16 %v959
        %v1918 = vunpack.c.l.b16 %v960
        %v1919 = vunpack.c.h.b16 %v960
        %v1920 = vunpack.c.l.b16 %v961
        %v1921 = vunpack.c.h.b16 %v961
        %v1922 = vunpack.c.l.b16 %v962
        %v1923 = vunpack.c.h.b16 %v962
        %v1924 = vunpack.c.l.b16 %v963
        %v1925 = vunpack.c.h.b16 %v963
        %v1926 = vunpack.c.l.b16 %v964
        %v1927 = vunpack.c.h.b16 %v964
        %v1928 = vunpack.c.l.b16 %v965
        %v1929 = vunpack.c.h.b16 %v965
        %v1930 = vunpack.c.l.b16 %v966
        %v1931 = vunpack.c.h.b16 %v966
        %v1932 = vunpack.c.l.b16 %v967
        %v1933 = vunpack.c.h.b16 %v967
        %v1934 = vunpack.c.l.b16 %v968
        %v1935 = vunpack.c.h.b16 %v968
        %v1936 = vunpack.c.l.b16 %v969
        %v1937 = vunpack.c.h.b16 %v969
        %v1938 = vunpack.c.l.b16 %v970
        %v1939 = vunpack.c.h.b16 %v970
        %v1940 = vunpack.c.l.b16 %v971
        %v1941 = vunpack.c.h.b16 %v971
        %v1942 = vunpack.c.l.b16 %v972
        %v1943 = vunpack.c.h.b16 %v972
        %v1944 = vunpack.c.l.b16 %v973
        %v1945 = vunpack.c.h.b16 %v973
        %v1946 = vunpack.c.l.b16 %v974
        %v1947 = vunpack.c.h.b16 %v974
        %v1948 = vunpack.c.l.b16 %v975
        %v1949 = vunpack.c.h.b16 %v975
        %v1950 = vunpack.c.l.b16 %v976
        %v1951 = vunpack.c.h.b16 %v976
        %v1952 = vunpack.c.l.b16 %v977
        %v1953 = vunpack.c.h.b16 %v977
        %v1954 = vunpack.c.l.b16 %v978
        %v1955 = vunpack.c.h.b16 %v978
        %v1956 = vunpack.c.l.b16 %v979
        %v1957 = vunpack.c.h.b16 %v979
        %v1958 = vunpack.c.l.b16 %v980
        %v1959 = vunpack.c.h.b16 %v980
        %v1960 = vunpack.c.l.b16 %v981
        %v1961 = vunpack.c.h.b16 %v981
        %v1962 = vunpack.c.l.b16 %v982
        %v1963 = vunpack.c.h.b16 %v982
        %v1964 = vunpack.c.l.b16 %v983
        %v1965 = vunpack.c.h.b16 %v983
        %v1966 = vunpack.c.l.b16 %v984
        %v1967 = vunpack.c.h.b16 %v984
        %v1968 = vunpack.c.l.b16 %v985
        %v1969 = vunpack.c.h.b16 %v985
        %v1970 = vunpack.c.l.b16 %v986
        %v1971 = vunpack.c.h.b16 %v986
        %v1972 = vunpack.c.l.b16 %v987
        %v1973 = vunpack.c.h.b16 %v987
        %v1974 = vunpack.c.l.b16 %v988
        %v1975 = vunpack.c.h.b16 %v988
        %v1976 = vunpack.c.l.b16 %v989
        %v1977 = vunpack.c.h.b16 %v989
        %v1978 = vunpack.c.l.b16 %v990
        %v1979 = vunpack.c.h.b16 %v990
        %v1980 = vunpack.c.l.b16 %v991
        %v1981 = vunpack.c.h.b16 %v991
        %v1982 = vunpack.c.l.b16 %v992
        %v1983 = vunpack.c.h.b16 %v992
        %v1984 = vunpack.c.l.b16 %v993
        %v1985 = vunpack.c.h.b16 %v993
        %v1986 = vunpack.c.l.b16 %v994
        %v1987 = vunpack.c.h.b16 %v994
        %v1988 = vunpack.c.l.b16 %v995
        %v1989 = vunpack.c.h.b16 %v995
        %v1990 = vunpack.c.l.b16 %v996
        %v1991 = vunpack.c.h.b16 %v996
        %v1992 = vunpack.c.l.b16 %v997
        %v1993 = vunpack.c.h.b16 %v997
        %v1994 = vunpack.c.l.b16 %v998
        %v1995 = vunpack.c.h.b16 %v998
        %v1996 = vunpack.c.l.b16 %v999
        %v1997 = vunpack.c.h.b16 %v999
        %v1998 = vunpack.c.l.b16 %v1000
        %v1999 = vunpack.c.h.b16 %v1000
        %v2000 = vunpack.c.l.b16 %v1001
        %v2001 = vunpack.c.h.b16 %v1001
        %v2002 = vunpack.c.l.b16 %v1002
        %v2003 = vunpack.c.h.b16 %v1002
        %v2004 = vunpack.c.l.b16 %v1003
        %v2005 = vunpack.c.h.b16 %v1003
        %v2006 = vunpack.c.l.b16 %v1004
        %v2007 = vunpack.c.h.b16 %v1004
        %v2008 = vunpack.c.l.b16 %v1005
        %v2009 = vunpack.c.h.b16 %v1005
        %v2010 = vunpack.c.l.b16 %v1006
        %v2011 = vunpack.c.h.b16 %v1006
        %v2012 = vunpack.c.l.b16 %v1007
        %v2013 = vunpack.c.h.b16 %v1007
        %v2014 = vunpack.c.l.b16 %v1008
        %v2015 = vunpack.c.h.b16 %v1008
        %v2016 = vunpack.c.l.b16 %v1009
        %v2017 = vunpack.c.h.b16 %v1009
        %v2018 = vunpack.c.l.b16 %v1010
        %v2019 = vunpack.c.h.b16 %v1010
        %v2020 = vunpack.c.l.b16 %v1011
        %v2021 = vunpack.c.h.b16 %v1011
        %v2022 = vunpack.c.l.b16 %v1012
        %v2023 = vunpack.c.h.b16 %v1012
        %v2024 = vunpack.c.l.b16 %v1013
        %v2025 = vunpack.c.h.b16 %v1013
        %v2026 = vunpack.c.l.b16 %v1014
        %v2027 = vunpack.c.h.b16 %v1014
        %v2028 = vunpack.c.l.b16 %v1015
        %v2029 = vunpack.c.h.b16 %v1015
        %v2030 = vunpack.c.l.b16 %v1016
        %v2031 = vunpack.c.h.b16 %v1016
        %v2032 = vunpack.c.l.b16 %v1017
        %v2033 = vunpack.c.h.b16 %v1017
        %v2034 = vunpack.c.l.b16 %v1018
        %v2035 = vunpack.c.h.b16 %v1018
        %v2036 = vunpack.c.l.b16 %v1019
        %v2037 = vunpack.c.h.b16 %v1019
        %v2038 = vunpack.c.l.b16 %v1020
        %v2039 = vunpack.c.h.b16 %v1020
        %v2040 = vunpack.c.l.b16 %v1021
        %v2041 = vunpack.c.h.b16 %v1021
        %v2042 = vunpack.c.l.b16 %v1022
        %v2043 = vunpack.c.h.b16 %v1022
        %v2044 = vunpack.c.l.b16 %v1023
        %v2045 = vunpack.c.h.b16 %v1023
        %v2046 = vunpack.c.l.b16 %v1024
        %v2047 = vunpack.c.h.b16 %v1024
        %v2048 = vunpack.c.l.b16 %v1025
        %v2049 = vunpack.c.h.b16 %v1025
        %v2050 = vunpack.c.l.b16 %v1026
        %v2051 = vunpack.c.h.b16 %v1026
        %v2052 = vunpack.c.l.b16 %v1027
        %v2053 = vunpack.c.h.b16 %v1027
        %v2054 = vunpack.c.l.b16 %v1028
        %v2055 = vunpack.c.h.b16 %v1028
        %v2056 = vunpack.c.l.b16 %v1029
        %v2057 = vunpack.c.h.b16 %v1029
        %v2058 = vunpack.c.l.b16 %v1030
        %v2059 = vunpack.c.h.b16 %v1030
        %v2060 = vunpack.c.l.b16 %v1031
        %v2061 = vunpack.c.h.b16 %v1031
        %v2062 = vunpack.c.l.b16 %v1032
        %v2063 = vunpack.c.h.b16 %v1032
        %v2064 = vunpack.c.l.b16 %v1033
        %v2065 = vunpack.c.h.b16 %v1033
        %v2066 = vunpack.c.l.b16 %v1034
        %v2067 = vunpack.c.h.b16 %v1034
        %v2068 = vunpack.c.l.b16 %v1035
        %v2069 = vunpack.c.h.b16 %v1035
        %v2070 = vunpack.c.l.b16 %v1036
        %v2071 = vunpack.c.h.b16 %v1036
        %v2072 = vunpack.c.l.b16 %v1037
        %v2073 = vunpack.c.h.b16 %v1037
        %v2074 = vunpack.c.l.b16 %v1038
        %v2075 = vunpack.c.h.b16 %v1038
        %v2076 = vunpack.c.l.b16 %v1039
        %v2077 = vunpack.c.h.b16 %v1039
        %v2078 = vunpack.c.l.b16 %v1040
        %v2079 = vunpack.c.h.b16 %v1040
        %v2080 = vunpack.c.l.b16 %v1041
        %v2081 = vunpack.c.h.b16 %v1041
        %v2082 = vunpack.c.l.b16 %v1042
        %v2083 = vunpack.c.h.b16 %v1042
        %v2084 = vunpack.c.l.b16 %v1043
        %v2085 = vunpack.c.h.b16 %v1043
        %v2086 = vunpack.c.l.b16 %v1044
        %v2087 = vunpack.c.h.b16 %v1044
        %v2088 = vunpack.c.l.b16 %v1045
        %v2089 = vunpack.c.h.b16 %v1045
        %v2090 = vunpack.c.l.b16 %v1046
        %v2091 = vunpack.c.h.b16 %v1046
        %v2092 = vunpack.c.l.b16 %v1047
        %v2093 = vunpack.c.h.b16 %v1047
        %v2094 = vunpack.c.l.b16 %v1048
        %v2095 = vunpack.c.h.b16 %v1048
        %v2096 = vunpack.c.l.b16 %v1049
        %v2097 = vunpack.c.h.b16 %v1049
        %v2098 = vunpack.c.l.b16 %v1050
        %v2099 = vunpack.c.h.b16 %v1050
        %v2100 = vunpack.c.l.b16 %v1051
        %v2101 = vunpack.c.h.b16 %v1051
        %v2102 = vunpack.c.l.b16 %v1052
        %v2103 = vunpack.c.h.b16 %v1052
        %v2104 = vunpack.c.l.b16 %v1053
        %v2105 = vunpack.c.h.b16 %v1053
        %v2106 = vunpack.c.l.b16 %v1054
        %v2107 = vunpack.c.h.b16 %v1054
        %v2108 = vunpack.c.l.b16 %v1055
        %v2109 = vunpack.c.h.b16 %v1055
        %v2110 = vunpack.c.l.b16 %v1056
        %v2111 = vunpack.c.h.b16 %v1056
        %v2112 = vunpack.c.l.b16 %v1057
        %v2113 = vunpack.c.h.b16 %v1057
        %v2114 = vunpack.c.l.b16 %v1058
        %v2115 = vunpack.c.h.b16 %v1058
        %v2116 = vunpack.c.l.b16 %v1059
        %v2117 = vunpack.c.h.b16 %v1059
        %v2118 = vunpack.c.l.b16 %v1060
        %v2119 = vunpack.c.h.b16 %v1060
        %v2120 = vunpack.c.l.b16 %v1061
        %v2121 = vunpack.c.h.b16 %v1061
        %v2122 = vunpack.c.l.b16 %v1062
        %v2123 = vunpack.c.h.b16 %v1062
        %v2124 = vunpack.c.l.b16 %v1063
        %v2125 = vunpack.c.h.b16 %v1063
        %v2126 = vunpack.c.l.b16 %v1064
        %v2127 = vunpack.c.h.b16 %v1064
        %v2128 = vunpack.c.l.b16 %v1065
        %v2129 = vunpack.c.h.b16 %v1065
        %v2130 = vunpack.c.l.b16 %v1066
        %v2131 = vunpack.c.h.b16 %v1066
        %v2132 = vunpack.c.l.b16 %v1067
        %v2133 = vunpack.c.h.b16 %v1067
        %v2134 = vunpack.c.l.b16 %v1068
        %v2135 = vunpack.c.h.b16 %v1068
        %v2136 = vunpack.c.l.b16 %v1069
        %v2137 = vunpack.c.h.b16 %v1069
        %v2138 = vunpack.c.l.b16 %v1070
        %v2139 = vunpack.c.h.b16 %v1070
        %v2140 = vunpack.c.l.b16 %v1071
        %v2141 = vunpack.c.h.b16 %v1071
        %v2142 = vunpack.c.l.b16 %v1072
        %v2143 = vunpack.c.h.b16 %v1072
        %v2144 = vunpack.c.l.b16 %v1073
        %v2145 = vunpack.c.h.b16 %v1073
        %v2146 = vunpack.c.l.b16 %v1074
        %v2147 = vunpack.c.h.b16 %v1074
        %v2148 = vunpack.c.l.b16 %v1075
        %v2149 = vunpack.c.h.b16 %v1075
        %v2150 = vunpack.c.l.b16 %v1076
        %v2151 = vunpack.c.h.b16 %v1076
        %v2152 = vunpack.c.l.b16 %v1077
        %v2153 = vunpack.c.h.b16 %v1077
        %v2154 = vunpack.c.l.b16 %v1078
        %v2155 = vunpack.c.h.b16 %v1078
        %v2156 = vunpack.c.l.b16 %v1079
        %v2157 = vunpack.c.h.b16 %v1079
        %v2158 = vunpack.c.l.b16 %v1080
        %v2159 = vunpack.c.h.b16 %v1080
        %v2160 = vunpack.c.l.b16 %v1081
        %v2161 = vunpack.c.h.b16 %v1081
        %v2162 = vunpack.c.l.b16 %v1082
        %v2163 = vunpack.c.h.b16 %v1082
        %v2164 = vunpack.c.l.b16 %v1083
        %v2165 = vunpack.c.h.b16 %v1083
        %v2166 = vunpack.c.l.b16 %v1084
        %v2167 = vunpack.c.h.b16 %v1084
        %v2168 = vunpack.c.l.b16 %v1085
        %v2169 = vunpack.c.h.b16 %v1085
        %v2170 = vunpack.c.l.b16 %v1086
        %v2171 = vunpack.c.h.b16 %v1086
        %v2172 = vunpack.c.l.b16 %v1087
        %v2173 = vunpack.c.h.b16 %v1087
        %v2174 = vunpack.c.l.b16 %v1088
        %v2175 = vunpack.c.h.b16 %v1088
        %v2176 = vunpack.c.l.b16 %v1089
        %v2177 = vunpack.c.h.b16 %v1089
        %v2178 = vunpack.c.l.b16 %v1090
        %v2179 = vunpack.c.h.b16 %v1090
        %v2180 = vunpack.c.l.b16 %v1091
        %v2181 = vunpack.c.h.b16 %v1091
        %v2182 = vunpack.c.l.b16 %v1092
        %v2183 = vunpack.c.h.b16 %v1092
        %v2184 = vunpack.c.l.b16 %v1093
        %v2185 = vunpack.c.h.b16 %v1093
        %v2186 = vunpack.c.l.b16 %v1094
        %v2187 = vunpack.c.h.b16 %v1094
        %v2188 = vunpack.c.l.b16 %v1095
        %v2189 = vunpack.c.h.b16 %v1095
        %v2190 = vunpack.c.l.b16 %v1096
        %v2191 = vunpack.c.h.b16 %v1096
        %v2192 = vunpack.c.l.b16 %v1097
        %v2193 = vunpack.c.h.b16 %v1097
        %v2194 = vunpack.c.l.b16 %v1098
        %v2195 = vunpack.c.h.b16 %v1098
        %v2196 = vunpack.c.l.b16 %v1099
        %v2197 = vunpack.c.h.b16 %v1099
        %v2198 = vunpack.c.l.b16 %v1100
        %v2199 = vunpack.c.h.b16 %v1100
        %v2200 = vunpack.c.l.b16 %v1101
        %v2201 = vunpack.c.h.b16 %v1101
        %v2202 = vunpack.c.l.b16 %v1102
        %v2203 = vunpack.c.h.b16 %v1102
        %v2204 = vunpack.c.l.b16 %v1103
        %v2205 = vunpack.c.h.b16 %v1103
        %v2206 = vunpack.c.l.b16 %v1104
        %v2207 = vunpack.c.h.b16 %v1104
        %v2208 = vunpack.c.l.b16 %v1105
        %v2209 = vunpack.c.h.b16 %v1105
        %v2210 = vunpack.c.l.b16 %v1106
        %v2211 = vunpack.c.h.b16 %v1106
        %v2212 = vunpack.c.l.b16 %v1107
        %v2213 = vunpack.c.h.b16 %v1107
        %v2214 = vunpack.c.l.b16 %v1108
        %v2215 = vunpack.c.h.b16 %v1108
        %v2216 = vunpack.c.l.b16 %v1109
        %v2217 = vunpack.c.h.b16 %v1109
        %v2218 = vunpack.c.l.b16 %v1110
        %v2219 = vunpack.c.h.b16 %v1110
        %v2220 = vunpack.c.l.b16 %v1111
        %v2221 = vunpack.c.h.b16 %v1111
        %v2222 = vunpack.c.l.b16 %v1112
        %v2223 = vunpack.c.h.b16 %v1112
        %v2224 = vunpack.c.l.b16 %v1113
        %v2225 = vunpack.c.h.b16 %v1113
        %v2226 = vunpack.c.l.b16 %v1114
        %v2227 = vunpack.c.h.b16 %v1114
        %v2228 = vunpack.c.l.b16 %v1115
        %v2229 = vunpack.c.h.b16 %v1115
        %v2230 = vunpack.c.l.b16 %v1116
        %v2231 = vunpack.c.h.b16 %v1116
        %v2232 = vunpack.c.l.b16 %v1117
        %v2233 = vunpack.c.h.b16 %v1117
        %v2234 = vunpack.c.l.b16 %v1118
        %v2235 = vunpack.c.h.b16 %v1118
        %v2236 = vunpack.c.l.b16 %v1119
        %v2237 = vunpack.c.h.b16 %v1119
        %v2238 = vunpack.c.l.b16 %v1120
        %v2239 = vunpack.c.h.b16 %v1120
        %v2240 = vunpack.c.l.b16 %v1121
        %v2241 = vunpack.c.h.b16 %v1121
        %v2242 = vunpack.c.l.b16 %v1122
        %v2243 = vunpack.c.h.b16 %v1122
        %v2244 = vunpack.c.l.b16 %v1123
        %v2245 = vunpack.c.h.b16 %v1123
        %v2246 = vunpack.c.l.b16 %v1124
        %v2247 = vunpack.c.h.b16 %v1124
        %v2248 = vunpack.c.l.b16 %v1125
        %v2249 = vunpack.c.h.b16 %v1125
        %v2250 = vunpack.c.l.b16 %v1126
        %v2251 = vunpack.c.h.b16 %v1126
        %v2252 = vunpack.c.l.b16 %v1127
        %v2253 = vunpack.c.h.b16 %v1127
        %v2254 = vunpack.c.l.b16 %v1128
        %v2255 = vunpack.c.h.b16 %v1128
        %v2256 = vunpack.c.l.b16 %v1129
        %v2257 = vunpack.c.h.b16 %v1129
        %v2258 = vunpack.c.l.b16 %v1130
        %v2259 = vunpack.c.h.b16 %v1130
        %v2260 = vunpack.c.l.b16 %v1131
        %v2261 = vunpack.c.h.b16 %v1131
        %v2262 = vunpack.c.l.b16 %v1132
        %v2263 = vunpack.c.h.b16 %v1132
        %v2264 = vunpack.c.l.b16 %v1133
        %v2265 = vunpack.c.h.b16 %v1133
        %v2266 = vunpack.c.l.b16 %v1134
        %v2267 = vunpack.c.h.b16 %v1134
        %v2268 = vunpack.c.l.b16 %v1135
        %v2269 = vunpack.c.h.b16 %v1135
        %v2270 = vunpack.c.l.b16 %v1136
        %v2271 = vunpack.c.h.b16 %v1136
        %v2272 = vunpack.c.l.b16 %v1137
        %v2273 = vunpack.c.h.b16 %v1137
        %v2274 = vunpack.c.l.b16 %v1138
        %v2275 = vunpack.c.h.b16 %v1138
        %v2276 = vunpack.c.l.b16 %v1139
        %v2277 = vunpack.c.h.b16 %v1139
        %v2278 = vunpack.c.l.b16 %v1140
        %v2279 = vunpack.c.h.b16 %v1140
        %v2280 = vunpack.c.l.b16 %v1141
        %v2281 = vunpack.c.h.b16 %v1141
        %v2282 = vunpack.c.l.b16 %v1142
        %v2283 = vunpack.c.h.b16 %v1142
        %v2284 = vunpack.c.l.b16 %v1143
        %v2285 = vunpack.c.h.b16 %v1143
        %v2286 = vunpack.c.l.b16 %v1144
        %v2287 = vunpack.c.h.b16 %v1144
        %v2288 = vunpack.c.l.b16 %v1145
        %v2289 = vunpack.c.h.b16 %v1145
        %v2290 = vunpack.c.l.b16 %v1146
        %v2291 = vunpack.c.h.b16 %v1146
        %v2292 = vunpack.c.l.b16 %v1147
        %v2293 = vunpack.c.h.b16 %v1147
        %v2294 = vunpack.c.l.b16 %v1148
        %v2295 = vunpack.c.h.b16 %v1148
        %v2296 = vunpack.c.l.b16 %v1149
        %v2297 = vunpack.c.h.b16 %v1149
        %v2298 = vunpack.c.l.b16 %v1150
        %v2299 = vunpack.c.h.b16 %v1150
        %v2300 = vunpack.c.l.b16 %v1151
        %v2301 = vunpack.c.h.b16 %v1151
        %v2302 = vunpack.c.l.b16 %v1152
        %v2303 = vunpack.c.h.b16 %v1152
        %v2304 = vunpack.c.l.b16 %v1153
        %v2305 = vunpack.c.h.b16 %v1153
        %v2306 = vunpack.c.l.b16 %v1154
        %v2307 = vunpack.c.h.b16 %v1154
        %v2308 = vunpack.c.l.b16 %v1155
        %v2309 = vunpack.c.h.b16 %v1155
        %v2310 = vunpack.c.l.b16 %v1156
        %v2311 = vunpack.c.h.b16 %v1156
        %v2312 = vunpack.c.l.b16 %v1157
        %v2313 = vunpack.c.h.b16 %v1157
        %v2314 = vunpack.c.l.b16 %v1158
        %v2315 = vunpack.c.h.b16 %v1158
        %v2316 = vunpack.c.l.b16 %v1159
        %v2317 = vunpack.c.h.b16 %v1159
        %v2318 = vpack.c.b16 %v1552, %v1550
        %v2319 = vpack.c.b16 %v1553, %v1551
        %v2320 = vpack.c.b16 %v1556, %v1554
        %v2321 = vpack.c.b16 %v1557, %v1555
        %v2322 = vpack.c.b16 %v1560, %v1558
        %v2323 = vpack.c.b16 %v1561, %v1559
        %v2324 = vpack.c.b16 %v1564, %v1562
        %v2325 = vpack.c.b16 %v1565, %v1563
        %v2326 = vpack.c.b16 %v1568, %v1566
        %v2327 = vpack.c.b16 %v1569, %v1567
        %v2328 = vpack.c.b16 %v1572, %v1570
        %v2329 = vpack.c.b16 %v1573, %v1571
        %v2330 = vpack.c.b16 %v1576, %v1574
        %v2331 = vpack.c.b16 %v1577, %v1575
        %v2332 = vpack.c.b16 %v1580, %v1578
        %v2333 = vpack.c.b16 %v1581, %v1579
        %v2334 = vpack.c.b16 %v1584, %v1582
        %v2335 = vpack.c.b16 %v1585, %v1583
        %v2336 = vpack.c.b16 %v1588, %v1586
        %v2337 = vpack.c.b16 %v1589, %v1587
        %v2338 = vpack.c.b16 %v1592, %v1590
        %v2339 = vpack.c.b16 %v1593, %v1591
        %v2340 = vpack.c.b16 %v1596, %v1594
        %v2341 = vpack.c.b16 %v1597, %v1595
        %v2342 = vpack.c.b16 %v1600, %v1598
        %v2343 = vpack.c.b16 %v1601, %v1599
        %v2344 = vpack.c.b16 %v1604, %v1602
        %v2345 = vpack.c.b16 %v1605, %v1603
        %v2346 = vpack.c.b16 %v1608, %v1606
        %v2347 = vpack.c.b16 %v1609, %v1607
        %v2348 = vpack.c.b16 %v1612, %v1610
        %v2349 = vpack.c.b16 %v1613, %v1611
        %v2350 = vpack.c.b16 %v1616, %v1614
        %v2351 = vpack.c.b16 %v1617, %v1615
        %v2352 = vpack.c.b16 %v1620, %v1618
        %v2353 = vpack.c.b16 %v1621, %v1619
        %v2354 = vpack.c.b16 %v1624, %v1622
        %v2355 = vpack.c.b16 %v1625, %v1623
        %v2356 = vpack.c.b16 %v1628, %v1626
        %v2357 = vpack.c.b16 %v1629, %v1627
        %v2358 = vpack.c.b16 %v1632, %v1630
        %v2359 = vpack.c.b16 %v1633, %v1631
        %v2360 = vpack.c.b16 %v1636, %v1634
        %v2361 = vpack.c.b16 %v1637, %v1635
        %v2362 = vpack.c.b16 %v1640, %v1638
        %v2363 = vpack.c.b16 %v1641, %v1639
        %v2364 = vpack.c.b16 %v1644, %v1642
        %v2365 = vpack.c.b16 %v1645, %v1643
        %v2366 = vpack.c.b16 %v1648, %v1646
        %v2367 = vpack.c.b16 %v1649, %v1647
        %v2368 = vpack.c.b16 %v1652, %v1650
        %v2369 = vpack.c.b16 %v1653, %v1651
        %v2370 = vpack.c.b16 %v1656, %v1654
        %v2371 = vpack.c.b16 %v1657, %v1655
        %v2372 = vpack.c.b16 %v1660, %v1658
        %v2373 = vpack.c.b16 %v1661, %v1659
        %v2374 = vpack.c.b16 %v1664, %v1662
        %v2375 = vpack.c.b16 %v1665, %v1663
        %v2376 = vpack.c.b16 %v1668, %v1666
        %v2377 = vpack.c.b16 %v1669, %v1667
        %v2378 = vpack.c.b16 %v1672, %v1670
        %v2379 = vpack.c.b16 %v1673, %v1671
        %v2380 = vpack.c.b16 %v1676, %v1674
        %v2381 = vpack.c.b16 %v1677, %v1675
        %v2382 = vpack.c.b16 %v1680, %v1678
        %v2383 = vpack.c.b16 %v1681, %v1679
        %v2384 = vpack.c.b16 %v1684, %v1682
        %v2385 = vpack.c.b16 %v1685, %v1683
        %v2386 = vpack.c.b16 %v1688, %v1686
        %v2387 = vpack.c.b16 %v1689, %v1687
        %v2388 = vpack.c.b16 %v1692, %v1690
        %v2389 = vpack.c.b16 %v1693, %v1691
        %v2390 = vpack.c.b16 %v1696, %v1694
        %v2391 = vpack.c.b16 %v1697, %v1695
        %v2392 = vpack.c.b16 %v1700, %v1698
        %v2393 = vpack.c.b16 %v1701, %v1699
        %v2394 = vpack.c.b16 %v1704, %v1702
        %v2395 = vpack.c.b16 %v1705, %v1703
        %v2396 = vpack.c.b16 %v1708, %v1706
        %v2397 = vpack.c.b16 %v1709, %v1707
        %v2398 = vpack.c.b16 %v1712, %v1710
        %v2399 = vpack.c.b16 %v1713, %v1711
        %v2400 = vpack.c.b16 %v1716, %v1714
        %v2401 = vpack.c.b16 %v1717, %v1715
        %v2402 = vpack.c.b16 %v1720, %v1718
        %v2403 = vpack.c.b16 %v1721, %v1719
        %v2404 = vpack.c.b16 %v1724, %v1722
        %v2405 = vpack.c.b16 %v1725, %v1723
        %v2406 = vpack.c.b16 %v1728, %v1726
        %v2407 = vpack.c.b16 %v1729, %v1727
        %v2408 = vpack.c.b16 %v1732, %v1730
        %v2409 = vpack.c.b16 %v1733, %v1731
        %v2410 = vpack.c.b16 %v1736, %v1734
        %v2411 = vpack.c.b16 %v1737, %v1735
        %v2412 = vpack.c.b16 %v1740, %v1738
        %v2413 = vpack.c.b16 %v1741, %v1739
        %v2414 = vpack.c.b16 %v1744, %v1742
        %v2415 = vpack.c.b16 %v1745, %v1743
        %v2416 = vpack.c.b16 %v1748, %v1746
        %v2417 = vpack.c.b16 %v1749, %v1747
        %v2418 = vpack.c.b16 %v1752, %v1750
        %v2419 = vpack.c.b16 %v1753, %v1751
        %v2420 = vpack.c.b16 %v1756, %v1754
        %v2421 = vpack.c.b16 %v1757, %v1755
        %v2422 = vpack.c.b16 %v1760, %v1758
        %v2423 = vpack.c.b16 %v1761, %v1759
        %v2424 = vpack.c.b16 %v1764, %v1762
        %v2425 = vpack.c.b16 %v1765, %v1763
        %v2426 = vpack.c.b16 %v1768, %v1766
        %v2427 = vpack.c.b16 %v1769, %v1767
        %v2428 = vpack.c.b16 %v1772, %v1770
        %v2429 = vpack.c.b16 %v1773, %v1771
        %v2430 = vpack.c.b16 %v1776, %v1774
        %v2431 = vpack.c.b16 %v1777, %v1775
        %v2432 = vpack.c.b16 %v1780, %v1778
        %v2433 = vpack.c.b16 %v1781, %v1779
        %v2434 = vpack.c.b16 %v1784, %v1782
        %v2435 = vpack.c.b16 %v1785, %v1783
        %v2436 = vpack.c.b16 %v1788, %v1786
        %v2437 = vpack.c.b16 %v1789, %v1787
        %v2438 = vpack.c.b16 %v1792, %v1790
        %v2439 = vpack.c.b16 %v1793, %v1791
        %v2440 = vpack.c.b16 %v1796, %v1794
        %v2441 = vpack.c.b16 %v1797, %v1795
        %v2442 = vpack.c.b16 %v1800, %v1798
        %v2443 = vpack.c.b16 %v1801, %v1799
        %v2444 = vpack.c.b16 %v1804, %v1802
        %v2445 = vpack.c.b16 %v1805, %v1803
        %v2446 = vpack.c.b16 %v1808, %v1806
        %v2447 = vpack.c.b16 %v1809, %v1807
        %v2448 = vpack.c.b16 %v1812, %v1810
        %v2449 = vpack.c.b16 %v1813, %v1811
        %v2450 = vpack.c.b16 %v1816, %v1814
        %v2451 = vpack.c.b16 %v1817, %v1815
        %v2452 = vpack.c.b16 %v1820, %v1818
        %v2453 = vpack.c.b16 %v1821, %v1819
        %v2454 = vpack.c.b16 %v1824, %v1822
        %v2455 = vpack.c.b16 %v1825, %v1823
        %v2456 = vpack.c.b16 %v1828, %v1826
        %v2457 = vpack.c.b16 %v1829, %v1827
        %v2458 = vpack.c.b16 %v1832, %v1830
        %v2459 = vpack.c.b16 %v1833, %v1831
        %v2460 = vpack.c.b16 %v1836, %v1834
        %v2461 = vpack.c.b16 %v1837, %v1835
        %v2462 = vpack.c.b16 %v1840, %v1838
        %v2463 = vpack.c.b16 %v1841, %v1839
        %v2464 = vpack.c.b16 %v1844, %v1842
        %v2465 = vpack.c.b16 %v1845, %v1843
        %v2466 = vpack.c.b16 %v1848, %v1846
        %v2467 = vpack.c.b16 %v1849, %v1847
        %v2468 = vpack.c.b16 %v1852, %v1850
        %v2469 = vpack.c.b16 %v1853, %v1851
        %v2470 = vpack.c.b16 %v1856, %v1854
        %v2471 = vpack.c.b16 %v1857, %v1855
        %v2472 = vpack.c.b16 %v1860, %v1858
        %v2473 = vpack.c.b16 %v1861, %v1859
        %v2474 = vpack.c.b16 %v1864, %v1862
        %v2475 = vpack.c.b16 %v1865, %v1863
        %v2476 = vpack.c.b16 %v1868, %v1866
        %v2477 = vpack.c.b16 %v1869, %v1867
        %v2478 = vpack.c.b16 %v1872, %v1870
        %v2479 = vpack.c.b16 %v1873, %v1871
        %v2480 = vpack.c.b16 %v1876, %v1874
        %v2481 = vpack.c.b16 %v1877, %v1875
        %v2482 = vpack.c.b16 %v1880, %v1878
        %v2483 = vpack.c.b16 %v1881, %v1879
        %v2484 = vpack.c.b16 %v1884, %v1882
        %v2485 = vpack.c.b16 %v1885, %v1883
        %v2486 = vpack.c.b16 %v1888, %v1886
        %v2487 = vpack.c.b16 %v1889, %v1887
        %v2488 = vpack.c.b16 %v1892, %v1890
        %v2489 = vpack.c.b16 %v1893, %v1891
        %v2490 = vpack.c.b16 %v1896, %v1894
        %v2491 = vpack.c.b16 %v1897, %v1895
        %v2492 = vpack.c.b16 %v1900, %v1898
        %v2493 = vpack.c.b16 %v1901, %v1899
        %v2494 = vpack.c.b16 %v1904, %v1902
        %v2495 = vpack.c.b16 %v1905, %v1903
        %v2496 = vpack.c.b16 %v1908, %v1906
        %v2497 = vpack.c.b16 %v1909, %v1907
        %v2498 = vpack.c.b16 %v1912, %v1910
        %v2499 = vpack.c.b16 %v1913, %v1911
        %v2500 = vpack.c.b16 %v1916, %v1914
        %v2501 = vpack.c.b16 %v1917, %v1915
        %v2502 = vpack.c.b16 %v1920, %v1918
        %v2503 = vpack.c.b16 %v1921, %v1919
        %v2504 = vpack.c.b16 %v1924, %v1922
        %v2505 = vpack.c.b16 %v1925, %v1923
        %v2506 = vpack.c.b16 %v1928, %v1926
        %v2507 = vpack.c.b16 %v1929, %v1927
        %v2508 = vpack.c.b16 %v1932, %v1930
        %v2509 = vpack.c.b16 %v1933, %v1931
        %v2510 = vpack.c.b16 %v1936, %v1934
        %v2511 = vpack.c.b16 %v1937, %v1935
        %v2512 = vpack.c.b16 %v1940, %v1938
        %v2513 = vpack.c.b16 %v1941, %v1939
        %v2514 = vpack.c.b16 %v1944, %v1942
        %v2515 = vpack.c.b16 %v1945, %v1943
        %v2516 = vpack.c.b16 %v1948, %v1946
        %v2517 = vpack.c.b16 %v1949, %v1947
        %v2518 = vpack.c.b16 %v1952, %v1950
        %v2519 = vpack.c.b16 %v1953, %v1951
        %v2520 = vpack.c.b16 %v1956, %v1954
        %v2521 = vpack.c.b16 %v1957, %v1955
        %v2522 = vpack.c.b16 %v1960, %v1958
        %v2523 = vpack.c.b16 %v1961, %v1959
        %v2524 = vpack.c.b16 %v1964, %v1962
        %v2525 = vpack.c.b16 %v1965, %v1963
        %v2526 = vpack.c.b16 %v1968, %v1966
        %v2527 = vpack.c.b16 %v1969, %v1967
        %v2528 = vpack.c.b16 %v1972, %v1970
        %v2529 = vpack.c.b16 %v1973, %v1971
        %v2530 = vpack.c.b16 %v1976, %v1974
        %v2531 = vpack.c.b16 %v1977, %v1975
        %v2532 = vpack.c.b16 %v1980, %v1978
        %v2533 = vpack.c.b16 %v1981, %v1979
        %v2534 = vpack.c.b16 %v1984, %v1982
        %v2535 = vpack.c.b16 %v1985, %v1983
        %v2536 = vpack.c.b16 %v1988, %v1986
        %v2537 = vpack.c.b16 %v1989, %v1987
        %v2538 = vpack.c.b16 %v1992, %v1990
        %v2539 = vpack.c.b16 %v1993, %v1991
        %v2540 = vpack.c.b16 %v1996, %v1994
        %v2541 = vpack.c.b16 %v1997, %v1995
        %v2542 = vpack.c.b16 %v2000, %v1998
        %v2543 = vpack.c.b16 %v2001, %v1999
        %v2544 = vpack.c.b16 %v2004, %v2002
        %v2545 = vpack.c.b16 %v2005, %v2003
        %v2546 = vpack.c.b16 %v2008, %v2006
        %v2547 = vpack.c.b16 %v2009, %v2007
        %v2548 = vpack.c.b16 %v2012, %v2010
        %v2549 = vpack.c.b16 %v2013, %v2011
        %v2550 = vpack.c.b16 %v2016, %v2014
        %v2551 = vpack.c.b16 %v2017, %v2015
        %v2552 = vpack.c.b16 %v2020, %v2018
        %v2553 = vpack.c.b16 %v2021, %v2019
        %v2554 = vpack.c.b16 %v2024, %v2022
        %v2555 = vpack.c.b16 %v2025, %v2023
        %v2556 = vpack.c.b16 %v2028, %v2026
        %v2557 = vpack.c.b16 %v2029, %v2027
        %v2558 = vpack.c.b16 %v2032, %v2030
        %v2559 = vpack.c.b16 %v2033, %v2031
        %v2560 = vpack.c.b16 %v2036, %v2034
        %v2561 = vpack.c.b16 %v2037, %v2035
        %v2562 = vpack.c.b16 %v2040, %v2038
        %v2563 = vpack.c.b16 %v2041, %v2039
        %v2564 = vpack.c.b16 %v2044, %v2042
        %v2565 = vpack.c.b16 %v2045, %v2043
        %v2566 = vpack.c.b16 %v2048, %v2046
        %v2567 = vpack.c.b16 %v2049, %v2047
        %v2568 = vpack.c.b16 %v2052, %v2050
        %v2569 = vpack.c.b16 %v2053, %v2051
        %v2570 = vpack.c.b16 %v2056, %v2054
        %v2571 = vpack.c.b16 %v2057, %v2055
        %v2572 = vpack.c.b16 %v2060, %v2058
        %v2573 = vpack.c.b16 %v2061, %v2059
        %v2574 = vpack.c.b16 %v2064, %v2062
        %v2575 = vpack.c.b16 %v2065, %v2063
        %v2576 = vpack.c.b16 %v2068, %v2066
        %v2577 = vpack.c.b16 %v2069, %v2067
        %v2578 = vpack.c.b16 %v2072, %v2070
        %v2579 = vpack.c.b16 %v2073, %v2071
        %v2580 = vpack.c.b16 %v2076, %v2074
        %v2581 = vpack.c.b16 %v2077, %v2075
        %v2582 = vpack.c.b16 %v2080, %v2078
        %v2583 = vpack.c.b16 %v2081, %v2079
        %v2584 = vpack.c.b16 %v2084, %v2082
        %v2585 = vpack.c.b16 %v2085, %v2083
        %v2586 = vpack.c.b16 %v2088, %v2086
        %v2587 = vpack.c.b16 %v2089, %v2087
        %v2588 = vpack.c.b16 %v2092, %v2090
        %v2589 = vpack.c.b16 %v2093, %v2091
        %v2590 = vpack.c.b16 %v2096, %v2094
        %v2591 = vpack.c.b16 %v2097, %v2095
        %v2592 = vpack.c.b16 %v2100, %v2098
        %v2593 = vpack.c.b16 %v2101, %v2099
        %v2594 = vpack.c.b16 %v2104, %v2102
        %v2595 = vpack.c.b16 %v2105, %v2103
        %v2596 = vpack.c.b16 %v2108, %v2106
        %v2597 = vpack.c.b16 %v2109, %v2107
        %v2598 = vpack.c.b16 %v2112, %v2110
        %v2599 = vpack.c.b16 %v2113, %v2111
        %v2600 = vpack.c.b16 %v2116, %v2114
        %v2601 = vpack.c.b16 %v2117, %v2115
        %v2602 = vpack.c.b16 %v2120, %v2118
        %v2603 = vpack.c.b16 %v2121, %v2119
        %v2604 = vpack.c.b16 %v2124, %v2122
        %v2605 = vpack.c.b16 %v2125, %v2123
        %v2606 = vpack.c.b16 %v2128, %v2126
        %v2607 = vpack.c.b16 %v2129, %v2127
        %v2608 = vpack.c.b16 %v2132, %v2130
        %v2609 = vpack.c.b16 %v2133, %v2131
        %v2610 = vpack.c.b16 %v2136, %v2134
        %v2611 = vpack.c.b16 %v2137, %v2135
        %v2612 = vpack.c.b16 %v2140, %v2138
        %v2613 = vpack.c.b16 %v2141, %v2139
        %v2614 = vpack.c.b16 %v2144, %v2142
        %v2615 = vpack.c.b16 %v2145, %v2143
        %v2616 = vpack.c.b16 %v2148, %v2146
        %v2617 = vpack.c.b16 %v2149, %v2147
        %v2618 = vpack.c.b16 %v2152, %v2150
        %v2619 = vpack.c.b16 %v2153, %v2151
        %v2620 = vpack.c.b16 %v2156, %v2154
        %v2621 = vpack.c.b16 %v2157, %v2155
        %v2622 = vpack.c.b16 %v2160, %v2158
        %v2623 = vpack.c.b16 %v2161, %v2159
        %v2624 = vpack.c.b16 %v2164, %v2162
        %v2625 = vpack.c.b16 %v2165, %v2163
        %v2626 = vpack.c.b16 %v2168, %v2166
        %v2627 = vpack.c.b16 %v2169, %v2167
        %v2628 = vpack.c.b16 %v2172, %v2170
        %v2629 = vpack.c.b16 %v2173, %v2171
        %v2630 = vpack.c.b16 %v2176, %v2174
        %v2631 = vpack.c.b16 %v2177, %v2175
        %v2632 = vpack.c.b16 %v2180, %v2178
        %v2633 = vpack.c.b16 %v2181, %v2179
        %v2634 = vpack.c.b16 %v2184, %v2182
        %v2635 = vpack.c.b16 %v2185, %v2183
        %v2636 = vpack.c.b16 %v2188, %v2186
        %v2637 = vpack.c.b16 %v2189, %v2187
        %v2638 = vpack.c.b16 %v2192, %v2190
        %v2639 = vpack.c.b16 %v2193, %v2191
        %v2640 = vpack.c.b16 %v2196, %v2194
        %v2641 = vpack.c.b16 %v2197, %v2195
        %v2642 = vpack.c.b16 %v2200, %v2198
        %v2643 = vpack.c.b16 %v2201, %v2199
        %v2644 = vpack.c.b16 %v2204, %v2202
        %v2645 = vpack.c.b16 %v2205, %v2203
        %v2646 = vpack.c.b16 %v2208, %v2206
        %v2647 = vpack.c.b16 %v2209, %v2207
        %v2648 = vpack.c.b16 %v2212, %v2210
        %v2649 = vpack.c.b16 %v2213, %v2211
        %v2650 = vpack.c.b16 %v2216, %v2214
        %v2651 = vpack.c.b16 %v2217, %v2215
        %v2652 = vpack.c.b16 %v2220, %v2218
        %v2653 = vpack.c.b16 %v2221, %v2219
        %v2654 = vpack.c.b16 %v2224, %v2222
        %v2655 = vpack.c.b16 %v2225, %v2223
        %v2656 = vpack.c.b16 %v2228, %v2226
        %v2657 = vpack.c.b16 %v2229, %v2227
        %v2658 = vpack.c.b16 %v2232, %v2230
        %v2659 = vpack.c.b16 %v2233, %v2231
        %v2660 = vpack.c.b16 %v2236, %v2234
        %v2661 = vpack.c.b16 %v2237, %v2235
        %v2662 = vpack.c.b16 %v2240, %v2238
        %v2663 = vpack.c.b16 %v2241, %v2239
        %v2664 = vpack.c.b16 %v2244, %v2242
        %v2665 = vpack.c.b16 %v2245, %v2243
        %v2666 = vpack.c.b16 %v2248, %v2246
        %v2667 = vpack.c.b16 %v2249, %v2247
        %v2668 = vpack.c.b16 %v2252, %v2250
        %v2669 = vpack.c.b16 %v2253, %v2251
        %v2670 = vpack.c.b16 %v2256, %v2254
        %v2671 = vpack.c.b16 %v2257, %v2255
        %v2672 = vpack.c.b16 %v2260, %v2258
        %v2673 = vpack.c.b16 %v2261, %v2259
        %v2674 = vpack.c.b16 %v2264, %v2262
        %v2675 = vpack.c.b16 %v2265, %v2263
        %v2676 = vpack.c.b16 %v2268, %v2266
        %v2677 = vpack.c.b16 %v2269, %v2267
        %v2678 = vpack.c.b16 %v2272, %v2270
        %v2679 = vpack.c.b16 %v2273, %v2271
        %v2680 = vpack.c.b16 %v2276, %v2274
        %v2681 = vpack.c.b16 %v2277, %v2275
        %v2682 = vpack.c.b16 %v2280, %v2278
        %v2683 = vpack.c.b16 %v2281, %v2279
        %v2684 = vpack.c.b16 %v2284, %v2282
        %v2685 = vpack.c.b16 %v2285, %v2283
        %v2686 = vpack.c.b16 %v2288, %v2286
        %v2687 = vpack.c.b16 %v2289, %v2287
        %v2688 = vpack.c.b16 %v2292, %v2290
        %v2689 = vpack.c.b16 %v2293, %v2291
        %v2690 = vpack.c.b16 %v2296, %v2294
        %v2691 = vpack.c.b16 %v2297, %v2295
        %v2692 = vpack.c.b16 %v2300, %v2298
        %v2693 = vpack.c.b16 %v2301, %v2299
        %v2694 = vpack.c.b16 %v2304, %v2302
        %v2695 = vpack.c.b16 %v2305, %v2303
        %v2696 = vpack.c.b16 %v2308, %v2306
        %v2697 = vpack.c.b16 %v2309, %v2307
        %v2698 = vpack.c.b16 %v2312, %v2310
        %v2699 = vpack.c.b16 %v2313, %v2311
        %v2700 = vpack.c.b16 %v2316, %v2314
        %v2701 = vpack.c.b16 %v2317, %v2315
        %3086 = vmatpush.bf16.msra.mxu0 %v2332
        %3087 = vmatpush.bf16.msra.mxu0 %v2330
        %3088 = vmatpush.bf16.msra.mxu0 %v2328
        %3089 = vmatpush.bf16.msra.mxu0 %v2326
        %3090 = vmatpush.bf16.msra.mxu0 %v2324
        %3091 = vmatpush.bf16.msra.mxu0 %v2322
        %3092 = vmatpush.bf16.msra.mxu0 %v2320
        %3093 = vmatpush.bf16.msra.mxu0 %v2318
        %3094 = vmatmul.bf16.gmra.mxu0 %v752
        %v3095 = vpop.f32.mrf.mxu0
        %v3096 = vadd.f32 %v1162, %v3095
        %v3097 = vpop.f32.mrf.mxu0
        %3098 = vdwg.mxu0
        %3099 = vmatpush.bf16.msra.mxu0 %v2348
        %3100 = vmatpush.bf16.msra.mxu0 %v2346
        %3101 = vmatpush.bf16.msra.mxu0 %v2344
        %3102 = vmatpush.bf16.msra.mxu0 %v2342
        %3103 = vmatpush.bf16.msra.mxu0 %v2340
        %3104 = vmatpush.bf16.msra.mxu0 %v2338
        %3105 = vmatpush.bf16.msra.mxu0 %v2336
        %3106 = vmatpush.bf16.msra.mxu0 %v2334
        %3107 = vmatmul.bf16.gmra.mxu0 %v753
        %v3108 = vpop.f32.mrf.mxu0
        %v3109 = vadd.f32 %v3096, %v3108
        %v3110 = vpop.f32.mrf.mxu0
        %3111 = vdwg.mxu0
        %3112 = vmatpush.bf16.msra.mxu0 %v2364
        %3113 = vmatpush.bf16.msra.mxu0 %v2362
        %3114 = vmatpush.bf16.msra.mxu0 %v2360
        %3115 = vmatpush.bf16.msra.mxu0 %v2358
        %3116 = vmatpush.bf16.msra.mxu0 %v2356
        %3117 = vmatpush.bf16.msra.mxu0 %v2354
        %3118 = vmatpush.bf16.msra.mxu0 %v2352
        %3119 = vmatpush.bf16.msra.mxu0 %v2350
        %3120 = vmatmul.bf16.gmra.mxu0 %v754
        %v3121 = vpop.f32.mrf.mxu0
        %v3122 = vadd.f32 %v3109, %v3121
        %v3123 = vpop.f32.mrf.mxu0
        %3124 = vdwg.mxu0
        %3125 = vmatpush.bf16.msra.mxu0 %v2380
        %3126 = vmatpush.bf16.msra.mxu0 %v2378
        %3127 = vmatpush.bf16.msra.mxu0 %v2376
        %3128 = vmatpush.bf16.msra.mxu0 %v2374
        %3129 = vmatpush.bf16.msra.mxu0 %v2372
        %3130 = vmatpush.bf16.msra.mxu0 %v2370
        %3131 = vmatpush.bf16.msra.mxu0 %v2368
        %3132 = vmatpush.bf16.msra.mxu0 %v2366
        %3133 = vmatmul.bf16.gmra.mxu0 %v755
        %v3134 = vpop.f32.mrf.mxu0
        %v3135 = vadd.f32 %v3122, %v3134
        %v3136 = vpop.f32.mrf.mxu0
        %3137 = vdwg.mxu0
        %3138 = vmatpush.bf16.msra.mxu0 %v2396
        %3139 = vmatpush.bf16.msra.mxu0 %v2394
        %3140 = vmatpush.bf16.msra.mxu0 %v2392
        %3141 = vmatpush.bf16.msra.mxu0 %v2390
        %3142 = vmatpush.bf16.msra.mxu0 %v2388
        %3143 = vmatpush.bf16.msra.mxu0 %v2386
        %3144 = vmatpush.bf16.msra.mxu0 %v2384
        %3145 = vmatpush.bf16.msra.mxu0 %v2382
        %3146 = vmatmul.bf16.gmra.mxu0 %v756
        %v3147 = vpop.f32.mrf.mxu0
        %v3148 = vadd.f32 %v3135, %v3147
        %v3149 = vpop.f32.mrf.mxu0
        %3150 = vdwg.mxu0
        %3151 = vmatpush.bf16.msra.mxu0 %v2412
        %3152 = vmatpush.bf16.msra.mxu0 %v2410
        %3153 = vmatpush.bf16.msra.mxu0 %v2408
        %3154 = vmatpush.bf16.msra.mxu0 %v2406
        %3155 = vmatpush.bf16.msra.mxu0 %v2404
        %3156 = vmatpush.bf16.msra.mxu0 %v2402
        %3157 = vmatpush.bf16.msra.mxu0 %v2400
        %3158 = vmatpush.bf16.msra.mxu0 %v2398
        %3159 = vmatmul.bf16.gmra.mxu0 %v757
        %v3160 = vpop.f32.mrf.mxu0
        %v3161 = vadd.f32 %v3148, %v3160
        %v3162 = vpop.f32.mrf.mxu0
        %3163 = vdwg.mxu0
        %3164 = vmatpush.bf16.msra.mxu0 %v2428
        %3165 = vmatpush.bf16.msra.mxu0 %v2426
        %3166 = vmatpush.bf16.msra.mxu0 %v2424
        %3167 = vmatpush.bf16.msra.mxu0 %v2422
        %3168 = vmatpush.bf16.msra.mxu0 %v2420
        %3169 = vmatpush.bf16.msra.mxu0 %v2418
        %3170 = vmatpush.bf16.msra.mxu0 %v2416
        %3171 = vmatpush.bf16.msra.mxu0 %v2414
        %3172 = vmatmul.bf16.gmra.mxu0 %v758
        %v3173 = vpop.f32.mrf.mxu0
        %v3174 = vadd.f32 %v3161, %v3173
        %v3175 = vpop.f32.mrf.mxu0
        %3176 = vdwg.mxu0
        %3177 = vmatpush.bf16.msra.mxu0 %v2444
        %3178 = vmatpush.bf16.msra.mxu0 %v2442
        %3179 = vmatpush.bf16.msra.mxu0 %v2440
        %3180 = vmatpush.bf16.msra.mxu0 %v2438
        %3181 = vmatpush.bf16.msra.mxu0 %v2436
        %3182 = vmatpush.bf16.msra.mxu0 %v2434
        %3183 = vmatpush.bf16.msra.mxu0 %v2432
        %3184 = vmatpush.bf16.msra.mxu0 %v2430
        %3185 = vmatmul.bf16.gmra.mxu0 %v759
        %v3186 = vpop.f32.mrf.mxu0
        %v3187 = vadd.f32 %v3174, %v3186
        %v3188 = vpop.f32.mrf.mxu0
        %3189 = vdwg.mxu0
        %3190 = vmatpush.bf16.msra.mxu0 %v2460
        %3191 = vmatpush.bf16.msra.mxu0 %v2458
        %3192 = vmatpush.bf16.msra.mxu0 %v2456
        %3193 = vmatpush.bf16.msra.mxu0 %v2454
        %3194 = vmatpush.bf16.msra.mxu0 %v2452
        %3195 = vmatpush.bf16.msra.mxu0 %v2450
        %3196 = vmatpush.bf16.msra.mxu0 %v2448
        %3197 = vmatpush.bf16.msra.mxu0 %v2446
        %3198 = vmatmul.bf16.gmra.mxu0 %v760
        %v3199 = vpop.f32.mrf.mxu0
        %v3200 = vadd.f32 %v3187, %v3199
        %v3201 = vpop.f32.mrf.mxu0
        %3202 = vdwg.mxu0
        %3203 = vmatpush.bf16.msra.mxu0 %v2476
        %3204 = vmatpush.bf16.msra.mxu0 %v2474
        %3205 = vmatpush.bf16.msra.mxu0 %v2472
        %3206 = vmatpush.bf16.msra.mxu0 %v2470
        %3207 = vmatpush.bf16.msra.mxu0 %v2468
        %3208 = vmatpush.bf16.msra.mxu0 %v2466
        %3209 = vmatpush.bf16.msra.mxu0 %v2464
        %3210 = vmatpush.bf16.msra.mxu0 %v2462
        %3211 = vmatmul.bf16.gmra.mxu0 %v761
        %v3212 = vpop.f32.mrf.mxu0
        %v3213 = vadd.f32 %v3200, %v3212
        %v3214 = vpop.f32.mrf.mxu0
        %3215 = vdwg.mxu0
        %3216 = vmatpush.bf16.msra.mxu0 %v2492
        %3217 = vmatpush.bf16.msra.mxu0 %v2490
        %3218 = vmatpush.bf16.msra.mxu0 %v2488
        %3219 = vmatpush.bf16.msra.mxu0 %v2486
        %3220 = vmatpush.bf16.msra.mxu0 %v2484
        %3221 = vmatpush.bf16.msra.mxu0 %v2482
        %3222 = vmatpush.bf16.msra.mxu0 %v2480
        %3223 = vmatpush.bf16.msra.mxu0 %v2478
        %3224 = vmatmul.bf16.gmra.mxu0 %v762
        %v3225 = vpop.f32.mrf.mxu0
        %v3226 = vadd.f32 %v3213, %v3225
        %v3227 = vpop.f32.mrf.mxu0
        %3228 = vdwg.mxu0
        %3229 = vmatpush.bf16.msra.mxu0 %v2508
        %3230 = vmatpush.bf16.msra.mxu0 %v2506
        %3231 = vmatpush.bf16.msra.mxu0 %v2504
        %3232 = vmatpush.bf16.msra.mxu0 %v2502
        %3233 = vmatpush.bf16.msra.mxu0 %v2500
        %3234 = vmatpush.bf16.msra.mxu0 %v2498
        %3235 = vmatpush.bf16.msra.mxu0 %v2496
        %3236 = vmatpush.bf16.msra.mxu0 %v2494
        %3237 = vmatmul.bf16.gmra.mxu0 %v763
        %v3238 = vpop.f32.mrf.mxu0
        %v3239 = vadd.f32 %v3226, %v3238
        %v3240 = vpop.f32.mrf.mxu0
        %3241 = vdwg.mxu0
        %3242 = vmatpush.bf16.msra.mxu0 %v2524
        %3243 = vmatpush.bf16.msra.mxu0 %v2522
        %3244 = vmatpush.bf16.msra.mxu0 %v2520
        %3245 = vmatpush.bf16.msra.mxu0 %v2518
        %3246 = vmatpush.bf16.msra.mxu0 %v2516
        %3247 = vmatpush.bf16.msra.mxu0 %v2514
        %3248 = vmatpush.bf16.msra.mxu0 %v2512
        %3249 = vmatpush.bf16.msra.mxu0 %v2510
        %3250 = vmatmul.bf16.gmra.mxu0 %v764
        %v3251 = vpop.f32.mrf.mxu0
        %v3252 = vadd.f32 %v3239, %v3251
        %v3253 = vpop.f32.mrf.mxu0
        %3254 = vdwg.mxu0
        %3255 = vmatpush.bf16.msra.mxu0 %v2540
        %3256 = vmatpush.bf16.msra.mxu0 %v2538
        %3257 = vmatpush.bf16.msra.mxu0 %v2536
        %3258 = vmatpush.bf16.msra.mxu0 %v2534
        %3259 = vmatpush.bf16.msra.mxu0 %v2532
        %3260 = vmatpush.bf16.msra.mxu0 %v2530
        %3261 = vmatpush.bf16.msra.mxu0 %v2528
        %3262 = vmatpush.bf16.msra.mxu0 %v2526
        %3263 = vmatmul.bf16.gmra.mxu0 %v765
        %v3264 = vpop.f32.mrf.mxu0
        %v3265 = vadd.f32 %v3252, %v3264
        %v3266 = vpop.f32.mrf.mxu0
        %3267 = vdwg.mxu0
        %3268 = vmatpush.bf16.msra.mxu0 %v2556
        %3269 = vmatpush.bf16.msra.mxu0 %v2554
        %3270 = vmatpush.bf16.msra.mxu0 %v2552
        %3271 = vmatpush.bf16.msra.mxu0 %v2550
        %3272 = vmatpush.bf16.msra.mxu0 %v2548
        %3273 = vmatpush.bf16.msra.mxu0 %v2546
        %3274 = vmatpush.bf16.msra.mxu0 %v2544
        %3275 = vmatpush.bf16.msra.mxu0 %v2542
        %3276 = vmatmul.bf16.gmra.mxu0 %v766
        %v3277 = vpop.f32.mrf.mxu0
        %v3278 = vadd.f32 %v3265, %v3277
        %v3279 = vpop.f32.mrf.mxu0
        %3280 = vdwg.mxu0
        %3281 = vmatpush.bf16.msra.mxu0 %v2572
        %3282 = vmatpush.bf16.msra.mxu0 %v2570
        %3283 = vmatpush.bf16.msra.mxu0 %v2568
        %3284 = vmatpush.bf16.msra.mxu0 %v2566
        %3285 = vmatpush.bf16.msra.mxu0 %v2564
        %3286 = vmatpush.bf16.msra.mxu0 %v2562
        %3287 = vmatpush.bf16.msra.mxu0 %v2560
        %3288 = vmatpush.bf16.msra.mxu0 %v2558
        %3289 = vmatmul.bf16.gmra.mxu0 %v767
        %v3290 = vpop.f32.mrf.mxu0
        %v3291 = vadd.f32 %v3278, %v3290
        %v3292 = vpop.f32.mrf.mxu0
        %3293 = vdwg.mxu0
        %3294 = vmatpush.bf16.msra.mxu0 %v2588
        %3295 = vmatpush.bf16.msra.mxu0 %v2586
        %3296 = vmatpush.bf16.msra.mxu0 %v2584
        %3297 = vmatpush.bf16.msra.mxu0 %v2582
        %3298 = vmatpush.bf16.msra.mxu0 %v2580
        %3299 = vmatpush.bf16.msra.mxu0 %v2578
        %3300 = vmatpush.bf16.msra.mxu0 %v2576
        %3301 = vmatpush.bf16.msra.mxu0 %v2574
        %3302 = vmatmul.bf16.gmra.mxu0 %v768
        %v3303 = vpop.f32.mrf.mxu0
        %v3304 = vadd.f32 %v3291, %v3303
        %v3305 = vpop.f32.mrf.mxu0
        %3306 = vdwg.mxu0
        %3307 = vmatpush.bf16.msra.mxu0 %v2604
        %3308 = vmatpush.bf16.msra.mxu0 %v2602
        %3309 = vmatpush.bf16.msra.mxu0 %v2600
        %3310 = vmatpush.bf16.msra.mxu0 %v2598
        %3311 = vmatpush.bf16.msra.mxu0 %v2596
        %3312 = vmatpush.bf16.msra.mxu0 %v2594
        %3313 = vmatpush.bf16.msra.mxu0 %v2592
        %3314 = vmatpush.bf16.msra.mxu0 %v2590
        %3315 = vmatmul.bf16.gmra.mxu0 %v769
        %v3316 = vpop.f32.mrf.mxu0
        %v3317 = vadd.f32 %v3304, %v3316
        %v3318 = vpop.f32.mrf.mxu0
        %3319 = vdwg.mxu0
        %3320 = vmatpush.bf16.msra.mxu0 %v2620
        %3321 = vmatpush.bf16.msra.mxu0 %v2618
        %3322 = vmatpush.bf16.msra.mxu0 %v2616
        %3323 = vmatpush.bf16.msra.mxu0 %v2614
        %3324 = vmatpush.bf16.msra.mxu0 %v2612
        %3325 = vmatpush.bf16.msra.mxu0 %v2610
        %3326 = vmatpush.bf16.msra.mxu0 %v2608
        %3327 = vmatpush.bf16.msra.mxu0 %v2606
        %3328 = vmatmul.bf16.gmra.mxu0 %v770
        %v3329 = vpop.f32.mrf.mxu0
        %v3330 = vadd.f32 %v3317, %v3329
        %v3331 = vpop.f32.mrf.mxu0
        %3332 = vdwg.mxu0
        %3333 = vmatpush.bf16.msra.mxu0 %v2636
        %3334 = vmatpush.bf16.msra.mxu0 %v2634
        %3335 = vmatpush.bf16.msra.mxu0 %v2632
        %3336 = vmatpush.bf16.msra.mxu0 %v2630
        %3337 = vmatpush.bf16.msra.mxu0 %v2628
        %3338 = vmatpush.bf16.msra.mxu0 %v2626
        %3339 = vmatpush.bf16.msra.mxu0 %v2624
        %3340 = vmatpush.bf16.msra.mxu0 %v2622
        %3341 = vmatmul.bf16.gmra.mxu0 %v771
        %v3342 = vpop.f32.mrf.mxu0
        %v3343 = vadd.f32 %v3330, %v3342
        %v3344 = vpop.f32.mrf.mxu0
        %3345 = vdwg.mxu0
        %3346 = vmatpush.bf16.msra.mxu0 %v2652
        %3347 = vmatpush.bf16.msra.mxu0 %v2650
        %3348 = vmatpush.bf16.msra.mxu0 %v2648
        %3349 = vmatpush.bf16.msra.mxu0 %v2646
        %3350 = vmatpush.bf16.msra.mxu0 %v2644
        %3351 = vmatpush.bf16.msra.mxu0 %v2642
        %3352 = vmatpush.bf16.msra.mxu0 %v2640
        %3353 = vmatpush.bf16.msra.mxu0 %v2638
        %3354 = vmatmul.bf16.gmra.mxu0 %v772
        %v3355 = vpop.f32.mrf.mxu0
        %v3356 = vadd.f32 %v3343, %v3355
        %v3357 = vpop.f32.mrf.mxu0
        %3358 = vdwg.mxu0
        %3359 = vmatpush.bf16.msra.mxu0 %v2668
        %3360 = vmatpush.bf16.msra.mxu0 %v2666
        %3361 = vmatpush.bf16.msra.mxu0 %v2664
        %3362 = vmatpush.bf16.msra.mxu0 %v2662
        %3363 = vmatpush.bf16.msra.mxu0 %v2660
        %3364 = vmatpush.bf16.msra.mxu0 %v2658
        %3365 = vmatpush.bf16.msra.mxu0 %v2656
        %3366 = vmatpush.bf16.msra.mxu0 %v2654
        %3367 = vmatmul.bf16.gmra.mxu0 %v773
        %v3368 = vpop.f32.mrf.mxu0
        %v3369 = vadd.f32 %v3356, %v3368
        %v3370 = vpop.f32.mrf.mxu0
        %3371 = vdwg.mxu0
        %3372 = vmatpush.bf16.msra.mxu0 %v2684
        %3373 = vmatpush.bf16.msra.mxu0 %v2682
        %3374 = vmatpush.bf16.msra.mxu0 %v2680
        %3375 = vmatpush.bf16.msra.mxu0 %v2678
        %3376 = vmatpush.bf16.msra.mxu0 %v2676
        %3377 = vmatpush.bf16.msra.mxu0 %v2674
        %3378 = vmatpush.bf16.msra.mxu0 %v2672
        %3379 = vmatpush.bf16.msra.mxu0 %v2670
        %3380 = vmatmul.bf16.gmra.mxu0 %v774
        %v3381 = vpop.f32.mrf.mxu0
        %v3382 = vadd.f32 %v3369, %v3381
        %v3383 = vpop.f32.mrf.mxu0
        %3384 = vdwg.mxu0
        %3385 = vmatpush.bf16.msra.mxu0 %v2700
        %3386 = vmatpush.bf16.msra.mxu0 %v2698
        %3387 = vmatpush.bf16.msra.mxu0 %v2696
        %3388 = vmatpush.bf16.msra.mxu0 %v2694
        %3389 = vmatpush.bf16.msra.mxu0 %v2692
        %3390 = vmatpush.bf16.msra.mxu0 %v2690
        %3391 = vmatpush.bf16.msra.mxu0 %v2688
        %3392 = vmatpush.bf16.msra.mxu0 %v2686
        %3393 = vmatmul.bf16.gmra.mxu0 %v775
        %v3394 = vpop.f32.mrf.mxu0
        %v3395 = vadd.f32 %v3382, %v3394
        %v3396 = vpop.f32.mrf.mxu0
        %3397 = vdwg.mxu0
        %3398 = vmatpush.bf16.msra.mxu0 %v2333
        %3399 = vmatpush.bf16.msra.mxu0 %v2331
        %3400 = vmatpush.bf16.msra.mxu0 %v2329
        %3401 = vmatpush.bf16.msra.mxu0 %v2327
        %3402 = vmatpush.bf16.msra.mxu0 %v2325
        %3403 = vmatpush.bf16.msra.mxu0 %v2323
        %3404 = vmatpush.bf16.msra.mxu0 %v2321
        %3405 = vmatpush.bf16.msra.mxu0 %v2319
        %3406 = vmatmul.bf16.gmra.mxu0 %v752
        %v3407 = vpop.f32.mrf.mxu0
        %v3408 = vadd.f32 %v1163, %v3407
        %v3409 = vpop.f32.mrf.mxu0
        %3410 = vdwg.mxu0
        %3411 = vmatpush.bf16.msra.mxu0 %v2349
        %3412 = vmatpush.bf16.msra.mxu0 %v2347
        %3413 = vmatpush.bf16.msra.mxu0 %v2345
        %3414 = vmatpush.bf16.msra.mxu0 %v2343
        %3415 = vmatpush.bf16.msra.mxu0 %v2341
        %3416 = vmatpush.bf16.msra.mxu0 %v2339
        %3417 = vmatpush.bf16.msra.mxu0 %v2337
        %3418 = vmatpush.bf16.msra.mxu0 %v2335
        %3419 = vmatmul.bf16.gmra.mxu0 %v753
        %v3420 = vpop.f32.mrf.mxu0
        %v3421 = vadd.f32 %v3408, %v3420
        %v3422 = vpop.f32.mrf.mxu0
        %3423 = vdwg.mxu0
        %3424 = vmatpush.bf16.msra.mxu0 %v2365
        %3425 = vmatpush.bf16.msra.mxu0 %v2363
        %3426 = vmatpush.bf16.msra.mxu0 %v2361
        %3427 = vmatpush.bf16.msra.mxu0 %v2359
        %3428 = vmatpush.bf16.msra.mxu0 %v2357
        %3429 = vmatpush.bf16.msra.mxu0 %v2355
        %3430 = vmatpush.bf16.msra.mxu0 %v2353
        %3431 = vmatpush.bf16.msra.mxu0 %v2351
        %3432 = vmatmul.bf16.gmra.mxu0 %v754
        %v3433 = vpop.f32.mrf.mxu0
        %v3434 = vadd.f32 %v3421, %v3433
        %v3435 = vpop.f32.mrf.mxu0
        %3436 = vdwg.mxu0
        %3437 = vmatpush.bf16.msra.mxu0 %v2381
        %3438 = vmatpush.bf16.msra.mxu0 %v2379
        %3439 = vmatpush.bf16.msra.mxu0 %v2377
        %3440 = vmatpush.bf16.msra.mxu0 %v2375
        %3441 = vmatpush.bf16.msra.mxu0 %v2373
        %3442 = vmatpush.bf16.msra.mxu0 %v2371
        %3443 = vmatpush.bf16.msra.mxu0 %v2369
        %3444 = vmatpush.bf16.msra.mxu0 %v2367
        %3445 = vmatmul.bf16.gmra.mxu0 %v755
        %v3446 = vpop.f32.mrf.mxu0
        %v3447 = vadd.f32 %v3434, %v3446
        %v3448 = vpop.f32.mrf.mxu0
        %3449 = vdwg.mxu0
        %3450 = vmatpush.bf16.msra.mxu0 %v2397
        %3451 = vmatpush.bf16.msra.mxu0 %v2395
        %3452 = vmatpush.bf16.msra.mxu0 %v2393
        %3453 = vmatpush.bf16.msra.mxu0 %v2391
        %3454 = vmatpush.bf16.msra.mxu0 %v2389
        %3455 = vmatpush.bf16.msra.mxu0 %v2387
        %3456 = vmatpush.bf16.msra.mxu0 %v2385
        %3457 = vmatpush.bf16.msra.mxu0 %v2383
        %3458 = vmatmul.bf16.gmra.mxu0 %v756
        %v3459 = vpop.f32.mrf.mxu0
        %v3460 = vadd.f32 %v3447, %v3459
        %v3461 = vpop.f32.mrf.mxu0
        %3462 = vdwg.mxu0
        %3463 = vmatpush.bf16.msra.mxu0 %v2413
        %3464 = vmatpush.bf16.msra.mxu0 %v2411
        %3465 = vmatpush.bf16.msra.mxu0 %v2409
        %3466 = vmatpush.bf16.msra.mxu0 %v2407
        %3467 = vmatpush.bf16.msra.mxu0 %v2405
        %3468 = vmatpush.bf16.msra.mxu0 %v2403
        %3469 = vmatpush.bf16.msra.mxu0 %v2401
        %3470 = vmatpush.bf16.msra.mxu0 %v2399
        %3471 = vmatmul.bf16.gmra.mxu0 %v757
        %v3472 = vpop.f32.mrf.mxu0
        %v3473 = vadd.f32 %v3460, %v3472
        %v3474 = vpop.f32.mrf.mxu0
        %3475 = vdwg.mxu0
        %3476 = vmatpush.bf16.msra.mxu0 %v2429
        %3477 = vmatpush.bf16.msra.mxu0 %v2427
        %3478 = vmatpush.bf16.msra.mxu0 %v2425
        %3479 = vmatpush.bf16.msra.mxu0 %v2423
        %3480 = vmatpush.bf16.msra.mxu0 %v2421
        %3481 = vmatpush.bf16.msra.mxu0 %v2419
        %3482 = vmatpush.bf16.msra.mxu0 %v2417
        %3483 = vmatpush.bf16.msra.mxu0 %v2415
        %3484 = vmatmul.bf16.gmra.mxu0 %v758
        %v3485 = vpop.f32.mrf.mxu0
        %v3486 = vadd.f32 %v3473, %v3485
        %v3487 = vpop.f32.mrf.mxu0
        %3488 = vdwg.mxu0
        %3489 = vmatpush.bf16.msra.mxu0 %v2445
        %3490 = vmatpush.bf16.msra.mxu0 %v2443
        %3491 = vmatpush.bf16.msra.mxu0 %v2441
        %3492 = vmatpush.bf16.msra.mxu0 %v2439
        %3493 = vmatpush.bf16.msra.mxu0 %v2437
        %3494 = vmatpush.bf16.msra.mxu0 %v2435
        %3495 = vmatpush.bf16.msra.mxu0 %v2433
        %3496 = vmatpush.bf16.msra.mxu0 %v2431
        %3497 = vmatmul.bf16.gmra.mxu0 %v759
        %v3498 = vpop.f32.mrf.mxu0
        %v3499 = vadd.f32 %v3486, %v3498
        %v3500 = vpop.f32.mrf.mxu0
        %3501 = vdwg.mxu0
        %3502 = vmatpush.bf16.msra.mxu0 %v2461
        %3503 = vmatpush.bf16.msra.mxu0 %v2459
        %3504 = vmatpush.bf16.msra.mxu0 %v2457
        %3505 = vmatpush.bf16.msra.mxu0 %v2455
        %3506 = vmatpush.bf16.msra.mxu0 %v2453
        %3507 = vmatpush.bf16.msra.mxu0 %v2451
        %3508 = vmatpush.bf16.msra.mxu0 %v2449
        %3509 = vmatpush.bf16.msra.mxu0 %v2447
        %3510 = vmatmul.bf16.gmra.mxu0 %v760
        %v3511 = vpop.f32.mrf.mxu0
        %v3512 = vadd.f32 %v3499, %v3511
        %v3513 = vpop.f32.mrf.mxu0
        %3514 = vdwg.mxu0
        %3515 = vmatpush.bf16.msra.mxu0 %v2477
        %3516 = vmatpush.bf16.msra.mxu0 %v2475
        %3517 = vmatpush.bf16.msra.mxu0 %v2473
        %3518 = vmatpush.bf16.msra.mxu0 %v2471
        %3519 = vmatpush.bf16.msra.mxu0 %v2469
        %3520 = vmatpush.bf16.msra.mxu0 %v2467
        %3521 = vmatpush.bf16.msra.mxu0 %v2465
        %3522 = vmatpush.bf16.msra.mxu0 %v2463
        %3523 = vmatmul.bf16.gmra.mxu0 %v761
        %v3524 = vpop.f32.mrf.mxu0
        %v3525 = vadd.f32 %v3512, %v3524
        %v3526 = vpop.f32.mrf.mxu0
        %3527 = vdwg.mxu0
        %3528 = vmatpush.bf16.msra.mxu0 %v2493
        %3529 = vmatpush.bf16.msra.mxu0 %v2491
        %3530 = vmatpush.bf16.msra.mxu0 %v2489
        %3531 = vmatpush.bf16.msra.mxu0 %v2487
        %3532 = vmatpush.bf16.msra.mxu0 %v2485
        %3533 = vmatpush.bf16.msra.mxu0 %v2483
        %3534 = vmatpush.bf16.msra.mxu0 %v2481
        %3535 = vmatpush.bf16.msra.mxu0 %v2479
        %3536 = vmatmul.bf16.gmra.mxu0 %v762
        %v3537 = vpop.f32.mrf.mxu0
        %v3538 = vadd.f32 %v3525, %v3537
        %v3539 = vpop.f32.mrf.mxu0
        %3540 = vdwg.mxu0
        %3541 = vmatpush.bf16.msra.mxu0 %v2509
        %3542 = vmatpush.bf16.msra.mxu0 %v2507
        %3543 = vmatpush.bf16.msra.mxu0 %v2505
        %3544 = vmatpush.bf16.msra.mxu0 %v2503
        %3545 = vmatpush.bf16.msra.mxu0 %v2501
        %3546 = vmatpush.bf16.msra.mxu0 %v2499
        %3547 = vmatpush.bf16.msra.mxu0 %v2497
        %3548 = vmatpush.bf16.msra.mxu0 %v2495
        %3549 = vmatmul.bf16.gmra.mxu0 %v763
        %v3550 = vpop.f32.mrf.mxu0
        %v3551 = vadd.f32 %v3538, %v3550
        %v3552 = vpop.f32.mrf.mxu0
        %3553 = vdwg.mxu0
        %3554 = vmatpush.bf16.msra.mxu0 %v2525
        %3555 = vmatpush.bf16.msra.mxu0 %v2523
        %3556 = vmatpush.bf16.msra.mxu0 %v2521
        %3557 = vmatpush.bf16.msra.mxu0 %v2519
        %3558 = vmatpush.bf16.msra.mxu0 %v2517
        %3559 = vmatpush.bf16.msra.mxu0 %v2515
        %3560 = vmatpush.bf16.msra.mxu0 %v2513
        %3561 = vmatpush.bf16.msra.mxu0 %v2511
        %3562 = vmatmul.bf16.gmra.mxu0 %v764
        %v3563 = vpop.f32.mrf.mxu0
        %v3564 = vadd.f32 %v3551, %v3563
        %v3565 = vpop.f32.mrf.mxu0
        %3566 = vdwg.mxu0
        %3567 = vmatpush.bf16.msra.mxu0 %v2541
        %3568 = vmatpush.bf16.msra.mxu0 %v2539
        %3569 = vmatpush.bf16.msra.mxu0 %v2537
        %3570 = vmatpush.bf16.msra.mxu0 %v2535
        %3571 = vmatpush.bf16.msra.mxu0 %v2533
        %3572 = vmatpush.bf16.msra.mxu0 %v2531
        %3573 = vmatpush.bf16.msra.mxu0 %v2529
        %3574 = vmatpush.bf16.msra.mxu0 %v2527
        %3575 = vmatmul.bf16.gmra.mxu0 %v765
        %v3576 = vpop.f32.mrf.mxu0
        %v3577 = vadd.f32 %v3564, %v3576
        %v3578 = vpop.f32.mrf.mxu0
        %3579 = vdwg.mxu0
        %3580 = vmatpush.bf16.msra.mxu0 %v2557
        %3581 = vmatpush.bf16.msra.mxu0 %v2555
        %3582 = vmatpush.bf16.msra.mxu0 %v2553
        %3583 = vmatpush.bf16.msra.mxu0 %v2551
        %3584 = vmatpush.bf16.msra.mxu0 %v2549
        %3585 = vmatpush.bf16.msra.mxu0 %v2547
        %3586 = vmatpush.bf16.msra.mxu0 %v2545
        %3587 = vmatpush.bf16.msra.mxu0 %v2543
        %3588 = vmatmul.bf16.gmra.mxu0 %v766
        %v3589 = vpop.f32.mrf.mxu0
        %v3590 = vadd.f32 %v3577, %v3589
        %v3591 = vpop.f32.mrf.mxu0
        %3592 = vdwg.mxu0
        %3593 = vmatpush.bf16.msra.mxu0 %v2573
        %3594 = vmatpush.bf16.msra.mxu0 %v2571
        %3595 = vmatpush.bf16.msra.mxu0 %v2569
        %3596 = vmatpush.bf16.msra.mxu0 %v2567
        %3597 = vmatpush.bf16.msra.mxu0 %v2565
        %3598 = vmatpush.bf16.msra.mxu0 %v2563
        %3599 = vmatpush.bf16.msra.mxu0 %v2561
        %3600 = vmatpush.bf16.msra.mxu0 %v2559
        %3601 = vmatmul.bf16.gmra.mxu0 %v767
        %v3602 = vpop.f32.mrf.mxu0
        %v3603 = vadd.f32 %v3590, %v3602
        %v3604 = vpop.f32.mrf.mxu0
        %3605 = vdwg.mxu0
        %3606 = vmatpush.bf16.msra.mxu0 %v2589
        %3607 = vmatpush.bf16.msra.mxu0 %v2587
        %3608 = vmatpush.bf16.msra.mxu0 %v2585
        %3609 = vmatpush.bf16.msra.mxu0 %v2583
        %3610 = vmatpush.bf16.msra.mxu0 %v2581
        %3611 = vmatpush.bf16.msra.mxu0 %v2579
        %3612 = vmatpush.bf16.msra.mxu0 %v2577
        %3613 = vmatpush.bf16.msra.mxu0 %v2575
        %3614 = vmatmul.bf16.gmra.mxu0 %v768
        %v3615 = vpop.f32.mrf.mxu0
        %v3616 = vadd.f32 %v3603, %v3615
        %v3617 = vpop.f32.mrf.mxu0
        %3618 = vdwg.mxu0
        %3619 = vmatpush.bf16.msra.mxu0 %v2605
        %3620 = vmatpush.bf16.msra.mxu0 %v2603
        %3621 = vmatpush.bf16.msra.mxu0 %v2601
        %3622 = vmatpush.bf16.msra.mxu0 %v2599
        %3623 = vmatpush.bf16.msra.mxu0 %v2597
        %3624 = vmatpush.bf16.msra.mxu0 %v2595
        %3625 = vmatpush.bf16.msra.mxu0 %v2593
        %3626 = vmatpush.bf16.msra.mxu0 %v2591
        %3627 = vmatmul.bf16.gmra.mxu0 %v769
        %v3628 = vpop.f32.mrf.mxu0
        %v3629 = vadd.f32 %v3616, %v3628
        %v3630 = vpop.f32.mrf.mxu0
        %3631 = vdwg.mxu0
        %3632 = vmatpush.bf16.msra.mxu0 %v2621
        %3633 = vmatpush.bf16.msra.mxu0 %v2619
        %3634 = vmatpush.bf16.msra.mxu0 %v2617
        %3635 = vmatpush.bf16.msra.mxu0 %v2615
        %3636 = vmatpush.bf16.msra.mxu0 %v2613
        %3637 = vmatpush.bf16.msra.mxu0 %v2611
        %3638 = vmatpush.bf16.msra.mxu0 %v2609
        %3639 = vmatpush.bf16.msra.mxu0 %v2607
        %3640 = vmatmul.bf16.gmra.mxu0 %v770
        %v3641 = vpop.f32.mrf.mxu0
        %v3642 = vadd.f32 %v3629, %v3641
        %v3643 = vpop.f32.mrf.mxu0
        %3644 = vdwg.mxu0
        %3645 = vmatpush.bf16.msra.mxu0 %v2637
        %3646 = vmatpush.bf16.msra.mxu0 %v2635
        %3647 = vmatpush.bf16.msra.mxu0 %v2633
        %3648 = vmatpush.bf16.msra.mxu0 %v2631
        %3649 = vmatpush.bf16.msra.mxu0 %v2629
        %3650 = vmatpush.bf16.msra.mxu0 %v2627
        %3651 = vmatpush.bf16.msra.mxu0 %v2625
        %3652 = vmatpush.bf16.msra.mxu0 %v2623
        %3653 = vmatmul.bf16.gmra.mxu0 %v771
        %v3654 = vpop.f32.mrf.mxu0
        %v3655 = vadd.f32 %v3642, %v3654
        %v3656 = vpop.f32.mrf.mxu0
        %3657 = vdwg.mxu0
        %3658 = vmatpush.bf16.msra.mxu0 %v2653
        %3659 = vmatpush.bf16.msra.mxu0 %v2651
        %3660 = vmatpush.bf16.msra.mxu0 %v2649
        %3661 = vmatpush.bf16.msra.mxu0 %v2647
        %3662 = vmatpush.bf16.msra.mxu0 %v2645
        %3663 = vmatpush.bf16.msra.mxu0 %v2643
        %3664 = vmatpush.bf16.msra.mxu0 %v2641
        %3665 = vmatpush.bf16.msra.mxu0 %v2639
        %3666 = vmatmul.bf16.gmra.mxu0 %v772
        %v3667 = vpop.f32.mrf.mxu0
        %v3668 = vadd.f32 %v3655, %v3667
        %v3669 = vpop.f32.mrf.mxu0
        %3670 = vdwg.mxu0
        %3671 = vmatpush.bf16.msra.mxu0 %v2669
        %3672 = vmatpush.bf16.msra.mxu0 %v2667
        %3673 = vmatpush.bf16.msra.mxu0 %v2665
        %3674 = vmatpush.bf16.msra.mxu0 %v2663
        %3675 = vmatpush.bf16.msra.mxu0 %v2661
        %3676 = vmatpush.bf16.msra.mxu0 %v2659
        %3677 = vmatpush.bf16.msra.mxu0 %v2657
        %3678 = vmatpush.bf16.msra.mxu0 %v2655
        %3679 = vmatmul.bf16.gmra.mxu0 %v773
        %v3680 = vpop.f32.mrf.mxu0
        %v3681 = vadd.f32 %v3668, %v3680
        %v3682 = vpop.f32.mrf.mxu0
        %3683 = vdwg.mxu0
        %3684 = vmatpush.bf16.msra.mxu0 %v2685
        %3685 = vmatpush.bf16.msra.mxu0 %v2683
        %3686 = vmatpush.bf16.msra.mxu0 %v2681
        %3687 = vmatpush.bf16.msra.mxu0 %v2679
        %3688 = vmatpush.bf16.msra.mxu0 %v2677
        %3689 = vmatpush.bf16.msra.mxu0 %v2675
        %3690 = vmatpush.bf16.msra.mxu0 %v2673
        %3691 = vmatpush.bf16.msra.mxu0 %v2671
        %3692 = vmatmul.bf16.gmra.mxu0 %v774
        %v3693 = vpop.f32.mrf.mxu0
        %v3694 = vadd.f32 %v3681, %v3693
        %v3695 = vpop.f32.mrf.mxu0
        %3696 = vdwg.mxu0
        %3697 = vmatpush.bf16.msra.mxu0 %v2701
        %3698 = vmatpush.bf16.msra.mxu0 %v2699
        %3699 = vmatpush.bf16.msra.mxu0 %v2697
        %3700 = vmatpush.bf16.msra.mxu0 %v2695
        %3701 = vmatpush.bf16.msra.mxu0 %v2693
        %3702 = vmatpush.bf16.msra.mxu0 %v2691
        %3703 = vmatpush.bf16.msra.mxu0 %v2689
        %3704 = vmatpush.bf16.msra.mxu0 %v2687
        %3705 = vmatmul.bf16.gmra.mxu0 %v775
        %v3706 = vpop.f32.mrf.mxu0
        %v3707 = vadd.f32 %v3694, %v3706
        %v3708 = vpop.f32.mrf.mxu0
        %3709 = vdwg.mxu0
        %v3710 = vmul.f32 %v3395, 0.5
        %v3711 = vmul.f32 %v3707, 0.5
        %v3712 = vmul.f32 %v3395, 0.70710677
        %v3713 = vmul.f32 %v3707, 0.70710677
        %v3714 = vmul.f32 %v3712, %v3712
        %v3715 = vmin.f32 16.0, %v3714
        %v3716 = vmul.f32 %v3715, 2.1237322e-06
        %v3717 = vadd.f32 %v3716, 0.00028619796
        %v3718 = vmul.f32 %v3715, %v3717
        %v3719 = vadd.f32 %v3718, 0.0036580483
        %v3720 = vmul.f32 %v3715, %v3719
        %v3721 = vadd.f32 %v3720, 0.05243302
        %v3722 = vmul.f32 %v3715, %v3721
        %v3723 = vadd.f32 %v3722, 0.18741608
        %v3724 = vmul.f32 %v3715, %v3723
        %v3725 = vadd.f32 %v3724, 1.1283791
        %v3726 = vmul.f32 %v3712, %v3725
        %v3727 = vmul.f32 %v3715, 3.8918573e-05
        %v3728 = vadd.f32 %v3727, 0.001143296
        %v3729 = vmul.f32 %v3715, %v3728
        %v3730 = vadd.f32 %v3729, 0.014752088
        %v3731 = vmul.f32 %v3715, %v3730
        %v3732 = vadd.f32 %v3731, 0.112945676
        %v3733 = vmul.f32 %v3715, %v3732
        %v3734 = vadd.f32 %v3733, 0.4994258
        %v3735 = vmul.f32 %v3715, %v3734
        %v3736 = vadd.f32 %v3735, 1.0
        %v3737 = vrcp.pop %v3736
        %v3738 = vmul.f32 %v3736, %v3737
        %v3739 = vsub.f32 1.0, %v3738
        %v3740 = vmul.f32 %v3737, %v3739
        %v3741 = vadd.f32 %v3737, %v3740
        %vm3742 = vweird.f32 %v3736
        %vm3743 = vweird.f32 %v3737
        %vm3744 = vmor %vm3742, %vm3743
        %v3745 = vsel %vm3744, %v3737, %v3741
        %v3746 = vand.u32 2147483647, %v3736
        %vm3747 = vcmp.eq.f32.partialorder %v3746, 8.507059e+37
        %v3748 = vand.u32 %v3736, 2147483648
        %v3749 = vor.u32 1.1754944e-38, %v3748
        %v3750 = vsel %vm3747, %v3749, %v3745
        %v3751 = vmul.f32 %v3726, %v3750
        %v3752 = vmin.f32 %v3751, 1.0
        %v3753 = vmax.f32 %v3752, -1.0
        %v3754 = vmul.f32 %v3713, %v3713
        %v3755 = vmin.f32 16.0, %v3754
        %v3756 = vmul.f32 %v3755, 2.1237322e-06
        %v3757 = vadd.f32 %v3756, 0.00028619796
        %v3758 = vmul.f32 %v3755, %v3757
        %v3759 = vadd.f32 %v3758, 0.0036580483
        %v3760 = vmul.f32 %v3755, %v3759
        %v3761 = vadd.f32 %v3760, 0.05243302
        %v3762 = vmul.f32 %v3755, %v3761
        %v3763 = vadd.f32 %v3762, 0.18741608
        %v3764 = vmul.f32 %v3755, %v3763
        %v3765 = vadd.f32 %v3764, 1.1283791
        %v3766 = vmul.f32 %v3713, %v3765
        %v3767 = vmul.f32 %v3755, 3.8918573e-05
        %v3768 = vadd.f32 %v3767, 0.001143296
        %v3769 = vmul.f32 %v3755, %v3768
        %v3770 = vadd.f32 %v3769, 0.014752088
        %v3771 = vmul.f32 %v3755, %v3770
        %v3772 = vadd.f32 %v3771, 0.112945676
        %v3773 = vmul.f32 %v3755, %v3772
        %v3774 = vadd.f32 %v3773, 0.4994258
        %v3775 = vmul.f32 %v3755, %v3774
        %v3776 = vadd.f32 %v3775, 1.0
        %v3777 = vrcp.pop %v3776
        %v3778 = vmul.f32 %v3776, %v3777
        %v3779 = vsub.f32 1.0, %v3778
        %v3780 = vmul.f32 %v3777, %v3779
        %v3781 = vadd.f32 %v3777, %v3780
        %vm3782 = vweird.f32 %v3776
        %vm3783 = vweird.f32 %v3777
        %vm3784 = vmor %vm3782, %vm3783
        %v3785 = vsel %vm3784, %v3777, %v3781
        %v3786 = vand.u32 2147483647, %v3776
        %vm3787 = vcmp.eq.f32.partialorder %v3786, 8.507059e+37
        %v3788 = vand.u32 %v3776, 2147483648
        %v3789 = vor.u32 1.1754944e-38, %v3788
        %v3790 = vsel %vm3787, %v3789, %v3785
        %v3791 = vmul.f32 %v3766, %v3790
        %v3792 = vmin.f32 %v3791, 1.0
        %v3793 = vmax.f32 %v3792, -1.0
        %v3794 = vadd.f32 %v3753, 1.0
        %v3795 = vadd.f32 %v3793, 1.0
        %v3796 = vmul.f32 %v3710, %v3794
        %v3797 = vmul.f32 %v3711, %v3795
        %v3798 = vadd.f32 %v3796, %v3797
        %3799 = vadd.xlane.f32.xlu0 %v3798
        %v3800 = vpop.xlane.xlu0 %3799
        %v3801 = vrcp.pop 256.0
        %v3802 = vmul.f32 256.0, %v3801
        %v3803 = vsub.f32 1.0, %v3802
        %v3804 = vmul.f32 %v3801, %v3803
        %v3805 = vadd.f32 %v3801, %v3804
        %vm3806 = vweird.f32 %v3801
        %v3807 = vsel %vm3806, %v3801, %v3805
        %v3808 = vmul.f32 %v3800, %v3807
        %v3809 = vsub.f32 %v3796, %v3808
        %v3810 = vsub.f32 %v3797, %v3808
        %v3811 = vmul.f32 %v3809, %v3809
        %v3812 = vmul.f32 %v3810, %v3810
        %v3813 = vadd.f32 %v3811, %v3812
        %3814 = vadd.xlane.f32.xlu0 %v3813
        %v3815 = vpop.xlane.xlu0 %3814
        %v3816 = vmul.f32 %v3815, %v3807
        %v3817 = vadd.f32 %v3816, 1e-05
        %v3818 = vrsqrt.pop %v3817
        %v3819 = vmul.f32 %v3818, %v3817
        %v3820 = vmul.f32 %v3819, %v3818
        %v3821 = vmul.f32 0.5, %v3820
        %v3822 = vsub.f32 1.5, %v3821
        %v3823 = vmul.f32 %v3818, %v3822
        %vm3824 = vweird.f32 %v3817
        %vm3825 = vweird.f32 %v3818
        %vm3826 = vmor %vm3824, %vm3825
        %v3827 = vsel %vm3826, %v3818, %v3823
        %v3828 = vmul.f32 %v3809, %v3827
        %v3829 = vmul.f32 %v3810, %v3827
        %v3830 = vld [vmem:[#allocation8] sm:$0x3]
        %v3832 = vperm.slane %v3830, 0
        %v3833 = vperm.slane %v3830, 1
        %v3836 = vmul.f32 %v3828, %v3832
        %v3837 = vmul.f32 %v3829, %v3833
        %v3838 = vld [vmem:[#allocation10] sm:$0x3]
        %v3840 = vperm.slane %v3838, 0
        %v3841 = vperm.slane %v3838, 1
        %v3844 = vadd.f32 %v3836, %v3840
        %v3845 = vadd.f32 %v3837, %v3841
        %v3846 = vpack.c.bf16 %v3844, %v3844
        %v3847 = vpack.c.bf16 %v3845, %v3845
        %v3848 = vld [vmem:[#allocation11] sm:$0xf]
        %v3849 = vld [vmem:[#allocation11 + $0x4] sm:$0xf]
        %v3850 = vld [vmem:[#allocation11 + $0x8] sm:$0xf]
        %v3851 = vld [vmem:[#allocation11 + $0xc] sm:$0xf]
        %v3852 = vld [vmem:[#allocation11 + $0x10] sm:$0xf]
        %v3853 = vld [vmem:[#allocation11 + $0x14] sm:$0xf]
        %v3854 = vld [vmem:[#allocation11 + $0x18] sm:$0xf]
        %v3855 = vld [vmem:[#allocation11 + $0x1c] sm:$0xf]
        %v3856 = vld [vmem:[#allocation11 + $0x20] sm:$0xf]
        %v3857 = vld [vmem:[#allocation11 + $0x24] sm:$0xf]
        %v3858 = vld [vmem:[#allocation11 + $0x28] sm:$0xf]
        %v3859 = vld [vmem:[#allocation11 + $0x2c] sm:$0xf]
        %v3860 = vld [vmem:[#allocation11 + $0x30] sm:$0xf]
        %v3861 = vld [vmem:[#allocation11 + $0x34] sm:$0xf]
        %v3862 = vld [vmem:[#allocation11 + $0x38] sm:$0xf]
        %v3863 = vld [vmem:[#allocation11 + $0x3c] sm:$0xf]
        %v3864 = vld [vmem:[#allocation11 + $0x40] sm:$0xf]
        %v3865 = vld [vmem:[#allocation11 + $0x44] sm:$0xf]
        %v3866 = vld [vmem:[#allocation11 + $0x48] sm:$0xf]
        %v3867 = vld [vmem:[#allocation11 + $0x4c] sm:$0xf]
        %v3868 = vld [vmem:[#allocation11 + $0x50] sm:$0xf]
        %v3869 = vld [vmem:[#allocation11 + $0x54] sm:$0xf]
        %v3870 = vld [vmem:[#allocation11 + $0x58] sm:$0xf]
        %v3871 = vld [vmem:[#allocation11 + $0x5c] sm:$0xf]
        %v3872 = vld [vmem:[#allocation11 + $0x60] sm:$0xf]
        %v3873 = vld [vmem:[#allocation11 + $0x64] sm:$0xf]
        %v3874 = vld [vmem:[#allocation11 + $0x68] sm:$0xf]
        %v3875 = vld [vmem:[#allocation11 + $0x6c] sm:$0xf]
        %v3876 = vld [vmem:[#allocation11 + $0x70] sm:$0xf]
        %v3877 = vld [vmem:[#allocation11 + $0x74] sm:$0xf]
        %v3878 = vld [vmem:[#allocation11 + $0x78] sm:$0xf]
        %v3879 = vld [vmem:[#allocation11 + $0x7c] sm:$0xf]
        %v3880 = vld [vmem:[#allocation13] sm:$0x1]
        %v3882 = vperm.slane %v3880, 0
        %v3916 = vunpack.c.l.b16 %v3848
        %v3917 = vunpack.c.l.b16 %v3849
        %v3918 = vunpack.c.l.b16 %v3850
        %v3919 = vunpack.c.l.b16 %v3851
        %v3920 = vunpack.c.l.b16 %v3852
        %v3921 = vunpack.c.l.b16 %v3853
        %v3922 = vunpack.c.l.b16 %v3854
        %v3923 = vunpack.c.l.b16 %v3855
        %v3924 = vunpack.c.l.b16 %v3856
        %v3925 = vunpack.c.l.b16 %v3857
        %v3926 = vunpack.c.l.b16 %v3858
        %v3927 = vunpack.c.l.b16 %v3859
        %v3928 = vunpack.c.l.b16 %v3860
        %v3929 = vunpack.c.l.b16 %v3861
        %v3930 = vunpack.c.l.b16 %v3862
        %v3931 = vunpack.c.l.b16 %v3863
        %v3932 = vunpack.c.l.b16 %v3864
        %v3933 = vunpack.c.l.b16 %v3865
        %v3934 = vunpack.c.l.b16 %v3866
        %v3935 = vunpack.c.l.b16 %v3867
        %v3936 = vunpack.c.l.b16 %v3868
        %v3937 = vunpack.c.l.b16 %v3869
        %v3938 = vunpack.c.l.b16 %v3870
        %v3939 = vunpack.c.l.b16 %v3871
        %v3940 = vunpack.c.l.b16 %v3872
        %v3941 = vunpack.c.l.b16 %v3873
        %v3942 = vunpack.c.l.b16 %v3874
        %v3943 = vunpack.c.l.b16 %v3875
        %v3944 = vunpack.c.l.b16 %v3876
        %v3945 = vunpack.c.l.b16 %v3877
        %v3946 = vunpack.c.l.b16 %v3878
        %v3947 = vunpack.c.l.b16 %v3879
        %v3948 = vpack.c.b16 %v3917, %v3916
        %v3949 = vpack.c.b16 %v3919, %v3918
        %v3950 = vpack.c.b16 %v3921, %v3920
        %v3951 = vpack.c.b16 %v3923, %v3922
        %v3952 = vpack.c.b16 %v3925, %v3924
        %v3953 = vpack.c.b16 %v3927, %v3926
        %v3954 = vpack.c.b16 %v3929, %v3928
        %v3955 = vpack.c.b16 %v3931, %v3930
        %v3956 = vpack.c.b16 %v3933, %v3932
        %v3957 = vpack.c.b16 %v3935, %v3934
        %v3958 = vpack.c.b16 %v3937, %v3936
        %v3959 = vpack.c.b16 %v3939, %v3938
        %v3960 = vpack.c.b16 %v3941, %v3940
        %v3961 = vpack.c.b16 %v3943, %v3942
        %v3962 = vpack.c.b16 %v3945, %v3944
        %v3963 = vpack.c.b16 %v3947, %v3946
        %3980 = vmatpush.bf16.msra.mxu0 %v3955
        %3981 = vmatpush.bf16.msra.mxu0 %v3954
        %3982 = vmatpush.bf16.msra.mxu0 %v3953
        %3983 = vmatpush.bf16.msra.mxu0 %v3952
        %3984 = vmatpush.bf16.msra.mxu0 %v3951
        %3985 = vmatpush.bf16.msra.mxu0 %v3950
        %3986 = vmatpush.bf16.msra.mxu0 %v3949
        %3987 = vmatpush.bf16.msra.mxu0 %v3948
        %3988 = vmatmul.bf16.gmra.mxu0 %v3846
        %v3989 = vpop.f32.mrf.mxu0
        %v3990 = vadd.f32 %v3882, %v3989
        %v3991 = vpop.f32.mrf.mxu0
        %3992 = vdwg.mxu0
        %3993 = vmatpush.bf16.msra.mxu0 %v3963
        %3994 = vmatpush.bf16.msra.mxu0 %v3962
        %3995 = vmatpush.bf16.msra.mxu0 %v3961
        %3996 = vmatpush.bf16.msra.mxu0 %v3960
        %3997 = vmatpush.bf16.msra.mxu0 %v3959
        %3998 = vmatpush.bf16.msra.mxu0 %v3958
        %3999 = vmatpush.bf16.msra.mxu0 %v3957
        %4000 = vmatpush.bf16.msra.mxu0 %v3956
        %4001 = vmatmul.bf16.gmra.mxu0 %v3847
        %v4002 = vpop.f32.mrf.mxu0
        %v4003 = vadd.f32 %v3990, %v4002
        %v4004 = vpop.f32.mrf.mxu0
        %4005 = vdwg.mxu0
        %v4006 = vmul.f32 %v4003, 0.5
        %v4007 = vmul.f32 %v4003, 0.70710677
        %v4008 = vmul.f32 %v4007, %v4007
        %v4009 = vmin.f32 16.0, %v4008
        %v4010 = vmul.f32 %v4009, 2.1237322e-06
        %v4011 = vadd.f32 %v4010, 0.00028619796
        %v4012 = vmul.f32 %v4009, %v4011
        %v4013 = vadd.f32 %v4012, 0.0036580483
        %v4014 = vmul.f32 %v4009, %v4013
        %v4015 = vadd.f32 %v4014, 0.05243302
        %v4016 = vmul.f32 %v4009, %v4015
        %v4017 = vadd.f32 %v4016, 0.18741608
        %v4018 = vmul.f32 %v4009, %v4017
        %v4019 = vadd.f32 %v4018, 1.1283791
        %v4020 = vmul.f32 %v4007, %v4019
        %v4021 = vmul.f32 %v4009, 3.8918573e-05
        %v4022 = vadd.f32 %v4021, 0.001143296
        %v4023 = vmul.f32 %v4009, %v4022
        %v4024 = vadd.f32 %v4023, 0.014752088
        %v4025 = vmul.f32 %v4009, %v4024
        %v4026 = vadd.f32 %v4025, 0.112945676
        %v4027 = vmul.f32 %v4009, %v4026
        %v4028 = vadd.f32 %v4027, 0.4994258
        %v4029 = vmul.f32 %v4009, %v4028
        %v4030 = vadd.f32 %v4029, 1.0
        %v4031 = vrcp.pop %v4030
        %v4032 = vmul.f32 %v4030, %v4031
        %v4033 = vsub.f32 1.0, %v4032
        %v4034 = vmul.f32 %v4031, %v4033
        %v4035 = vadd.f32 %v4031, %v4034
        %vm4036 = vweird.f32 %v4030
        %vm4037 = vweird.f32 %v4031
        %vm4038 = vmor %vm4036, %vm4037
        %v4039 = vsel %vm4038, %v4031, %v4035
        %v4040 = vand.u32 2147483647, %v4030
        %vm4041 = vcmp.eq.f32.partialorder %v4040, 8.507059e+37
        %v4042 = vand.u32 %v4030, 2147483648
        %v4043 = vor.u32 1.1754944e-38, %v4042
        %v4044 = vsel %vm4041, %v4043, %v4039
        %v4045 = vmul.f32 %v4020, %v4044
        %v4046 = vmin.f32 %v4045, 1.0
        %v4047 = vmax.f32 %v4046, -1.0
        %v4048 = vadd.f32 %v4047, 1.0
        %v4049 = vmul.f32 %v4006, %v4048
        %v4050 = vpack.c.bf16 %v4049, %v4049
        %v4051 = vld [vmem:[#allocation14] sm:$0xf]
        %v4052 = vld [vmem:[#allocation14 + $0x4] sm:$0xf]
        %v4053 = vld [vmem:[#allocation14 + $0x8] sm:$0xf]
        %v4054 = vld [vmem:[#allocation14 + $0xc] sm:$0xf]
        %v4055 = vld [vmem:[#allocation14 + $0x10] sm:$0xf]
        %v4056 = vld [vmem:[#allocation14 + $0x14] sm:$0xf]
        %v4057 = vld [vmem:[#allocation14 + $0x18] sm:$0xf]
        %v4058 = vld [vmem:[#allocation14 + $0x1c] sm:$0xf]
        %v4059 = vld [vmem:[#allocation14 + $0x20] sm:$0xf]
        %v4060 = vld [vmem:[#allocation14 + $0x24] sm:$0xf]
        %v4061 = vld [vmem:[#allocation14 + $0x28] sm:$0xf]
        %v4062 = vld [vmem:[#allocation14 + $0x2c] sm:$0xf]
        %v4063 = vld [vmem:[#allocation14 + $0x30] sm:$0xf]
        %v4064 = vld [vmem:[#allocation14 + $0x34] sm:$0xf]
        %v4065 = vld [vmem:[#allocation14 + $0x38] sm:$0xf]
        %v4066 = vld [vmem:[#allocation14 + $0x3c] sm:$0xf]
        %v4067 = vld [vmem:[#allocation16] sm:$0x1]
        %v4069 = vperm.slane %v4067, 0
        %v4087 = vunpack.c.l.b16 %v4051
        %v4088 = vunpack.c.l.b16 %v4052
        %v4089 = vunpack.c.l.b16 %v4053
        %v4090 = vunpack.c.l.b16 %v4054
        %v4091 = vunpack.c.l.b16 %v4055
        %v4092 = vunpack.c.l.b16 %v4056
        %v4093 = vunpack.c.l.b16 %v4057
        %v4094 = vunpack.c.l.b16 %v4058
        %v4095 = vunpack.c.l.b16 %v4059
        %v4096 = vunpack.c.l.b16 %v4060
        %v4097 = vunpack.c.l.b16 %v4061
        %v4098 = vunpack.c.l.b16 %v4062
        %v4099 = vunpack.c.l.b16 %v4063
        %v4100 = vunpack.c.l.b16 %v4064
        %v4101 = vunpack.c.l.b16 %v4065
        %v4102 = vunpack.c.l.b16 %v4066
        %v4103 = vpack.c.b16 %v4088, %v4087
        %v4104 = vpack.c.b16 %v4090, %v4089
        %v4105 = vpack.c.b16 %v4092, %v4091
        %v4106 = vpack.c.b16 %v4094, %v4093
        %v4107 = vpack.c.b16 %v4096, %v4095
        %v4108 = vpack.c.b16 %v4098, %v4097
        %v4109 = vpack.c.b16 %v4100, %v4099
        %v4110 = vpack.c.b16 %v4102, %v4101
        %4119 = vmatpush.bf16.msra.mxu0 %v4110
        %4120 = vmatpush.bf16.msra.mxu0 %v4109
        %4121 = vmatpush.bf16.msra.mxu0 %v4108
        %4122 = vmatpush.bf16.msra.mxu0 %v4107
        %4123 = vmatpush.bf16.msra.mxu0 %v4106
        %4124 = vmatpush.bf16.msra.mxu0 %v4105
        %4125 = vmatpush.bf16.msra.mxu0 %v4104
        %4126 = vmatpush.bf16.msra.mxu0 %v4103
        %4127 = vmatmul.bf16.gmra.mxu0 %v4050
        %v4128 = vpop.f32.mrf.mxu0
        %v4129 = vadd.f32 %v4069, %v4128
        %v4130 = vpop.f32.mrf.mxu0
        %4131 = vdwg.mxu0
        %v4132 = vmul.f32 %v4129, 0.5
        %v4133 = vmul.f32 %v4129, 0.70710677
        %v4134 = vmul.f32 %v4133, %v4133
        %v4135 = vmin.f32 16.0, %v4134
        %v4136 = vmul.f32 %v4135, 2.1237322e-06
        %v4137 = vadd.f32 %v4136, 0.00028619796
        %v4138 = vmul.f32 %v4135, %v4137
        %v4139 = vadd.f32 %v4138, 0.0036580483
        %v4140 = vmul.f32 %v4135, %v4139
        %v4141 = vadd.f32 %v4140, 0.05243302
        %v4142 = vmul.f32 %v4135, %v4141
        %v4143 = vadd.f32 %v4142, 0.18741608
        %v4144 = vmul.f32 %v4135, %v4143
        %v4145 = vadd.f32 %v4144, 1.1283791
        %v4146 = vmul.f32 %v4133, %v4145
        %v4147 = vmul.f32 %v4135, 3.8918573e-05
        %v4148 = vadd.f32 %v4147, 0.001143296
        %v4149 = vmul.f32 %v4135, %v4148
        %v4150 = vadd.f32 %v4149, 0.014752088
        %v4151 = vmul.f32 %v4135, %v4150
        %v4152 = vadd.f32 %v4151, 0.112945676
        %v4153 = vmul.f32 %v4135, %v4152
        %v4154 = vadd.f32 %v4153, 0.4994258
        %v4155 = vmul.f32 %v4135, %v4154
        %v4156 = vadd.f32 %v4155, 1.0
        %v4157 = vrcp.pop %v4156
        %v4158 = vmul.f32 %v4156, %v4157
        %v4159 = vsub.f32 1.0, %v4158
        %v4160 = vmul.f32 %v4157, %v4159
        %v4161 = vadd.f32 %v4157, %v4160
        %vm4162 = vweird.f32 %v4156
        %vm4163 = vweird.f32 %v4157
        %vm4164 = vmor %vm4162, %vm4163
        %v4165 = vsel %vm4164, %v4157, %v4161
        %v4166 = vand.u32 2147483647, %v4156
        %vm4167 = vcmp.eq.f32.partialorder %v4166, 8.507059e+37
        %v4168 = vand.u32 %v4156, 2147483648
        %v4169 = vor.u32 1.1754944e-38, %v4168
        %v4170 = vsel %vm4167, %v4169, %v4165
        %v4171 = vmul.f32 %v4146, %v4170
        %v4172 = vmin.f32 %v4171, 1.0
        %v4173 = vmax.f32 %v4172, -1.0
        %v4174 = vadd.f32 %v4173, 1.0
        %v4175 = vmul.f32 %v4132, %v4174
        %v4176 = vpack.c.bf16 %v4175, %v4175
        %v4177 = vld [vmem:[#allocation17] sm:$0xf]
        %v4178 = vld [vmem:[#allocation17 + $0x4] sm:$0xf]
        %v4179 = vld [vmem:[#allocation17 + $0x8] sm:$0xf]
        %v4180 = vld [vmem:[#allocation17 + $0xc] sm:$0xf]
        %v4181 = vld [vmem:[#allocation17 + $0x10] sm:$0xf]
        %v4182 = vld [vmem:[#allocation17 + $0x14] sm:$0xf]
        %v4183 = vld [vmem:[#allocation17 + $0x18] sm:$0xf]
        %v4184 = vld [vmem:[#allocation17 + $0x1c] sm:$0xf]
        %v4185 = vld [vmem:[#allocation17 + $0x20] sm:$0xf]
        %v4186 = vld [vmem:[#allocation17 + $0x24] sm:$0xf]
        %v4187 = vld [vmem:[#allocation17 + $0x28] sm:$0xf]
        %v4188 = vld [vmem:[#allocation17 + $0x2c] sm:$0xf]
        %v4189 = vld [vmem:[#allocation17 + $0x30] sm:$0xf]
        %v4190 = vld [vmem:[#allocation17 + $0x34] sm:$0xf]
        %v4191 = vld [vmem:[#allocation17 + $0x38] sm:$0xf]
        %v4192 = vld [vmem:[#allocation17 + $0x3c] sm:$0xf]
        %v4193 = vld [vmem:[#allocation19] sm:$0x1]
        %v4195 = vperm.slane %v4193, 0
        %v4213 = vunpack.c.l.b16 %v4177
        %v4214 = vunpack.c.l.b16 %v4178
        %v4215 = vunpack.c.l.b16 %v4179
        %v4216 = vunpack.c.l.b16 %v4180
        %v4217 = vunpack.c.l.b16 %v4181
        %v4218 = vunpack.c.l.b16 %v4182
        %v4219 = vunpack.c.l.b16 %v4183
        %v4220 = vunpack.c.l.b16 %v4184
        %v4221 = vunpack.c.l.b16 %v4185
        %v4222 = vunpack.c.l.b16 %v4186
        %v4223 = vunpack.c.l.b16 %v4187
        %v4224 = vunpack.c.l.b16 %v4188
        %v4225 = vunpack.c.l.b16 %v4189
        %v4226 = vunpack.c.l.b16 %v4190
        %v4227 = vunpack.c.l.b16 %v4191
        %v4228 = vunpack.c.l.b16 %v4192
        %v4229 = vpack.c.b16 %v4214, %v4213
        %v4230 = vpack.c.b16 %v4216, %v4215
        %v4231 = vpack.c.b16 %v4218, %v4217
        %v4232 = vpack.c.b16 %v4220, %v4219
        %v4233 = vpack.c.b16 %v4222, %v4221
        %v4234 = vpack.c.b16 %v4224, %v4223
        %v4235 = vpack.c.b16 %v4226, %v4225
        %v4236 = vpack.c.b16 %v4228, %v4227
        %4245 = vmatpush.bf16.msra.mxu0 %v4236
        %4246 = vmatpush.bf16.msra.mxu0 %v4235
        %4247 = vmatpush.bf16.msra.mxu0 %v4234
        %4248 = vmatpush.bf16.msra.mxu0 %v4233
        %4249 = vmatpush.bf16.msra.mxu0 %v4232
        %4250 = vmatpush.bf16.msra.mxu0 %v4231
        %4251 = vmatpush.bf16.msra.mxu0 %v4230
        %4252 = vmatpush.bf16.msra.mxu0 %v4229
        %4253 = vmatmul.bf16.gmra.mxu0 %v4176
        %v4254 = vpop.f32.mrf.mxu0
        %v4255 = vadd.f32 %v4195, %v4254
        %v4256 = vpop.f32.mrf.mxu0
        %4257 = vdwg.mxu0
        %v4258 = vmul.f32 %v4255, 0.5
        %v4259 = vmul.f32 %v4255, 0.70710677
        %v4260 = vmul.f32 %v4259, %v4259
        %v4261 = vmin.f32 16.0, %v4260
        %v4262 = vmul.f32 %v4261, 2.1237322e-06
        %v4263 = vadd.f32 %v4262, 0.00028619796
        %v4264 = vmul.f32 %v4261, %v4263
        %v4265 = vadd.f32 %v4264, 0.0036580483
        %v4266 = vmul.f32 %v4261, %v4265
        %v4267 = vadd.f32 %v4266, 0.05243302
        %v4268 = vmul.f32 %v4261, %v4267
        %v4269 = vadd.f32 %v4268, 0.18741608
        %v4270 = vmul.f32 %v4261, %v4269
        %v4271 = vadd.f32 %v4270, 1.1283791
        %v4272 = vmul.f32 %v4259, %v4271
        %v4273 = vmul.f32 %v4261, 3.8918573e-05
        %v4274 = vadd.f32 %v4273, 0.001143296
        %v4275 = vmul.f32 %v4261, %v4274
        %v4276 = vadd.f32 %v4275, 0.014752088
        %v4277 = vmul.f32 %v4261, %v4276
        %v4278 = vadd.f32 %v4277, 0.112945676
        %v4279 = vmul.f32 %v4261, %v4278
        %v4280 = vadd.f32 %v4279, 0.4994258
        %v4281 = vmul.f32 %v4261, %v4280
        %v4282 = vadd.f32 %v4281, 1.0
        %v4283 = vrcp.pop %v4282
        %v4284 = vmul.f32 %v4282, %v4283
        %v4285 = vsub.f32 1.0, %v4284
        %v4286 = vmul.f32 %v4283, %v4285
        %v4287 = vadd.f32 %v4283, %v4286
        %vm4288 = vweird.f32 %v4282
        %vm4289 = vweird.f32 %v4283
        %vm4290 = vmor %vm4288, %vm4289
        %v4291 = vsel %vm4290, %v4283, %v4287
        %v4292 = vand.u32 2147483647, %v4282
        %vm4293 = vcmp.eq.f32.partialorder %v4292, 8.507059e+37
        %v4294 = vand.u32 %v4282, 2147483648
        %v4295 = vor.u32 1.1754944e-38, %v4294
        %v4296 = vsel %vm4293, %v4295, %v4291
        %v4297 = vmul.f32 %v4272, %v4296
        %v4298 = vmin.f32 %v4297, 1.0
        %v4299 = vmax.f32 %v4298, -1.0
        %v4300 = vadd.f32 %v4299, 1.0
        %v4301 = vmul.f32 %v4258, %v4300
        %v4302 = vpack.c.bf16 %v4301, %v4301
        %v4303 = vld [vmem:[#allocation20] sm:$0xff]
        %v4304 = vld [vmem:[#allocation20 + $0x8] sm:$0xff]
        %v4305 = vld [vmem:[#allocation20 + $0x10] sm:$0xff]
        %v4306 = vld [vmem:[#allocation20 + $0x18] sm:$0xff]
        %v4307 = vld [vmem:[#allocation20 + $0x20] sm:$0xff]
        %v4308 = vld [vmem:[#allocation20 + $0x28] sm:$0xff]
        %v4309 = vld [vmem:[#allocation20 + $0x30] sm:$0xff]
        %v4310 = vld [vmem:[#allocation20 + $0x38] sm:$0xff]
        %v4311 = vld [vmem:[#allocation20 + $0x40] sm:$0xff]
        %v4312 = vld [vmem:[#allocation20 + $0x48] sm:$0xff]
        %v4313 = vld [vmem:[#allocation20 + $0x50] sm:$0xff]
        %v4314 = vld [vmem:[#allocation20 + $0x58] sm:$0xff]
        %v4315 = vld [vmem:[#allocation20 + $0x60] sm:$0xff]
        %v4316 = vld [vmem:[#allocation20 + $0x68] sm:$0xff]
        %v4317 = vld [vmem:[#allocation20 + $0x70] sm:$0xff]
        %v4318 = vld [vmem:[#allocation20 + $0x78] sm:$0xff]
        %v4319 = vld [vmem:[#allocation22] sm:$0x3]
        %v4321 = vperm.slane %v4319, 0
        %v4322 = vperm.slane %v4319, 1
        %v4341 = vunpack.c.l.b16 %v4303
        %v4342 = vunpack.c.h.b16 %v4303
        %v4343 = vunpack.c.l.b16 %v4304
        %v4344 = vunpack.c.h.b16 %v4304
        %v4345 = vunpack.c.l.b16 %v4305
        %v4346 = vunpack.c.h.b16 %v4305
        %v4347 = vunpack.c.l.b16 %v4306
        %v4348 = vunpack.c.h.b16 %v4306
        %v4349 = vunpack.c.l.b16 %v4307
        %v4350 = vunpack.c.h.b16 %v4307
        %v4351 = vunpack.c.l.b16 %v4308
        %v4352 = vunpack.c.h.b16 %v4308
        %v4353 = vunpack.c.l.b16 %v4309
        %v4354 = vunpack.c.h.b16 %v4309
        %v4355 = vunpack.c.l.b16 %v4310
        %v4356 = vunpack.c.h.b16 %v4310
        %v4357 = vunpack.c.l.b16 %v4311
        %v4358 = vunpack.c.h.b16 %v4311
        %v4359 = vunpack.c.l.b16 %v4312
        %v4360 = vunpack.c.h.b16 %v4312
        %v4361 = vunpack.c.l.b16 %v4313
        %v4362 = vunpack.c.h.b16 %v4313
        %v4363 = vunpack.c.l.b16 %v4314
        %v4364 = vunpack.c.h.b16 %v4314
        %v4365 = vunpack.c.l.b16 %v4315
        %v4366 = vunpack.c.h.b16 %v4315
        %v4367 = vunpack.c.l.b16 %v4316
        %v4368 = vunpack.c.h.b16 %v4316
        %v4369 = vunpack.c.l.b16 %v4317
        %v4370 = vunpack.c.h.b16 %v4317
        %v4371 = vunpack.c.l.b16 %v4318
        %v4372 = vunpack.c.h.b16 %v4318
        %v4373 = vpack.c.b16 %v4343, %v4341
        %v4374 = vpack.c.b16 %v4344, %v4342
        %v4375 = vpack.c.b16 %v4347, %v4345
        %v4376 = vpack.c.b16 %v4348, %v4346
        %v4377 = vpack.c.b16 %v4351, %v4349
        %v4378 = vpack.c.b16 %v4352, %v4350
        %v4379 = vpack.c.b16 %v4355, %v4353
        %v4380 = vpack.c.b16 %v4356, %v4354
        %v4381 = vpack.c.b16 %v4359, %v4357
        %v4382 = vpack.c.b16 %v4360, %v4358
        %v4383 = vpack.c.b16 %v4363, %v4361
        %v4384 = vpack.c.b16 %v4364, %v4362
        %v4385 = vpack.c.b16 %v4367, %v4365
        %v4386 = vpack.c.b16 %v4368, %v4366
        %v4387 = vpack.c.b16 %v4371, %v4369
        %v4388 = vpack.c.b16 %v4372, %v4370
        %4405 = vmatpush.bf16.msra.mxu0 %v4387
        %4406 = vmatpush.bf16.msra.mxu0 %v4385
        %4407 = vmatpush.bf16.msra.mxu0 %v4383
        %4408 = vmatpush.bf16.msra.mxu0 %v4381
        %4409 = vmatpush.bf16.msra.mxu0 %v4379
        %4410 = vmatpush.bf16.msra.mxu0 %v4377
        %4411 = vmatpush.bf16.msra.mxu0 %v4375
        %4412 = vmatpush.bf16.msra.mxu0 %v4373
        %4413 = vmatmul.bf16.gmra.mxu0 %v4302
        %v4414 = vpop.f32.mrf.mxu0
        %v4415 = vadd.f32 %v4321, %v4414
        %v4416 = vpop.f32.mrf.mxu0
        %4417 = vdwg.mxu0
        %4418 = vmatpush.bf16.msra.mxu0 %v4388
        %4419 = vmatpush.bf16.msra.mxu0 %v4386
        %4420 = vmatpush.bf16.msra.mxu0 %v4384
        %4421 = vmatpush.bf16.msra.mxu0 %v4382
        %4422 = vmatpush.bf16.msra.mxu0 %v4380
        %4423 = vmatpush.bf16.msra.mxu0 %v4378
        %4424 = vmatpush.bf16.msra.mxu0 %v4376
        %4425 = vmatpush.bf16.msra.mxu0 %v4374
        %4426 = vmatmul.bf16.gmra.mxu0 %v4302
        %v4427 = vpop.f32.mrf.mxu0
        %v4428 = vadd.f32 %v4322, %v4427
        %v4429 = vpop.f32.mrf.mxu0
        %4430 = vdwg.mxu0
        %v4431 = vmul.f32 %v4415, 0.5
        %v4432 = vmul.f32 %v4428, 0.5
        %v4433 = vmul.f32 %v4415, 0.70710677
        %v4434 = vmul.f32 %v4428, 0.70710677
        %v4435 = vmul.f32 %v4433, %v4433
        %v4436 = vmin.f32 16.0, %v4435
        %v4437 = vmul.f32 %v4436, 2.1237322e-06
        %v4438 = vadd.f32 %v4437, 0.00028619796
        %v4439 = vmul.f32 %v4436, %v4438
        %v4440 = vadd.f32 %v4439, 0.0036580483
        %v4441 = vmul.f32 %v4436, %v4440
        %v4442 = vadd.f32 %v4441, 0.05243302
        %v4443 = vmul.f32 %v4436, %v4442
        %v4444 = vadd.f32 %v4443, 0.18741608
        %v4445 = vmul.f32 %v4436, %v4444
        %v4446 = vadd.f32 %v4445, 1.1283791
        %v4447 = vmul.f32 %v4433, %v4446
        %v4448 = vmul.f32 %v4436, 3.8918573e-05
        %v4449 = vadd.f32 %v4448, 0.001143296
        %v4450 = vmul.f32 %v4436, %v4449
        %v4451 = vadd.f32 %v4450, 0.014752088
        %v4452 = vmul.f32 %v4436, %v4451
        %v4453 = vadd.f32 %v4452, 0.112945676
        %v4454 = vmul.f32 %v4436, %v4453
        %v4455 = vadd.f32 %v4454, 0.4994258
        %v4456 = vmul.f32 %v4436, %v4455
        %v4457 = vadd.f32 %v4456, 1.0
        %v4458 = vrcp.pop %v4457
        %v4459 = vmul.f32 %v4457, %v4458
        %v4460 = vsub.f32 1.0, %v4459
        %v4461 = vmul.f32 %v4458, %v4460
        %v4462 = vadd.f32 %v4458, %v4461
        %vm4463 = vweird.f32 %v4457
        %vm4464 = vweird.f32 %v4458
        %vm4465 = vmor %vm4463, %vm4464
        %v4466 = vsel %vm4465, %v4458, %v4462
        %v4467 = vand.u32 2147483647, %v4457
        %vm4468 = vcmp.eq.f32.partialorder %v4467, 8.507059e+37
        %v4469 = vand.u32 %v4457, 2147483648
        %v4470 = vor.u32 1.1754944e-38, %v4469
        %v4471 = vsel %vm4468, %v4470, %v4466
        %v4472 = vmul.f32 %v4447, %v4471
        %v4473 = vmin.f32 %v4472, 1.0
        %v4474 = vmax.f32 %v4473, -1.0
        %v4475 = vmul.f32 %v4434, %v4434
        %v4476 = vmin.f32 16.0, %v4475
        %v4477 = vmul.f32 %v4476, 2.1237322e-06
        %v4478 = vadd.f32 %v4477, 0.00028619796
        %v4479 = vmul.f32 %v4476, %v4478
        %v4480 = vadd.f32 %v4479, 0.0036580483
        %v4481 = vmul.f32 %v4476, %v4480
        %v4482 = vadd.f32 %v4481, 0.05243302
        %v4483 = vmul.f32 %v4476, %v4482
        %v4484 = vadd.f32 %v4483, 0.18741608
        %v4485 = vmul.f32 %v4476, %v4484
        %v4486 = vadd.f32 %v4485, 1.1283791
        %v4487 = vmul.f32 %v4434, %v4486
        %v4488 = vmul.f32 %v4476, 3.8918573e-05
        %v4489 = vadd.f32 %v4488, 0.001143296
        %v4490 = vmul.f32 %v4476, %v4489
        %v4491 = vadd.f32 %v4490, 0.014752088
        %v4492 = vmul.f32 %v4476, %v4491
        %v4493 = vadd.f32 %v4492, 0.112945676
        %v4494 = vmul.f32 %v4476, %v4493
        %v4495 = vadd.f32 %v4494, 0.4994258
        %v4496 = vmul.f32 %v4476, %v4495
        %v4497 = vadd.f32 %v4496, 1.0
        %v4498 = vrcp.pop %v4497
        %v4499 = vmul.f32 %v4497, %v4498
        %v4500 = vsub.f32 1.0, %v4499
        %v4501 = vmul.f32 %v4498, %v4500
        %v4502 = vadd.f32 %v4498, %v4501
        %vm4503 = vweird.f32 %v4497
        %vm4504 = vweird.f32 %v4498
        %vm4505 = vmor %vm4503, %vm4504
        %v4506 = vsel %vm4505, %v4498, %v4502
        %v4507 = vand.u32 2147483647, %v4497
        %vm4508 = vcmp.eq.f32.partialorder %v4507, 8.507059e+37
        %v4509 = vand.u32 %v4497, 2147483648
        %v4510 = vor.u32 1.1754944e-38, %v4509
        %v4511 = vsel %vm4508, %v4510, %v4506
        %v4512 = vmul.f32 %v4487, %v4511
        %v4513 = vmin.f32 %v4512, 1.0
        %v4514 = vmax.f32 %v4513, -1.0
        %v4515 = vadd.f32 %v4474, 1.0
        %v4516 = vadd.f32 %v4514, 1.0
        %v4517 = vmul.f32 %v4431, %v4515
        %v4518 = vmul.f32 %v4432, %v4516
        %v4519 = vpack.c.bf16 %v4517, %v4517
        %v4520 = vpack.c.bf16 %v4518, %v4518
        %v4521 = vld [vmem:[#allocation23] sm:$0xff]
        %v4522 = vld [vmem:[#allocation23 + $0x8] sm:$0xff]
        %v4523 = vld [vmem:[#allocation23 + $0x10] sm:$0xff]
        %v4524 = vld [vmem:[#allocation23 + $0x18] sm:$0xff]
        %v4525 = vld [vmem:[#allocation23 + $0x20] sm:$0xff]
        %v4526 = vld [vmem:[#allocation23 + $0x28] sm:$0xff]
        %v4527 = vld [vmem:[#allocation23 + $0x30] sm:$0xff]
        %v4528 = vld [vmem:[#allocation23 + $0x38] sm:$0xff]
        %v4529 = vld [vmem:[#allocation23 + $0x40] sm:$0xff]
        %v4530 = vld [vmem:[#allocation23 + $0x48] sm:$0xff]
        %v4531 = vld [vmem:[#allocation23 + $0x50] sm:$0xff]
        %v4532 = vld [vmem:[#allocation23 + $0x58] sm:$0xff]
        %v4533 = vld [vmem:[#allocation23 + $0x60] sm:$0xff]
        %v4534 = vld [vmem:[#allocation23 + $0x68] sm:$0xff]
        %v4535 = vld [vmem:[#allocation23 + $0x70] sm:$0xff]
        %v4536 = vld [vmem:[#allocation23 + $0x78] sm:$0xff]
        %v4537 = vld [vmem:[#allocation23 + $0x80] sm:$0xff]
        %v4538 = vld [vmem:[#allocation23 + $0x88] sm:$0xff]
        %v4539 = vld [vmem:[#allocation23 + $0x90] sm:$0xff]
        %v4540 = vld [vmem:[#allocation23 + $0x98] sm:$0xff]
        %v4541 = vld [vmem:[#allocation23 + $0xa0] sm:$0xff]
        %v4542 = vld [vmem:[#allocation23 + $0xa8] sm:$0xff]
        %v4543 = vld [vmem:[#allocation23 + $0xb0] sm:$0xff]
        %v4544 = vld [vmem:[#allocation23 + $0xb8] sm:$0xff]
        %v4545 = vld [vmem:[#allocation23 + $0xc0] sm:$0xff]
        %v4546 = vld [vmem:[#allocation23 + $0xc8] sm:$0xff]
        %v4547 = vld [vmem:[#allocation23 + $0xd0] sm:$0xff]
        %v4548 = vld [vmem:[#allocation23 + $0xd8] sm:$0xff]
        %v4549 = vld [vmem:[#allocation23 + $0xe0] sm:$0xff]
        %v4550 = vld [vmem:[#allocation23 + $0xe8] sm:$0xff]
        %v4551 = vld [vmem:[#allocation23 + $0xf0] sm:$0xff]
        %v4552 = vld [vmem:[#allocation23 + $0xf8] sm:$0xff]
        %v4553 = vld [vmem:[#allocation23 + $0x100] sm:$0xff]
        %v4554 = vld [vmem:[#allocation23 + $0x108] sm:$0xff]
        %v4555 = vld [vmem:[#allocation23 + $0x110] sm:$0xff]
        %v4556 = vld [vmem:[#allocation23 + $0x118] sm:$0xff]
        %v4557 = vld [vmem:[#allocation23 + $0x120] sm:$0xff]
        %v4558 = vld [vmem:[#allocation23 + $0x128] sm:$0xff]
        %v4559 = vld [vmem:[#allocation23 + $0x130] sm:$0xff]
        %v4560 = vld [vmem:[#allocation23 + $0x138] sm:$0xff]
        %v4561 = vld [vmem:[#allocation23 + $0x140] sm:$0xff]
        %v4562 = vld [vmem:[#allocation23 + $0x148] sm:$0xff]
        %v4563 = vld [vmem:[#allocation23 + $0x150] sm:$0xff]
        %v4564 = vld [vmem:[#allocation23 + $0x158] sm:$0xff]
        %v4565 = vld [vmem:[#allocation23 + $0x160] sm:$0xff]
        %v4566 = vld [vmem:[#allocation23 + $0x168] sm:$0xff]
        %v4567 = vld [vmem:[#allocation23 + $0x170] sm:$0xff]
        %v4568 = vld [vmem:[#allocation23 + $0x178] sm:$0xff]
        %v4569 = vld [vmem:[#allocation23 + $0x180] sm:$0xff]
        %v4570 = vld [vmem:[#allocation23 + $0x188] sm:$0xff]
        %v4571 = vld [vmem:[#allocation23 + $0x190] sm:$0xff]
        %v4572 = vld [vmem:[#allocation23 + $0x198] sm:$0xff]
        %v4573 = vld [vmem:[#allocation23 + $0x1a0] sm:$0xff]
        %v4574 = vld [vmem:[#allocation23 + $0x1a8] sm:$0xff]
        %v4575 = vld [vmem:[#allocation23 + $0x1b0] sm:$0xff]
        %v4576 = vld [vmem:[#allocation23 + $0x1b8] sm:$0xff]
        %v4577 = vld [vmem:[#allocation23 + $0x1c0] sm:$0xff]
        %v4578 = vld [vmem:[#allocation23 + $0x1c8] sm:$0xff]
        %v4579 = vld [vmem:[#allocation23 + $0x1d0] sm:$0xff]
        %v4580 = vld [vmem:[#allocation23 + $0x1d8] sm:$0xff]
        %v4581 = vld [vmem:[#allocation23 + $0x1e0] sm:$0xff]
        %v4582 = vld [vmem:[#allocation23 + $0x1e8] sm:$0xff]
        %v4583 = vld [vmem:[#allocation23 + $0x1f0] sm:$0xff]
        %v4584 = vld [vmem:[#allocation23 + $0x1f8] sm:$0xff]
        %v4585 = vld [vmem:[#allocation23 + $0x200] sm:$0xff]
        %v4586 = vld [vmem:[#allocation23 + $0x208] sm:$0xff]
        %v4587 = vld [vmem:[#allocation23 + $0x210] sm:$0xff]
        %v4588 = vld [vmem:[#allocation23 + $0x218] sm:$0xff]
        %v4589 = vld [vmem:[#allocation23 + $0x220] sm:$0xff]
        %v4590 = vld [vmem:[#allocation23 + $0x228] sm:$0xff]
        %v4591 = vld [vmem:[#allocation23 + $0x230] sm:$0xff]
        %v4592 = vld [vmem:[#allocation23 + $0x238] sm:$0xff]
        %v4593 = vld [vmem:[#allocation23 + $0x240] sm:$0xff]
        %v4594 = vld [vmem:[#allocation23 + $0x248] sm:$0xff]
        %v4595 = vld [vmem:[#allocation23 + $0x250] sm:$0xff]
        %v4596 = vld [vmem:[#allocation23 + $0x258] sm:$0xff]
        %v4597 = vld [vmem:[#allocation23 + $0x260] sm:$0xff]
        %v4598 = vld [vmem:[#allocation23 + $0x268] sm:$0xff]
        %v4599 = vld [vmem:[#allocation23 + $0x270] sm:$0xff]
        %v4600 = vld [vmem:[#allocation23 + $0x278] sm:$0xff]
        %v4601 = vld [vmem:[#allocation23 + $0x280] sm:$0xff]
        %v4602 = vld [vmem:[#allocation23 + $0x288] sm:$0xff]
        %v4603 = vld [vmem:[#allocation23 + $0x290] sm:$0xff]
        %v4604 = vld [vmem:[#allocation23 + $0x298] sm:$0xff]
        %v4605 = vld [vmem:[#allocation23 + $0x2a0] sm:$0xff]
        %v4606 = vld [vmem:[#allocation23 + $0x2a8] sm:$0xff]
        %v4607 = vld [vmem:[#allocation23 + $0x2b0] sm:$0xff]
        %v4608 = vld [vmem:[#allocation23 + $0x2b8] sm:$0xff]
        %v4609 = vld [vmem:[#allocation23 + $0x2c0] sm:$0xff]
        %v4610 = vld [vmem:[#allocation23 + $0x2c8] sm:$0xff]
        %v4611 = vld [vmem:[#allocation23 + $0x2d0] sm:$0xff]
        %v4612 = vld [vmem:[#allocation23 + $0x2d8] sm:$0xff]
        %v4613 = vld [vmem:[#allocation23 + $0x2e0] sm:$0xff]
        %v4614 = vld [vmem:[#allocation23 + $0x2e8] sm:$0xff]
        %v4615 = vld [vmem:[#allocation23 + $0x2f0] sm:$0xff]
        %v4616 = vld [vmem:[#allocation23 + $0x2f8] sm:$0xff]
        %v4617 = vld [vmem:[#allocation23 + $0x300] sm:$0xff]
        %v4618 = vld [vmem:[#allocation23 + $0x308] sm:$0xff]
        %v4619 = vld [vmem:[#allocation23 + $0x310] sm:$0xff]
        %v4620 = vld [vmem:[#allocation23 + $0x318] sm:$0xff]
        %v4621 = vld [vmem:[#allocation23 + $0x320] sm:$0xff]
        %v4622 = vld [vmem:[#allocation23 + $0x328] sm:$0xff]
        %v4623 = vld [vmem:[#allocation23 + $0x330] sm:$0xff]
        %v4624 = vld [vmem:[#allocation23 + $0x338] sm:$0xff]
        %v4625 = vld [vmem:[#allocation23 + $0x340] sm:$0xff]
        %v4626 = vld [vmem:[#allocation23 + $0x348] sm:$0xff]
        %v4627 = vld [vmem:[#allocation23 + $0x350] sm:$0xff]
        %v4628 = vld [vmem:[#allocation23 + $0x358] sm:$0xff]
        %v4629 = vld [vmem:[#allocation23 + $0x360] sm:$0xff]
        %v4630 = vld [vmem:[#allocation23 + $0x368] sm:$0xff]
        %v4631 = vld [vmem:[#allocation23 + $0x370] sm:$0xff]
        %v4632 = vld [vmem:[#allocation23 + $0x378] sm:$0xff]
        %v4633 = vld [vmem:[#allocation23 + $0x380] sm:$0xff]
        %v4634 = vld [vmem:[#allocation23 + $0x388] sm:$0xff]
        %v4635 = vld [vmem:[#allocation23 + $0x390] sm:$0xff]
        %v4636 = vld [vmem:[#allocation23 + $0x398] sm:$0xff]
        %v4637 = vld [vmem:[#allocation23 + $0x3a0] sm:$0xff]
        %v4638 = vld [vmem:[#allocation23 + $0x3a8] sm:$0xff]
        %v4639 = vld [vmem:[#allocation23 + $0x3b0] sm:$0xff]
        %v4640 = vld [vmem:[#allocation23 + $0x3b8] sm:$0xff]
        %v4641 = vld [vmem:[#allocation23 + $0x3c0] sm:$0xff]
        %v4642 = vld [vmem:[#allocation23 + $0x3c8] sm:$0xff]
        %v4643 = vld [vmem:[#allocation23 + $0x3d0] sm:$0xff]
        %v4644 = vld [vmem:[#allocation23 + $0x3d8] sm:$0xff]
        %v4645 = vld [vmem:[#allocation23 + $0x3e0] sm:$0xff]
        %v4646 = vld [vmem:[#allocation23 + $0x3e8] sm:$0xff]
        %v4647 = vld [vmem:[#allocation23 + $0x3f0] sm:$0xff]
        %v4648 = vld [vmem:[#allocation23 + $0x3f8] sm:$0xff]
        %v4649 = vld [vmem:[#allocation23 + $0x400] sm:$0xff]
        %v4650 = vld [vmem:[#allocation23 + $0x408] sm:$0xff]
        %v4651 = vld [vmem:[#allocation23 + $0x410] sm:$0xff]
        %v4652 = vld [vmem:[#allocation23 + $0x418] sm:$0xff]
        %v4653 = vld [vmem:[#allocation23 + $0x420] sm:$0xff]
        %v4654 = vld [vmem:[#allocation23 + $0x428] sm:$0xff]
        %v4655 = vld [vmem:[#allocation23 + $0x430] sm:$0xff]
        %v4656 = vld [vmem:[#allocation23 + $0x438] sm:$0xff]
        %v4657 = vld [vmem:[#allocation23 + $0x440] sm:$0xff]
        %v4658 = vld [vmem:[#allocation23 + $0x448] sm:$0xff]
        %v4659 = vld [vmem:[#allocation23 + $0x450] sm:$0xff]
        %v4660 = vld [vmem:[#allocation23 + $0x458] sm:$0xff]
        %v4661 = vld [vmem:[#allocation23 + $0x460] sm:$0xff]
        %v4662 = vld [vmem:[#allocation23 + $0x468] sm:$0xff]
        %v4663 = vld [vmem:[#allocation23 + $0x470] sm:$0xff]
        %v4664 = vld [vmem:[#allocation23 + $0x478] sm:$0xff]
        %v4665 = vld [vmem:[#allocation23 + $0x480] sm:$0xff]
        %v4666 = vld [vmem:[#allocation23 + $0x488] sm:$0xff]
        %v4667 = vld [vmem:[#allocation23 + $0x490] sm:$0xff]
        %v4668 = vld [vmem:[#allocation23 + $0x498] sm:$0xff]
        %v4669 = vld [vmem:[#allocation23 + $0x4a0] sm:$0xff]
        %v4670 = vld [vmem:[#allocation23 + $0x4a8] sm:$0xff]
        %v4671 = vld [vmem:[#allocation23 + $0x4b0] sm:$0xff]
        %v4672 = vld [vmem:[#allocation23 + $0x4b8] sm:$0xff]
        %v4673 = vld [vmem:[#allocation23 + $0x4c0] sm:$0xff]
        %v4674 = vld [vmem:[#allocation23 + $0x4c8] sm:$0xff]
        %v4675 = vld [vmem:[#allocation23 + $0x4d0] sm:$0xff]
        %v4676 = vld [vmem:[#allocation23 + $0x4d8] sm:$0xff]
        %v4677 = vld [vmem:[#allocation23 + $0x4e0] sm:$0xff]
        %v4678 = vld [vmem:[#allocation23 + $0x4e8] sm:$0xff]
        %v4679 = vld [vmem:[#allocation23 + $0x4f0] sm:$0xff]
        %v4680 = vld [vmem:[#allocation23 + $0x4f8] sm:$0xff]
        %v4681 = vld [vmem:[#allocation23 + $0x500] sm:$0xff]
        %v4682 = vld [vmem:[#allocation23 + $0x508] sm:$0xff]
        %v4683 = vld [vmem:[#allocation23 + $0x510] sm:$0xff]
        %v4684 = vld [vmem:[#allocation23 + $0x518] sm:$0xff]
        %v4685 = vld [vmem:[#allocation23 + $0x520] sm:$0xff]
        %v4686 = vld [vmem:[#allocation23 + $0x528] sm:$0xff]
        %v4687 = vld [vmem:[#allocation23 + $0x530] sm:$0xff]
        %v4688 = vld [vmem:[#allocation23 + $0x538] sm:$0xff]
        %v4689 = vld [vmem:[#allocation23 + $0x540] sm:$0xff]
        %v4690 = vld [vmem:[#allocation23 + $0x548] sm:$0xff]
        %v4691 = vld [vmem:[#allocation23 + $0x550] sm:$0xff]
        %v4692 = vld [vmem:[#allocation23 + $0x558] sm:$0xff]
        %v4693 = vld [vmem:[#allocation23 + $0x560] sm:$0xff]
        %v4694 = vld [vmem:[#allocation23 + $0x568] sm:$0xff]
        %v4695 = vld [vmem:[#allocation23 + $0x570] sm:$0xff]
        %v4696 = vld [vmem:[#allocation23 + $0x578] sm:$0xff]
        %v4697 = vld [vmem:[#allocation23 + $0x580] sm:$0xff]
        %v4698 = vld [vmem:[#allocation23 + $0x588] sm:$0xff]
        %v4699 = vld [vmem:[#allocation23 + $0x590] sm:$0xff]
        %v4700 = vld [vmem:[#allocation23 + $0x598] sm:$0xff]
        %v4701 = vld [vmem:[#allocation23 + $0x5a0] sm:$0xff]
        %v4702 = vld [vmem:[#allocation23 + $0x5a8] sm:$0xff]
        %v4703 = vld [vmem:[#allocation23 + $0x5b0] sm:$0xff]
        %v4704 = vld [vmem:[#allocation23 + $0x5b8] sm:$0xff]
        %v4705 = vld [vmem:[#allocation23 + $0x5c0] sm:$0xff]
        %v4706 = vld [vmem:[#allocation23 + $0x5c8] sm:$0xff]
        %v4707 = vld [vmem:[#allocation23 + $0x5d0] sm:$0xff]
        %v4708 = vld [vmem:[#allocation23 + $0x5d8] sm:$0xff]
        %v4709 = vld [vmem:[#allocation23 + $0x5e0] sm:$0xff]
        %v4710 = vld [vmem:[#allocation23 + $0x5e8] sm:$0xff]
        %v4711 = vld [vmem:[#allocation23 + $0x5f0] sm:$0xff]
        %v4712 = vld [vmem:[#allocation23 + $0x5f8] sm:$0xff]
        %v4713 = vld [vmem:[#allocation23 + $0x600] sm:$0xff]
        %v4714 = vld [vmem:[#allocation23 + $0x608] sm:$0xff]
        %v4715 = vld [vmem:[#allocation23 + $0x610] sm:$0xff]
        %v4716 = vld [vmem:[#allocation23 + $0x618] sm:$0xff]
        %v4717 = vld [vmem:[#allocation23 + $0x620] sm:$0xff]
        %v4718 = vld [vmem:[#allocation23 + $0x628] sm:$0xff]
        %v4719 = vld [vmem:[#allocation23 + $0x630] sm:$0xff]
        %v4720 = vld [vmem:[#allocation23 + $0x638] sm:$0xff]
        %v4721 = vld [vmem:[#allocation23 + $0x640] sm:$0xff]
        %v4722 = vld [vmem:[#allocation23 + $0x648] sm:$0xff]
        %v4723 = vld [vmem:[#allocation23 + $0x650] sm:$0xff]
        %v4724 = vld [vmem:[#allocation23 + $0x658] sm:$0xff]
        %v4725 = vld [vmem:[#allocation23 + $0x660] sm:$0xff]
        %v4726 = vld [vmem:[#allocation23 + $0x668] sm:$0xff]
        %v4727 = vld [vmem:[#allocation23 + $0x670] sm:$0xff]
        %v4728 = vld [vmem:[#allocation23 + $0x678] sm:$0xff]
        %v4729 = vld [vmem:[#allocation23 + $0x680] sm:$0xff]
        %v4730 = vld [vmem:[#allocation23 + $0x688] sm:$0xff]
        %v4731 = vld [vmem:[#allocation23 + $0x690] sm:$0xff]
        %v4732 = vld [vmem:[#allocation23 + $0x698] sm:$0xff]
        %v4733 = vld [vmem:[#allocation23 + $0x6a0] sm:$0xff]
        %v4734 = vld [vmem:[#allocation23 + $0x6a8] sm:$0xff]
        %v4735 = vld [vmem:[#allocation23 + $0x6b0] sm:$0xff]
        %v4736 = vld [vmem:[#allocation23 + $0x6b8] sm:$0xff]
        %v4737 = vld [vmem:[#allocation23 + $0x6c0] sm:$0xff]
        %v4738 = vld [vmem:[#allocation23 + $0x6c8] sm:$0xff]
        %v4739 = vld [vmem:[#allocation23 + $0x6d0] sm:$0xff]
        %v4740 = vld [vmem:[#allocation23 + $0x6d8] sm:$0xff]
        %v4741 = vld [vmem:[#allocation23 + $0x6e0] sm:$0xff]
        %v4742 = vld [vmem:[#allocation23 + $0x6e8] sm:$0xff]
        %v4743 = vld [vmem:[#allocation23 + $0x6f0] sm:$0xff]
        %v4744 = vld [vmem:[#allocation23 + $0x6f8] sm:$0xff]
        %v4745 = vld [vmem:[#allocation23 + $0x700] sm:$0xff]
        %v4746 = vld [vmem:[#allocation23 + $0x708] sm:$0xff]
        %v4747 = vld [vmem:[#allocation23 + $0x710] sm:$0xff]
        %v4748 = vld [vmem:[#allocation23 + $0x718] sm:$0xff]
        %v4749 = vld [vmem:[#allocation23 + $0x720] sm:$0xff]
        %v4750 = vld [vmem:[#allocation23 + $0x728] sm:$0xff]
        %v4751 = vld [vmem:[#allocation23 + $0x730] sm:$0xff]
        %v4752 = vld [vmem:[#allocation23 + $0x738] sm:$0xff]
        %v4753 = vld [vmem:[#allocation23 + $0x740] sm:$0xff]
        %v4754 = vld [vmem:[#allocation23 + $0x748] sm:$0xff]
        %v4755 = vld [vmem:[#allocation23 + $0x750] sm:$0xff]
        %v4756 = vld [vmem:[#allocation23 + $0x758] sm:$0xff]
        %v4757 = vld [vmem:[#allocation23 + $0x760] sm:$0xff]
        %v4758 = vld [vmem:[#allocation23 + $0x768] sm:$0xff]
        %v4759 = vld [vmem:[#allocation23 + $0x770] sm:$0xff]
        %v4760 = vld [vmem:[#allocation23 + $0x778] sm:$0xff]
        %v4761 = vld [vmem:[#allocation23 + $0x780] sm:$0xff]
        %v4762 = vld [vmem:[#allocation23 + $0x788] sm:$0xff]
        %v4763 = vld [vmem:[#allocation23 + $0x790] sm:$0xff]
        %v4764 = vld [vmem:[#allocation23 + $0x798] sm:$0xff]
        %v4765 = vld [vmem:[#allocation23 + $0x7a0] sm:$0xff]
        %v4766 = vld [vmem:[#allocation23 + $0x7a8] sm:$0xff]
        %v4767 = vld [vmem:[#allocation23 + $0x7b0] sm:$0xff]
        %v4768 = vld [vmem:[#allocation23 + $0x7b8] sm:$0xff]
        %v4769 = vld [vmem:[#allocation23 + $0x7c0] sm:$0xff]
        %v4770 = vld [vmem:[#allocation23 + $0x7c8] sm:$0xff]
        %v4771 = vld [vmem:[#allocation23 + $0x7d0] sm:$0xff]
        %v4772 = vld [vmem:[#allocation23 + $0x7d8] sm:$0xff]
        %v4773 = vld [vmem:[#allocation23 + $0x7e0] sm:$0xff]
        %v4774 = vld [vmem:[#allocation23 + $0x7e8] sm:$0xff]
        %v4775 = vld [vmem:[#allocation23 + $0x7f0] sm:$0xff]
        %v4776 = vld [vmem:[#allocation23 + $0x7f8] sm:$0xff]
        %v4777 = vld [vmem:[#allocation23 + $0x800] sm:$0xff]
        %v4778 = vld [vmem:[#allocation23 + $0x808] sm:$0xff]
        %v4779 = vld [vmem:[#allocation23 + $0x810] sm:$0xff]
        %v4780 = vld [vmem:[#allocation23 + $0x818] sm:$0xff]
        %v4781 = vld [vmem:[#allocation23 + $0x820] sm:$0xff]
        %v4782 = vld [vmem:[#allocation23 + $0x828] sm:$0xff]
        %v4783 = vld [vmem:[#allocation23 + $0x830] sm:$0xff]
        %v4784 = vld [vmem:[#allocation23 + $0x838] sm:$0xff]
        %v4785 = vld [vmem:[#allocation23 + $0x840] sm:$0xff]
        %v4786 = vld [vmem:[#allocation23 + $0x848] sm:$0xff]
        %v4787 = vld [vmem:[#allocation23 + $0x850] sm:$0xff]
        %v4788 = vld [vmem:[#allocation23 + $0x858] sm:$0xff]
        %v4789 = vld [vmem:[#allocation23 + $0x860] sm:$0xff]
        %v4790 = vld [vmem:[#allocation23 + $0x868] sm:$0xff]
        %v4791 = vld [vmem:[#allocation23 + $0x870] sm:$0xff]
        %v4792 = vld [vmem:[#allocation23 + $0x878] sm:$0xff]
        %v4793 = vld [vmem:[#allocation23 + $0x880] sm:$0xff]
        %v4794 = vld [vmem:[#allocation23 + $0x888] sm:$0xff]
        %v4795 = vld [vmem:[#allocation23 + $0x890] sm:$0xff]
        %v4796 = vld [vmem:[#allocation23 + $0x898] sm:$0xff]
        %v4797 = vld [vmem:[#allocation23 + $0x8a0] sm:$0xff]
        %v4798 = vld [vmem:[#allocation23 + $0x8a8] sm:$0xff]
        %v4799 = vld [vmem:[#allocation23 + $0x8b0] sm:$0xff]
        %v4800 = vld [vmem:[#allocation23 + $0x8b8] sm:$0xff]
        %v4801 = vld [vmem:[#allocation23 + $0x8c0] sm:$0xff]
        %v4802 = vld [vmem:[#allocation23 + $0x8c8] sm:$0xff]
        %v4803 = vld [vmem:[#allocation23 + $0x8d0] sm:$0xff]
        %v4804 = vld [vmem:[#allocation23 + $0x8d8] sm:$0xff]
        %v4805 = vld [vmem:[#allocation23 + $0x8e0] sm:$0xff]
        %v4806 = vld [vmem:[#allocation23 + $0x8e8] sm:$0xff]
        %v4807 = vld [vmem:[#allocation23 + $0x8f0] sm:$0xff]
        %v4808 = vld [vmem:[#allocation23 + $0x8f8] sm:$0xff]
        %v4809 = vld [vmem:[#allocation23 + $0x900] sm:$0xff]
        %v4810 = vld [vmem:[#allocation23 + $0x908] sm:$0xff]
        %v4811 = vld [vmem:[#allocation23 + $0x910] sm:$0xff]
        %v4812 = vld [vmem:[#allocation23 + $0x918] sm:$0xff]
        %v4813 = vld [vmem:[#allocation23 + $0x920] sm:$0xff]
        %v4814 = vld [vmem:[#allocation23 + $0x928] sm:$0xff]
        %v4815 = vld [vmem:[#allocation23 + $0x930] sm:$0xff]
        %v4816 = vld [vmem:[#allocation23 + $0x938] sm:$0xff]
        %v4817 = vld [vmem:[#allocation23 + $0x940] sm:$0xff]
        %v4818 = vld [vmem:[#allocation23 + $0x948] sm:$0xff]
        %v4819 = vld [vmem:[#allocation23 + $0x950] sm:$0xff]
        %v4820 = vld [vmem:[#allocation23 + $0x958] sm:$0xff]
        %v4821 = vld [vmem:[#allocation23 + $0x960] sm:$0xff]
        %v4822 = vld [vmem:[#allocation23 + $0x968] sm:$0xff]
        %v4823 = vld [vmem:[#allocation23 + $0x970] sm:$0xff]
        %v4824 = vld [vmem:[#allocation23 + $0x978] sm:$0xff]
        %v4825 = vld [vmem:[#allocation23 + $0x980] sm:$0xff]
        %v4826 = vld [vmem:[#allocation23 + $0x988] sm:$0xff]
        %v4827 = vld [vmem:[#allocation23 + $0x990] sm:$0xff]
        %v4828 = vld [vmem:[#allocation23 + $0x998] sm:$0xff]
        %v4829 = vld [vmem:[#allocation23 + $0x9a0] sm:$0xff]
        %v4830 = vld [vmem:[#allocation23 + $0x9a8] sm:$0xff]
        %v4831 = vld [vmem:[#allocation23 + $0x9b0] sm:$0xff]
        %v4832 = vld [vmem:[#allocation23 + $0x9b8] sm:$0xff]
        %v4833 = vld [vmem:[#allocation23 + $0x9c0] sm:$0xff]
        %v4834 = vld [vmem:[#allocation23 + $0x9c8] sm:$0xff]
        %v4835 = vld [vmem:[#allocation23 + $0x9d0] sm:$0xff]
        %v4836 = vld [vmem:[#allocation23 + $0x9d8] sm:$0xff]
        %v4837 = vld [vmem:[#allocation23 + $0x9e0] sm:$0xff]
        %v4838 = vld [vmem:[#allocation23 + $0x9e8] sm:$0xff]
        %v4839 = vld [vmem:[#allocation23 + $0x9f0] sm:$0xff]
        %v4840 = vld [vmem:[#allocation23 + $0x9f8] sm:$0xff]
        %v4841 = vld [vmem:[#allocation23 + $0xa00] sm:$0xff]
        %v4842 = vld [vmem:[#allocation23 + $0xa08] sm:$0xff]
        %v4843 = vld [vmem:[#allocation23 + $0xa10] sm:$0xff]
        %v4844 = vld [vmem:[#allocation23 + $0xa18] sm:$0xff]
        %v4845 = vld [vmem:[#allocation23 + $0xa20] sm:$0xff]
        %v4846 = vld [vmem:[#allocation23 + $0xa28] sm:$0xff]
        %v4847 = vld [vmem:[#allocation23 + $0xa30] sm:$0xff]
        %v4848 = vld [vmem:[#allocation23 + $0xa38] sm:$0xff]
        %v4849 = vld [vmem:[#allocation23 + $0xa40] sm:$0xff]
        %v4850 = vld [vmem:[#allocation23 + $0xa48] sm:$0xff]
        %v4851 = vld [vmem:[#allocation23 + $0xa50] sm:$0xff]
        %v4852 = vld [vmem:[#allocation23 + $0xa58] sm:$0xff]
        %v4853 = vld [vmem:[#allocation23 + $0xa60] sm:$0xff]
        %v4854 = vld [vmem:[#allocation23 + $0xa68] sm:$0xff]
        %v4855 = vld [vmem:[#allocation23 + $0xa70] sm:$0xff]
        %v4856 = vld [vmem:[#allocation23 + $0xa78] sm:$0xff]
        %v4857 = vld [vmem:[#allocation23 + $0xa80] sm:$0xff]
        %v4858 = vld [vmem:[#allocation23 + $0xa88] sm:$0xff]
        %v4859 = vld [vmem:[#allocation23 + $0xa90] sm:$0xff]
        %v4860 = vld [vmem:[#allocation23 + $0xa98] sm:$0xff]
        %v4861 = vld [vmem:[#allocation23 + $0xaa0] sm:$0xff]
        %v4862 = vld [vmem:[#allocation23 + $0xaa8] sm:$0xff]
        %v4863 = vld [vmem:[#allocation23 + $0xab0] sm:$0xff]
        %v4864 = vld [vmem:[#allocation23 + $0xab8] sm:$0xff]
        %v4865 = vld [vmem:[#allocation23 + $0xac0] sm:$0xff]
        %v4866 = vld [vmem:[#allocation23 + $0xac8] sm:$0xff]
        %v4867 = vld [vmem:[#allocation23 + $0xad0] sm:$0xff]
        %v4868 = vld [vmem:[#allocation23 + $0xad8] sm:$0xff]
        %v4869 = vld [vmem:[#allocation23 + $0xae0] sm:$0xff]
        %v4870 = vld [vmem:[#allocation23 + $0xae8] sm:$0xff]
        %v4871 = vld [vmem:[#allocation23 + $0xaf0] sm:$0xff]
        %v4872 = vld [vmem:[#allocation23 + $0xaf8] sm:$0xff]
        %v4873 = vld [vmem:[#allocation23 + $0xb00] sm:$0xff]
        %v4874 = vld [vmem:[#allocation23 + $0xb08] sm:$0xff]
        %v4875 = vld [vmem:[#allocation23 + $0xb10] sm:$0xff]
        %v4876 = vld [vmem:[#allocation23 + $0xb18] sm:$0xff]
        %v4877 = vld [vmem:[#allocation23 + $0xb20] sm:$0xff]
        %v4878 = vld [vmem:[#allocation23 + $0xb28] sm:$0xff]
        %v4879 = vld [vmem:[#allocation23 + $0xb30] sm:$0xff]
        %v4880 = vld [vmem:[#allocation23 + $0xb38] sm:$0xff]
        %v4881 = vld [vmem:[#allocation23 + $0xb40] sm:$0xff]
        %v4882 = vld [vmem:[#allocation23 + $0xb48] sm:$0xff]
        %v4883 = vld [vmem:[#allocation23 + $0xb50] sm:$0xff]
        %v4884 = vld [vmem:[#allocation23 + $0xb58] sm:$0xff]
        %v4885 = vld [vmem:[#allocation23 + $0xb60] sm:$0xff]
        %v4886 = vld [vmem:[#allocation23 + $0xb68] sm:$0xff]
        %v4887 = vld [vmem:[#allocation23 + $0xb70] sm:$0xff]
        %v4888 = vld [vmem:[#allocation23 + $0xb78] sm:$0xff]
        %v4889 = vld [vmem:[#allocation23 + $0xb80] sm:$0xff]
        %v4890 = vld [vmem:[#allocation23 + $0xb88] sm:$0xff]
        %v4891 = vld [vmem:[#allocation23 + $0xb90] sm:$0xff]
        %v4892 = vld [vmem:[#allocation23 + $0xb98] sm:$0xff]
        %v4893 = vld [vmem:[#allocation23 + $0xba0] sm:$0xff]
        %v4894 = vld [vmem:[#allocation23 + $0xba8] sm:$0xff]
        %v4895 = vld [vmem:[#allocation23 + $0xbb0] sm:$0xff]
        %v4896 = vld [vmem:[#allocation23 + $0xbb8] sm:$0xff]
        %v4897 = vld [vmem:[#allocation23 + $0xbc0] sm:$0xff]
        %v4898 = vld [vmem:[#allocation23 + $0xbc8] sm:$0xff]
        %v4899 = vld [vmem:[#allocation23 + $0xbd0] sm:$0xff]
        %v4900 = vld [vmem:[#allocation23 + $0xbd8] sm:$0xff]
        %v4901 = vld [vmem:[#allocation23 + $0xbe0] sm:$0xff]
        %v4902 = vld [vmem:[#allocation23 + $0xbe8] sm:$0xff]
        %v4903 = vld [vmem:[#allocation23 + $0xbf0] sm:$0xff]
        %v4904 = vld [vmem:[#allocation23 + $0xbf8] sm:$0xff]
        %v4905 = vld [vmem:[#allocation25] sm:$0xff]
        %v4906 = vld [vmem:[#allocation25 + $0x8] sm:$0xff]
        %v4907 = vld [vmem:[#allocation25 + $0x10] sm:$0xff]
        %v4911 = vperm.slane %v4905, 0
        %v4912 = vperm.slane %v4905, 1
        %v4913 = vperm.slane %v4905, 2
        %v4914 = vperm.slane %v4905, 3
        %v4915 = vperm.slane %v4905, 4
        %v4916 = vperm.slane %v4905, 5
        %v4917 = vperm.slane %v4905, 6
        %v4918 = vperm.slane %v4905, 7
        %v4919 = vperm.slane %v4906, 0
        %v4920 = vperm.slane %v4906, 1
        %v4921 = vperm.slane %v4906, 2
        %v4922 = vperm.slane %v4906, 3
        %v4923 = vperm.slane %v4906, 4
        %v4924 = vperm.slane %v4906, 5
        %v4925 = vperm.slane %v4906, 6
        %v4926 = vperm.slane %v4906, 7
        %v4927 = vperm.slane %v4907, 0
        %v4928 = vperm.slane %v4907, 1
        %v4929 = vperm.slane %v4907, 2
        %v4930 = vperm.slane %v4907, 3
        %v4931 = vperm.slane %v4907, 4
        %v4932 = vperm.slane %v4907, 5
        %v4933 = vperm.slane %v4907, 6
        %v4934 = vperm.slane %v4907, 7
        %v5343 = vunpack.c.l.b16 %v4521
        %v5344 = vunpack.c.h.b16 %v4521
        %v5345 = vunpack.c.l.b16 %v4522
        %v5346 = vunpack.c.h.b16 %v4522
        %v5347 = vunpack.c.l.b16 %v4523
        %v5348 = vunpack.c.h.b16 %v4523
        %v5349 = vunpack.c.l.b16 %v4524
        %v5350 = vunpack.c.h.b16 %v4524
        %v5351 = vunpack.c.l.b16 %v4525
        %v5352 = vunpack.c.h.b16 %v4525
        %v5353 = vunpack.c.l.b16 %v4526
        %v5354 = vunpack.c.h.b16 %v4526
        %v5355 = vunpack.c.l.b16 %v4527
        %v5356 = vunpack.c.h.b16 %v4527
        %v5357 = vunpack.c.l.b16 %v4528
        %v5358 = vunpack.c.h.b16 %v4528
        %v5359 = vunpack.c.l.b16 %v4529
        %v5360 = vunpack.c.h.b16 %v4529
        %v5361 = vunpack.c.l.b16 %v4530
        %v5362 = vunpack.c.h.b16 %v4530
        %v5363 = vunpack.c.l.b16 %v4531
        %v5364 = vunpack.c.h.b16 %v4531
        %v5365 = vunpack.c.l.b16 %v4532
        %v5366 = vunpack.c.h.b16 %v4532
        %v5367 = vunpack.c.l.b16 %v4533
        %v5368 = vunpack.c.h.b16 %v4533
        %v5369 = vunpack.c.l.b16 %v4534
        %v5370 = vunpack.c.h.b16 %v4534
        %v5371 = vunpack.c.l.b16 %v4535
        %v5372 = vunpack.c.h.b16 %v4535
        %v5373 = vunpack.c.l.b16 %v4536
        %v5374 = vunpack.c.h.b16 %v4536
        %v5375 = vunpack.c.l.b16 %v4537
        %v5376 = vunpack.c.h.b16 %v4537
        %v5377 = vunpack.c.l.b16 %v4538
        %v5378 = vunpack.c.h.b16 %v4538
        %v5379 = vunpack.c.l.b16 %v4539
        %v5380 = vunpack.c.h.b16 %v4539
        %v5381 = vunpack.c.l.b16 %v4540
        %v5382 = vunpack.c.h.b16 %v4540
        %v5383 = vunpack.c.l.b16 %v4541
        %v5384 = vunpack.c.h.b16 %v4541
        %v5385 = vunpack.c.l.b16 %v4542
        %v5386 = vunpack.c.h.b16 %v4542
        %v5387 = vunpack.c.l.b16 %v4543
        %v5388 = vunpack.c.h.b16 %v4543
        %v5389 = vunpack.c.l.b16 %v4544
        %v5390 = vunpack.c.h.b16 %v4544
        %v5391 = vunpack.c.l.b16 %v4545
        %v5392 = vunpack.c.h.b16 %v4545
        %v5393 = vunpack.c.l.b16 %v4546
        %v5394 = vunpack.c.h.b16 %v4546
        %v5395 = vunpack.c.l.b16 %v4547
        %v5396 = vunpack.c.h.b16 %v4547
        %v5397 = vunpack.c.l.b16 %v4548
        %v5398 = vunpack.c.h.b16 %v4548
        %v5399 = vunpack.c.l.b16 %v4549
        %v5400 = vunpack.c.h.b16 %v4549
        %v5401 = vunpack.c.l.b16 %v4550
        %v5402 = vunpack.c.h.b16 %v4550
        %v5403 = vunpack.c.l.b16 %v4551
        %v5404 = vunpack.c.h.b16 %v4551
        %v5405 = vunpack.c.l.b16 %v4552
        %v5406 = vunpack.c.h.b16 %v4552
        %v5407 = vunpack.c.l.b16 %v4553
        %v5408 = vunpack.c.h.b16 %v4553
        %v5409 = vunpack.c.l.b16 %v4554
        %v5410 = vunpack.c.h.b16 %v4554
        %v5411 = vunpack.c.l.b16 %v4555
        %v5412 = vunpack.c.h.b16 %v4555
        %v5413 = vunpack.c.l.b16 %v4556
        %v5414 = vunpack.c.h.b16 %v4556
        %v5415 = vunpack.c.l.b16 %v4557
        %v5416 = vunpack.c.h.b16 %v4557
        %v5417 = vunpack.c.l.b16 %v4558
        %v5418 = vunpack.c.h.b16 %v4558
        %v5419 = vunpack.c.l.b16 %v4559
        %v5420 = vunpack.c.h.b16 %v4559
        %v5421 = vunpack.c.l.b16 %v4560
        %v5422 = vunpack.c.h.b16 %v4560
        %v5423 = vunpack.c.l.b16 %v4561
        %v5424 = vunpack.c.h.b16 %v4561
        %v5425 = vunpack.c.l.b16 %v4562
        %v5426 = vunpack.c.h.b16 %v4562
        %v5427 = vunpack.c.l.b16 %v4563
        %v5428 = vunpack.c.h.b16 %v4563
        %v5429 = vunpack.c.l.b16 %v4564
        %v5430 = vunpack.c.h.b16 %v4564
        %v5431 = vunpack.c.l.b16 %v4565
        %v5432 = vunpack.c.h.b16 %v4565
        %v5433 = vunpack.c.l.b16 %v4566
        %v5434 = vunpack.c.h.b16 %v4566
        %v5435 = vunpack.c.l.b16 %v4567
        %v5436 = vunpack.c.h.b16 %v4567
        %v5437 = vunpack.c.l.b16 %v4568
        %v5438 = vunpack.c.h.b16 %v4568
        %v5439 = vunpack.c.l.b16 %v4569
        %v5440 = vunpack.c.h.b16 %v4569
        %v5441 = vunpack.c.l.b16 %v4570
        %v5442 = vunpack.c.h.b16 %v4570
        %v5443 = vunpack.c.l.b16 %v4571
        %v5444 = vunpack.c.h.b16 %v4571
        %v5445 = vunpack.c.l.b16 %v4572
        %v5446 = vunpack.c.h.b16 %v4572
        %v5447 = vunpack.c.l.b16 %v4573
        %v5448 = vunpack.c.h.b16 %v4573
        %v5449 = vunpack.c.l.b16 %v4574
        %v5450 = vunpack.c.h.b16 %v4574
        %v5451 = vunpack.c.l.b16 %v4575
        %v5452 = vunpack.c.h.b16 %v4575
        %v5453 = vunpack.c.l.b16 %v4576
        %v5454 = vunpack.c.h.b16 %v4576
        %v5455 = vunpack.c.l.b16 %v4577
        %v5456 = vunpack.c.h.b16 %v4577
        %v5457 = vunpack.c.l.b16 %v4578
        %v5458 = vunpack.c.h.b16 %v4578
        %v5459 = vunpack.c.l.b16 %v4579
        %v5460 = vunpack.c.h.b16 %v4579
        %v5461 = vunpack.c.l.b16 %v4580
        %v5462 = vunpack.c.h.b16 %v4580
        %v5463 = vunpack.c.l.b16 %v4581
        %v5464 = vunpack.c.h.b16 %v4581
        %v5465 = vunpack.c.l.b16 %v4582
        %v5466 = vunpack.c.h.b16 %v4582
        %v5467 = vunpack.c.l.b16 %v4583
        %v5468 = vunpack.c.h.b16 %v4583
        %v5469 = vunpack.c.l.b16 %v4584
        %v5470 = vunpack.c.h.b16 %v4584
        %v5471 = vunpack.c.l.b16 %v4585
        %v5472 = vunpack.c.h.b16 %v4585
        %v5473 = vunpack.c.l.b16 %v4586
        %v5474 = vunpack.c.h.b16 %v4586
        %v5475 = vunpack.c.l.b16 %v4587
        %v5476 = vunpack.c.h.b16 %v4587
        %v5477 = vunpack.c.l.b16 %v4588
        %v5478 = vunpack.c.h.b16 %v4588
        %v5479 = vunpack.c.l.b16 %v4589
        %v5480 = vunpack.c.h.b16 %v4589
        %v5481 = vunpack.c.l.b16 %v4590
        %v5482 = vunpack.c.h.b16 %v4590
        %v5483 = vunpack.c.l.b16 %v4591
        %v5484 = vunpack.c.h.b16 %v4591
        %v5485 = vunpack.c.l.b16 %v4592
        %v5486 = vunpack.c.h.b16 %v4592
        %v5487 = vunpack.c.l.b16 %v4593
        %v5488 = vunpack.c.h.b16 %v4593
        %v5489 = vunpack.c.l.b16 %v4594
        %v5490 = vunpack.c.h.b16 %v4594
        %v5491 = vunpack.c.l.b16 %v4595
        %v5492 = vunpack.c.h.b16 %v4595
        %v5493 = vunpack.c.l.b16 %v4596
        %v5494 = vunpack.c.h.b16 %v4596
        %v5495 = vunpack.c.l.b16 %v4597
        %v5496 = vunpack.c.h.b16 %v4597
        %v5497 = vunpack.c.l.b16 %v4598
        %v5498 = vunpack.c.h.b16 %v4598
        %v5499 = vunpack.c.l.b16 %v4599
        %v5500 = vunpack.c.h.b16 %v4599
        %v5501 = vunpack.c.l.b16 %v4600
        %v5502 = vunpack.c.h.b16 %v4600
        %v5503 = vunpack.c.l.b16 %v4601
        %v5504 = vunpack.c.h.b16 %v4601
        %v5505 = vunpack.c.l.b16 %v4602
        %v5506 = vunpack.c.h.b16 %v4602
        %v5507 = vunpack.c.l.b16 %v4603
        %v5508 = vunpack.c.h.b16 %v4603
        %v5509 = vunpack.c.l.b16 %v4604
        %v5510 = vunpack.c.h.b16 %v4604
        %v5511 = vunpack.c.l.b16 %v4605
        %v5512 = vunpack.c.h.b16 %v4605
        %v5513 = vunpack.c.l.b16 %v4606
        %v5514 = vunpack.c.h.b16 %v4606
        %v5515 = vunpack.c.l.b16 %v4607
        %v5516 = vunpack.c.h.b16 %v4607
        %v5517 = vunpack.c.l.b16 %v4608
        %v5518 = vunpack.c.h.b16 %v4608
        %v5519 = vunpack.c.l.b16 %v4609
        %v5520 = vunpack.c.h.b16 %v4609
        %v5521 = vunpack.c.l.b16 %v4610
        %v5522 = vunpack.c.h.b16 %v4610
        %v5523 = vunpack.c.l.b16 %v4611
        %v5524 = vunpack.c.h.b16 %v4611
        %v5525 = vunpack.c.l.b16 %v4612
        %v5526 = vunpack.c.h.b16 %v4612
        %v5527 = vunpack.c.l.b16 %v4613
        %v5528 = vunpack.c.h.b16 %v4613
        %v5529 = vunpack.c.l.b16 %v4614
        %v5530 = vunpack.c.h.b16 %v4614
        %v5531 = vunpack.c.l.b16 %v4615
        %v5532 = vunpack.c.h.b16 %v4615
        %v5533 = vunpack.c.l.b16 %v4616
        %v5534 = vunpack.c.h.b16 %v4616
        %v5535 = vunpack.c.l.b16 %v4617
        %v5536 = vunpack.c.h.b16 %v4617
        %v5537 = vunpack.c.l.b16 %v4618
        %v5538 = vunpack.c.h.b16 %v4618
        %v5539 = vunpack.c.l.b16 %v4619
        %v5540 = vunpack.c.h.b16 %v4619
        %v5541 = vunpack.c.l.b16 %v4620
        %v5542 = vunpack.c.h.b16 %v4620
        %v5543 = vunpack.c.l.b16 %v4621
        %v5544 = vunpack.c.h.b16 %v4621
        %v5545 = vunpack.c.l.b16 %v4622
        %v5546 = vunpack.c.h.b16 %v4622
        %v5547 = vunpack.c.l.b16 %v4623
        %v5548 = vunpack.c.h.b16 %v4623
        %v5549 = vunpack.c.l.b16 %v4624
        %v5550 = vunpack.c.h.b16 %v4624
        %v5551 = vunpack.c.l.b16 %v4625
        %v5552 = vunpack.c.h.b16 %v4625
        %v5553 = vunpack.c.l.b16 %v4626
        %v5554 = vunpack.c.h.b16 %v4626
        %v5555 = vunpack.c.l.b16 %v4627
        %v5556 = vunpack.c.h.b16 %v4627
        %v5557 = vunpack.c.l.b16 %v4628
        %v5558 = vunpack.c.h.b16 %v4628
        %v5559 = vunpack.c.l.b16 %v4629
        %v5560 = vunpack.c.h.b16 %v4629
        %v5561 = vunpack.c.l.b16 %v4630
        %v5562 = vunpack.c.h.b16 %v4630
        %v5563 = vunpack.c.l.b16 %v4631
        %v5564 = vunpack.c.h.b16 %v4631
        %v5565 = vunpack.c.l.b16 %v4632
        %v5566 = vunpack.c.h.b16 %v4632
        %v5567 = vunpack.c.l.b16 %v4633
        %v5568 = vunpack.c.h.b16 %v4633
        %v5569 = vunpack.c.l.b16 %v4634
        %v5570 = vunpack.c.h.b16 %v4634
        %v5571 = vunpack.c.l.b16 %v4635
        %v5572 = vunpack.c.h.b16 %v4635
        %v5573 = vunpack.c.l.b16 %v4636
        %v5574 = vunpack.c.h.b16 %v4636
        %v5575 = vunpack.c.l.b16 %v4637
        %v5576 = vunpack.c.h.b16 %v4637
        %v5577 = vunpack.c.l.b16 %v4638
        %v5578 = vunpack.c.h.b16 %v4638
        %v5579 = vunpack.c.l.b16 %v4639
        %v5580 = vunpack.c.h.b16 %v4639
        %v5581 = vunpack.c.l.b16 %v4640
        %v5582 = vunpack.c.h.b16 %v4640
        %v5583 = vunpack.c.l.b16 %v4641
        %v5584 = vunpack.c.h.b16 %v4641
        %v5585 = vunpack.c.l.b16 %v4642
        %v5586 = vunpack.c.h.b16 %v4642
        %v5587 = vunpack.c.l.b16 %v4643
        %v5588 = vunpack.c.h.b16 %v4643
        %v5589 = vunpack.c.l.b16 %v4644
        %v5590 = vunpack.c.h.b16 %v4644
        %v5591 = vunpack.c.l.b16 %v4645
        %v5592 = vunpack.c.h.b16 %v4645
        %v5593 = vunpack.c.l.b16 %v4646
        %v5594 = vunpack.c.h.b16 %v4646
        %v5595 = vunpack.c.l.b16 %v4647
        %v5596 = vunpack.c.h.b16 %v4647
        %v5597 = vunpack.c.l.b16 %v4648
        %v5598 = vunpack.c.h.b16 %v4648
        %v5599 = vunpack.c.l.b16 %v4649
        %v5600 = vunpack.c.h.b16 %v4649
        %v5601 = vunpack.c.l.b16 %v4650
        %v5602 = vunpack.c.h.b16 %v4650
        %v5603 = vunpack.c.l.b16 %v4651
        %v5604 = vunpack.c.h.b16 %v4651
        %v5605 = vunpack.c.l.b16 %v4652
        %v5606 = vunpack.c.h.b16 %v4652
        %v5607 = vunpack.c.l.b16 %v4653
        %v5608 = vunpack.c.h.b16 %v4653
        %v5609 = vunpack.c.l.b16 %v4654
        %v5610 = vunpack.c.h.b16 %v4654
        %v5611 = vunpack.c.l.b16 %v4655
        %v5612 = vunpack.c.h.b16 %v4655
        %v5613 = vunpack.c.l.b16 %v4656
        %v5614 = vunpack.c.h.b16 %v4656
        %v5615 = vunpack.c.l.b16 %v4657
        %v5616 = vunpack.c.h.b16 %v4657
        %v5617 = vunpack.c.l.b16 %v4658
        %v5618 = vunpack.c.h.b16 %v4658
        %v5619 = vunpack.c.l.b16 %v4659
        %v5620 = vunpack.c.h.b16 %v4659
        %v5621 = vunpack.c.l.b16 %v4660
        %v5622 = vunpack.c.h.b16 %v4660
        %v5623 = vunpack.c.l.b16 %v4661
        %v5624 = vunpack.c.h.b16 %v4661
        %v5625 = vunpack.c.l.b16 %v4662
        %v5626 = vunpack.c.h.b16 %v4662
        %v5627 = vunpack.c.l.b16 %v4663
        %v5628 = vunpack.c.h.b16 %v4663
        %v5629 = vunpack.c.l.b16 %v4664
        %v5630 = vunpack.c.h.b16 %v4664
        %v5631 = vunpack.c.l.b16 %v4665
        %v5632 = vunpack.c.h.b16 %v4665
        %v5633 = vunpack.c.l.b16 %v4666
        %v5634 = vunpack.c.h.b16 %v4666
        %v5635 = vunpack.c.l.b16 %v4667
        %v5636 = vunpack.c.h.b16 %v4667
        %v5637 = vunpack.c.l.b16 %v4668
        %v5638 = vunpack.c.h.b16 %v4668
        %v5639 = vunpack.c.l.b16 %v4669
        %v5640 = vunpack.c.h.b16 %v4669
        %v5641 = vunpack.c.l.b16 %v4670
        %v5642 = vunpack.c.h.b16 %v4670
        %v5643 = vunpack.c.l.b16 %v4671
        %v5644 = vunpack.c.h.b16 %v4671
        %v5645 = vunpack.c.l.b16 %v4672
        %v5646 = vunpack.c.h.b16 %v4672
        %v5647 = vunpack.c.l.b16 %v4673
        %v5648 = vunpack.c.h.b16 %v4673
        %v5649 = vunpack.c.l.b16 %v4674
        %v5650 = vunpack.c.h.b16 %v4674
        %v5651 = vunpack.c.l.b16 %v4675
        %v5652 = vunpack.c.h.b16 %v4675
        %v5653 = vunpack.c.l.b16 %v4676
        %v5654 = vunpack.c.h.b16 %v4676
        %v5655 = vunpack.c.l.b16 %v4677
        %v5656 = vunpack.c.h.b16 %v4677
        %v5657 = vunpack.c.l.b16 %v4678
        %v5658 = vunpack.c.h.b16 %v4678
        %v5659 = vunpack.c.l.b16 %v4679
        %v5660 = vunpack.c.h.b16 %v4679
        %v5661 = vunpack.c.l.b16 %v4680
        %v5662 = vunpack.c.h.b16 %v4680
        %v5663 = vunpack.c.l.b16 %v4681
        %v5664 = vunpack.c.h.b16 %v4681
        %v5665 = vunpack.c.l.b16 %v4682
        %v5666 = vunpack.c.h.b16 %v4682
        %v5667 = vunpack.c.l.b16 %v4683
        %v5668 = vunpack.c.h.b16 %v4683
        %v5669 = vunpack.c.l.b16 %v4684
        %v5670 = vunpack.c.h.b16 %v4684
        %v5671 = vunpack.c.l.b16 %v4685
        %v5672 = vunpack.c.h.b16 %v4685
        %v5673 = vunpack.c.l.b16 %v4686
        %v5674 = vunpack.c.h.b16 %v4686
        %v5675 = vunpack.c.l.b16 %v4687
        %v5676 = vunpack.c.h.b16 %v4687
        %v5677 = vunpack.c.l.b16 %v4688
        %v5678 = vunpack.c.h.b16 %v4688
        %v5679 = vunpack.c.l.b16 %v4689
        %v5680 = vunpack.c.h.b16 %v4689
        %v5681 = vunpack.c.l.b16 %v4690
        %v5682 = vunpack.c.h.b16 %v4690
        %v5683 = vunpack.c.l.b16 %v4691
        %v5684 = vunpack.c.h.b16 %v4691
        %v5685 = vunpack.c.l.b16 %v4692
        %v5686 = vunpack.c.h.b16 %v4692
        %v5687 = vunpack.c.l.b16 %v4693
        %v5688 = vunpack.c.h.b16 %v4693
        %v5689 = vunpack.c.l.b16 %v4694
        %v5690 = vunpack.c.h.b16 %v4694
        %v5691 = vunpack.c.l.b16 %v4695
        %v5692 = vunpack.c.h.b16 %v4695
        %v5693 = vunpack.c.l.b16 %v4696
        %v5694 = vunpack.c.h.b16 %v4696
        %v5695 = vunpack.c.l.b16 %v4697
        %v5696 = vunpack.c.h.b16 %v4697
        %v5697 = vunpack.c.l.b16 %v4698
        %v5698 = vunpack.c.h.b16 %v4698
        %v5699 = vunpack.c.l.b16 %v4699
        %v5700 = vunpack.c.h.b16 %v4699
        %v5701 = vunpack.c.l.b16 %v4700
        %v5702 = vunpack.c.h.b16 %v4700
        %v5703 = vunpack.c.l.b16 %v4701
        %v5704 = vunpack.c.h.b16 %v4701
        %v5705 = vunpack.c.l.b16 %v4702
        %v5706 = vunpack.c.h.b16 %v4702
        %v5707 = vunpack.c.l.b16 %v4703
        %v5708 = vunpack.c.h.b16 %v4703
        %v5709 = vunpack.c.l.b16 %v4704
        %v5710 = vunpack.c.h.b16 %v4704
        %v5711 = vunpack.c.l.b16 %v4705
        %v5712 = vunpack.c.h.b16 %v4705
        %v5713 = vunpack.c.l.b16 %v4706
        %v5714 = vunpack.c.h.b16 %v4706
        %v5715 = vunpack.c.l.b16 %v4707
        %v5716 = vunpack.c.h.b16 %v4707
        %v5717 = vunpack.c.l.b16 %v4708
        %v5718 = vunpack.c.h.b16 %v4708
        %v5719 = vunpack.c.l.b16 %v4709
        %v5720 = vunpack.c.h.b16 %v4709
        %v5721 = vunpack.c.l.b16 %v4710
        %v5722 = vunpack.c.h.b16 %v4710
        %v5723 = vunpack.c.l.b16 %v4711
        %v5724 = vunpack.c.h.b16 %v4711
        %v5725 = vunpack.c.l.b16 %v4712
        %v5726 = vunpack.c.h.b16 %v4712
        %v5727 = vunpack.c.l.b16 %v4713
        %v5728 = vunpack.c.h.b16 %v4713
        %v5729 = vunpack.c.l.b16 %v4714
        %v5730 = vunpack.c.h.b16 %v4714
        %v5731 = vunpack.c.l.b16 %v4715
        %v5732 = vunpack.c.h.b16 %v4715
        %v5733 = vunpack.c.l.b16 %v4716
        %v5734 = vunpack.c.h.b16 %v4716
        %v5735 = vunpack.c.l.b16 %v4717
        %v5736 = vunpack.c.h.b16 %v4717
        %v5737 = vunpack.c.l.b16 %v4718
        %v5738 = vunpack.c.h.b16 %v4718
        %v5739 = vunpack.c.l.b16 %v4719
        %v5740 = vunpack.c.h.b16 %v4719
        %v5741 = vunpack.c.l.b16 %v4720
        %v5742 = vunpack.c.h.b16 %v4720
        %v5743 = vunpack.c.l.b16 %v4721
        %v5744 = vunpack.c.h.b16 %v4721
        %v5745 = vunpack.c.l.b16 %v4722
        %v5746 = vunpack.c.h.b16 %v4722
        %v5747 = vunpack.c.l.b16 %v4723
        %v5748 = vunpack.c.h.b16 %v4723
        %v5749 = vunpack.c.l.b16 %v4724
        %v5750 = vunpack.c.h.b16 %v4724
        %v5751 = vunpack.c.l.b16 %v4725
        %v5752 = vunpack.c.h.b16 %v4725
        %v5753 = vunpack.c.l.b16 %v4726
        %v5754 = vunpack.c.h.b16 %v4726
        %v5755 = vunpack.c.l.b16 %v4727
        %v5756 = vunpack.c.h.b16 %v4727
        %v5757 = vunpack.c.l.b16 %v4728
        %v5758 = vunpack.c.h.b16 %v4728
        %v5759 = vunpack.c.l.b16 %v4729
        %v5760 = vunpack.c.h.b16 %v4729
        %v5761 = vunpack.c.l.b16 %v4730
        %v5762 = vunpack.c.h.b16 %v4730
        %v5763 = vunpack.c.l.b16 %v4731
        %v5764 = vunpack.c.h.b16 %v4731
        %v5765 = vunpack.c.l.b16 %v4732
        %v5766 = vunpack.c.h.b16 %v4732
        %v5767 = vunpack.c.l.b16 %v4733
        %v5768 = vunpack.c.h.b16 %v4733
        %v5769 = vunpack.c.l.b16 %v4734
        %v5770 = vunpack.c.h.b16 %v4734
        %v5771 = vunpack.c.l.b16 %v4735
        %v5772 = vunpack.c.h.b16 %v4735
        %v5773 = vunpack.c.l.b16 %v4736
        %v5774 = vunpack.c.h.b16 %v4736
        %v5775 = vunpack.c.l.b16 %v4737
        %v5776 = vunpack.c.h.b16 %v4737
        %v5777 = vunpack.c.l.b16 %v4738
        %v5778 = vunpack.c.h.b16 %v4738
        %v5779 = vunpack.c.l.b16 %v4739
        %v5780 = vunpack.c.h.b16 %v4739
        %v5781 = vunpack.c.l.b16 %v4740
        %v5782 = vunpack.c.h.b16 %v4740
        %v5783 = vunpack.c.l.b16 %v4741
        %v5784 = vunpack.c.h.b16 %v4741
        %v5785 = vunpack.c.l.b16 %v4742
        %v5786 = vunpack.c.h.b16 %v4742
        %v5787 = vunpack.c.l.b16 %v4743
        %v5788 = vunpack.c.h.b16 %v4743
        %v5789 = vunpack.c.l.b16 %v4744
        %v5790 = vunpack.c.h.b16 %v4744
        %v5791 = vunpack.c.l.b16 %v4745
        %v5792 = vunpack.c.h.b16 %v4745
        %v5793 = vunpack.c.l.b16 %v4746
        %v5794 = vunpack.c.h.b16 %v4746
        %v5795 = vunpack.c.l.b16 %v4747
        %v5796 = vunpack.c.h.b16 %v4747
        %v5797 = vunpack.c.l.b16 %v4748
        %v5798 = vunpack.c.h.b16 %v4748
        %v5799 = vunpack.c.l.b16 %v4749
        %v5800 = vunpack.c.h.b16 %v4749
        %v5801 = vunpack.c.l.b16 %v4750
        %v5802 = vunpack.c.h.b16 %v4750
        %v5803 = vunpack.c.l.b16 %v4751
        %v5804 = vunpack.c.h.b16 %v4751
        %v5805 = vunpack.c.l.b16 %v4752
        %v5806 = vunpack.c.h.b16 %v4752
        %v5807 = vunpack.c.l.b16 %v4753
        %v5808 = vunpack.c.h.b16 %v4753
        %v5809 = vunpack.c.l.b16 %v4754
        %v5810 = vunpack.c.h.b16 %v4754
        %v5811 = vunpack.c.l.b16 %v4755
        %v5812 = vunpack.c.h.b16 %v4755
        %v5813 = vunpack.c.l.b16 %v4756
        %v5814 = vunpack.c.h.b16 %v4756
        %v5815 = vunpack.c.l.b16 %v4757
        %v5816 = vunpack.c.h.b16 %v4757
        %v5817 = vunpack.c.l.b16 %v4758
        %v5818 = vunpack.c.h.b16 %v4758
        %v5819 = vunpack.c.l.b16 %v4759
        %v5820 = vunpack.c.h.b16 %v4759
        %v5821 = vunpack.c.l.b16 %v4760
        %v5822 = vunpack.c.h.b16 %v4760
        %v5823 = vunpack.c.l.b16 %v4761
        %v5824 = vunpack.c.h.b16 %v4761
        %v5825 = vunpack.c.l.b16 %v4762
        %v5826 = vunpack.c.h.b16 %v4762
        %v5827 = vunpack.c.l.b16 %v4763
        %v5828 = vunpack.c.h.b16 %v4763
        %v5829 = vunpack.c.l.b16 %v4764
        %v5830 = vunpack.c.h.b16 %v4764
        %v5831 = vunpack.c.l.b16 %v4765
        %v5832 = vunpack.c.h.b16 %v4765
        %v5833 = vunpack.c.l.b16 %v4766
        %v5834 = vunpack.c.h.b16 %v4766
        %v5835 = vunpack.c.l.b16 %v4767
        %v5836 = vunpack.c.h.b16 %v4767
        %v5837 = vunpack.c.l.b16 %v4768
        %v5838 = vunpack.c.h.b16 %v4768
        %v5839 = vunpack.c.l.b16 %v4769
        %v5840 = vunpack.c.h.b16 %v4769
        %v5841 = vunpack.c.l.b16 %v4770
        %v5842 = vunpack.c.h.b16 %v4770
        %v5843 = vunpack.c.l.b16 %v4771
        %v5844 = vunpack.c.h.b16 %v4771
        %v5845 = vunpack.c.l.b16 %v4772
        %v5846 = vunpack.c.h.b16 %v4772
        %v5847 = vunpack.c.l.b16 %v4773
        %v5848 = vunpack.c.h.b16 %v4773
        %v5849 = vunpack.c.l.b16 %v4774
        %v5850 = vunpack.c.h.b16 %v4774
        %v5851 = vunpack.c.l.b16 %v4775
        %v5852 = vunpack.c.h.b16 %v4775
        %v5853 = vunpack.c.l.b16 %v4776
        %v5854 = vunpack.c.h.b16 %v4776
        %v5855 = vunpack.c.l.b16 %v4777
        %v5856 = vunpack.c.h.b16 %v4777
        %v5857 = vunpack.c.l.b16 %v4778
        %v5858 = vunpack.c.h.b16 %v4778
        %v5859 = vunpack.c.l.b16 %v4779
        %v5860 = vunpack.c.h.b16 %v4779
        %v5861 = vunpack.c.l.b16 %v4780
        %v5862 = vunpack.c.h.b16 %v4780
        %v5863 = vunpack.c.l.b16 %v4781
        %v5864 = vunpack.c.h.b16 %v4781
        %v5865 = vunpack.c.l.b16 %v4782
        %v5866 = vunpack.c.h.b16 %v4782
        %v5867 = vunpack.c.l.b16 %v4783
        %v5868 = vunpack.c.h.b16 %v4783
        %v5869 = vunpack.c.l.b16 %v4784
        %v5870 = vunpack.c.h.b16 %v4784
        %v5871 = vunpack.c.l.b16 %v4785
        %v5872 = vunpack.c.h.b16 %v4785
        %v5873 = vunpack.c.l.b16 %v4786
        %v5874 = vunpack.c.h.b16 %v4786
        %v5875 = vunpack.c.l.b16 %v4787
        %v5876 = vunpack.c.h.b16 %v4787
        %v5877 = vunpack.c.l.b16 %v4788
        %v5878 = vunpack.c.h.b16 %v4788
        %v5879 = vunpack.c.l.b16 %v4789
        %v5880 = vunpack.c.h.b16 %v4789
        %v5881 = vunpack.c.l.b16 %v4790
        %v5882 = vunpack.c.h.b16 %v4790
        %v5883 = vunpack.c.l.b16 %v4791
        %v5884 = vunpack.c.h.b16 %v4791
        %v5885 = vunpack.c.l.b16 %v4792
        %v5886 = vunpack.c.h.b16 %v4792
        %v5887 = vunpack.c.l.b16 %v4793
        %v5888 = vunpack.c.h.b16 %v4793
        %v5889 = vunpack.c.l.b16 %v4794
        %v5890 = vunpack.c.h.b16 %v4794
        %v5891 = vunpack.c.l.b16 %v4795
        %v5892 = vunpack.c.h.b16 %v4795
        %v5893 = vunpack.c.l.b16 %v4796
        %v5894 = vunpack.c.h.b16 %v4796
        %v5895 = vunpack.c.l.b16 %v4797
        %v5896 = vunpack.c.h.b16 %v4797
        %v5897 = vunpack.c.l.b16 %v4798
        %v5898 = vunpack.c.h.b16 %v4798
        %v5899 = vunpack.c.l.b16 %v4799
        %v5900 = vunpack.c.h.b16 %v4799
        %v5901 = vunpack.c.l.b16 %v4800
        %v5902 = vunpack.c.h.b16 %v4800
        %v5903 = vunpack.c.l.b16 %v4801
        %v5904 = vunpack.c.h.b16 %v4801
        %v5905 = vunpack.c.l.b16 %v4802
        %v5906 = vunpack.c.h.b16 %v4802
        %v5907 = vunpack.c.l.b16 %v4803
        %v5908 = vunpack.c.h.b16 %v4803
        %v5909 = vunpack.c.l.b16 %v4804
        %v5910 = vunpack.c.h.b16 %v4804
        %v5911 = vunpack.c.l.b16 %v4805
        %v5912 = vunpack.c.h.b16 %v4805
        %v5913 = vunpack.c.l.b16 %v4806
        %v5914 = vunpack.c.h.b16 %v4806
        %v5915 = vunpack.c.l.b16 %v4807
        %v5916 = vunpack.c.h.b16 %v4807
        %v5917 = vunpack.c.l.b16 %v4808
        %v5918 = vunpack.c.h.b16 %v4808
        %v5919 = vunpack.c.l.b16 %v4809
        %v5920 = vunpack.c.h.b16 %v4809
        %v5921 = vunpack.c.l.b16 %v4810
        %v5922 = vunpack.c.h.b16 %v4810
        %v5923 = vunpack.c.l.b16 %v4811
        %v5924 = vunpack.c.h.b16 %v4811
        %v5925 = vunpack.c.l.b16 %v4812
        %v5926 = vunpack.c.h.b16 %v4812
        %v5927 = vunpack.c.l.b16 %v4813
        %v5928 = vunpack.c.h.b16 %v4813
        %v5929 = vunpack.c.l.b16 %v4814
        %v5930 = vunpack.c.h.b16 %v4814
        %v5931 = vunpack.c.l.b16 %v4815
        %v5932 = vunpack.c.h.b16 %v4815
        %v5933 = vunpack.c.l.b16 %v4816
        %v5934 = vunpack.c.h.b16 %v4816
        %v5935 = vunpack.c.l.b16 %v4817
        %v5936 = vunpack.c.h.b16 %v4817
        %v5937 = vunpack.c.l.b16 %v4818
        %v5938 = vunpack.c.h.b16 %v4818
        %v5939 = vunpack.c.l.b16 %v4819
        %v5940 = vunpack.c.h.b16 %v4819
        %v5941 = vunpack.c.l.b16 %v4820
        %v5942 = vunpack.c.h.b16 %v4820
        %v5943 = vunpack.c.l.b16 %v4821
        %v5944 = vunpack.c.h.b16 %v4821
        %v5945 = vunpack.c.l.b16 %v4822
        %v5946 = vunpack.c.h.b16 %v4822
        %v5947 = vunpack.c.l.b16 %v4823
        %v5948 = vunpack.c.h.b16 %v4823
        %v5949 = vunpack.c.l.b16 %v4824
        %v5950 = vunpack.c.h.b16 %v4824
        %v5951 = vunpack.c.l.b16 %v4825
        %v5952 = vunpack.c.h.b16 %v4825
        %v5953 = vunpack.c.l.b16 %v4826
        %v5954 = vunpack.c.h.b16 %v4826
        %v5955 = vunpack.c.l.b16 %v4827
        %v5956 = vunpack.c.h.b16 %v4827
        %v5957 = vunpack.c.l.b16 %v4828
        %v5958 = vunpack.c.h.b16 %v4828
        %v5959 = vunpack.c.l.b16 %v4829
        %v5960 = vunpack.c.h.b16 %v4829
        %v5961 = vunpack.c.l.b16 %v4830
        %v5962 = vunpack.c.h.b16 %v4830
        %v5963 = vunpack.c.l.b16 %v4831
        %v5964 = vunpack.c.h.b16 %v4831
        %v5965 = vunpack.c.l.b16 %v4832
        %v5966 = vunpack.c.h.b16 %v4832
        %v5967 = vunpack.c.l.b16 %v4833
        %v5968 = vunpack.c.h.b16 %v4833
        %v5969 = vunpack.c.l.b16 %v4834
        %v5970 = vunpack.c.h.b16 %v4834
        %v5971 = vunpack.c.l.b16 %v4835
        %v5972 = vunpack.c.h.b16 %v4835
        %v5973 = vunpack.c.l.b16 %v4836
        %v5974 = vunpack.c.h.b16 %v4836
        %v5975 = vunpack.c.l.b16 %v4837
        %v5976 = vunpack.c.h.b16 %v4837
        %v5977 = vunpack.c.l.b16 %v4838
        %v5978 = vunpack.c.h.b16 %v4838
        %v5979 = vunpack.c.l.b16 %v4839
        %v5980 = vunpack.c.h.b16 %v4839
        %v5981 = vunpack.c.l.b16 %v4840
        %v5982 = vunpack.c.h.b16 %v4840
        %v5983 = vunpack.c.l.b16 %v4841
        %v5984 = vunpack.c.h.b16 %v4841
        %v5985 = vunpack.c.l.b16 %v4842
        %v5986 = vunpack.c.h.b16 %v4842
        %v5987 = vunpack.c.l.b16 %v4843
        %v5988 = vunpack.c.h.b16 %v4843
        %v5989 = vunpack.c.l.b16 %v4844
        %v5990 = vunpack.c.h.b16 %v4844
        %v5991 = vunpack.c.l.b16 %v4845
        %v5992 = vunpack.c.h.b16 %v4845
        %v5993 = vunpack.c.l.b16 %v4846
        %v5994 = vunpack.c.h.b16 %v4846
        %v5995 = vunpack.c.l.b16 %v4847
        %v5996 = vunpack.c.h.b16 %v4847
        %v5997 = vunpack.c.l.b16 %v4848
        %v5998 = vunpack.c.h.b16 %v4848
        %v5999 = vunpack.c.l.b16 %v4849
        %v6000 = vunpack.c.h.b16 %v4849
        %v6001 = vunpack.c.l.b16 %v4850
        %v6002 = vunpack.c.h.b16 %v4850
        %v6003 = vunpack.c.l.b16 %v4851
        %v6004 = vunpack.c.h.b16 %v4851
        %v6005 = vunpack.c.l.b16 %v4852
        %v6006 = vunpack.c.h.b16 %v4852
        %v6007 = vunpack.c.l.b16 %v4853
        %v6008 = vunpack.c.h.b16 %v4853
        %v6009 = vunpack.c.l.b16 %v4854
        %v6010 = vunpack.c.h.b16 %v4854
        %v6011 = vunpack.c.l.b16 %v4855
        %v6012 = vunpack.c.h.b16 %v4855
        %v6013 = vunpack.c.l.b16 %v4856
        %v6014 = vunpack.c.h.b16 %v4856
        %v6015 = vunpack.c.l.b16 %v4857
        %v6016 = vunpack.c.h.b16 %v4857
        %v6017 = vunpack.c.l.b16 %v4858
        %v6018 = vunpack.c.h.b16 %v4858
        %v6019 = vunpack.c.l.b16 %v4859
        %v6020 = vunpack.c.h.b16 %v4859
        %v6021 = vunpack.c.l.b16 %v4860
        %v6022 = vunpack.c.h.b16 %v4860
        %v6023 = vunpack.c.l.b16 %v4861
        %v6024 = vunpack.c.h.b16 %v4861
        %v6025 = vunpack.c.l.b16 %v4862
        %v6026 = vunpack.c.h.b16 %v4862
        %v6027 = vunpack.c.l.b16 %v4863
        %v6028 = vunpack.c.h.b16 %v4863
        %v6029 = vunpack.c.l.b16 %v4864
        %v6030 = vunpack.c.h.b16 %v4864
        %v6031 = vunpack.c.l.b16 %v4865
        %v6032 = vunpack.c.h.b16 %v4865
        %v6033 = vunpack.c.l.b16 %v4866
        %v6034 = vunpack.c.h.b16 %v4866
        %v6035 = vunpack.c.l.b16 %v4867
        %v6036 = vunpack.c.h.b16 %v4867
        %v6037 = vunpack.c.l.b16 %v4868
        %v6038 = vunpack.c.h.b16 %v4868
        %v6039 = vunpack.c.l.b16 %v4869
        %v6040 = vunpack.c.h.b16 %v4869
        %v6041 = vunpack.c.l.b16 %v4870
        %v6042 = vunpack.c.h.b16 %v4870
        %v6043 = vunpack.c.l.b16 %v4871
        %v6044 = vunpack.c.h.b16 %v4871
        %v6045 = vunpack.c.l.b16 %v4872
        %v6046 = vunpack.c.h.b16 %v4872
        %v6047 = vunpack.c.l.b16 %v4873
        %v6048 = vunpack.c.h.b16 %v4873
        %v6049 = vunpack.c.l.b16 %v4874
        %v6050 = vunpack.c.h.b16 %v4874
        %v6051 = vunpack.c.l.b16 %v4875
        %v6052 = vunpack.c.h.b16 %v4875
        %v6053 = vunpack.c.l.b16 %v4876
        %v6054 = vunpack.c.h.b16 %v4876
        %v6055 = vunpack.c.l.b16 %v4877
        %v6056 = vunpack.c.h.b16 %v4877
        %v6057 = vunpack.c.l.b16 %v4878
        %v6058 = vunpack.c.h.b16 %v4878
        %v6059 = vunpack.c.l.b16 %v4879
        %v6060 = vunpack.c.h.b16 %v4879
        %v6061 = vunpack.c.l.b16 %v4880
        %v6062 = vunpack.c.h.b16 %v4880
        %v6063 = vunpack.c.l.b16 %v4881
        %v6064 = vunpack.c.h.b16 %v4881
        %v6065 = vunpack.c.l.b16 %v4882
        %v6066 = vunpack.c.h.b16 %v4882
        %v6067 = vunpack.c.l.b16 %v4883
        %v6068 = vunpack.c.h.b16 %v4883
        %v6069 = vunpack.c.l.b16 %v4884
        %v6070 = vunpack.c.h.b16 %v4884
        %v6071 = vunpack.c.l.b16 %v4885
        %v6072 = vunpack.c.h.b16 %v4885
        %v6073 = vunpack.c.l.b16 %v4886
        %v6074 = vunpack.c.h.b16 %v4886
        %v6075 = vunpack.c.l.b16 %v4887
        %v6076 = vunpack.c.h.b16 %v4887
        %v6077 = vunpack.c.l.b16 %v4888
        %v6078 = vunpack.c.h.b16 %v4888
        %v6079 = vunpack.c.l.b16 %v4889
        %v6080 = vunpack.c.h.b16 %v4889
        %v6081 = vunpack.c.l.b16 %v4890
        %v6082 = vunpack.c.h.b16 %v4890
        %v6083 = vunpack.c.l.b16 %v4891
        %v6084 = vunpack.c.h.b16 %v4891
        %v6085 = vunpack.c.l.b16 %v4892
        %v6086 = vunpack.c.h.b16 %v4892
        %v6087 = vunpack.c.l.b16 %v4893
        %v6088 = vunpack.c.h.b16 %v4893
        %v6089 = vunpack.c.l.b16 %v4894
        %v6090 = vunpack.c.h.b16 %v4894
        %v6091 = vunpack.c.l.b16 %v4895
        %v6092 = vunpack.c.h.b16 %v4895
        %v6093 = vunpack.c.l.b16 %v4896
        %v6094 = vunpack.c.h.b16 %v4896
        %v6095 = vunpack.c.l.b16 %v4897
        %v6096 = vunpack.c.h.b16 %v4897
        %v6097 = vunpack.c.l.b16 %v4898
        %v6098 = vunpack.c.h.b16 %v4898
        %v6099 = vunpack.c.l.b16 %v4899
        %v6100 = vunpack.c.h.b16 %v4899
        %v6101 = vunpack.c.l.b16 %v4900
        %v6102 = vunpack.c.h.b16 %v4900
        %v6103 = vunpack.c.l.b16 %v4901
        %v6104 = vunpack.c.h.b16 %v4901
        %v6105 = vunpack.c.l.b16 %v4902
        %v6106 = vunpack.c.h.b16 %v4902
        %v6107 = vunpack.c.l.b16 %v4903
        %v6108 = vunpack.c.h.b16 %v4903
        %v6109 = vunpack.c.l.b16 %v4904
        %v6110 = vunpack.c.h.b16 %v4904
        %v6111 = vpack.c.b16 %v5367, %v5343
        %v6112 = vpack.c.b16 %v5368, %v5344
        %v6113 = vpack.c.b16 %v5369, %v5345
        %v6114 = vpack.c.b16 %v5370, %v5346
        %v6115 = vpack.c.b16 %v5371, %v5347
        %v6116 = vpack.c.b16 %v5372, %v5348
        %v6117 = vpack.c.b16 %v5373, %v5349
        %v6118 = vpack.c.b16 %v5374, %v5350
        %v6119 = vpack.c.b16 %v5375, %v5351
        %v6120 = vpack.c.b16 %v5376, %v5352
        %v6121 = vpack.c.b16 %v5377, %v5353
        %v6122 = vpack.c.b16 %v5378, %v5354
        %v6123 = vpack.c.b16 %v5379, %v5355
        %v6124 = vpack.c.b16 %v5380, %v5356
        %v6125 = vpack.c.b16 %v5381, %v5357
        %v6126 = vpack.c.b16 %v5382, %v5358
        %v6127 = vpack.c.b16 %v5383, %v5359
        %v6128 = vpack.c.b16 %v5384, %v5360
        %v6129 = vpack.c.b16 %v5385, %v5361
        %v6130 = vpack.c.b16 %v5386, %v5362
        %v6131 = vpack.c.b16 %v5387, %v5363
        %v6132 = vpack.c.b16 %v5388, %v5364
        %v6133 = vpack.c.b16 %v5389, %v5365
        %v6134 = vpack.c.b16 %v5390, %v5366
        %v6135 = vpack.c.b16 %v5415, %v5391
        %v6136 = vpack.c.b16 %v5416, %v5392
        %v6137 = vpack.c.b16 %v5417, %v5393
        %v6138 = vpack.c.b16 %v5418, %v5394
        %v6139 = vpack.c.b16 %v5419, %v5395
        %v6140 = vpack.c.b16 %v5420, %v5396
        %v6141 = vpack.c.b16 %v5421, %v5397
        %v6142 = vpack.c.b16 %v5422, %v5398
        %v6143 = vpack.c.b16 %v5423, %v5399
        %v6144 = vpack.c.b16 %v5424, %v5400
        %v6145 = vpack.c.b16 %v5425, %v5401
        %v6146 = vpack.c.b16 %v5426, %v5402
        %v6147 = vpack.c.b16 %v5427, %v5403
        %v6148 = vpack.c.b16 %v5428, %v5404
        %v6149 = vpack.c.b16 %v5429, %v5405
        %v6150 = vpack.c.b16 %v5430, %v5406
        %v6151 = vpack.c.b16 %v5431, %v5407
        %v6152 = vpack.c.b16 %v5432, %v5408
        %v6153 = vpack.c.b16 %v5433, %v5409
        %v6154 = vpack.c.b16 %v5434, %v5410
        %v6155 = vpack.c.b16 %v5435, %v5411
        %v6156 = vpack.c.b16 %v5436, %v5412
        %v6157 = vpack.c.b16 %v5437, %v5413
        %v6158 = vpack.c.b16 %v5438, %v5414
        %v6159 = vpack.c.b16 %v5463, %v5439
        %v6160 = vpack.c.b16 %v5464, %v5440
        %v6161 = vpack.c.b16 %v5465, %v5441
        %v6162 = vpack.c.b16 %v5466, %v5442
        %v6163 = vpack.c.b16 %v5467, %v5443
        %v6164 = vpack.c.b16 %v5468, %v5444
        %v6165 = vpack.c.b16 %v5469, %v5445
        %v6166 = vpack.c.b16 %v5470, %v5446
        %v6167 = vpack.c.b16 %v5471, %v5447
        %v6168 = vpack.c.b16 %v5472, %v5448
        %v6169 = vpack.c.b16 %v5473, %v5449
        %v6170 = vpack.c.b16 %v5474, %v5450
        %v6171 = vpack.c.b16 %v5475, %v5451
        %v6172 = vpack.c.b16 %v5476, %v5452
        %v6173 = vpack.c.b16 %v5477, %v5453
        %v6174 = vpack.c.b16 %v5478, %v5454
        %v6175 = vpack.c.b16 %v5479, %v5455
        %v6176 = vpack.c.b16 %v5480, %v5456
        %v6177 = vpack.c.b16 %v5481, %v5457
        %v6178 = vpack.c.b16 %v5482, %v5458
        %v6179 = vpack.c.b16 %v5483, %v5459
        %v6180 = vpack.c.b16 %v5484, %v5460
        %v6181 = vpack.c.b16 %v5485, %v5461
        %v6182 = vpack.c.b16 %v5486, %v5462
        %v6183 = vpack.c.b16 %v5511, %v5487
        %v6184 = vpack.c.b16 %v5512, %v5488
        %v6185 = vpack.c.b16 %v5513, %v5489
        %v6186 = vpack.c.b16 %v5514, %v5490
        %v6187 = vpack.c.b16 %v5515, %v5491
        %v6188 = vpack.c.b16 %v5516, %v5492
        %v6189 = vpack.c.b16 %v5517, %v5493
        %v6190 = vpack.c.b16 %v5518, %v5494
        %v6191 = vpack.c.b16 %v5519, %v5495
        %v6192 = vpack.c.b16 %v5520, %v5496
        %v6193 = vpack.c.b16 %v5521, %v5497
        %v6194 = vpack.c.b16 %v5522, %v5498
        %v6195 = vpack.c.b16 %v5523, %v5499
        %v6196 = vpack.c.b16 %v5524, %v5500
        %v6197 = vpack.c.b16 %v5525, %v5501
        %v6198 = vpack.c.b16 %v5526, %v5502
        %v6199 = vpack.c.b16 %v5527, %v5503
        %v6200 = vpack.c.b16 %v5528, %v5504
        %v6201 = vpack.c.b16 %v5529, %v5505
        %v6202 = vpack.c.b16 %v5530, %v5506
        %v6203 = vpack.c.b16 %v5531, %v5507
        %v6204 = vpack.c.b16 %v5532, %v5508
        %v6205 = vpack.c.b16 %v5533, %v5509
        %v6206 = vpack.c.b16 %v5534, %v5510
        %v6207 = vpack.c.b16 %v5559, %v5535
        %v6208 = vpack.c.b16 %v5560, %v5536
        %v6209 = vpack.c.b16 %v5561, %v5537
        %v6210 = vpack.c.b16 %v5562, %v5538
        %v6211 = vpack.c.b16 %v5563, %v5539
        %v6212 = vpack.c.b16 %v5564, %v5540
        %v6213 = vpack.c.b16 %v5565, %v5541
        %v6214 = vpack.c.b16 %v5566, %v5542
        %v6215 = vpack.c.b16 %v5567, %v5543
        %v6216 = vpack.c.b16 %v5568, %v5544
        %v6217 = vpack.c.b16 %v5569, %v5545
        %v6218 = vpack.c.b16 %v5570, %v5546
        %v6219 = vpack.c.b16 %v5571, %v5547
        %v6220 = vpack.c.b16 %v5572, %v5548
        %v6221 = vpack.c.b16 %v5573, %v5549
        %v6222 = vpack.c.b16 %v5574, %v5550
        %v6223 = vpack.c.b16 %v5575, %v5551
        %v6224 = vpack.c.b16 %v5576, %v5552
        %v6225 = vpack.c.b16 %v5577, %v5553
        %v6226 = vpack.c.b16 %v5578, %v5554
        %v6227 = vpack.c.b16 %v5579, %v5555
        %v6228 = vpack.c.b16 %v5580, %v5556
        %v6229 = vpack.c.b16 %v5581, %v5557
        %v6230 = vpack.c.b16 %v5582, %v5558
        %v6231 = vpack.c.b16 %v5607, %v5583
        %v6232 = vpack.c.b16 %v5608, %v5584
        %v6233 = vpack.c.b16 %v5609, %v5585
        %v6234 = vpack.c.b16 %v5610, %v5586
        %v6235 = vpack.c.b16 %v5611, %v5587
        %v6236 = vpack.c.b16 %v5612, %v5588
        %v6237 = vpack.c.b16 %v5613, %v5589
        %v6238 = vpack.c.b16 %v5614, %v5590
        %v6239 = vpack.c.b16 %v5615, %v5591
        %v6240 = vpack.c.b16 %v5616, %v5592
        %v6241 = vpack.c.b16 %v5617, %v5593
        %v6242 = vpack.c.b16 %v5618, %v5594
        %v6243 = vpack.c.b16 %v5619, %v5595
        %v6244 = vpack.c.b16 %v5620, %v5596
        %v6245 = vpack.c.b16 %v5621, %v5597
        %v6246 = vpack.c.b16 %v5622, %v5598
        %v6247 = vpack.c.b16 %v5623, %v5599
        %v6248 = vpack.c.b16 %v5624, %v5600
        %v6249 = vpack.c.b16 %v5625, %v5601
        %v6250 = vpack.c.b16 %v5626, %v5602
        %v6251 = vpack.c.b16 %v5627, %v5603
        %v6252 = vpack.c.b16 %v5628, %v5604
        %v6253 = vpack.c.b16 %v5629, %v5605
        %v6254 = vpack.c.b16 %v5630, %v5606
        %v6255 = vpack.c.b16 %v5655, %v5631
        %v6256 = vpack.c.b16 %v5656, %v5632
        %v6257 = vpack.c.b16 %v5657, %v5633
        %v6258 = vpack.c.b16 %v5658, %v5634
        %v6259 = vpack.c.b16 %v5659, %v5635
        %v6260 = vpack.c.b16 %v5660, %v5636
        %v6261 = vpack.c.b16 %v5661, %v5637
        %v6262 = vpack.c.b16 %v5662, %v5638
        %v6263 = vpack.c.b16 %v5663, %v5639
        %v6264 = vpack.c.b16 %v5664, %v5640
        %v6265 = vpack.c.b16 %v5665, %v5641
        %v6266 = vpack.c.b16 %v5666, %v5642
        %v6267 = vpack.c.b16 %v5667, %v5643
        %v6268 = vpack.c.b16 %v5668, %v5644
        %v6269 = vpack.c.b16 %v5669, %v5645
        %v6270 = vpack.c.b16 %v5670, %v5646
        %v6271 = vpack.c.b16 %v5671, %v5647
        %v6272 = vpack.c.b16 %v5672, %v5648
        %v6273 = vpack.c.b16 %v5673, %v5649
        %v6274 = vpack.c.b16 %v5674, %v5650
        %v6275 = vpack.c.b16 %v5675, %v5651
        %v6276 = vpack.c.b16 %v5676, %v5652
        %v6277 = vpack.c.b16 %v5677, %v5653
        %v6278 = vpack.c.b16 %v5678, %v5654
        %v6279 = vpack.c.b16 %v5703, %v5679
        %v6280 = vpack.c.b16 %v5704, %v5680
        %v6281 = vpack.c.b16 %v5705, %v5681
        %v6282 = vpack.c.b16 %v5706, %v5682
        %v6283 = vpack.c.b16 %v5707, %v5683
        %v6284 = vpack.c.b16 %v5708, %v5684
        %v6285 = vpack.c.b16 %v5709, %v5685
        %v6286 = vpack.c.b16 %v5710, %v5686
        %v6287 = vpack.c.b16 %v5711, %v5687
        %v6288 = vpack.c.b16 %v5712, %v5688
        %v6289 = vpack.c.b16 %v5713, %v5689
        %v6290 = vpack.c.b16 %v5714, %v5690
        %v6291 = vpack.c.b16 %v5715, %v5691
        %v6292 = vpack.c.b16 %v5716, %v5692
        %v6293 = vpack.c.b16 %v5717, %v5693
        %v6294 = vpack.c.b16 %v5718, %v5694
        %v6295 = vpack.c.b16 %v5719, %v5695
        %v6296 = vpack.c.b16 %v5720, %v5696
        %v6297 = vpack.c.b16 %v5721, %v5697
        %v6298 = vpack.c.b16 %v5722, %v5698
        %v6299 = vpack.c.b16 %v5723, %v5699
        %v6300 = vpack.c.b16 %v5724, %v5700
        %v6301 = vpack.c.b16 %v5725, %v5701
        %v6302 = vpack.c.b16 %v5726, %v5702
        %v6303 = vpack.c.b16 %v5751, %v5727
        %v6304 = vpack.c.b16 %v5752, %v5728
        %v6305 = vpack.c.b16 %v5753, %v5729
        %v6306 = vpack.c.b16 %v5754, %v5730
        %v6307 = vpack.c.b16 %v5755, %v5731
        %v6308 = vpack.c.b16 %v5756, %v5732
        %v6309 = vpack.c.b16 %v5757, %v5733
        %v6310 = vpack.c.b16 %v5758, %v5734
        %v6311 = vpack.c.b16 %v5759, %v5735
        %v6312 = vpack.c.b16 %v5760, %v5736
        %v6313 = vpack.c.b16 %v5761, %v5737
        %v6314 = vpack.c.b16 %v5762, %v5738
        %v6315 = vpack.c.b16 %v5763, %v5739
        %v6316 = vpack.c.b16 %v5764, %v5740
        %v6317 = vpack.c.b16 %v5765, %v5741
        %v6318 = vpack.c.b16 %v5766, %v5742
        %v6319 = vpack.c.b16 %v5767, %v5743
        %v6320 = vpack.c.b16 %v5768, %v5744
        %v6321 = vpack.c.b16 %v5769, %v5745
        %v6322 = vpack.c.b16 %v5770, %v5746
        %v6323 = vpack.c.b16 %v5771, %v5747
        %v6324 = vpack.c.b16 %v5772, %v5748
        %v6325 = vpack.c.b16 %v5773, %v5749
        %v6326 = vpack.c.b16 %v5774, %v5750
        %v6327 = vpack.c.b16 %v5799, %v5775
        %v6328 = vpack.c.b16 %v5800, %v5776
        %v6329 = vpack.c.b16 %v5801, %v5777
        %v6330 = vpack.c.b16 %v5802, %v5778
        %v6331 = vpack.c.b16 %v5803, %v5779
        %v6332 = vpack.c.b16 %v5804, %v5780
        %v6333 = vpack.c.b16 %v5805, %v5781
        %v6334 = vpack.c.b16 %v5806, %v5782
        %v6335 = vpack.c.b16 %v5807, %v5783
        %v6336 = vpack.c.b16 %v5808, %v5784
        %v6337 = vpack.c.b16 %v5809, %v5785
        %v6338 = vpack.c.b16 %v5810, %v5786
        %v6339 = vpack.c.b16 %v5811, %v5787
        %v6340 = vpack.c.b16 %v5812, %v5788
        %v6341 = vpack.c.b16 %v5813, %v5789
        %v6342 = vpack.c.b16 %v5814, %v5790
        %v6343 = vpack.c.b16 %v5815, %v5791
        %v6344 = vpack.c.b16 %v5816, %v5792
        %v6345 = vpack.c.b16 %v5817, %v5793
        %v6346 = vpack.c.b16 %v5818, %v5794
        %v6347 = vpack.c.b16 %v5819, %v5795
        %v6348 = vpack.c.b16 %v5820, %v5796
        %v6349 = vpack.c.b16 %v5821, %v5797
        %v6350 = vpack.c.b16 %v5822, %v5798
        %v6351 = vpack.c.b16 %v5847, %v5823
        %v6352 = vpack.c.b16 %v5848, %v5824
        %v6353 = vpack.c.b16 %v5849, %v5825
        %v6354 = vpack.c.b16 %v5850, %v5826
        %v6355 = vpack.c.b16 %v5851, %v5827
        %v6356 = vpack.c.b16 %v5852, %v5828
        %v6357 = vpack.c.b16 %v5853, %v5829
        %v6358 = vpack.c.b16 %v5854, %v5830
        %v6359 = vpack.c.b16 %v5855, %v5831
        %v6360 = vpack.c.b16 %v5856, %v5832
        %v6361 = vpack.c.b16 %v5857, %v5833
        %v6362 = vpack.c.b16 %v5858, %v5834
        %v6363 = vpack.c.b16 %v5859, %v5835
        %v6364 = vpack.c.b16 %v5860, %v5836
        %v6365 = vpack.c.b16 %v5861, %v5837
        %v6366 = vpack.c.b16 %v5862, %v5838
        %v6367 = vpack.c.b16 %v5863, %v5839
        %v6368 = vpack.c.b16 %v5864, %v5840
        %v6369 = vpack.c.b16 %v5865, %v5841
        %v6370 = vpack.c.b16 %v5866, %v5842
        %v6371 = vpack.c.b16 %v5867, %v5843
        %v6372 = vpack.c.b16 %v5868, %v5844
        %v6373 = vpack.c.b16 %v5869, %v5845
        %v6374 = vpack.c.b16 %v5870, %v5846
        %v6375 = vpack.c.b16 %v5895, %v5871
        %v6376 = vpack.c.b16 %v5896, %v5872
        %v6377 = vpack.c.b16 %v5897, %v5873
        %v6378 = vpack.c.b16 %v5898, %v5874
        %v6379 = vpack.c.b16 %v5899, %v5875
        %v6380 = vpack.c.b16 %v5900, %v5876
        %v6381 = vpack.c.b16 %v5901, %v5877
        %v6382 = vpack.c.b16 %v5902, %v5878
        %v6383 = vpack.c.b16 %v5903, %v5879
        %v6384 = vpack.c.b16 %v5904, %v5880
        %v6385 = vpack.c.b16 %v5905, %v5881
        %v6386 = vpack.c.b16 %v5906, %v5882
        %v6387 = vpack.c.b16 %v5907, %v5883
        %v6388 = vpack.c.b16 %v5908, %v5884
        %v6389 = vpack.c.b16 %v5909, %v5885
        %v6390 = vpack.c.b16 %v5910, %v5886
        %v6391 = vpack.c.b16 %v5911, %v5887
        %v6392 = vpack.c.b16 %v5912, %v5888
        %v6393 = vpack.c.b16 %v5913, %v5889
        %v6394 = vpack.c.b16 %v5914, %v5890
        %v6395 = vpack.c.b16 %v5915, %v5891
        %v6396 = vpack.c.b16 %v5916, %v5892
        %v6397 = vpack.c.b16 %v5917, %v5893
        %v6398 = vpack.c.b16 %v5918, %v5894
        %v6399 = vpack.c.b16 %v5943, %v5919
        %v6400 = vpack.c.b16 %v5944, %v5920
        %v6401 = vpack.c.b16 %v5945, %v5921
        %v6402 = vpack.c.b16 %v5946, %v5922
        %v6403 = vpack.c.b16 %v5947, %v5923
        %v6404 = vpack.c.b16 %v5948, %v5924
        %v6405 = vpack.c.b16 %v5949, %v5925
        %v6406 = vpack.c.b16 %v5950, %v5926
        %v6407 = vpack.c.b16 %v5951, %v5927
        %v6408 = vpack.c.b16 %v5952, %v5928
        %v6409 = vpack.c.b16 %v5953, %v5929
        %v6410 = vpack.c.b16 %v5954, %v5930
        %v6411 = vpack.c.b16 %v5955, %v5931
        %v6412 = vpack.c.b16 %v5956, %v5932
        %v6413 = vpack.c.b16 %v5957, %v5933
        %v6414 = vpack.c.b16 %v5958, %v5934
        %v6415 = vpack.c.b16 %v5959, %v5935
        %v6416 = vpack.c.b16 %v5960, %v5936
        %v6417 = vpack.c.b16 %v5961, %v5937
        %v6418 = vpack.c.b16 %v5962, %v5938
        %v6419 = vpack.c.b16 %v5963, %v5939
        %v6420 = vpack.c.b16 %v5964, %v5940
        %v6421 = vpack.c.b16 %v5965, %v5941
        %v6422 = vpack.c.b16 %v5966, %v5942
        %v6423 = vpack.c.b16 %v5991, %v5967
        %v6424 = vpack.c.b16 %v5992, %v5968
        %v6425 = vpack.c.b16 %v5993, %v5969
        %v6426 = vpack.c.b16 %v5994, %v5970
        %v6427 = vpack.c.b16 %v5995, %v5971
        %v6428 = vpack.c.b16 %v5996, %v5972
        %v6429 = vpack.c.b16 %v5997, %v5973
        %v6430 = vpack.c.b16 %v5998, %v5974
        %v6431 = vpack.c.b16 %v5999, %v5975
        %v6432 = vpack.c.b16 %v6000, %v5976
        %v6433 = vpack.c.b16 %v6001, %v5977
        %v6434 = vpack.c.b16 %v6002, %v5978
        %v6435 = vpack.c.b16 %v6003, %v5979
        %v6436 = vpack.c.b16 %v6004, %v5980
        %v6437 = vpack.c.b16 %v6005, %v5981
        %v6438 = vpack.c.b16 %v6006, %v5982
        %v6439 = vpack.c.b16 %v6007, %v5983
        %v6440 = vpack.c.b16 %v6008, %v5984
        %v6441 = vpack.c.b16 %v6009, %v5985
        %v6442 = vpack.c.b16 %v6010, %v5986
        %v6443 = vpack.c.b16 %v6011, %v5987
        %v6444 = vpack.c.b16 %v6012, %v5988
        %v6445 = vpack.c.b16 %v6013, %v5989
        %v6446 = vpack.c.b16 %v6014, %v5990
        %v6447 = vpack.c.b16 %v6039, %v6015
        %v6448 = vpack.c.b16 %v6040, %v6016
        %v6449 = vpack.c.b16 %v6041, %v6017
        %v6450 = vpack.c.b16 %v6042, %v6018
        %v6451 = vpack.c.b16 %v6043, %v6019
        %v6452 = vpack.c.b16 %v6044, %v6020
        %v6453 = vpack.c.b16 %v6045, %v6021
        %v6454 = vpack.c.b16 %v6046, %v6022
        %v6455 = vpack.c.b16 %v6047, %v6023
        %v6456 = vpack.c.b16 %v6048, %v6024
        %v6457 = vpack.c.b16 %v6049, %v6025
        %v6458 = vpack.c.b16 %v6050, %v6026
        %v6459 = vpack.c.b16 %v6051, %v6027
        %v6460 = vpack.c.b16 %v6052, %v6028
        %v6461 = vpack.c.b16 %v6053, %v6029
        %v6462 = vpack.c.b16 %v6054, %v6030
        %v6463 = vpack.c.b16 %v6055, %v6031
        %v6464 = vpack.c.b16 %v6056, %v6032
        %v6465 = vpack.c.b16 %v6057, %v6033
        %v6466 = vpack.c.b16 %v6058, %v6034
        %v6467 = vpack.c.b16 %v6059, %v6035
        %v6468 = vpack.c.b16 %v6060, %v6036
        %v6469 = vpack.c.b16 %v6061, %v6037
        %v6470 = vpack.c.b16 %v6062, %v6038
        %v6471 = vpack.c.b16 %v6087, %v6063
        %v6472 = vpack.c.b16 %v6088, %v6064
        %v6473 = vpack.c.b16 %v6089, %v6065
        %v6474 = vpack.c.b16 %v6090, %v6066
        %v6475 = vpack.c.b16 %v6091, %v6067
        %v6476 = vpack.c.b16 %v6092, %v6068
        %v6477 = vpack.c.b16 %v6093, %v6069
        %v6478 = vpack.c.b16 %v6094, %v6070
        %v6479 = vpack.c.b16 %v6095, %v6071
        %v6480 = vpack.c.b16 %v6096, %v6072
        %v6481 = vpack.c.b16 %v6097, %v6073
        %v6482 = vpack.c.b16 %v6098, %v6074
        %v6483 = vpack.c.b16 %v6099, %v6075
        %v6484 = vpack.c.b16 %v6100, %v6076
        %v6485 = vpack.c.b16 %v6101, %v6077
        %v6486 = vpack.c.b16 %v6102, %v6078
        %v6487 = vpack.c.b16 %v6103, %v6079
        %v6488 = vpack.c.b16 %v6104, %v6080
        %v6489 = vpack.c.b16 %v6105, %v6081
        %v6490 = vpack.c.b16 %v6106, %v6082
        %v6491 = vpack.c.b16 %v6107, %v6083
        %v6492 = vpack.c.b16 %v6108, %v6084
        %v6493 = vpack.c.b16 %v6109, %v6085
        %v6494 = vpack.c.b16 %v6110, %v6086
        %6879 = vmatpush.bf16.msra.mxu0 %v6279
        %6880 = vmatpush.bf16.msra.mxu0 %v6255
        %6881 = vmatpush.bf16.msra.mxu0 %v6231
        %6882 = vmatpush.bf16.msra.mxu0 %v6207
        %6883 = vmatpush.bf16.msra.mxu0 %v6183
        %6884 = vmatpush.bf16.msra.mxu0 %v6159
        %6885 = vmatpush.bf16.msra.mxu0 %v6135
        %6886 = vmatpush.bf16.msra.mxu0 %v6111
        %6887 = vmatmul.bf16.gmra.mxu0 %v4519
        %v6888 = vpop.f32.mrf.mxu0
        %v6889 = vadd.f32 %v4911, %v6888
        %v6890 = vpop.f32.mrf.mxu0
        %6891 = vdwg.mxu0
        %6892 = vmatpush.bf16.msra.mxu0 %v6471
        %6893 = vmatpush.bf16.msra.mxu0 %v6447
        %6894 = vmatpush.bf16.msra.mxu0 %v6423
        %6895 = vmatpush.bf16.msra.mxu0 %v6399
        %6896 = vmatpush.bf16.msra.mxu0 %v6375
        %6897 = vmatpush.bf16.msra.mxu0 %v6351
        %6898 = vmatpush.bf16.msra.mxu0 %v6327
        %6899 = vmatpush.bf16.msra.mxu0 %v6303
        %6900 = vmatmul.bf16.gmra.mxu0 %v4520
        %v6901 = vpop.f32.mrf.mxu0
        %v6902 = vadd.f32 %v6889, %v6901
        %v6903 = vpop.f32.mrf.mxu0
        %6904 = vdwg.mxu0
        %6905 = vmatpush.bf16.msra.mxu0 %v6280
        %6906 = vmatpush.bf16.msra.mxu0 %v6256
        %6907 = vmatpush.bf16.msra.mxu0 %v6232
        %6908 = vmatpush.bf16.msra.mxu0 %v6208
        %6909 = vmatpush.bf16.msra.mxu0 %v6184
        %6910 = vmatpush.bf16.msra.mxu0 %v6160
        %6911 = vmatpush.bf16.msra.mxu0 %v6136
        %6912 = vmatpush.bf16.msra.mxu0 %v6112
        %6913 = vmatmul.bf16.gmra.mxu0 %v4519
        %v6914 = vpop.f32.mrf.mxu0
        %v6915 = vadd.f32 %v4912, %v6914
        %v6916 = vpop.f32.mrf.mxu0
        %6917 = vdwg.mxu0
        %6918 = vmatpush.bf16.msra.mxu0 %v6472
        %6919 = vmatpush.bf16.msra.mxu0 %v6448
        %6920 = vmatpush.bf16.msra.mxu0 %v6424
        %6921 = vmatpush.bf16.msra.mxu0 %v6400
        %6922 = vmatpush.bf16.msra.mxu0 %v6376
        %6923 = vmatpush.bf16.msra.mxu0 %v6352
        %6924 = vmatpush.bf16.msra.mxu0 %v6328
        %6925 = vmatpush.bf16.msra.mxu0 %v6304
        %6926 = vmatmul.bf16.gmra.mxu0 %v4520
        %v6927 = vpop.f32.mrf.mxu0
        %v6928 = vadd.f32 %v6915, %v6927
        %v6929 = vpop.f32.mrf.mxu0
        %6930 = vdwg.mxu0
        %6931 = vmatpush.bf16.msra.mxu0 %v6281
        %6932 = vmatpush.bf16.msra.mxu0 %v6257
        %6933 = vmatpush.bf16.msra.mxu0 %v6233
        %6934 = vmatpush.bf16.msra.mxu0 %v6209
        %6935 = vmatpush.bf16.msra.mxu0 %v6185
        %6936 = vmatpush.bf16.msra.mxu0 %v6161
        %6937 = vmatpush.bf16.msra.mxu0 %v6137
        %6938 = vmatpush.bf16.msra.mxu0 %v6113
        %6939 = vmatmul.bf16.gmra.mxu0 %v4519
        %v6940 = vpop.f32.mrf.mxu0
        %v6941 = vadd.f32 %v4913, %v6940
        %v6942 = vpop.f32.mrf.mxu0
        %6943 = vdwg.mxu0
        %6944 = vmatpush.bf16.msra.mxu0 %v6473
        %6945 = vmatpush.bf16.msra.mxu0 %v6449
        %6946 = vmatpush.bf16.msra.mxu0 %v6425
        %6947 = vmatpush.bf16.msra.mxu0 %v6401
        %6948 = vmatpush.bf16.msra.mxu0 %v6377
        %6949 = vmatpush.bf16.msra.mxu0 %v6353
        %6950 = vmatpush.bf16.msra.mxu0 %v6329
        %6951 = vmatpush.bf16.msra.mxu0 %v6305
        %6952 = vmatmul.bf16.gmra.mxu0 %v4520
        %v6953 = vpop.f32.mrf.mxu0
        %v6954 = vadd.f32 %v6941, %v6953
        %v6955 = vpop.f32.mrf.mxu0
        %6956 = vdwg.mxu0
        %6957 = vmatpush.bf16.msra.mxu0 %v6282
        %6958 = vmatpush.bf16.msra.mxu0 %v6258
        %6959 = vmatpush.bf16.msra.mxu0 %v6234
        %6960 = vmatpush.bf16.msra.mxu0 %v6210
        %6961 = vmatpush.bf16.msra.mxu0 %v6186
        %6962 = vmatpush.bf16.msra.mxu0 %v6162
        %6963 = vmatpush.bf16.msra.mxu0 %v6138
        %6964 = vmatpush.bf16.msra.mxu0 %v6114
        %6965 = vmatmul.bf16.gmra.mxu0 %v4519
        %v6966 = vpop.f32.mrf.mxu0
        %v6967 = vadd.f32 %v4914, %v6966
        %v6968 = vpop.f32.mrf.mxu0
        %6969 = vdwg.mxu0
        %6970 = vmatpush.bf16.msra.mxu0 %v6474
        %6971 = vmatpush.bf16.msra.mxu0 %v6450
        %6972 = vmatpush.bf16.msra.mxu0 %v6426
        %6973 = vmatpush.bf16.msra.mxu0 %v6402
        %6974 = vmatpush.bf16.msra.mxu0 %v6378
        %6975 = vmatpush.bf16.msra.mxu0 %v6354
        %6976 = vmatpush.bf16.msra.mxu0 %v6330
        %6977 = vmatpush.bf16.msra.mxu0 %v6306
        %6978 = vmatmul.bf16.gmra.mxu0 %v4520
        %v6979 = vpop.f32.mrf.mxu0
        %v6980 = vadd.f32 %v6967, %v6979
        %v6981 = vpop.f32.mrf.mxu0
        %6982 = vdwg.mxu0
        %6983 = vmatpush.bf16.msra.mxu0 %v6283
        %6984 = vmatpush.bf16.msra.mxu0 %v6259
        %6985 = vmatpush.bf16.msra.mxu0 %v6235
        %6986 = vmatpush.bf16.msra.mxu0 %v6211
        %6987 = vmatpush.bf16.msra.mxu0 %v6187
        %6988 = vmatpush.bf16.msra.mxu0 %v6163
        %6989 = vmatpush.bf16.msra.mxu0 %v6139
        %6990 = vmatpush.bf16.msra.mxu0 %v6115
        %6991 = vmatmul.bf16.gmra.mxu0 %v4519
        %v6992 = vpop.f32.mrf.mxu0
        %v6993 = vadd.f32 %v4915, %v6992
        %v6994 = vpop.f32.mrf.mxu0
        %6995 = vdwg.mxu0
        %6996 = vmatpush.bf16.msra.mxu0 %v6475
        %6997 = vmatpush.bf16.msra.mxu0 %v6451
        %6998 = vmatpush.bf16.msra.mxu0 %v6427
        %6999 = vmatpush.bf16.msra.mxu0 %v6403
        %7000 = vmatpush.bf16.msra.mxu0 %v6379
        %7001 = vmatpush.bf16.msra.mxu0 %v6355
        %7002 = vmatpush.bf16.msra.mxu0 %v6331
        %7003 = vmatpush.bf16.msra.mxu0 %v6307
        %7004 = vmatmul.bf16.gmra.mxu0 %v4520
        %v7005 = vpop.f32.mrf.mxu0
        %v7006 = vadd.f32 %v6993, %v7005
        %v7007 = vpop.f32.mrf.mxu0
        %7008 = vdwg.mxu0
        %7009 = vmatpush.bf16.msra.mxu0 %v6284
        %7010 = vmatpush.bf16.msra.mxu0 %v6260
        %7011 = vmatpush.bf16.msra.mxu0 %v6236
        %7012 = vmatpush.bf16.msra.mxu0 %v6212
        %7013 = vmatpush.bf16.msra.mxu0 %v6188
        %7014 = vmatpush.bf16.msra.mxu0 %v6164
        %7015 = vmatpush.bf16.msra.mxu0 %v6140
        %7016 = vmatpush.bf16.msra.mxu0 %v6116
        %7017 = vmatmul.bf16.gmra.mxu0 %v4519
        %v7018 = vpop.f32.mrf.mxu0
        %v7019 = vadd.f32 %v4916, %v7018
        %v7020 = vpop.f32.mrf.mxu0
        %7021 = vdwg.mxu0
        %7022 = vmatpush.bf16.msra.mxu0 %v6476
        %7023 = vmatpush.bf16.msra.mxu0 %v6452
        %7024 = vmatpush.bf16.msra.mxu0 %v6428
        %7025 = vmatpush.bf16.msra.mxu0 %v6404
        %7026 = vmatpush.bf16.msra.mxu0 %v6380
        %7027 = vmatpush.bf16.msra.mxu0 %v6356
        %7028 = vmatpush.bf16.msra.mxu0 %v6332
        %7029 = vmatpush.bf16.msra.mxu0 %v6308
        %7030 = vmatmul.bf16.gmra.mxu0 %v4520
        %v7031 = vpop.f32.mrf.mxu0
        %v7032 = vadd.f32 %v7019, %v7031
        %v7033 = vpop.f32.mrf.mxu0
        %7034 = vdwg.mxu0
        %7035 = vmatpush.bf16.msra.mxu0 %v6285
        %7036 = vmatpush.bf16.msra.mxu0 %v6261
        %7037 = vmatpush.bf16.msra.mxu0 %v6237
        %7038 = vmatpush.bf16.msra.mxu0 %v6213
        %7039 = vmatpush.bf16.msra.mxu0 %v6189
        %7040 = vmatpush.bf16.msra.mxu0 %v6165
        %7041 = vmatpush.bf16.msra.mxu0 %v6141
        %7042 = vmatpush.bf16.msra.mxu0 %v6117
        %7043 = vmatmul.bf16.gmra.mxu0 %v4519
        %v7044 = vpop.f32.mrf.mxu0
        %v7045 = vadd.f32 %v4917, %v7044
        %v7046 = vpop.f32.mrf.mxu0
        %7047 = vdwg.mxu0
        %7048 = vmatpush.bf16.msra.mxu0 %v6477
        %7049 = vmatpush.bf16.msra.mxu0 %v6453
        %7050 = vmatpush.bf16.msra.mxu0 %v6429
        %7051 = vmatpush.bf16.msra.mxu0 %v6405
        %7052 = vmatpush.bf16.msra.mxu0 %v6381
        %7053 = vmatpush.bf16.msra.mxu0 %v6357
        %7054 = vmatpush.bf16.msra.mxu0 %v6333
        %7055 = vmatpush.bf16.msra.mxu0 %v6309
        %7056 = vmatmul.bf16.gmra.mxu0 %v4520
        %v7057 = vpop.f32.mrf.mxu0
        %v7058 = vadd.f32 %v7045, %v7057
        %v7059 = vpop.f32.mrf.mxu0
        %7060 = vdwg.mxu0
        %7061 = vmatpush.bf16.msra.mxu0 %v6286
        %7062 = vmatpush.bf16.msra.mxu0 %v6262
        %7063 = vmatpush.bf16.msra.mxu0 %v6238
        %7064 = vmatpush.bf16.msra.mxu0 %v6214
        %7065 = vmatpush.bf16.msra.mxu0 %v6190
        %7066 = vmatpush.bf16.msra.mxu0 %v6166
        %7067 = vmatpush.bf16.msra.mxu0 %v6142
        %7068 = vmatpush.bf16.msra.mxu0 %v6118
        %7069 = vmatmul.bf16.gmra.mxu0 %v4519
        %v7070 = vpop.f32.mrf.mxu0
        %v7071 = vadd.f32 %v4918, %v7070
        %v7072 = vpop.f32.mrf.mxu0
        %7073 = vdwg.mxu0
        %7074 = vmatpush.bf16.msra.mxu0 %v6478
        %7075 = vmatpush.bf16.msra.mxu0 %v6454
        %7076 = vmatpush.bf16.msra.mxu0 %v6430
        %7077 = vmatpush.bf16.msra.mxu0 %v6406
        %7078 = vmatpush.bf16.msra.mxu0 %v6382
        %7079 = vmatpush.bf16.msra.mxu0 %v6358
        %7080 = vmatpush.bf16.msra.mxu0 %v6334
        %7081 = vmatpush.bf16.msra.mxu0 %v6310
        %7082 = vmatmul.bf16.gmra.mxu0 %v4520
        %v7083 = vpop.f32.mrf.mxu0
        %v7084 = vadd.f32 %v7071, %v7083
        %v7085 = vpop.f32.mrf.mxu0
        %7086 = vdwg.mxu0
        %7087 = vmatpush.bf16.msra.mxu0 %v6287
        %7088 = vmatpush.bf16.msra.mxu0 %v6263
        %7089 = vmatpush.bf16.msra.mxu0 %v6239
        %7090 = vmatpush.bf16.msra.mxu0 %v6215
        %7091 = vmatpush.bf16.msra.mxu0 %v6191
        %7092 = vmatpush.bf16.msra.mxu0 %v6167
        %7093 = vmatpush.bf16.msra.mxu0 %v6143
        %7094 = vmatpush.bf16.msra.mxu0 %v6119
        %7095 = vmatmul.bf16.gmra.mxu0 %v4519
        %v7096 = vpop.f32.mrf.mxu0
        %v7097 = vadd.f32 %v4919, %v7096
        %v7098 = vpop.f32.mrf.mxu0
        %7099 = vdwg.mxu0
        %7100 = vmatpush.bf16.msra.mxu0 %v6479
        %7101 = vmatpush.bf16.msra.mxu0 %v6455
        %7102 = vmatpush.bf16.msra.mxu0 %v6431
        %7103 = vmatpush.bf16.msra.mxu0 %v6407
        %7104 = vmatpush.bf16.msra.mxu0 %v6383
        %7105 = vmatpush.bf16.msra.mxu0 %v6359
        %7106 = vmatpush.bf16.msra.mxu0 %v6335
        %7107 = vmatpush.bf16.msra.mxu0 %v6311
        %7108 = vmatmul.bf16.gmra.mxu0 %v4520
        %v7109 = vpop.f32.mrf.mxu0
        %v7110 = vadd.f32 %v7097, %v7109
        %v7111 = vpop.f32.mrf.mxu0
        %7112 = vdwg.mxu0
        %7113 = vmatpush.bf16.msra.mxu0 %v6288
        %7114 = vmatpush.bf16.msra.mxu0 %v6264
        %7115 = vmatpush.bf16.msra.mxu0 %v6240
        %7116 = vmatpush.bf16.msra.mxu0 %v6216
        %7117 = vmatpush.bf16.msra.mxu0 %v6192
        %7118 = vmatpush.bf16.msra.mxu0 %v6168
        %7119 = vmatpush.bf16.msra.mxu0 %v6144
        %7120 = vmatpush.bf16.msra.mxu0 %v6120
        %7121 = vmatmul.bf16.gmra.mxu0 %v4519
        %v7122 = vpop.f32.mrf.mxu0
        %v7123 = vadd.f32 %v4920, %v7122
        %v7124 = vpop.f32.mrf.mxu0
        %7125 = vdwg.mxu0
        %7126 = vmatpush.bf16.msra.mxu0 %v6480
        %7127 = vmatpush.bf16.msra.mxu0 %v6456
        %7128 = vmatpush.bf16.msra.mxu0 %v6432
        %7129 = vmatpush.bf16.msra.mxu0 %v6408
        %7130 = vmatpush.bf16.msra.mxu0 %v6384
        %7131 = vmatpush.bf16.msra.mxu0 %v6360
        %7132 = vmatpush.bf16.msra.mxu0 %v6336
        %7133 = vmatpush.bf16.msra.mxu0 %v6312
        %7134 = vmatmul.bf16.gmra.mxu0 %v4520
        %v7135 = vpop.f32.mrf.mxu0
        %v7136 = vadd.f32 %v7123, %v7135
        %v7137 = vpop.f32.mrf.mxu0
        %7138 = vdwg.mxu0
        %7139 = vmatpush.bf16.msra.mxu0 %v6289
        %7140 = vmatpush.bf16.msra.mxu0 %v6265
        %7141 = vmatpush.bf16.msra.mxu0 %v6241
        %7142 = vmatpush.bf16.msra.mxu0 %v6217
        %7143 = vmatpush.bf16.msra.mxu0 %v6193
        %7144 = vmatpush.bf16.msra.mxu0 %v6169
        %7145 = vmatpush.bf16.msra.mxu0 %v6145
        %7146 = vmatpush.bf16.msra.mxu0 %v6121
        %7147 = vmatmul.bf16.gmra.mxu0 %v4519
        %v7148 = vpop.f32.mrf.mxu0
        %v7149 = vadd.f32 %v4921, %v7148
        %v7150 = vpop.f32.mrf.mxu0
        %7151 = vdwg.mxu0
        %7152 = vmatpush.bf16.msra.mxu0 %v6481
        %7153 = vmatpush.bf16.msra.mxu0 %v6457
        %7154 = vmatpush.bf16.msra.mxu0 %v6433
        %7155 = vmatpush.bf16.msra.mxu0 %v6409
        %7156 = vmatpush.bf16.msra.mxu0 %v6385
        %7157 = vmatpush.bf16.msra.mxu0 %v6361
        %7158 = vmatpush.bf16.msra.mxu0 %v6337
        %7159 = vmatpush.bf16.msra.mxu0 %v6313
        %7160 = vmatmul.bf16.gmra.mxu0 %v4520
        %v7161 = vpop.f32.mrf.mxu0
        %v7162 = vadd.f32 %v7149, %v7161
        %v7163 = vpop.f32.mrf.mxu0
        %7164 = vdwg.mxu0
        %7165 = vmatpush.bf16.msra.mxu0 %v6290
        %7166 = vmatpush.bf16.msra.mxu0 %v6266
        %7167 = vmatpush.bf16.msra.mxu0 %v6242
        %7168 = vmatpush.bf16.msra.mxu0 %v6218
        %7169 = vmatpush.bf16.msra.mxu0 %v6194
        %7170 = vmatpush.bf16.msra.mxu0 %v6170
        %7171 = vmatpush.bf16.msra.mxu0 %v6146
        %7172 = vmatpush.bf16.msra.mxu0 %v6122
        %7173 = vmatmul.bf16.gmra.mxu0 %v4519
        %v7174 = vpop.f32.mrf.mxu0
        %v7175 = vadd.f32 %v4922, %v7174
        %v7176 = vpop.f32.mrf.mxu0
        %7177 = vdwg.mxu0
        %7178 = vmatpush.bf16.msra.mxu0 %v6482
        %7179 = vmatpush.bf16.msra.mxu0 %v6458
        %7180 = vmatpush.bf16.msra.mxu0 %v6434
        %7181 = vmatpush.bf16.msra.mxu0 %v6410
        %7182 = vmatpush.bf16.msra.mxu0 %v6386
        %7183 = vmatpush.bf16.msra.mxu0 %v6362
        %7184 = vmatpush.bf16.msra.mxu0 %v6338
        %7185 = vmatpush.bf16.msra.mxu0 %v6314
        %7186 = vmatmul.bf16.gmra.mxu0 %v4520
        %v7187 = vpop.f32.mrf.mxu0
        %v7188 = vadd.f32 %v7175, %v7187
        %v7189 = vpop.f32.mrf.mxu0
        %7190 = vdwg.mxu0
        %7191 = vmatpush.bf16.msra.mxu0 %v6291
        %7192 = vmatpush.bf16.msra.mxu0 %v6267
        %7193 = vmatpush.bf16.msra.mxu0 %v6243
        %7194 = vmatpush.bf16.msra.mxu0 %v6219
        %7195 = vmatpush.bf16.msra.mxu0 %v6195
        %7196 = vmatpush.bf16.msra.mxu0 %v6171
        %7197 = vmatpush.bf16.msra.mxu0 %v6147
        %7198 = vmatpush.bf16.msra.mxu0 %v6123
        %7199 = vmatmul.bf16.gmra.mxu0 %v4519
        %v7200 = vpop.f32.mrf.mxu0
        %v7201 = vadd.f32 %v4923, %v7200
        %v7202 = vpop.f32.mrf.mxu0
        %7203 = vdwg.mxu0
        %7204 = vmatpush.bf16.msra.mxu0 %v6483
        %7205 = vmatpush.bf16.msra.mxu0 %v6459
        %7206 = vmatpush.bf16.msra.mxu0 %v6435
        %7207 = vmatpush.bf16.msra.mxu0 %v6411
        %7208 = vmatpush.bf16.msra.mxu0 %v6387
        %7209 = vmatpush.bf16.msra.mxu0 %v6363
        %7210 = vmatpush.bf16.msra.mxu0 %v6339
        %7211 = vmatpush.bf16.msra.mxu0 %v6315
        %7212 = vmatmul.bf16.gmra.mxu0 %v4520
        %v7213 = vpop.f32.mrf.mxu0
        %v7214 = vadd.f32 %v7201, %v7213
        %v7215 = vpop.f32.mrf.mxu0
        %7216 = vdwg.mxu0
        %7217 = vmatpush.bf16.msra.mxu0 %v6292
        %7218 = vmatpush.bf16.msra.mxu0 %v6268
        %7219 = vmatpush.bf16.msra.mxu0 %v6244
        %7220 = vmatpush.bf16.msra.mxu0 %v6220
        %7221 = vmatpush.bf16.msra.mxu0 %v6196
        %7222 = vmatpush.bf16.msra.mxu0 %v6172
        %7223 = vmatpush.bf16.msra.mxu0 %v6148
        %7224 = vmatpush.bf16.msra.mxu0 %v6124
        %7225 = vmatmul.bf16.gmra.mxu0 %v4519
        %v7226 = vpop.f32.mrf.mxu0
        %v7227 = vadd.f32 %v4924, %v7226
        %v7228 = vpop.f32.mrf.mxu0
        %7229 = vdwg.mxu0
        %7230 = vmatpush.bf16.msra.mxu0 %v6484
        %7231 = vmatpush.bf16.msra.mxu0 %v6460
        %7232 = vmatpush.bf16.msra.mxu0 %v6436
        %7233 = vmatpush.bf16.msra.mxu0 %v6412
        %7234 = vmatpush.bf16.msra.mxu0 %v6388
        %7235 = vmatpush.bf16.msra.mxu0 %v6364
        %7236 = vmatpush.bf16.msra.mxu0 %v6340
        %7237 = vmatpush.bf16.msra.mxu0 %v6316
        %7238 = vmatmul.bf16.gmra.mxu0 %v4520
        %v7239 = vpop.f32.mrf.mxu0
        %v7240 = vadd.f32 %v7227, %v7239
        %v7241 = vpop.f32.mrf.mxu0
        %7242 = vdwg.mxu0
        %7243 = vmatpush.bf16.msra.mxu0 %v6293
        %7244 = vmatpush.bf16.msra.mxu0 %v6269
        %7245 = vmatpush.bf16.msra.mxu0 %v6245
        %7246 = vmatpush.bf16.msra.mxu0 %v6221
        %7247 = vmatpush.bf16.msra.mxu0 %v6197
        %7248 = vmatpush.bf16.msra.mxu0 %v6173
        %7249 = vmatpush.bf16.msra.mxu0 %v6149
        %7250 = vmatpush.bf16.msra.mxu0 %v6125
        %7251 = vmatmul.bf16.gmra.mxu0 %v4519
        %v7252 = vpop.f32.mrf.mxu0
        %v7253 = vadd.f32 %v4925, %v7252
        %v7254 = vpop.f32.mrf.mxu0
        %7255 = vdwg.mxu0
        %7256 = vmatpush.bf16.msra.mxu0 %v6485
        %7257 = vmatpush.bf16.msra.mxu0 %v6461
        %7258 = vmatpush.bf16.msra.mxu0 %v6437
        %7259 = vmatpush.bf16.msra.mxu0 %v6413
        %7260 = vmatpush.bf16.msra.mxu0 %v6389
        %7261 = vmatpush.bf16.msra.mxu0 %v6365
        %7262 = vmatpush.bf16.msra.mxu0 %v6341
        %7263 = vmatpush.bf16.msra.mxu0 %v6317
        %7264 = vmatmul.bf16.gmra.mxu0 %v4520
        %v7265 = vpop.f32.mrf.mxu0
        %v7266 = vadd.f32 %v7253, %v7265
        %v7267 = vpop.f32.mrf.mxu0
        %7268 = vdwg.mxu0
        %7269 = vmatpush.bf16.msra.mxu0 %v6294
        %7270 = vmatpush.bf16.msra.mxu0 %v6270
        %7271 = vmatpush.bf16.msra.mxu0 %v6246
        %7272 = vmatpush.bf16.msra.mxu0 %v6222
        %7273 = vmatpush.bf16.msra.mxu0 %v6198
        %7274 = vmatpush.bf16.msra.mxu0 %v6174
        %7275 = vmatpush.bf16.msra.mxu0 %v6150
        %7276 = vmatpush.bf16.msra.mxu0 %v6126
        %7277 = vmatmul.bf16.gmra.mxu0 %v4519
        %v7278 = vpop.f32.mrf.mxu0
        %v7279 = vadd.f32 %v4926, %v7278
        %v7280 = vpop.f32.mrf.mxu0
        %7281 = vdwg.mxu0
        %7282 = vmatpush.bf16.msra.mxu0 %v6486
        %7283 = vmatpush.bf16.msra.mxu0 %v6462
        %7284 = vmatpush.bf16.msra.mxu0 %v6438
        %7285 = vmatpush.bf16.msra.mxu0 %v6414
        %7286 = vmatpush.bf16.msra.mxu0 %v6390
        %7287 = vmatpush.bf16.msra.mxu0 %v6366
        %7288 = vmatpush.bf16.msra.mxu0 %v6342
        %7289 = vmatpush.bf16.msra.mxu0 %v6318
        %7290 = vmatmul.bf16.gmra.mxu0 %v4520
        %v7291 = vpop.f32.mrf.mxu0
        %v7292 = vadd.f32 %v7279, %v7291
        %v7293 = vpop.f32.mrf.mxu0
        %7294 = vdwg.mxu0
        %7295 = vmatpush.bf16.msra.mxu0 %v6295
        %7296 = vmatpush.bf16.msra.mxu0 %v6271
        %7297 = vmatpush.bf16.msra.mxu0 %v6247
        %7298 = vmatpush.bf16.msra.mxu0 %v6223
        %7299 = vmatpush.bf16.msra.mxu0 %v6199
        %7300 = vmatpush.bf16.msra.mxu0 %v6175
        %7301 = vmatpush.bf16.msra.mxu0 %v6151
        %7302 = vmatpush.bf16.msra.mxu0 %v6127
        %7303 = vmatmul.bf16.gmra.mxu0 %v4519
        %v7304 = vpop.f32.mrf.mxu0
        %v7305 = vadd.f32 %v4927, %v7304
        %v7306 = vpop.f32.mrf.mxu0
        %7307 = vdwg.mxu0
        %7308 = vmatpush.bf16.msra.mxu0 %v6487
        %7309 = vmatpush.bf16.msra.mxu0 %v6463
        %7310 = vmatpush.bf16.msra.mxu0 %v6439
        %7311 = vmatpush.bf16.msra.mxu0 %v6415
        %7312 = vmatpush.bf16.msra.mxu0 %v6391
        %7313 = vmatpush.bf16.msra.mxu0 %v6367
        %7314 = vmatpush.bf16.msra.mxu0 %v6343
        %7315 = vmatpush.bf16.msra.mxu0 %v6319
        %7316 = vmatmul.bf16.gmra.mxu0 %v4520
        %v7317 = vpop.f32.mrf.mxu0
        %v7318 = vadd.f32 %v7305, %v7317
        %v7319 = vpop.f32.mrf.mxu0
        %7320 = vdwg.mxu0
        %7321 = vmatpush.bf16.msra.mxu0 %v6296
        %7322 = vmatpush.bf16.msra.mxu0 %v6272
        %7323 = vmatpush.bf16.msra.mxu0 %v6248
        %7324 = vmatpush.bf16.msra.mxu0 %v6224
        %7325 = vmatpush.bf16.msra.mxu0 %v6200
        %7326 = vmatpush.bf16.msra.mxu0 %v6176
        %7327 = vmatpush.bf16.msra.mxu0 %v6152
        %7328 = vmatpush.bf16.msra.mxu0 %v6128
        %7329 = vmatmul.bf16.gmra.mxu0 %v4519
        %v7330 = vpop.f32.mrf.mxu0
        %v7331 = vadd.f32 %v4928, %v7330
        %v7332 = vpop.f32.mrf.mxu0
        %7333 = vdwg.mxu0
        %7334 = vmatpush.bf16.msra.mxu0 %v6488
        %7335 = vmatpush.bf16.msra.mxu0 %v6464
        %7336 = vmatpush.bf16.msra.mxu0 %v6440
        %7337 = vmatpush.bf16.msra.mxu0 %v6416
        %7338 = vmatpush.bf16.msra.mxu0 %v6392
        %7339 = vmatpush.bf16.msra.mxu0 %v6368
        %7340 = vmatpush.bf16.msra.mxu0 %v6344
        %7341 = vmatpush.bf16.msra.mxu0 %v6320
        %7342 = vmatmul.bf16.gmra.mxu0 %v4520
        %v7343 = vpop.f32.mrf.mxu0
        %v7344 = vadd.f32 %v7331, %v7343
        %v7345 = vpop.f32.mrf.mxu0
        %7346 = vdwg.mxu0
        %7347 = vmatpush.bf16.msra.mxu0 %v6297
        %7348 = vmatpush.bf16.msra.mxu0 %v6273
        %7349 = vmatpush.bf16.msra.mxu0 %v6249
        %7350 = vmatpush.bf16.msra.mxu0 %v6225
        %7351 = vmatpush.bf16.msra.mxu0 %v6201
        %7352 = vmatpush.bf16.msra.mxu0 %v6177
        %7353 = vmatpush.bf16.msra.mxu0 %v6153
        %7354 = vmatpush.bf16.msra.mxu0 %v6129
        %7355 = vmatmul.bf16.gmra.mxu0 %v4519
        %v7356 = vpop.f32.mrf.mxu0
        %v7357 = vadd.f32 %v4929, %v7356
        %v7358 = vpop.f32.mrf.mxu0
        %7359 = vdwg.mxu0
        %7360 = vmatpush.bf16.msra.mxu0 %v6489
        %7361 = vmatpush.bf16.msra.mxu0 %v6465
        %7362 = vmatpush.bf16.msra.mxu0 %v6441
        %7363 = vmatpush.bf16.msra.mxu0 %v6417
        %7364 = vmatpush.bf16.msra.mxu0 %v6393
        %7365 = vmatpush.bf16.msra.mxu0 %v6369
        %7366 = vmatpush.bf16.msra.mxu0 %v6345
        %7367 = vmatpush.bf16.msra.mxu0 %v6321
        %7368 = vmatmul.bf16.gmra.mxu0 %v4520
        %v7369 = vpop.f32.mrf.mxu0
        %v7370 = vadd.f32 %v7357, %v7369
        %v7371 = vpop.f32.mrf.mxu0
        %7372 = vdwg.mxu0
        %7373 = vmatpush.bf16.msra.mxu0 %v6298
        %7374 = vmatpush.bf16.msra.mxu0 %v6274
        %7375 = vmatpush.bf16.msra.mxu0 %v6250
        %7376 = vmatpush.bf16.msra.mxu0 %v6226
        %7377 = vmatpush.bf16.msra.mxu0 %v6202
        %7378 = vmatpush.bf16.msra.mxu0 %v6178
        %7379 = vmatpush.bf16.msra.mxu0 %v6154
        %7380 = vmatpush.bf16.msra.mxu0 %v6130
        %7381 = vmatmul.bf16.gmra.mxu0 %v4519
        %v7382 = vpop.f32.mrf.mxu0
        %v7383 = vadd.f32 %v4930, %v7382
        %v7384 = vpop.f32.mrf.mxu0
        %7385 = vdwg.mxu0
        %7386 = vmatpush.bf16.msra.mxu0 %v6490
        %7387 = vmatpush.bf16.msra.mxu0 %v6466
        %7388 = vmatpush.bf16.msra.mxu0 %v6442
        %7389 = vmatpush.bf16.msra.mxu0 %v6418
        %7390 = vmatpush.bf16.msra.mxu0 %v6394
        %7391 = vmatpush.bf16.msra.mxu0 %v6370
        %7392 = vmatpush.bf16.msra.mxu0 %v6346
        %7393 = vmatpush.bf16.msra.mxu0 %v6322
        %7394 = vmatmul.bf16.gmra.mxu0 %v4520
        %v7395 = vpop.f32.mrf.mxu0
        %v7396 = vadd.f32 %v7383, %v7395
        %v7397 = vpop.f32.mrf.mxu0
        %7398 = vdwg.mxu0
        %7399 = vmatpush.bf16.msra.mxu0 %v6299
        %7400 = vmatpush.bf16.msra.mxu0 %v6275
        %7401 = vmatpush.bf16.msra.mxu0 %v6251
        %7402 = vmatpush.bf16.msra.mxu0 %v6227
        %7403 = vmatpush.bf16.msra.mxu0 %v6203
        %7404 = vmatpush.bf16.msra.mxu0 %v6179
        %7405 = vmatpush.bf16.msra.mxu0 %v6155
        %7406 = vmatpush.bf16.msra.mxu0 %v6131
        %7407 = vmatmul.bf16.gmra.mxu0 %v4519
        %v7408 = vpop.f32.mrf.mxu0
        %v7409 = vadd.f32 %v4931, %v7408
        %v7410 = vpop.f32.mrf.mxu0
        %7411 = vdwg.mxu0
        %7412 = vmatpush.bf16.msra.mxu0 %v6491
        %7413 = vmatpush.bf16.msra.mxu0 %v6467
        %7414 = vmatpush.bf16.msra.mxu0 %v6443
        %7415 = vmatpush.bf16.msra.mxu0 %v6419
        %7416 = vmatpush.bf16.msra.mxu0 %v6395
        %7417 = vmatpush.bf16.msra.mxu0 %v6371
        %7418 = vmatpush.bf16.msra.mxu0 %v6347
        %7419 = vmatpush.bf16.msra.mxu0 %v6323
        %7420 = vmatmul.bf16.gmra.mxu0 %v4520
        %v7421 = vpop.f32.mrf.mxu0
        %v7422 = vadd.f32 %v7409, %v7421
        %v7423 = vpop.f32.mrf.mxu0
        %7424 = vdwg.mxu0
        %7425 = vmatpush.bf16.msra.mxu0 %v6300
        %7426 = vmatpush.bf16.msra.mxu0 %v6276
        %7427 = vmatpush.bf16.msra.mxu0 %v6252
        %7428 = vmatpush.bf16.msra.mxu0 %v6228
        %7429 = vmatpush.bf16.msra.mxu0 %v6204
        %7430 = vmatpush.bf16.msra.mxu0 %v6180
        %7431 = vmatpush.bf16.msra.mxu0 %v6156
        %7432 = vmatpush.bf16.msra.mxu0 %v6132
        %7433 = vmatmul.bf16.gmra.mxu0 %v4519
        %v7434 = vpop.f32.mrf.mxu0
        %v7435 = vadd.f32 %v4932, %v7434
        %v7436 = vpop.f32.mrf.mxu0
        %7437 = vdwg.mxu0
        %7438 = vmatpush.bf16.msra.mxu0 %v6492
        %7439 = vmatpush.bf16.msra.mxu0 %v6468
        %7440 = vmatpush.bf16.msra.mxu0 %v6444
        %7441 = vmatpush.bf16.msra.mxu0 %v6420
        %7442 = vmatpush.bf16.msra.mxu0 %v6396
        %7443 = vmatpush.bf16.msra.mxu0 %v6372
        %7444 = vmatpush.bf16.msra.mxu0 %v6348
        %7445 = vmatpush.bf16.msra.mxu0 %v6324
        %7446 = vmatmul.bf16.gmra.mxu0 %v4520
        %v7447 = vpop.f32.mrf.mxu0
        %v7448 = vadd.f32 %v7435, %v7447
        %v7449 = vpop.f32.mrf.mxu0
        %7450 = vdwg.mxu0
        %7451 = vmatpush.bf16.msra.mxu0 %v6301
        %7452 = vmatpush.bf16.msra.mxu0 %v6277
        %7453 = vmatpush.bf16.msra.mxu0 %v6253
        %7454 = vmatpush.bf16.msra.mxu0 %v6229
        %7455 = vmatpush.bf16.msra.mxu0 %v6205
        %7456 = vmatpush.bf16.msra.mxu0 %v6181
        %7457 = vmatpush.bf16.msra.mxu0 %v6157
        %7458 = vmatpush.bf16.msra.mxu0 %v6133
        %7459 = vmatmul.bf16.gmra.mxu0 %v4519
        %v7460 = vpop.f32.mrf.mxu0
        %v7461 = vadd.f32 %v4933, %v7460
        %v7462 = vpop.f32.mrf.mxu0
        %7463 = vdwg.mxu0
        %7464 = vmatpush.bf16.msra.mxu0 %v6493
        %7465 = vmatpush.bf16.msra.mxu0 %v6469
        %7466 = vmatpush.bf16.msra.mxu0 %v6445
        %7467 = vmatpush.bf16.msra.mxu0 %v6421
        %7468 = vmatpush.bf16.msra.mxu0 %v6397
        %7469 = vmatpush.bf16.msra.mxu0 %v6373
        %7470 = vmatpush.bf16.msra.mxu0 %v6349
        %7471 = vmatpush.bf16.msra.mxu0 %v6325
        %7472 = vmatmul.bf16.gmra.mxu0 %v4520
        %v7473 = vpop.f32.mrf.mxu0
        %v7474 = vadd.f32 %v7461, %v7473
        %v7475 = vpop.f32.mrf.mxu0
        %7476 = vdwg.mxu0
        %7477 = vmatpush.bf16.msra.mxu0 %v6302
        %7478 = vmatpush.bf16.msra.mxu0 %v6278
        %7479 = vmatpush.bf16.msra.mxu0 %v6254
        %7480 = vmatpush.bf16.msra.mxu0 %v6230
        %7481 = vmatpush.bf16.msra.mxu0 %v6206
        %7482 = vmatpush.bf16.msra.mxu0 %v6182
        %7483 = vmatpush.bf16.msra.mxu0 %v6158
        %7484 = vmatpush.bf16.msra.mxu0 %v6134
        %7485 = vmatmul.bf16.gmra.mxu0 %v4519
        %v7486 = vpop.f32.mrf.mxu0
        %v7487 = vadd.f32 %v4934, %v7486
        %v7488 = vpop.f32.mrf.mxu0
        %7489 = vdwg.mxu0
        %7490 = vmatpush.bf16.msra.mxu0 %v6494
        %7491 = vmatpush.bf16.msra.mxu0 %v6470
        %7492 = vmatpush.bf16.msra.mxu0 %v6446
        %7493 = vmatpush.bf16.msra.mxu0 %v6422
        %7494 = vmatpush.bf16.msra.mxu0 %v6398
        %7495 = vmatpush.bf16.msra.mxu0 %v6374
        %7496 = vmatpush.bf16.msra.mxu0 %v6350
        %7497 = vmatpush.bf16.msra.mxu0 %v6326
        %7498 = vmatmul.bf16.gmra.mxu0 %v4520
        %v7499 = vpop.f32.mrf.mxu0
        %v7500 = vadd.f32 %v7487, %v7499
        %v7501 = vpop.f32.mrf.mxu0
        %7502 = vdwg.mxu0
        %7503 = vst [vmem:[%s727] sm:$0xff] %v6902
        %7504 = vst [vmem:[%s727 + $0x8] sm:$0xff] %v6928
        %7505 = vst [vmem:[%s727 + $0x10] sm:$0xff] %v6954
        %7506 = vst [vmem:[%s727 + $0x18] sm:$0xff] %v6980
        %7507 = vst [vmem:[%s727 + $0x20] sm:$0xff] %v7006
        %7508 = vst [vmem:[%s727 + $0x28] sm:$0xff] %v7032
        %7509 = vst [vmem:[%s727 + $0x30] sm:$0xff] %v7058
        %7510 = vst [vmem:[%s727 + $0x38] sm:$0xff] %v7084
        %7511 = vst [vmem:[%s727 + $0x40] sm:$0xff] %v7110
        %7512 = vst [vmem:[%s727 + $0x48] sm:$0xff] %v7136
        %7513 = vst [vmem:[%s727 + $0x50] sm:$0xff] %v7162
        %7514 = vst [vmem:[%s727 + $0x58] sm:$0xff] %v7188
        %7515 = vst [vmem:[%s727 + $0x60] sm:$0xff] %v7214
        %7516 = vst [vmem:[%s727 + $0x68] sm:$0xff] %v7240
        %7517 = vst [vmem:[%s727 + $0x70] sm:$0xff] %v7266
        %7518 = vst [vmem:[%s727 + $0x78] sm:$0xff] %v7292
        %7519 = vst [vmem:[%s727 + $0x80] sm:$0xff] %v7318
        %7520 = vst [vmem:[%s727 + $0x88] sm:$0xff] %v7344
        %7521 = vst [vmem:[%s727 + $0x90] sm:$0xff] %v7370
        %7522 = vst [vmem:[%s727 + $0x98] sm:$0xff] %v7396
        %7523 = vst [vmem:[%s727 + $0xa0] sm:$0xff] %v7422
        %7524 = vst [vmem:[%s727 + $0xa8] sm:$0xff] %v7448
        %7525 = vst [vmem:[%s727 + $0xb0] sm:$0xff] %v7474
        %7526 = vst [vmem:[%s727 + $0xb8] sm:$0xff] %v7500
        %s7527 = sand.u32 %s367, 1
        %s7528 = scalar_lea.sflag [#allocation4], %s7527
        %s7529 = sand.u32 %s367, 1
        %s7530 = smul.addr %s7529, 192
        %s7531 = scalar_lea.vmem [#allocation26], %s7530
        // Predicated region
        $region141: #{tpu_custom_call.1} parent=79 // pred_check
          %p7532 = pneg %p377
        $region142: #{tpu_custom_call.1} parent=79 // pred_check_branch
          %7534 = sbr.rel (%p7532) target = $region144
        $region143: #{tpu_custom_call.1} parent=79 // pred_region
          %7536 = vsyncadd %s7528, 0
          %s7537 = smul.addr %s39, 24
          %s7538 = smul.addr %s7537, 8
          %s7539 = scalar_lea.hbm %s15, %s7538
          %s7541 = sshll.u32 %s7531, 4
          %s7542 = int_to_ptr.vmem [resolvable:$true] %s7541
          %s7543 = sshll.u32 %s7539, 4
          %s7544 = int_to_ptr.hbm [resolvable:$true] %s7543
          %7546 = dma.vmem_to_hbm [thread:$0]  %s7542, 3072, %s7544, %s7528
        $region144: #{tpu_custom_call.1} parent=79 // pred_fallthru
          _
      $region80: #{tpu_custom_call.1} parent=5 // pred_fallthru
        _
      %p7547 = scmp.le.s32.totalorder 2, %s34
      // Predicated region
      $region145: #{tpu_custom_call.1} parent=5 // pred_check
        %p7548 = pneg %p7547
      $region146: #{tpu_custom_call.1} parent=5 // pred_check_branch
        %7550 = sbr.rel (%p7548) target = $region148
      $region147: #{tpu_custom_call.1} parent=5 // pred_region
        %s7551 = ssub.s32 %s34, 2
        // Predicated region
        $region149: #{tpu_custom_call.1} parent=147 // pred_check
          %p7552 = pneg %p383
        $region150: #{tpu_custom_call.1} parent=147 // pred_check_branch
          %7554 = sbr.rel (%p7552) target = $region152
        $region151: #{tpu_custom_call.1} parent=147 // pred_region
          %s7555 = sand.u32 %s368, 1
          %s7556 = scalar_lea.sflag [#allocation4], %s7555
          %s7557 = sand.u32 %s368, 1
          %s7558 = smul.addr %s7557, 192
          %s7559 = scalar_lea.vmem [#allocation26], %s7558
          %7561 = dma.done %s7556, 3072
        $region152: #{tpu_custom_call.1} parent=147 // pred_fallthru
          _
      $region148: #{tpu_custom_call.1} parent=5 // pred_fallthru
        _
    $region6: #{tpu_custom_call.1} parent=1 // loop_footer
      %s38 = sadd.s32 1, %s34
    $region7: #{tpu_custom_call.1} parent=1 // loop_footer_branch
      %33 = sbr.rel target = $region3
    $region8: #{tpu_custom_call.1} parent=1 // loop_exit
      _
    %7562 = vsyncpa [#allocation3], 1
    %s7563 = scalar_lea.sflag [#allocation3], 1
    %7564 = vsyncpa %s7563, 1
    %7565 = vsyncpa [#allocation6], 1
    %7566 = vsyncpa [#allocation9], 1
    %7567 = vsyncpa [#allocation12], 1
    %7568 = vsyncpa [#allocation15], 1
    %7569 = vsyncpa [#allocation18], 1
    %7570 = vsyncpa [#allocation21], 1
    %7571 = vsyncpa [#allocation24], 1
    %7572 = vsyncpa [#allocation4], 1
    %s7573 = scalar_lea.sflag [#allocation4], 1
    %7574 = vsyncpa %s7573, 1

</llo_original>
